<compile_context>
chip_gen: v5e
topology: v5e:2x2
jax: 0.10.0
libtpu: 0.0.40
codegen_flags: <defaults>
</compile_context>

<pallas_src>
import functools

import jax
import jax.numpy as jnp
from jax.experimental import pallas as pl
from jax.experimental.pallas import tpu as pltpu


# ----------------------------------------------------------------------------
# In-kernel helpers: only contiguous static slices, concatenation, broadcasts
# and 2-D dots are used (robust Mosaic lowering).  They operate on VMEM values.
# ----------------------------------------------------------------------------
def _conv_s1(xp, w_mat, bias, k, slope):
    """Stride-1 'valid' conv on a single (already zero-padded) image.

    xp:    (Hp, Wp, Cin)   f32 value
    w_mat: (k*k*Cin, Cout) bf16, rows ordered (kh, kw, cin)
    bias:  (1, Cout)       f32
    returns (Ho, Wo, Cout) f32
    """
    hp, wp, _ = xp.shape
    ho, wo = hp - k + 1, wp - k + 1
    # fused im2col: k*k shifted slabs concatenated along the channel (lane) dim
    pieces = [xp[kh:kh + ho, kw:kw + wo, :]
              for kh in range(k) for kw in range(k)]
    patches = jnp.concatenate(pieces, axis=-1)            # (Ho, Wo, k*k*Cin)
    rows = []
    for r in range(ho):
        acc = jnp.dot(patches[r].astype(jnp.bfloat16), w_mat,
                      preferred_element_type=jnp.float32)  # bf16 MXU, f32 acc
        acc = acc + bias                                    # f32 epilogue
        if slope is not None:
            acc = jnp.where(acc >= 0.0, acc, slope * acc)   # LeakyReLU(0.2)
        rows.append(acc[None])                              # (1, Wo, Cout)
    return jnp.concatenate(rows, axis=0)                    # (Ho, Wo, Cout)


def _zero_pad_hw(x, p):
    """Zero pad H and W of a (H, W, C) value by p (concat-based, in VMEM)."""
    if p == 0:
        return x
    h, w, c = x.shape
    zc = jnp.zeros((h, p, c), x.dtype)
    x = jnp.concatenate([zc, x, zc], axis=1)
    zr = jnp.zeros((p, w + 2 * p, c), x.dtype)
    return jnp.concatenate([zr, x, zr], axis=0)


def _space_to_depth2(x):
    """(H, W, C) -> (H//2, W//2, 4C); channel order (dh, dw, c). H, W even."""
    def _rows(a, par):
        return jnp.concatenate(
            [a[i:i + 1] for i in range(par, a.shape[0], 2)], axis=0)

    def _cols(a, par):
        return jnp.concatenate(
            [a[:, j:j + 1, :] for j in range(par, a.shape[1], 2)], axis=1)

    xe, xo = _rows(x, 0), _rows(x, 1)
    return jnp.concatenate(
        [_cols(xe, 0), _cols(xe, 1), _cols(xo, 0), _cols(xo, 1)], axis=-1)


# ----------------------------------------------------------------------------
# Pallas kernels
# ----------------------------------------------------------------------------
def _conv_layer_kernel(x_ref, w_ref, b_ref, o_ref, *, k, slope):
    # x_ref: (1, Hp, Wp, Cin) bf16 block for one batch element.
    x = x_ref[0].astype(jnp.float32)
    out = _conv_s1(x, w_ref[...], b_ref[...], k, slope)
    o_ref[0] = out.astype(o_ref.dtype)


def _tail_kernel(x_ref, w3_ref, b3_ref, w4_ref, b4_ref, w5_ref, b5_ref,
                 w6_ref, b6_ref, o_ref, *, slope):
    # Blocks 3..6 fused: every intermediate stays in VMEM / vregs.
    h = x_ref[0].astype(jnp.float32)                       # (5, 5, 64)
    h = _conv_s1(h, w3_ref[...], b3_ref[...], 2, slope)    # (4, 4, 32)
    h = _space_to_depth2(_zero_pad_hw(h, 1))               # (3, 3, 128)
    h = _conv_s1(h, w4_ref[...], b4_ref[...], 2, slope)    # (2, 2, 32)
    h = _space_to_depth2(_zero_pad_hw(h, 1))               # (2, 2, 128)
    h = _conv_s1(h, w5_ref[...], b5_ref[...], 2, slope)    # (1, 1, 32)
    h = _zero_pad_hw(h, 3)                                 # (7, 7, 32)
    h = _conv_s1(h, w6_ref[...], b6_ref[...], 7, None)     # (1, 1, 1)
    o_ref[0] = h.astype(o_ref.dtype)


# ----------------------------------------------------------------------------
# pallas_call wrappers
# ----------------------------------------------------------------------------
def conv_layer(x, w_mat, bias, k, slope, out_dtype):
    """Fused-im2col stride-1 conv. x: (N, Hp, Wp, Cin) bf16, already padded."""
    n, hp, wp, cin = x.shape
    ho, wo = hp - k + 1, wp - k + 1
    cout = w_mat.shape[1]
    kernel = functools.partial(_conv_layer_kernel, k=k, slope=slope)
    return pl.pallas_call(
        kernel,
        out_shape=jax.ShapeDtypeStruct((n, ho, wo, cout), out_dtype),
        grid=(n,),
        in_specs=[
            pl.BlockSpec((1, hp, wp, cin), lambda i: (i, 0, 0, 0)),
            pl.BlockSpec(w_mat.shape, lambda i: (0, 0)),   # resident weight
            pl.BlockSpec(bias.shape, lambda i: (0, 0)),    # resident bias
        ],
        out_specs=pl.BlockSpec((1, ho, wo, cout), lambda i: (i, 0, 0, 0)),
        compiler_params=pltpu.CompilerParams(
            dimension_semantics=("parallel",)),
    )(x, w_mat, bias)


def tail_fused(x, tail_params, slope):
    """Fused blocks 3..6. x: (N, Hp, Hp, 64) bf16 = block3 input (padded+s2d)."""
    n, hp, wp, cin = x.shape
    assert hp == wp
    # shape inference for conv2 -> (pad1+s2d) -> conv2 -> (pad1+s2d) -> conv2
    # -> pad3 -> conv7
    h = hp - 1
    assert h % 2 == 0
    h = (h + 2) // 2 - 1
    assert h % 2 == 0
    h = (h + 2) // 2 - 1          # block5 output; 7x7 head preserves this size
    ho = h

    kernel = functools.partial(_tail_kernel, slope=slope)
    flat = [x]
    in_specs = [pl.BlockSpec((1, hp, wp, cin), lambda i: (i, 0, 0, 0))]
    for w_mat, bias in tail_params:
        flat += [w_mat, bias]
        in_specs += [pl.BlockSpec(w_mat.shape, lambda i: (0, 0)),
                     pl.BlockSpec(bias.shape, lambda i: (0, 0))]
    return pl.pallas_call(
        kernel,
        out_shape=jax.ShapeDtypeStruct((n, ho, ho, 1), jnp.float32),
        grid=(n,),
        in_specs=in_specs,
        out_specs=pl.BlockSpec((1, ho, ho, 1), lambda i: (i, 0, 0, 0)),
        compiler_params=pltpu.CompilerParams(
            dimension_semantics=("parallel",)),
    )(*flat)


# ----------------------------------------------------------------------------
# XLA-side glue (tiny activations): zero pad + space-to-depth for stride-2
# ----------------------------------------------------------------------------
def _pad_and_s2d(x, padding, stride):
    x = jnp.pad(x, ((0, 0), (padding, padding), (padding, padding), (0, 0)))
    if stride == 2:
        n, h, w, c = x.shape
        assert h % 2 == 0 and w % 2 == 0
        x = x.reshape(n, h // 2, 2, w // 2, 2, c)
        x = x.transpose(0, 1, 3, 2, 4, 5)        # (n, i, j, dh, dw, c)
        x = x.reshape(n, h // 2, w // 2, 4 * c)
    return x


# ----------------------------------------------------------------------------
# Parameters (deterministic init) + spectral normalization + weight packing
# ----------------------------------------------------------------------------
def spectral_normalize(w, n_iter=5):
    # TODO(synk): torch spectral_norm does 1 power iteration per forward with a
    # persistent random u; here sigma is approximated once at init.
    cout = w.shape[0]
    w_mat = w.reshape(cout, -1)
    u = jnp.ones((cout,), jnp.float32) / jnp.sqrt(float(cout))
    v = None
    for _ in range(n_iter):
        v = w_mat.T @ u
        v = v / (jnp.linalg.norm(v) + 1e-12)
        u = w_mat @ v
        u = u / (jnp.linalg.norm(u) + 1e-12)
    sigma = u @ (w_mat @ v)
    return w / sigma


def init_conv_params(key, cin, cout, k):
    wkey, bkey = jax.random.split(key)
    fan_in = cin * k * k
    w = jax.random.normal(wkey, (cout, cin, k, k), jnp.float32) / jnp.sqrt(fan_in)
    b = jax.random.normal(bkey, (cout,), jnp.float32) * 0.01
    return spectral_normalize(w), b


def prepare_layer_params(w_torch, bias, stride):
    """(Cout, Cin, KH, KW) torch weight -> (K'*K'*Cin', Cout) bf16 matmul weight.

    Stride-2 layers are converted to stride-1 convs over a space-to-depth
    input, so their weights are re-packed with channel order (dh, dw, cin).
    """
    cout, cin, kh, kw = w_torch.shape
    w_t = jnp.transpose(w_torch, (2, 3, 1, 0))            # (KH, KW, Cin, Cout)
    if stride == 2:
        assert kh == 4 and kw == 4
        w_t = w_t.reshape(2, 2, 2, 2, cin, cout)           # (a, dh, b, dw, ci, co)
        w_t = w_t.transpose(0, 2, 1, 3, 4, 5)              # (a, b, dh, dw, ci, co)
        k_eff, c_eff = 2, 4 * cin
    else:
        k_eff, c_eff = kh, cin
    w_mat = w_t.reshape(k_eff * k_eff * c_eff, cout).astype(jnp.bfloat16)
    b = bias.reshape(1, cout).astype(jnp.float32)
    return w_mat, b, k_eff


class Opt:
    in_channels = 1
    out_channels = 3
    start_channels = 8
    pad = "zero"
    activ_d = "lrelu"
    norm_d = "none"   # chosen opt: no norm in discriminator blocks


def init_patch_discriminator(key, opt):
    sc = opt.start_channels
    cfg = [  # (cin, cout, k)
        (opt.in_channels + opt.out_channels, sc, 7),
        (sc, sc * 2, 4),
        (sc * 2, sc * 4, 4),
        (sc * 4, sc * 4, 4),
        (sc * 4, sc * 4, 4),
        (sc * 4, 1, 7),
    ]
    keys = jax.random.split(key, len(cfg))
    return [init_conv_params(kk, cin, cout, ksz)
            for kk, (cin, cout, ksz) in zip(keys, cfg)]


# ----------------------------------------------------------------------------
# Forward pass
# ----------------------------------------------------------------------------
LRELU_SLOPE = 0.2
# (kernel, stride, pad, lrelu?) for the 6 Conv2dLayer blocks
_BLOCK_CFG = [(7, 1, 3, True), (4, 2, 1, True), (4, 2, 1, True),
              (4, 2, 1, True), (4, 2, 1, True), (7, 1, 3, False)]


def patch_discriminator_forward(params, gray_nchw, img_nchw):
    # torch.cat((gray, img), 1) along channel, then NHWC + bf16 for the MXU path
    x = jnp.concatenate([gray_nchw, img_nchw], axis=1)
    x = jnp.transpose(x, (0, 2, 3, 1)).astype(jnp.bfloat16)

    prep = [prepare_layer_params(w, b, s)
            for (w, b), (_, s, _, _) in zip(params, _BLOCK_CFG)]

    # blocks 1 and 2: standalone fused-im2col conv kernels (largest M)
    for idx in (0, 1):
        _, s, p, _ = _BLOCK_CFG[idx]
        w_mat, bias, k_eff = prep[idx]
        x = _pad_and_s2d(x, p, s)
        x = conv_layer(x, w_mat, bias, k_eff, LRELU_SLOPE, jnp.bfloat16)

    # blocks 3..6: one fused pallas_call, intermediates never leave VMEM
    x = _pad_and_s2d(x, _BLOCK_CFG[2][2], _BLOCK_CFG[2][1])
    out = tail_fused(x, [(prep[i][0], prep[i][1]) for i in range(2, 6)],
                     LRELU_SLOPE)

    return jnp.transpose(out, (0, 3, 1, 2))                 # back to NCHW


if __name__ == "__main__":
    key = jax.random.PRNGKey(0)
    pkey, gkey, ikey = jax.random.split(key, 3)

    opt = Opt()
    params = init_patch_discriminator(pkey, opt)

    N, H, W = 2, 16, 16
    gray = jax.random.normal(gkey, (N, opt.in_channels, H, W), jnp.float32)
    img = jax.random.normal(ikey, (N, opt.out_channels, H, W), jnp.float32)

    fwd = jax.jit(patch_discriminator_forward)
    out = fwd(params, gray, img)
    out = jax.block_until_ready(out)
    assert out.shape == (N, 1, 1, 1), out.shape
    print("KERNEL_OK")
</pallas_src>

<mosaic_0001>
module attributes {stable_mosaic.version = 11 : i64} {
  func.func @_conv_layer_kernel(%arg0: i32, %arg1: memref<1x22x22x4xbf16, #tpu.memory_space<vmem>>, %arg2: memref<196x8xbf16, #tpu.memory_space<vmem>>, %arg3: memref<1x8xf32, #tpu.memory_space<vmem>>, %arg4: memref<1x16x16x8xbf16, #tpu.memory_space<vmem>>) attributes {dimension_semantics = [#tpu.dimension_semantics<parallel>], iteration_bounds = array<i64: 2>, scalar_prefetch = 0 : i64, scratch_operands = 0 : i64, tpu.core_type = #tpu.core_type<tc>, window_params = [{transform_indices = @transform_0, window_bounds = array<i64: 1, 22, 22, 4>}, {pipeline_mode = #tpu.pipeline_mode<synchronous>, transform_indices = @transform_1, window_bounds = array<i64: 196, 8>}, {pipeline_mode = #tpu.pipeline_mode<synchronous>, transform_indices = @transform_2, window_bounds = array<i64: 1, 8>}, {transform_indices = @transform_3, window_bounds = array<i64: 1, 16, 16, 8>}]} {
    %c0 = arith.constant 0 : index
    %c0_0 = arith.constant 0 : index
    %c0_1 = arith.constant 0 : index
    %c0_2 = arith.constant 0 : index
    %0 = vector.load %arg1[%c0, %c0_0, %c0_1, %c0_2] : memref<1x22x22x4xbf16, #tpu.memory_space<vmem>>, vector<1x22x22x4xbf16>
    %1 = vector.shape_cast %0 : vector<1x22x22x4xbf16> to vector<22x22x4xbf16>
    %2 = arith.extf %1 : vector<22x22x4xbf16> to vector<22x22x4xf32>
    %c0_3 = arith.constant 0 : index
    %c0_4 = arith.constant 0 : index
    %3 = vector.load %arg2[%c0_3, %c0_4] : memref<196x8xbf16, #tpu.memory_space<vmem>>, vector<196x8xbf16>
    %c0_5 = arith.constant 0 : index
    %c0_6 = arith.constant 0 : index
    %4 = vector.load %arg3[%c0_5, %c0_6] : memref<1x8xf32, #tpu.memory_space<vmem>>, vector<1x8xf32>
    %5 = vector.extract_strided_slice %2 {offsets = [0, 0, 0], sizes = [16, 16, 4], strides = [1, 1, 1]} : vector<22x22x4xf32> to vector<16x16x4xf32>
    %6 = vector.extract_strided_slice %2 {offsets = [0, 1, 0], sizes = [16, 16, 4], strides = [1, 1, 1]} : vector<22x22x4xf32> to vector<16x16x4xf32>
    %7 = vector.extract_strided_slice %2 {offsets = [0, 2, 0], sizes = [16, 16, 4], strides = [1, 1, 1]} : vector<22x22x4xf32> to vector<16x16x4xf32>
    %8 = vector.extract_strided_slice %2 {offsets = [0, 3, 0], sizes = [16, 16, 4], strides = [1, 1, 1]} : vector<22x22x4xf32> to vector<16x16x4xf32>
    %9 = vector.extract_strided_slice %2 {offsets = [0, 4, 0], sizes = [16, 16, 4], strides = [1, 1, 1]} : vector<22x22x4xf32> to vector<16x16x4xf32>
    %10 = vector.extract_strided_slice %2 {offsets = [0, 5, 0], sizes = [16, 16, 4], strides = [1, 1, 1]} : vector<22x22x4xf32> to vector<16x16x4xf32>
    %11 = vector.extract_strided_slice %2 {offsets = [0, 6, 0], sizes = [16, 16, 4], strides = [1, 1, 1]} : vector<22x22x4xf32> to vector<16x16x4xf32>
    %12 = vector.extract_strided_slice %2 {offsets = [1, 0, 0], sizes = [16, 16, 4], strides = [1, 1, 1]} : vector<22x22x4xf32> to vector<16x16x4xf32>
    %13 = vector.extract_strided_slice %2 {offsets = [1, 1, 0], sizes = [16, 16, 4], strides = [1, 1, 1]} : vector<22x22x4xf32> to vector<16x16x4xf32>
    %14 = vector.extract_strided_slice %2 {offsets = [1, 2, 0], sizes = [16, 16, 4], strides = [1, 1, 1]} : vector<22x22x4xf32> to vector<16x16x4xf32>
    %15 = vector.extract_strided_slice %2 {offsets = [1, 3, 0], sizes = [16, 16, 4], strides = [1, 1, 1]} : vector<22x22x4xf32> to vector<16x16x4xf32>
    %16 = vector.extract_strided_slice %2 {offsets = [1, 4, 0], sizes = [16, 16, 4], strides = [1, 1, 1]} : vector<22x22x4xf32> to vector<16x16x4xf32>
    %17 = vector.extract_strided_slice %2 {offsets = [1, 5, 0], sizes = [16, 16, 4], strides = [1, 1, 1]} : vector<22x22x4xf32> to vector<16x16x4xf32>
    %18 = vector.extract_strided_slice %2 {offsets = [1, 6, 0], sizes = [16, 16, 4], strides = [1, 1, 1]} : vector<22x22x4xf32> to vector<16x16x4xf32>
    %19 = vector.extract_strided_slice %2 {offsets = [2, 0, 0], sizes = [16, 16, 4], strides = [1, 1, 1]} : vector<22x22x4xf32> to vector<16x16x4xf32>
    %20 = vector.extract_strided_slice %2 {offsets = [2, 1, 0], sizes = [16, 16, 4], strides = [1, 1, 1]} : vector<22x22x4xf32> to vector<16x16x4xf32>
    %21 = vector.extract_strided_slice %2 {offsets = [2, 2, 0], sizes = [16, 16, 4], strides = [1, 1, 1]} : vector<22x22x4xf32> to vector<16x16x4xf32>
    %22 = vector.extract_strided_slice %2 {offsets = [2, 3, 0], sizes = [16, 16, 4], strides = [1, 1, 1]} : vector<22x22x4xf32> to vector<16x16x4xf32>
    %23 = vector.extract_strided_slice %2 {offsets = [2, 4, 0], sizes = [16, 16, 4], strides = [1, 1, 1]} : vector<22x22x4xf32> to vector<16x16x4xf32>
    %24 = vector.extract_strided_slice %2 {offsets = [2, 5, 0], sizes = [16, 16, 4], strides = [1, 1, 1]} : vector<22x22x4xf32> to vector<16x16x4xf32>
    %25 = vector.extract_strided_slice %2 {offsets = [2, 6, 0], sizes = [16, 16, 4], strides = [1, 1, 1]} : vector<22x22x4xf32> to vector<16x16x4xf32>
    %26 = vector.extract_strided_slice %2 {offsets = [3, 0, 0], sizes = [16, 16, 4], strides = [1, 1, 1]} : vector<22x22x4xf32> to vector<16x16x4xf32>
    %27 = vector.extract_strided_slice %2 {offsets = [3, 1, 0], sizes = [16, 16, 4], strides = [1, 1, 1]} : vector<22x22x4xf32> to vector<16x16x4xf32>
    %28 = vector.extract_strided_slice %2 {offsets = [3, 2, 0], sizes = [16, 16, 4], strides = [1, 1, 1]} : vector<22x22x4xf32> to vector<16x16x4xf32>
    %29 = vector.extract_strided_slice %2 {offsets = [3, 3, 0], sizes = [16, 16, 4], strides = [1, 1, 1]} : vector<22x22x4xf32> to vector<16x16x4xf32>
    %30 = vector.extract_strided_slice %2 {offsets = [3, 4, 0], sizes = [16, 16, 4], strides = [1, 1, 1]} : vector<22x22x4xf32> to vector<16x16x4xf32>
    %31 = vector.extract_strided_slice %2 {offsets = [3, 5, 0], sizes = [16, 16, 4], strides = [1, 1, 1]} : vector<22x22x4xf32> to vector<16x16x4xf32>
    %32 = vector.extract_strided_slice %2 {offsets = [3, 6, 0], sizes = [16, 16, 4], strides = [1, 1, 1]} : vector<22x22x4xf32> to vector<16x16x4xf32>
    %33 = vector.extract_strided_slice %2 {offsets = [4, 0, 0], sizes = [16, 16, 4], strides = [1, 1, 1]} : vector<22x22x4xf32> to vector<16x16x4xf32>
    %34 = vector.extract_strided_slice %2 {offsets = [4, 1, 0], sizes = [16, 16, 4], strides = [1, 1, 1]} : vector<22x22x4xf32> to vector<16x16x4xf32>
    %35 = vector.extract_strided_slice %2 {offsets = [4, 2, 0], sizes = [16, 16, 4], strides = [1, 1, 1]} : vector<22x22x4xf32> to vector<16x16x4xf32>
    %36 = vector.extract_strided_slice %2 {offsets = [4, 3, 0], sizes = [16, 16, 4], strides = [1, 1, 1]} : vector<22x22x4xf32> to vector<16x16x4xf32>
    %37 = vector.extract_strided_slice %2 {offsets = [4, 4, 0], sizes = [16, 16, 4], strides = [1, 1, 1]} : vector<22x22x4xf32> to vector<16x16x4xf32>
    %38 = vector.extract_strided_slice %2 {offsets = [4, 5, 0], sizes = [16, 16, 4], strides = [1, 1, 1]} : vector<22x22x4xf32> to vector<16x16x4xf32>
    %39 = vector.extract_strided_slice %2 {offsets = [4, 6, 0], sizes = [16, 16, 4], strides = [1, 1, 1]} : vector<22x22x4xf32> to vector<16x16x4xf32>
    %40 = vector.extract_strided_slice %2 {offsets = [5, 0, 0], sizes = [16, 16, 4], strides = [1, 1, 1]} : vector<22x22x4xf32> to vector<16x16x4xf32>
    %41 = vector.extract_strided_slice %2 {offsets = [5, 1, 0], sizes = [16, 16, 4], strides = [1, 1, 1]} : vector<22x22x4xf32> to vector<16x16x4xf32>
    %42 = vector.extract_strided_slice %2 {offsets = [5, 2, 0], sizes = [16, 16, 4], strides = [1, 1, 1]} : vector<22x22x4xf32> to vector<16x16x4xf32>
    %43 = vector.extract_strided_slice %2 {offsets = [5, 3, 0], sizes = [16, 16, 4], strides = [1, 1, 1]} : vector<22x22x4xf32> to vector<16x16x4xf32>
    %44 = vector.extract_strided_slice %2 {offsets = [5, 4, 0], sizes = [16, 16, 4], strides = [1, 1, 1]} : vector<22x22x4xf32> to vector<16x16x4xf32>
    %45 = vector.extract_strided_slice %2 {offsets = [5, 5, 0], sizes = [16, 16, 4], strides = [1, 1, 1]} : vector<22x22x4xf32> to vector<16x16x4xf32>
    %46 = vector.extract_strided_slice %2 {offsets = [5, 6, 0], sizes = [16, 16, 4], strides = [1, 1, 1]} : vector<22x22x4xf32> to vector<16x16x4xf32>
    %47 = vector.extract_strided_slice %2 {offsets = [6, 0, 0], sizes = [16, 16, 4], strides = [1, 1, 1]} : vector<22x22x4xf32> to vector<16x16x4xf32>
    %48 = vector.extract_strided_slice %2 {offsets = [6, 1, 0], sizes = [16, 16, 4], strides = [1, 1, 1]} : vector<22x22x4xf32> to vector<16x16x4xf32>
    %49 = vector.extract_strided_slice %2 {offsets = [6, 2, 0], sizes = [16, 16, 4], strides = [1, 1, 1]} : vector<22x22x4xf32> to vector<16x16x4xf32>
    %50 = vector.extract_strided_slice %2 {offsets = [6, 3, 0], sizes = [16, 16, 4], strides = [1, 1, 1]} : vector<22x22x4xf32> to vector<16x16x4xf32>
    %51 = vector.extract_strided_slice %2 {offsets = [6, 4, 0], sizes = [16, 16, 4], strides = [1, 1, 1]} : vector<22x22x4xf32> to vector<16x16x4xf32>
    %52 = vector.extract_strided_slice %2 {offsets = [6, 5, 0], sizes = [16, 16, 4], strides = [1, 1, 1]} : vector<22x22x4xf32> to vector<16x16x4xf32>
    %53 = vector.extract_strided_slice %2 {offsets = [6, 6, 0], sizes = [16, 16, 4], strides = [1, 1, 1]} : vector<22x22x4xf32> to vector<16x16x4xf32>
    %54 = tpu.concatenate %5, %6, %7, %8, %9, %10, %11, %12, %13, %14, %15, %16, %17, %18, %19, %20 in 2 : vector<16x16x4xf32>, vector<16x16x4xf32>, vector<16x16x4xf32>, vector<16x16x4xf32>, vector<16x16x4xf32>, vector<16x16x4xf32>, vector<16x16x4xf32>, vector<16x16x4xf32>, vector<16x16x4xf32>, vector<16x16x4xf32>, vector<16x16x4xf32>, vector<16x16x4xf32>, vector<16x16x4xf32>, vector<16x16x4xf32>, vector<16x16x4xf32>, vector<16x16x4xf32> -> vector<16x16x64xf32>
    %55 = tpu.concatenate %21, %22, %23, %24, %25, %26, %27, %28, %29, %30, %31, %32, %33, %34, %35, %36 in 2 : vector<16x16x4xf32>, vector<16x16x4xf32>, vector<16x16x4xf32>, vector<16x16x4xf32>, vector<16x16x4xf32>, vector<16x16x4xf32>, vector<16x16x4xf32>, vector<16x16x4xf32>, vector<16x16x4xf32>, vector<16x16x4xf32>, vector<16x16x4xf32>, vector<16x16x4xf32>, vector<16x16x4xf32>, vector<16x16x4xf32>, vector<16x16x4xf32>, vector<16x16x4xf32> -> vector<16x16x64xf32>
    %56 = tpu.concatenate %37, %38, %39, %40, %41, %42, %43, %44, %45, %46, %47, %48, %49, %50, %51, %52 in 2 : vector<16x16x4xf32>, vector<16x16x4xf32>, vector<16x16x4xf32>, vector<16x16x4xf32>, vector<16x16x4xf32>, vector<16x16x4xf32>, vector<16x16x4xf32>, vector<16x16x4xf32>, vector<16x16x4xf32>, vector<16x16x4xf32>, vector<16x16x4xf32>, vector<16x16x4xf32>, vector<16x16x4xf32>, vector<16x16x4xf32>, vector<16x16x4xf32>, vector<16x16x4xf32> -> vector<16x16x64xf32>
    %57 = tpu.concatenate %54, %55, %56, %53 in 2 : vector<16x16x64xf32>, vector<16x16x64xf32>, vector<16x16x64xf32>, vector<16x16x4xf32> -> vector<16x16x196xf32>
    %58 = vector.extract_strided_slice %57 {offsets = [0, 0, 0], sizes = [1, 16, 196], strides = [1, 1, 1]} : vector<16x16x196xf32> to vector<1x16x196xf32>
    %59 = vector.shape_cast %58 : vector<1x16x196xf32> to vector<16x196xf32>
    %60 = arith.truncf %59 : vector<16x196xf32> to vector<16x196xbf16>
    %cst = arith.constant dense<0.000000e+00> : vector<16x8xf32>
    %61 = tpu.matmul %60, %3, %cst {dimension_numbers = #tpu.dot_dimension_numbers<[1], [0], [0], [1], [0, 0, 1, 1], [], []>} : vector<16x196xbf16>, vector<196x8xbf16>, vector<16x8xf32> -> vector<16x8xf32>
    %62 = vector.broadcast %4 : vector<1x8xf32> to vector<16x8xf32>
    %63 = arith.addf %61, %62 : vector<16x8xf32>
    %cst_7 = arith.constant 0.000000e+00 : f32
    %64 = vector.broadcast %cst_7 : f32 to vector<16x8xf32>
    %65 = arith.cmpf oge, %63, %64 : vector<16x8xf32>
    %cst_8 = arith.constant 2.000000e-01 : f32
    %66 = vector.broadcast %cst_8 : f32 to vector<16x8xf32>
    %67 = arith.mulf %66, %63 : vector<16x8xf32>
    %68 = arith.select %65, %63, %67 : vector<16x8xi1>, vector<16x8xf32>
    %69 = vector.shape_cast %68 : vector<16x8xf32> to vector<1x16x8xf32>
    %70 = vector.extract_strided_slice %57 {offsets = [1, 0, 0], sizes = [1, 16, 196], strides = [1, 1, 1]} : vector<16x16x196xf32> to vector<1x16x196xf32>
    %71 = vector.shape_cast %70 : vector<1x16x196xf32> to vector<16x196xf32>
    %72 = arith.truncf %71 : vector<16x196xf32> to vector<16x196xbf16>
    %cst_9 = arith.constant dense<0.000000e+00> : vector<16x8xf32>
    %73 = tpu.matmul %72, %3, %cst_9 {dimension_numbers = #tpu.dot_dimension_numbers<[1], [0], [0], [1], [0, 0, 1, 1], [], []>} : vector<16x196xbf16>, vector<196x8xbf16>, vector<16x8xf32> -> vector<16x8xf32>
    %74 = vector.broadcast %4 : vector<1x8xf32> to vector<16x8xf32>
    %75 = arith.addf %73, %74 : vector<16x8xf32>
    %cst_10 = arith.constant 0.000000e+00 : f32
    %76 = vector.broadcast %cst_10 : f32 to vector<16x8xf32>
    %77 = arith.cmpf oge, %75, %76 : vector<16x8xf32>
    %cst_11 = arith.constant 2.000000e-01 : f32
    %78 = vector.broadcast %cst_11 : f32 to vector<16x8xf32>
    %79 = arith.mulf %78, %75 : vector<16x8xf32>
    %80 = arith.select %77, %75, %79 : vector<16x8xi1>, vector<16x8xf32>
    %81 = vector.shape_cast %80 : vector<16x8xf32> to vector<1x16x8xf32>
    %82 = vector.extract_strided_slice %57 {offsets = [2, 0, 0], sizes = [1, 16, 196], strides = [1, 1, 1]} : vector<16x16x196xf32> to vector<1x16x196xf32>
    %83 = vector.shape_cast %82 : vector<1x16x196xf32> to vector<16x196xf32>
    %84 = arith.truncf %83 : vector<16x196xf32> to vector<16x196xbf16>
    %cst_12 = arith.constant dense<0.000000e+00> : vector<16x8xf32>
    %85 = tpu.matmul %84, %3, %cst_12 {dimension_numbers = #tpu.dot_dimension_numbers<[1], [0], [0], [1], [0, 0, 1, 1], [], []>} : vector<16x196xbf16>, vector<196x8xbf16>, vector<16x8xf32> -> vector<16x8xf32>
    %86 = vector.broadcast %4 : vector<1x8xf32> to vector<16x8xf32>
    %87 = arith.addf %85, %86 : vector<16x8xf32>
    %cst_13 = arith.constant 0.000000e+00 : f32
    %88 = vector.broadcast %cst_13 : f32 to vector<16x8xf32>
    %89 = arith.cmpf oge, %87, %88 : vector<16x8xf32>
    %cst_14 = arith.constant 2.000000e-01 : f32
    %90 = vector.broadcast %cst_14 : f32 to vector<16x8xf32>
    %91 = arith.mulf %90, %87 : vector<16x8xf32>
    %92 = arith.select %89, %87, %91 : vector<16x8xi1>, vector<16x8xf32>
    %93 = vector.shape_cast %92 : vector<16x8xf32> to vector<1x16x8xf32>
    %94 = vector.extract_strided_slice %57 {offsets = [3, 0, 0], sizes = [1, 16, 196], strides = [1, 1, 1]} : vector<16x16x196xf32> to vector<1x16x196xf32>
    %95 = vector.shape_cast %94 : vector<1x16x196xf32> to vector<16x196xf32>
    %96 = arith.truncf %95 : vector<16x196xf32> to vector<16x196xbf16>
    %cst_15 = arith.constant dense<0.000000e+00> : vector<16x8xf32>
    %97 = tpu.matmul %96, %3, %cst_15 {dimension_numbers = #tpu.dot_dimension_numbers<[1], [0], [0], [1], [0, 0, 1, 1], [], []>} : vector<16x196xbf16>, vector<196x8xbf16>, vector<16x8xf32> -> vector<16x8xf32>
    %98 = vector.broadcast %4 : vector<1x8xf32> to vector<16x8xf32>
    %99 = arith.addf %97, %98 : vector<16x8xf32>
    %cst_16 = arith.constant 0.000000e+00 : f32
    %100 = vector.broadcast %cst_16 : f32 to vector<16x8xf32>
    %101 = arith.cmpf oge, %99, %100 : vector<16x8xf32>
    %cst_17 = arith.constant 2.000000e-01 : f32
    %102 = vector.broadcast %cst_17 : f32 to vector<16x8xf32>
    %103 = arith.mulf %102, %99 : vector<16x8xf32>
    %104 = arith.select %101, %99, %103 : vector<16x8xi1>, vector<16x8xf32>
    %105 = vector.shape_cast %104 : vector<16x8xf32> to vector<1x16x8xf32>
    %106 = vector.extract_strided_slice %57 {offsets = [4, 0, 0], sizes = [1, 16, 196], strides = [1, 1, 1]} : vector<16x16x196xf32> to vector<1x16x196xf32>
    %107 = vector.shape_cast %106 : vector<1x16x196xf32> to vector<16x196xf32>
    %108 = arith.truncf %107 : vector<16x196xf32> to vector<16x196xbf16>
    %cst_18 = arith.constant dense<0.000000e+00> : vector<16x8xf32>
    %109 = tpu.matmul %108, %3, %cst_18 {dimension_numbers = #tpu.dot_dimension_numbers<[1], [0], [0], [1], [0, 0, 1, 1], [], []>} : vector<16x196xbf16>, vector<196x8xbf16>, vector<16x8xf32> -> vector<16x8xf32>
    %110 = vector.broadcast %4 : vector<1x8xf32> to vector<16x8xf32>
    %111 = arith.addf %109, %110 : vector<16x8xf32>
    %cst_19 = arith.constant 0.000000e+00 : f32
    %112 = vector.broadcast %cst_19 : f32 to vector<16x8xf32>
    %113 = arith.cmpf oge, %111, %112 : vector<16x8xf32>
    %cst_20 = arith.constant 2.000000e-01 : f32
    %114 = vector.broadcast %cst_20 : f32 to vector<16x8xf32>
    %115 = arith.mulf %114, %111 : vector<16x8xf32>
    %116 = arith.select %113, %111, %115 : vector<16x8xi1>, vector<16x8xf32>
    %117 = vector.shape_cast %116 : vector<16x8xf32> to vector<1x16x8xf32>
    %118 = vector.extract_strided_slice %57 {offsets = [5, 0, 0], sizes = [1, 16, 196], strides = [1, 1, 1]} : vector<16x16x196xf32> to vector<1x16x196xf32>
    %119 = vector.shape_cast %118 : vector<1x16x196xf32> to vector<16x196xf32>
    %120 = arith.truncf %119 : vector<16x196xf32> to vector<16x196xbf16>
    %cst_21 = arith.constant dense<0.000000e+00> : vector<16x8xf32>
    %121 = tpu.matmul %120, %3, %cst_21 {dimension_numbers = #tpu.dot_dimension_numbers<[1], [0], [0], [1], [0, 0, 1, 1], [], []>} : vector<16x196xbf16>, vector<196x8xbf16>, vector<16x8xf32> -> vector<16x8xf32>
    %122 = vector.broadcast %4 : vector<1x8xf32> to vector<16x8xf32>
    %123 = arith.addf %121, %122 : vector<16x8xf32>
    %cst_22 = arith.constant 0.000000e+00 : f32
    %124 = vector.broadcast %cst_22 : f32 to vector<16x8xf32>
    %125 = arith.cmpf oge, %123, %124 : vector<16x8xf32>
    %cst_23 = arith.constant 2.000000e-01 : f32
    %126 = vector.broadcast %cst_23 : f32 to vector<16x8xf32>
    %127 = arith.mulf %126, %123 : vector<16x8xf32>
    %128 = arith.select %125, %123, %127 : vector<16x8xi1>, vector<16x8xf32>
    %129 = vector.shape_cast %128 : vector<16x8xf32> to vector<1x16x8xf32>
    %130 = vector.extract_strided_slice %57 {offsets = [6, 0, 0], sizes = [1, 16, 196], strides = [1, 1, 1]} : vector<16x16x196xf32> to vector<1x16x196xf32>
    %131 = vector.shape_cast %130 : vector<1x16x196xf32> to vector<16x196xf32>
    %132 = arith.truncf %131 : vector<16x196xf32> to vector<16x196xbf16>
    %cst_24 = arith.constant dense<0.000000e+00> : vector<16x8xf32>
    %133 = tpu.matmul %132, %3, %cst_24 {dimension_numbers = #tpu.dot_dimension_numbers<[1], [0], [0], [1], [0, 0, 1, 1], [], []>} : vector<16x196xbf16>, vector<196x8xbf16>, vector<16x8xf32> -> vector<16x8xf32>
    %134 = vector.broadcast %4 : vector<1x8xf32> to vector<16x8xf32>
    %135 = arith.addf %133, %134 : vector<16x8xf32>
    %cst_25 = arith.constant 0.000000e+00 : f32
    %136 = vector.broadcast %cst_25 : f32 to vector<16x8xf32>
    %137 = arith.cmpf oge, %135, %136 : vector<16x8xf32>
    %cst_26 = arith.constant 2.000000e-01 : f32
    %138 = vector.broadcast %cst_26 : f32 to vector<16x8xf32>
    %139 = arith.mulf %138, %135 : vector<16x8xf32>
    %140 = arith.select %137, %135, %139 : vector<16x8xi1>, vector<16x8xf32>
    %141 = vector.shape_cast %140 : vector<16x8xf32> to vector<1x16x8xf32>
    %142 = vector.extract_strided_slice %57 {offsets = [7, 0, 0], sizes = [1, 16, 196], strides = [1, 1, 1]} : vector<16x16x196xf32> to vector<1x16x196xf32>
    %143 = vector.shape_cast %142 : vector<1x16x196xf32> to vector<16x196xf32>
    %144 = arith.truncf %143 : vector<16x196xf32> to vector<16x196xbf16>
    %cst_27 = arith.constant dense<0.000000e+00> : vector<16x8xf32>
    %145 = tpu.matmul %144, %3, %cst_27 {dimension_numbers = #tpu.dot_dimension_numbers<[1], [0], [0], [1], [0, 0, 1, 1], [], []>} : vector<16x196xbf16>, vector<196x8xbf16>, vector<16x8xf32> -> vector<16x8xf32>
    %146 = vector.broadcast %4 : vector<1x8xf32> to vector<16x8xf32>
    %147 = arith.addf %145, %146 : vector<16x8xf32>
    %cst_28 = arith.constant 0.000000e+00 : f32
    %148 = vector.broadcast %cst_28 : f32 to vector<16x8xf32>
    %149 = arith.cmpf oge, %147, %148 : vector<16x8xf32>
    %cst_29 = arith.constant 2.000000e-01 : f32
    %150 = vector.broadcast %cst_29 : f32 to vector<16x8xf32>
    %151 = arith.mulf %150, %147 : vector<16x8xf32>
    %152 = arith.select %149, %147, %151 : vector<16x8xi1>, vector<16x8xf32>
    %153 = vector.shape_cast %152 : vector<16x8xf32> to vector<1x16x8xf32>
    %154 = vector.extract_strided_slice %57 {offsets = [8, 0, 0], sizes = [1, 16, 196], strides = [1, 1, 1]} : vector<16x16x196xf32> to vector<1x16x196xf32>
    %155 = vector.shape_cast %154 : vector<1x16x196xf32> to vector<16x196xf32>
    %156 = arith.truncf %155 : vector<16x196xf32> to vector<16x196xbf16>
    %cst_30 = arith.constant dense<0.000000e+00> : vector<16x8xf32>
    %157 = tpu.matmul %156, %3, %cst_30 {dimension_numbers = #tpu.dot_dimension_numbers<[1], [0], [0], [1], [0, 0, 1, 1], [], []>} : vector<16x196xbf16>, vector<196x8xbf16>, vector<16x8xf32> -> vector<16x8xf32>
    %158 = vector.broadcast %4 : vector<1x8xf32> to vector<16x8xf32>
    %159 = arith.addf %157, %158 : vector<16x8xf32>
    %cst_31 = arith.constant 0.000000e+00 : f32
    %160 = vector.broadcast %cst_31 : f32 to vector<16x8xf32>
    %161 = arith.cmpf oge, %159, %160 : vector<16x8xf32>
    %cst_32 = arith.constant 2.000000e-01 : f32
    %162 = vector.broadcast %cst_32 : f32 to vector<16x8xf32>
    %163 = arith.mulf %162, %159 : vector<16x8xf32>
    %164 = arith.select %161, %159, %163 : vector<16x8xi1>, vector<16x8xf32>
    %165 = vector.shape_cast %164 : vector<16x8xf32> to vector<1x16x8xf32>
    %166 = vector.extract_strided_slice %57 {offsets = [9, 0, 0], sizes = [1, 16, 196], strides = [1, 1, 1]} : vector<16x16x196xf32> to vector<1x16x196xf32>
    %167 = vector.shape_cast %166 : vector<1x16x196xf32> to vector<16x196xf32>
    %168 = arith.truncf %167 : vector<16x196xf32> to vector<16x196xbf16>
    %cst_33 = arith.constant dense<0.000000e+00> : vector<16x8xf32>
    %169 = tpu.matmul %168, %3, %cst_33 {dimension_numbers = #tpu.dot_dimension_numbers<[1], [0], [0], [1], [0, 0, 1, 1], [], []>} : vector<16x196xbf16>, vector<196x8xbf16>, vector<16x8xf32> -> vector<16x8xf32>
    %170 = vector.broadcast %4 : vector<1x8xf32> to vector<16x8xf32>
    %171 = arith.addf %169, %170 : vector<16x8xf32>
    %cst_34 = arith.constant 0.000000e+00 : f32
    %172 = vector.broadcast %cst_34 : f32 to vector<16x8xf32>
    %173 = arith.cmpf oge, %171, %172 : vector<16x8xf32>
    %cst_35 = arith.constant 2.000000e-01 : f32
    %174 = vector.broadcast %cst_35 : f32 to vector<16x8xf32>
    %175 = arith.mulf %174, %171 : vector<16x8xf32>
    %176 = arith.select %173, %171, %175 : vector<16x8xi1>, vector<16x8xf32>
    %177 = vector.shape_cast %176 : vector<16x8xf32> to vector<1x16x8xf32>
    %178 = vector.extract_strided_slice %57 {offsets = [10, 0, 0], sizes = [1, 16, 196], strides = [1, 1, 1]} : vector<16x16x196xf32> to vector<1x16x196xf32>
    %179 = vector.shape_cast %178 : vector<1x16x196xf32> to vector<16x196xf32>
    %180 = arith.truncf %179 : vector<16x196xf32> to vector<16x196xbf16>
    %cst_36 = arith.constant dense<0.000000e+00> : vector<16x8xf32>
    %181 = tpu.matmul %180, %3, %cst_36 {dimension_numbers = #tpu.dot_dimension_numbers<[1], [0], [0], [1], [0, 0, 1, 1], [], []>} : vector<16x196xbf16>, vector<196x8xbf16>, vector<16x8xf32> -> vector<16x8xf32>
    %182 = vector.broadcast %4 : vector<1x8xf32> to vector<16x8xf32>
    %183 = arith.addf %181, %182 : vector<16x8xf32>
    %cst_37 = arith.constant 0.000000e+00 : f32
    %184 = vector.broadcast %cst_37 : f32 to vector<16x8xf32>
    %185 = arith.cmpf oge, %183, %184 : vector<16x8xf32>
    %cst_38 = arith.constant 2.000000e-01 : f32
    %186 = vector.broadcast %cst_38 : f32 to vector<16x8xf32>
    %187 = arith.mulf %186, %183 : vector<16x8xf32>
    %188 = arith.select %185, %183, %187 : vector<16x8xi1>, vector<16x8xf32>
    %189 = vector.shape_cast %188 : vector<16x8xf32> to vector<1x16x8xf32>
    %190 = vector.extract_strided_slice %57 {offsets = [11, 0, 0], sizes = [1, 16, 196], strides = [1, 1, 1]} : vector<16x16x196xf32> to vector<1x16x196xf32>
    %191 = vector.shape_cast %190 : vector<1x16x196xf32> to vector<16x196xf32>
    %192 = arith.truncf %191 : vector<16x196xf32> to vector<16x196xbf16>
    %cst_39 = arith.constant dense<0.000000e+00> : vector<16x8xf32>
    %193 = tpu.matmul %192, %3, %cst_39 {dimension_numbers = #tpu.dot_dimension_numbers<[1], [0], [0], [1], [0, 0, 1, 1], [], []>} : vector<16x196xbf16>, vector<196x8xbf16>, vector<16x8xf32> -> vector<16x8xf32>
    %194 = vector.broadcast %4 : vector<1x8xf32> to vector<16x8xf32>
    %195 = arith.addf %193, %194 : vector<16x8xf32>
    %cst_40 = arith.constant 0.000000e+00 : f32
    %196 = vector.broadcast %cst_40 : f32 to vector<16x8xf32>
    %197 = arith.cmpf oge, %195, %196 : vector<16x8xf32>
    %cst_41 = arith.constant 2.000000e-01 : f32
    %198 = vector.broadcast %cst_41 : f32 to vector<16x8xf32>
    %199 = arith.mulf %198, %195 : vector<16x8xf32>
    %200 = arith.select %197, %195, %199 : vector<16x8xi1>, vector<16x8xf32>
    %201 = vector.shape_cast %200 : vector<16x8xf32> to vector<1x16x8xf32>
    %202 = vector.extract_strided_slice %57 {offsets = [12, 0, 0], sizes = [1, 16, 196], strides = [1, 1, 1]} : vector<16x16x196xf32> to vector<1x16x196xf32>
    %203 = vector.shape_cast %202 : vector<1x16x196xf32> to vector<16x196xf32>
    %204 = arith.truncf %203 : vector<16x196xf32> to vector<16x196xbf16>
    %cst_42 = arith.constant dense<0.000000e+00> : vector<16x8xf32>
    %205 = tpu.matmul %204, %3, %cst_42 {dimension_numbers = #tpu.dot_dimension_numbers<[1], [0], [0], [1], [0, 0, 1, 1], [], []>} : vector<16x196xbf16>, vector<196x8xbf16>, vector<16x8xf32> -> vector<16x8xf32>
    %206 = vector.broadcast %4 : vector<1x8xf32> to vector<16x8xf32>
    %207 = arith.addf %205, %206 : vector<16x8xf32>
    %cst_43 = arith.constant 0.000000e+00 : f32
    %208 = vector.broadcast %cst_43 : f32 to vector<16x8xf32>
    %209 = arith.cmpf oge, %207, %208 : vector<16x8xf32>
    %cst_44 = arith.constant 2.000000e-01 : f32
    %210 = vector.broadcast %cst_44 : f32 to vector<16x8xf32>
    %211 = arith.mulf %210, %207 : vector<16x8xf32>
    %212 = arith.select %209, %207, %211 : vector<16x8xi1>, vector<16x8xf32>
    %213 = vector.shape_cast %212 : vector<16x8xf32> to vector<1x16x8xf32>
    %214 = vector.extract_strided_slice %57 {offsets = [13, 0, 0], sizes = [1, 16, 196], strides = [1, 1, 1]} : vector<16x16x196xf32> to vector<1x16x196xf32>
    %215 = vector.shape_cast %214 : vector<1x16x196xf32> to vector<16x196xf32>
    %216 = arith.truncf %215 : vector<16x196xf32> to vector<16x196xbf16>
    %cst_45 = arith.constant dense<0.000000e+00> : vector<16x8xf32>
    %217 = tpu.matmul %216, %3, %cst_45 {dimension_numbers = #tpu.dot_dimension_numbers<[1], [0], [0], [1], [0, 0, 1, 1], [], []>} : vector<16x196xbf16>, vector<196x8xbf16>, vector<16x8xf32> -> vector<16x8xf32>
    %218 = vector.broadcast %4 : vector<1x8xf32> to vector<16x8xf32>
    %219 = arith.addf %217, %218 : vector<16x8xf32>
    %cst_46 = arith.constant 0.000000e+00 : f32
    %220 = vector.broadcast %cst_46 : f32 to vector<16x8xf32>
    %221 = arith.cmpf oge, %219, %220 : vector<16x8xf32>
    %cst_47 = arith.constant 2.000000e-01 : f32
    %222 = vector.broadcast %cst_47 : f32 to vector<16x8xf32>
    %223 = arith.mulf %222, %219 : vector<16x8xf32>
    %224 = arith.select %221, %219, %223 : vector<16x8xi1>, vector<16x8xf32>
    %225 = vector.shape_cast %224 : vector<16x8xf32> to vector<1x16x8xf32>
    %226 = vector.extract_strided_slice %57 {offsets = [14, 0, 0], sizes = [1, 16, 196], strides = [1, 1, 1]} : vector<16x16x196xf32> to vector<1x16x196xf32>
    %227 = vector.shape_cast %226 : vector<1x16x196xf32> to vector<16x196xf32>
    %228 = arith.truncf %227 : vector<16x196xf32> to vector<16x196xbf16>
    %cst_48 = arith.constant dense<0.000000e+00> : vector<16x8xf32>
    %229 = tpu.matmul %228, %3, %cst_48 {dimension_numbers = #tpu.dot_dimension_numbers<[1], [0], [0], [1], [0, 0, 1, 1], [], []>} : vector<16x196xbf16>, vector<196x8xbf16>, vector<16x8xf32> -> vector<16x8xf32>
    %230 = vector.broadcast %4 : vector<1x8xf32> to vector<16x8xf32>
    %231 = arith.addf %229, %230 : vector<16x8xf32>
    %cst_49 = arith.constant 0.000000e+00 : f32
    %232 = vector.broadcast %cst_49 : f32 to vector<16x8xf32>
    %233 = arith.cmpf oge, %231, %232 : vector<16x8xf32>
    %cst_50 = arith.constant 2.000000e-01 : f32
    %234 = vector.broadcast %cst_50 : f32 to vector<16x8xf32>
    %235 = arith.mulf %234, %231 : vector<16x8xf32>
    %236 = arith.select %233, %231, %235 : vector<16x8xi1>, vector<16x8xf32>
    %237 = vector.shape_cast %236 : vector<16x8xf32> to vector<1x16x8xf32>
    %238 = vector.extract_strided_slice %57 {offsets = [15, 0, 0], sizes = [1, 16, 196], strides = [1, 1, 1]} : vector<16x16x196xf32> to vector<1x16x196xf32>
    %239 = vector.shape_cast %238 : vector<1x16x196xf32> to vector<16x196xf32>
    %240 = arith.truncf %239 : vector<16x196xf32> to vector<16x196xbf16>
    %cst_51 = arith.constant dense<0.000000e+00> : vector<16x8xf32>
    %241 = tpu.matmul %240, %3, %cst_51 {dimension_numbers = #tpu.dot_dimension_numbers<[1], [0], [0], [1], [0, 0, 1, 1], [], []>} : vector<16x196xbf16>, vector<196x8xbf16>, vector<16x8xf32> -> vector<16x8xf32>
    %242 = vector.broadcast %4 : vector<1x8xf32> to vector<16x8xf32>
    %243 = arith.addf %241, %242 : vector<16x8xf32>
    %cst_52 = arith.constant 0.000000e+00 : f32
    %244 = vector.broadcast %cst_52 : f32 to vector<16x8xf32>
    %245 = arith.cmpf oge, %243, %244 : vector<16x8xf32>
    %cst_53 = arith.constant 2.000000e-01 : f32
    %246 = vector.broadcast %cst_53 : f32 to vector<16x8xf32>
    %247 = arith.mulf %246, %243 : vector<16x8xf32>
    %248 = arith.select %245, %243, %247 : vector<16x8xi1>, vector<16x8xf32>
    %249 = vector.shape_cast %248 : vector<16x8xf32> to vector<1x16x8xf32>
    %250 = tpu.concatenate %69, %81, %93, %105, %117, %129, %141, %153, %165, %177, %189, %201, %213, %225, %237, %249 in 0 : vector<1x16x8xf32>, vector<1x16x8xf32>, vector<1x16x8xf32>, vector<1x16x8xf32>, vector<1x16x8xf32>, vector<1x16x8xf32>, vector<1x16x8xf32>, vector<1x16x8xf32>, vector<1x16x8xf32>, vector<1x16x8xf32>, vector<1x16x8xf32>, vector<1x16x8xf32>, vector<1x16x8xf32>, vector<1x16x8xf32>, vector<1x16x8xf32>, vector<1x16x8xf32> -> vector<16x16x8xf32>
    %251 = arith.truncf %250 : vector<16x16x8xf32> to vector<16x16x8xbf16>
    %c0_54 = arith.constant 0 : index
    %c0_55 = arith.constant 0 : index
    %c0_56 = arith.constant 0 : index
    %c0_57 = arith.constant 0 : index
    %252 = vector.load %arg4[%c0_54, %c0_55, %c0_56, %c0_57] : memref<1x16x16x8xbf16, #tpu.memory_space<vmem>>, vector<1x16x16x8xbf16>
    %253 = vector.shape_cast %252 : vector<1x16x16x8xbf16> to vector<16x16x8xbf16>
    %254 = vector.shape_cast %251 : vector<16x16x8xbf16> to vector<1x16x16x8xbf16>
    tpu.vector_store %arg4[%c0_54, %c0_55, %c0_56, %c0_57], %254 {strides = array<i32>} : memref<1x16x16x8xbf16, #tpu.memory_space<vmem>>, vector<1x16x16x8xbf16>,
    return
  }
  func.func @transform_0(%arg0: i32) -> (i32, i32, i32, i32) {
    %c0_i32 = arith.constant 0 : i32
    %c0_i32_0 = arith.constant 0 : i32
    %c0_i32_1 = arith.constant 0 : i32
    %c0_i32_2 = arith.constant 0 : i32
    return %arg0, %c0_i32, %c0_i32_0, %c0_i32_1 : i32, i32, i32, i32
  }
  func.func @transform_1(%arg0: i32) -> (i32, i32) {
    %c0_i32 = arith.constant 0 : i32
    %c0_i32_0 = arith.constant 0 : i32
    %c0_i32_1 = arith.constant 0 : i32
    return %c0_i32, %c0_i32_0 : i32, i32
  }
  func.func @transform_2(%arg0: i32) -> (i32, i32) {
    %c0_i32 = arith.constant 0 : i32
    %c0_i32_0 = arith.constant 0 : i32
    %c0_i32_1 = arith.constant 0 : i32
    return %c0_i32, %c0_i32_0 : i32, i32
  }
  func.func @transform_3(%arg0: i32) -> (i32, i32, i32, i32) {
    %c0_i32 = arith.constant 0 : i32
    %c0_i32_0 = arith.constant 0 : i32
    %c0_i32_1 = arith.constant 0 : i32
    %c0_i32_2 = arith.constant 0 : i32
    return %arg0, %c0_i32, %c0_i32_0, %c0_i32_1 : i32, i32, i32, i32
  }
}

module attributes {stable_mosaic.version = 11 : i64} {
  func.func @_conv_layer_kernel(%arg0: i32, %arg1: memref<1x9x9x32xbf16, #tpu.memory_space<vmem>>, %arg2: memref<128x16xbf16, #tpu.memory_space<vmem>>, %arg3: memref<1x16xf32, #tpu.memory_space<vmem>>, %arg4: memref<1x8x8x16xbf16, #tpu.memory_space<vmem>>) attributes {dimension_semantics = [#tpu.dimension_semantics<parallel>], iteration_bounds = array<i64: 2>, scalar_prefetch = 0 : i64, scratch_operands = 0 : i64, tpu.core_type = #tpu.core_type<tc>, window_params = [{transform_indices = @transform_0, window_bounds = array<i64: 1, 9, 9, 32>}, {pipeline_mode = #tpu.pipeline_mode<synchronous>, transform_indices = @transform_1, window_bounds = array<i64: 128, 16>}, {pipeline_mode = #tpu.pipeline_mode<synchronous>, transform_indices = @transform_2, window_bounds = array<i64: 1, 16>}, {transform_indices = @transform_3, window_bounds = array<i64: 1, 8, 8, 16>}]} {
    %c0 = arith.constant 0 : index
    %c0_0 = arith.constant 0 : index
    %c0_1 = arith.constant 0 : index
    %c0_2 = arith.constant 0 : index
    %0 = vector.load %arg1[%c0, %c0_0, %c0_1, %c0_2] : memref<1x9x9x32xbf16, #tpu.memory_space<vmem>>, vector<1x9x9x32xbf16>
    %1 = vector.shape_cast %0 : vector<1x9x9x32xbf16> to vector<9x9x32xbf16>
    %2 = arith.extf %1 : vector<9x9x32xbf16> to vector<9x9x32xf32>
    %c0_3 = arith.constant 0 : index
    %c0_4 = arith.constant 0 : index
    %3 = vector.load %arg2[%c0_3, %c0_4] : memref<128x16xbf16, #tpu.memory_space<vmem>>, vector<128x16xbf16>
    %c0_5 = arith.constant 0 : index
    %c0_6 = arith.constant 0 : index
    %4 = vector.load %arg3[%c0_5, %c0_6] : memref<1x16xf32, #tpu.memory_space<vmem>>, vector<1x16xf32>
    %5 = vector.extract_strided_slice %2 {offsets = [0, 0, 0], sizes = [8, 8, 32], strides = [1, 1, 1]} : vector<9x9x32xf32> to vector<8x8x32xf32>
    %6 = vector.extract_strided_slice %2 {offsets = [0, 1, 0], sizes = [8, 8, 32], strides = [1, 1, 1]} : vector<9x9x32xf32> to vector<8x8x32xf32>
    %7 = vector.extract_strided_slice %2 {offsets = [1, 0, 0], sizes = [8, 8, 32], strides = [1, 1, 1]} : vector<9x9x32xf32> to vector<8x8x32xf32>
    %8 = vector.extract_strided_slice %2 {offsets = [1, 1, 0], sizes = [8, 8, 32], strides = [1, 1, 1]} : vector<9x9x32xf32> to vector<8x8x32xf32>
    %9 = tpu.concatenate %5, %6, %7, %8 in 2 : vector<8x8x32xf32>, vector<8x8x32xf32>, vector<8x8x32xf32>, vector<8x8x32xf32> -> vector<8x8x128xf32>
    %10 = vector.extract_strided_slice %9 {offsets = [0, 0, 0], sizes = [1, 8, 128], strides = [1, 1, 1]} : vector<8x8x128xf32> to vector<1x8x128xf32>
    %11 = vector.shape_cast %10 : vector<1x8x128xf32> to vector<8x128xf32>
    %12 = arith.truncf %11 : vector<8x128xf32> to vector<8x128xbf16>
    %cst = arith.constant dense<0.000000e+00> : vector<8x16xf32>
    %13 = tpu.matmul %12, %3, %cst {dimension_numbers = #tpu.dot_dimension_numbers<[1], [0], [0], [1], [0, 0, 1, 1], [], []>} : vector<8x128xbf16>, vector<128x16xbf16>, vector<8x16xf32> -> vector<8x16xf32>
    %14 = vector.broadcast %4 : vector<1x16xf32> to vector<8x16xf32>
    %15 = arith.addf %13, %14 : vector<8x16xf32>
    %cst_7 = arith.constant 0.000000e+00 : f32
    %16 = vector.broadcast %cst_7 : f32 to vector<8x16xf32>
    %17 = arith.cmpf oge, %15, %16 : vector<8x16xf32>
    %cst_8 = arith.constant 2.000000e-01 : f32
    %18 = vector.broadcast %cst_8 : f32 to vector<8x16xf32>
    %19 = arith.mulf %18, %15 : vector<8x16xf32>
    %20 = arith.select %17, %15, %19 : vector<8x16xi1>, vector<8x16xf32>
    %21 = vector.shape_cast %20 : vector<8x16xf32> to vector<1x8x16xf32>
    %22 = vector.extract_strided_slice %9 {offsets = [1, 0, 0], sizes = [1, 8, 128], strides = [1, 1, 1]} : vector<8x8x128xf32> to vector<1x8x128xf32>
    %23 = vector.shape_cast %22 : vector<1x8x128xf32> to vector<8x128xf32>
    %24 = arith.truncf %23 : vector<8x128xf32> to vector<8x128xbf16>
    %cst_9 = arith.constant dense<0.000000e+00> : vector<8x16xf32>
    %25 = tpu.matmul %24, %3, %cst_9 {dimension_numbers = #tpu.dot_dimension_numbers<[1], [0], [0], [1], [0, 0, 1, 1], [], []>} : vector<8x128xbf16>, vector<128x16xbf16>, vector<8x16xf32> -> vector<8x16xf32>
    %26 = vector.broadcast %4 : vector<1x16xf32> to vector<8x16xf32>
    %27 = arith.addf %25, %26 : vector<8x16xf32>
    %cst_10 = arith.constant 0.000000e+00 : f32
    %28 = vector.broadcast %cst_10 : f32 to vector<8x16xf32>
    %29 = arith.cmpf oge, %27, %28 : vector<8x16xf32>
    %cst_11 = arith.constant 2.000000e-01 : f32
    %30 = vector.broadcast %cst_11 : f32 to vector<8x16xf32>
    %31 = arith.mulf %30, %27 : vector<8x16xf32>
    %32 = arith.select %29, %27, %31 : vector<8x16xi1>, vector<8x16xf32>
    %33 = vector.shape_cast %32 : vector<8x16xf32> to vector<1x8x16xf32>
    %34 = vector.extract_strided_slice %9 {offsets = [2, 0, 0], sizes = [1, 8, 128], strides = [1, 1, 1]} : vector<8x8x128xf32> to vector<1x8x128xf32>
    %35 = vector.shape_cast %34 : vector<1x8x128xf32> to vector<8x128xf32>
    %36 = arith.truncf %35 : vector<8x128xf32> to vector<8x128xbf16>
    %cst_12 = arith.constant dense<0.000000e+00> : vector<8x16xf32>
    %37 = tpu.matmul %36, %3, %cst_12 {dimension_numbers = #tpu.dot_dimension_numbers<[1], [0], [0], [1], [0, 0, 1, 1], [], []>} : vector<8x128xbf16>, vector<128x16xbf16>, vector<8x16xf32> -> vector<8x16xf32>
    %38 = vector.broadcast %4 : vector<1x16xf32> to vector<8x16xf32>
    %39 = arith.addf %37, %38 : vector<8x16xf32>
    %cst_13 = arith.constant 0.000000e+00 : f32
    %40 = vector.broadcast %cst_13 : f32 to vector<8x16xf32>
    %41 = arith.cmpf oge, %39, %40 : vector<8x16xf32>
    %cst_14 = arith.constant 2.000000e-01 : f32
    %42 = vector.broadcast %cst_14 : f32 to vector<8x16xf32>
    %43 = arith.mulf %42, %39 : vector<8x16xf32>
    %44 = arith.select %41, %39, %43 : vector<8x16xi1>, vector<8x16xf32>
    %45 = vector.shape_cast %44 : vector<8x16xf32> to vector<1x8x16xf32>
    %46 = vector.extract_strided_slice %9 {offsets = [3, 0, 0], sizes = [1, 8, 128], strides = [1, 1, 1]} : vector<8x8x128xf32> to vector<1x8x128xf32>
    %47 = vector.shape_cast %46 : vector<1x8x128xf32> to vector<8x128xf32>
    %48 = arith.truncf %47 : vector<8x128xf32> to vector<8x128xbf16>
    %cst_15 = arith.constant dense<0.000000e+00> : vector<8x16xf32>
    %49 = tpu.matmul %48, %3, %cst_15 {dimension_numbers = #tpu.dot_dimension_numbers<[1], [0], [0], [1], [0, 0, 1, 1], [], []>} : vector<8x128xbf16>, vector<128x16xbf16>, vector<8x16xf32> -> vector<8x16xf32>
    %50 = vector.broadcast %4 : vector<1x16xf32> to vector<8x16xf32>
    %51 = arith.addf %49, %50 : vector<8x16xf32>
    %cst_16 = arith.constant 0.000000e+00 : f32
    %52 = vector.broadcast %cst_16 : f32 to vector<8x16xf32>
    %53 = arith.cmpf oge, %51, %52 : vector<8x16xf32>
    %cst_17 = arith.constant 2.000000e-01 : f32
    %54 = vector.broadcast %cst_17 : f32 to vector<8x16xf32>
    %55 = arith.mulf %54, %51 : vector<8x16xf32>
    %56 = arith.select %53, %51, %55 : vector<8x16xi1>, vector<8x16xf32>
    %57 = vector.shape_cast %56 : vector<8x16xf32> to vector<1x8x16xf32>
    %58 = vector.extract_strided_slice %9 {offsets = [4, 0, 0], sizes = [1, 8, 128], strides = [1, 1, 1]} : vector<8x8x128xf32> to vector<1x8x128xf32>
    %59 = vector.shape_cast %58 : vector<1x8x128xf32> to vector<8x128xf32>
    %60 = arith.truncf %59 : vector<8x128xf32> to vector<8x128xbf16>
    %cst_18 = arith.constant dense<0.000000e+00> : vector<8x16xf32>
    %61 = tpu.matmul %60, %3, %cst_18 {dimension_numbers = #tpu.dot_dimension_numbers<[1], [0], [0], [1], [0, 0, 1, 1], [], []>} : vector<8x128xbf16>, vector<128x16xbf16>, vector<8x16xf32> -> vector<8x16xf32>
    %62 = vector.broadcast %4 : vector<1x16xf32> to vector<8x16xf32>
    %63 = arith.addf %61, %62 : vector<8x16xf32>
    %cst_19 = arith.constant 0.000000e+00 : f32
    %64 = vector.broadcast %cst_19 : f32 to vector<8x16xf32>
    %65 = arith.cmpf oge, %63, %64 : vector<8x16xf32>
    %cst_20 = arith.constant 2.000000e-01 : f32
    %66 = vector.broadcast %cst_20 : f32 to vector<8x16xf32>
    %67 = arith.mulf %66, %63 : vector<8x16xf32>
    %68 = arith.select %65, %63, %67 : vector<8x16xi1>, vector<8x16xf32>
    %69 = vector.shape_cast %68 : vector<8x16xf32> to vector<1x8x16xf32>
    %70 = vector.extract_strided_slice %9 {offsets = [5, 0, 0], sizes = [1, 8, 128], strides = [1, 1, 1]} : vector<8x8x128xf32> to vector<1x8x128xf32>
    %71 = vector.shape_cast %70 : vector<1x8x128xf32> to vector<8x128xf32>
    %72 = arith.truncf %71 : vector<8x128xf32> to vector<8x128xbf16>
    %cst_21 = arith.constant dense<0.000000e+00> : vector<8x16xf32>
    %73 = tpu.matmul %72, %3, %cst_21 {dimension_numbers = #tpu.dot_dimension_numbers<[1], [0], [0], [1], [0, 0, 1, 1], [], []>} : vector<8x128xbf16>, vector<128x16xbf16>, vector<8x16xf32> -> vector<8x16xf32>
    %74 = vector.broadcast %4 : vector<1x16xf32> to vector<8x16xf32>
    %75 = arith.addf %73, %74 : vector<8x16xf32>
    %cst_22 = arith.constant 0.000000e+00 : f32
    %76 = vector.broadcast %cst_22 : f32 to vector<8x16xf32>
    %77 = arith.cmpf oge, %75, %76 : vector<8x16xf32>
    %cst_23 = arith.constant 2.000000e-01 : f32
    %78 = vector.broadcast %cst_23 : f32 to vector<8x16xf32>
    %79 = arith.mulf %78, %75 : vector<8x16xf32>
    %80 = arith.select %77, %75, %79 : vector<8x16xi1>, vector<8x16xf32>
    %81 = vector.shape_cast %80 : vector<8x16xf32> to vector<1x8x16xf32>
    %82 = vector.extract_strided_slice %9 {offsets = [6, 0, 0], sizes = [1, 8, 128], strides = [1, 1, 1]} : vector<8x8x128xf32> to vector<1x8x128xf32>
    %83 = vector.shape_cast %82 : vector<1x8x128xf32> to vector<8x128xf32>
    %84 = arith.truncf %83 : vector<8x128xf32> to vector<8x128xbf16>
    %cst_24 = arith.constant dense<0.000000e+00> : vector<8x16xf32>
    %85 = tpu.matmul %84, %3, %cst_24 {dimension_numbers = #tpu.dot_dimension_numbers<[1], [0], [0], [1], [0, 0, 1, 1], [], []>} : vector<8x128xbf16>, vector<128x16xbf16>, vector<8x16xf32> -> vector<8x16xf32>
    %86 = vector.broadcast %4 : vector<1x16xf32> to vector<8x16xf32>
    %87 = arith.addf %85, %86 : vector<8x16xf32>
    %cst_25 = arith.constant 0.000000e+00 : f32
    %88 = vector.broadcast %cst_25 : f32 to vector<8x16xf32>
    %89 = arith.cmpf oge, %87, %88 : vector<8x16xf32>
    %cst_26 = arith.constant 2.000000e-01 : f32
    %90 = vector.broadcast %cst_26 : f32 to vector<8x16xf32>
    %91 = arith.mulf %90, %87 : vector<8x16xf32>
    %92 = arith.select %89, %87, %91 : vector<8x16xi1>, vector<8x16xf32>
    %93 = vector.shape_cast %92 : vector<8x16xf32> to vector<1x8x16xf32>
    %94 = vector.extract_strided_slice %9 {offsets = [7, 0, 0], sizes = [1, 8, 128], strides = [1, 1, 1]} : vector<8x8x128xf32> to vector<1x8x128xf32>
    %95 = vector.shape_cast %94 : vector<1x8x128xf32> to vector<8x128xf32>
    %96 = arith.truncf %95 : vector<8x128xf32> to vector<8x128xbf16>
    %cst_27 = arith.constant dense<0.000000e+00> : vector<8x16xf32>
    %97 = tpu.matmul %96, %3, %cst_27 {dimension_numbers = #tpu.dot_dimension_numbers<[1], [0], [0], [1], [0, 0, 1, 1], [], []>} : vector<8x128xbf16>, vector<128x16xbf16>, vector<8x16xf32> -> vector<8x16xf32>
    %98 = vector.broadcast %4 : vector<1x16xf32> to vector<8x16xf32>
    %99 = arith.addf %97, %98 : vector<8x16xf32>
    %cst_28 = arith.constant 0.000000e+00 : f32
    %100 = vector.broadcast %cst_28 : f32 to vector<8x16xf32>
    %101 = arith.cmpf oge, %99, %100 : vector<8x16xf32>
    %cst_29 = arith.constant 2.000000e-01 : f32
    %102 = vector.broadcast %cst_29 : f32 to vector<8x16xf32>
    %103 = arith.mulf %102, %99 : vector<8x16xf32>
    %104 = arith.select %101, %99, %103 : vector<8x16xi1>, vector<8x16xf32>
    %105 = vector.shape_cast %104 : vector<8x16xf32> to vector<1x8x16xf32>
    %106 = tpu.concatenate %21, %33, %45, %57, %69, %81, %93, %105 in 0 : vector<1x8x16xf32>, vector<1x8x16xf32>, vector<1x8x16xf32>, vector<1x8x16xf32>, vector<1x8x16xf32>, vector<1x8x16xf32>, vector<1x8x16xf32>, vector<1x8x16xf32> -> vector<8x8x16xf32>
    %107 = arith.truncf %106 : vector<8x8x16xf32> to vector<8x8x16xbf16>
    %c0_30 = arith.constant 0 : index
    %c0_31 = arith.constant 0 : index
    %c0_32 = arith.constant 0 : index
    %c0_33 = arith.constant 0 : index
    %108 = vector.load %arg4[%c0_30, %c0_31, %c0_32, %c0_33] : memref<1x8x8x16xbf16, #tpu.memory_space<vmem>>, vector<1x8x8x16xbf16>
    %109 = vector.shape_cast %108 : vector<1x8x8x16xbf16> to vector<8x8x16xbf16>
    %110 = vector.shape_cast %107 : vector<8x8x16xbf16> to vector<1x8x8x16xbf16>
    tpu.vector_store %arg4[%c0_30, %c0_31, %c0_32, %c0_33], %110 {strides = array<i32>} : memref<1x8x8x16xbf16, #tpu.memory_space<vmem>>, vector<1x8x8x16xbf16>,
    return
  }
  func.func @transform_0(%arg0: i32) -> (i32, i32, i32, i32) {
    %c0_i32 = arith.constant 0 : i32
    %c0_i32_0 = arith.constant 0 : i32
    %c0_i32_1 = arith.constant 0 : i32
    %c0_i32_2 = arith.constant 0 : i32
    return %arg0, %c0_i32, %c0_i32_0, %c0_i32_1 : i32, i32, i32, i32
  }
  func.func @transform_1(%arg0: i32) -> (i32, i32) {
    %c0_i32 = arith.constant 0 : i32
    %c0_i32_0 = arith.constant 0 : i32
    %c0_i32_1 = arith.constant 0 : i32
    return %c0_i32, %c0_i32_0 : i32, i32
  }
  func.func @transform_2(%arg0: i32) -> (i32, i32) {
    %c0_i32 = arith.constant 0 : i32
    %c0_i32_0 = arith.constant 0 : i32
    %c0_i32_1 = arith.constant 0 : i32
    return %c0_i32, %c0_i32_0 : i32, i32
  }
  func.func @transform_3(%arg0: i32) -> (i32, i32, i32, i32) {
    %c0_i32 = arith.constant 0 : i32
    %c0_i32_0 = arith.constant 0 : i32
    %c0_i32_1 = arith.constant 0 : i32
    %c0_i32_2 = arith.constant 0 : i32
    return %arg0, %c0_i32, %c0_i32_0, %c0_i32_1 : i32, i32, i32, i32
  }
}

module attributes {stable_mosaic.version = 11 : i64} {
  func.func @_tail_kernel(%arg0: i32, %arg1: memref<1x5x5x64xbf16, #tpu.memory_space<vmem>>, %arg2: memref<256x32xbf16, #tpu.memory_space<vmem>>, %arg3: memref<1x32xf32, #tpu.memory_space<vmem>>, %arg4: memref<512x32xbf16, #tpu.memory_space<vmem>>, %arg5: memref<1x32xf32, #tpu.memory_space<vmem>>, %arg6: memref<512x32xbf16, #tpu.memory_space<vmem>>, %arg7: memref<1x32xf32, #tpu.memory_space<vmem>>, %arg8: memref<1568x1xbf16, #tpu.memory_space<vmem>>, %arg9: memref<1x1xf32, #tpu.memory_space<vmem>>, %arg10: memref<1x1x1x1xf32, #tpu.memory_space<vmem>>) attributes {dimension_semantics = [#tpu.dimension_semantics<parallel>], iteration_bounds = array<i64: 2>, scalar_prefetch = 0 : i64, scratch_operands = 0 : i64, tpu.core_type = #tpu.core_type<tc>, window_params = [{transform_indices = @transform_0, window_bounds = array<i64: 1, 5, 5, 64>}, {pipeline_mode = #tpu.pipeline_mode<synchronous>, transform_indices = @transform_1, window_bounds = array<i64: 256, 32>}, {pipeline_mode = #tpu.pipeline_mode<synchronous>, transform_indices = @transform_2, window_bounds = array<i64: 1, 32>}, {pipeline_mode = #tpu.pipeline_mode<synchronous>, transform_indices = @transform_3, window_bounds = array<i64: 512, 32>}, {pipeline_mode = #tpu.pipeline_mode<synchronous>, transform_indices = @transform_4, window_bounds = array<i64: 1, 32>}, {pipeline_mode = #tpu.pipeline_mode<synchronous>, transform_indices = @transform_5, window_bounds = array<i64: 512, 32>}, {pipeline_mode = #tpu.pipeline_mode<synchronous>, transform_indices = @transform_6, window_bounds = array<i64: 1, 32>}, {pipeline_mode = #tpu.pipeline_mode<synchronous>, transform_indices = @transform_7, window_bounds = array<i64: 1568, 1>}, {pipeline_mode = #tpu.pipeline_mode<synchronous>, transform_indices = @transform_8, window_bounds = array<i64: 1, 1>}, {transform_indices = @transform_9, window_bounds = array<i64: 1, 1, 1, 1>}]} {
    %c0 = arith.constant 0 : index
    %c0_0 = arith.constant 0 : index
    %c0_1 = arith.constant 0 : index
    %c0_2 = arith.constant 0 : index
    %0 = vector.load %arg1[%c0, %c0_0, %c0_1, %c0_2] : memref<1x5x5x64xbf16, #tpu.memory_space<vmem>>, vector<1x5x5x64xbf16>
    %1 = vector.shape_cast %0 : vector<1x5x5x64xbf16> to vector<5x5x64xbf16>
    %2 = arith.extf %1 : vector<5x5x64xbf16> to vector<5x5x64xf32>
    %c0_3 = arith.constant 0 : index
    %c0_4 = arith.constant 0 : index
    %3 = vector.load %arg2[%c0_3, %c0_4] : memref<256x32xbf16, #tpu.memory_space<vmem>>, vector<256x32xbf16>
    %c0_5 = arith.constant 0 : index
    %c0_6 = arith.constant 0 : index
    %4 = vector.load %arg3[%c0_5, %c0_6] : memref<1x32xf32, #tpu.memory_space<vmem>>, vector<1x32xf32>
    %5 = vector.extract_strided_slice %2 {offsets = [0, 0, 0], sizes = [4, 4, 64], strides = [1, 1, 1]} : vector<5x5x64xf32> to vector<4x4x64xf32>
    %6 = vector.extract_strided_slice %2 {offsets = [0, 1, 0], sizes = [4, 4, 64], strides = [1, 1, 1]} : vector<5x5x64xf32> to vector<4x4x64xf32>
    %7 = vector.extract_strided_slice %2 {offsets = [1, 0, 0], sizes = [4, 4, 64], strides = [1, 1, 1]} : vector<5x5x64xf32> to vector<4x4x64xf32>
    %8 = vector.extract_strided_slice %2 {offsets = [1, 1, 0], sizes = [4, 4, 64], strides = [1, 1, 1]} : vector<5x5x64xf32> to vector<4x4x64xf32>
    %9 = tpu.concatenate %5, %6, %7, %8 in 2 : vector<4x4x64xf32>, vector<4x4x64xf32>, vector<4x4x64xf32>, vector<4x4x64xf32> -> vector<4x4x256xf32>
    %10 = vector.extract_strided_slice %9 {offsets = [0, 0, 0], sizes = [1, 4, 256], strides = [1, 1, 1]} : vector<4x4x256xf32> to vector<1x4x256xf32>
    %11 = vector.shape_cast %10 : vector<1x4x256xf32> to vector<4x256xf32>
    %12 = arith.truncf %11 : vector<4x256xf32> to vector<4x256xbf16>
    %cst = arith.constant dense<0.000000e+00> : vector<4x32xf32>
    %13 = tpu.matmul %12, %3, %cst {dimension_numbers = #tpu.dot_dimension_numbers<[1], [0], [0], [1], [0, 0, 1, 1], [], []>} : vector<4x256xbf16>, vector<256x32xbf16>, vector<4x32xf32> -> vector<4x32xf32>
    %14 = vector.broadcast %4 : vector<1x32xf32> to vector<4x32xf32>
    %15 = arith.addf %13, %14 : vector<4x32xf32>
    %cst_7 = arith.constant 0.000000e+00 : f32
    %16 = vector.broadcast %cst_7 : f32 to vector<4x32xf32>
    %17 = arith.cmpf oge, %15, %16 : vector<4x32xf32>
    %cst_8 = arith.constant 2.000000e-01 : f32
    %18 = vector.broadcast %cst_8 : f32 to vector<4x32xf32>
    %19 = arith.mulf %18, %15 : vector<4x32xf32>
    %20 = arith.select %17, %15, %19 : vector<4x32xi1>, vector<4x32xf32>
    %21 = vector.shape_cast %20 : vector<4x32xf32> to vector<1x4x32xf32>
    %22 = vector.extract_strided_slice %9 {offsets = [1, 0, 0], sizes = [1, 4, 256], strides = [1, 1, 1]} : vector<4x4x256xf32> to vector<1x4x256xf32>
    %23 = vector.shape_cast %22 : vector<1x4x256xf32> to vector<4x256xf32>
    %24 = arith.truncf %23 : vector<4x256xf32> to vector<4x256xbf16>
    %cst_9 = arith.constant dense<0.000000e+00> : vector<4x32xf32>
    %25 = tpu.matmul %24, %3, %cst_9 {dimension_numbers = #tpu.dot_dimension_numbers<[1], [0], [0], [1], [0, 0, 1, 1], [], []>} : vector<4x256xbf16>, vector<256x32xbf16>, vector<4x32xf32> -> vector<4x32xf32>
    %26 = vector.broadcast %4 : vector<1x32xf32> to vector<4x32xf32>
    %27 = arith.addf %25, %26 : vector<4x32xf32>
    %cst_10 = arith.constant 0.000000e+00 : f32
    %28 = vector.broadcast %cst_10 : f32 to vector<4x32xf32>
    %29 = arith.cmpf oge, %27, %28 : vector<4x32xf32>
    %cst_11 = arith.constant 2.000000e-01 : f32
    %30 = vector.broadcast %cst_11 : f32 to vector<4x32xf32>
    %31 = arith.mulf %30, %27 : vector<4x32xf32>
    %32 = arith.select %29, %27, %31 : vector<4x32xi1>, vector<4x32xf32>
    %33 = vector.shape_cast %32 : vector<4x32xf32> to vector<1x4x32xf32>
    %34 = vector.extract_strided_slice %9 {offsets = [2, 0, 0], sizes = [1, 4, 256], strides = [1, 1, 1]} : vector<4x4x256xf32> to vector<1x4x256xf32>
    %35 = vector.shape_cast %34 : vector<1x4x256xf32> to vector<4x256xf32>
    %36 = arith.truncf %35 : vector<4x256xf32> to vector<4x256xbf16>
    %cst_12 = arith.constant dense<0.000000e+00> : vector<4x32xf32>
    %37 = tpu.matmul %36, %3, %cst_12 {dimension_numbers = #tpu.dot_dimension_numbers<[1], [0], [0], [1], [0, 0, 1, 1], [], []>} : vector<4x256xbf16>, vector<256x32xbf16>, vector<4x32xf32> -> vector<4x32xf32>
    %38 = vector.broadcast %4 : vector<1x32xf32> to vector<4x32xf32>
    %39 = arith.addf %37, %38 : vector<4x32xf32>
    %cst_13 = arith.constant 0.000000e+00 : f32
    %40 = vector.broadcast %cst_13 : f32 to vector<4x32xf32>
    %41 = arith.cmpf oge, %39, %40 : vector<4x32xf32>
    %cst_14 = arith.constant 2.000000e-01 : f32
    %42 = vector.broadcast %cst_14 : f32 to vector<4x32xf32>
    %43 = arith.mulf %42, %39 : vector<4x32xf32>
    %44 = arith.select %41, %39, %43 : vector<4x32xi1>, vector<4x32xf32>
    %45 = vector.shape_cast %44 : vector<4x32xf32> to vector<1x4x32xf32>
    %46 = vector.extract_strided_slice %9 {offsets = [3, 0, 0], sizes = [1, 4, 256], strides = [1, 1, 1]} : vector<4x4x256xf32> to vector<1x4x256xf32>
    %47 = vector.shape_cast %46 : vector<1x4x256xf32> to vector<4x256xf32>
    %48 = arith.truncf %47 : vector<4x256xf32> to vector<4x256xbf16>
    %cst_15 = arith.constant dense<0.000000e+00> : vector<4x32xf32>
    %49 = tpu.matmul %48, %3, %cst_15 {dimension_numbers = #tpu.dot_dimension_numbers<[1], [0], [0], [1], [0, 0, 1, 1], [], []>} : vector<4x256xbf16>, vector<256x32xbf16>, vector<4x32xf32> -> vector<4x32xf32>
    %50 = vector.broadcast %4 : vector<1x32xf32> to vector<4x32xf32>
    %51 = arith.addf %49, %50 : vector<4x32xf32>
    %cst_16 = arith.constant 0.000000e+00 : f32
    %52 = vector.broadcast %cst_16 : f32 to vector<4x32xf32>
    %53 = arith.cmpf oge, %51, %52 : vector<4x32xf32>
    %cst_17 = arith.constant 2.000000e-01 : f32
    %54 = vector.broadcast %cst_17 : f32 to vector<4x32xf32>
    %55 = arith.mulf %54, %51 : vector<4x32xf32>
    %56 = arith.select %53, %51, %55 : vector<4x32xi1>, vector<4x32xf32>
    %57 = vector.shape_cast %56 : vector<4x32xf32> to vector<1x4x32xf32>
    %58 = tpu.concatenate %21, %33, %45, %57 in 0 : vector<1x4x32xf32>, vector<1x4x32xf32>, vector<1x4x32xf32>, vector<1x4x32xf32> -> vector<4x4x32xf32>
    %cst_18 = arith.constant 0.000000e+00 : f32
    %59 = vector.broadcast %cst_18 : f32 to vector<4x1x32xf32>
    %60 = tpu.concatenate %59, %58, %59 in 1 : vector<4x1x32xf32>, vector<4x4x32xf32>, vector<4x1x32xf32> -> vector<4x6x32xf32>
    %cst_19 = arith.constant 0.000000e+00 : f32
    %61 = vector.broadcast %cst_19 : f32 to vector<1x6x32xf32>
    %62 = tpu.concatenate %61, %60, %61 in 0 : vector<1x6x32xf32>, vector<4x6x32xf32>, vector<1x6x32xf32> -> vector<6x6x32xf32>
    %63 = vector.extract_strided_slice %62 {offsets = [0, 0, 0], sizes = [1, 6, 32], strides = [1, 1, 1]} : vector<6x6x32xf32> to vector<1x6x32xf32>
    %64 = vector.extract_strided_slice %62 {offsets = [2, 0, 0], sizes = [1, 6, 32], strides = [1, 1, 1]} : vector<6x6x32xf32> to vector<1x6x32xf32>
    %65 = vector.extract_strided_slice %62 {offsets = [4, 0, 0], sizes = [1, 6, 32], strides = [1, 1, 1]} : vector<6x6x32xf32> to vector<1x6x32xf32>
    %66 = tpu.concatenate %63, %64, %65 in 0 : vector<1x6x32xf32>, vector<1x6x32xf32>, vector<1x6x32xf32> -> vector<3x6x32xf32>
    %67 = vector.extract_strided_slice %62 {offsets = [1, 0, 0], sizes = [1, 6, 32], strides = [1, 1, 1]} : vector<6x6x32xf32> to vector<1x6x32xf32>
    %68 = vector.extract_strided_slice %62 {offsets = [3, 0, 0], sizes = [1, 6, 32], strides = [1, 1, 1]} : vector<6x6x32xf32> to vector<1x6x32xf32>
    %69 = vector.extract_strided_slice %62 {offsets = [5, 0, 0], sizes = [1, 6, 32], strides = [1, 1, 1]} : vector<6x6x32xf32> to vector<1x6x32xf32>
    %70 = tpu.concatenate %67, %68, %69 in 0 : vector<1x6x32xf32>, vector<1x6x32xf32>, vector<1x6x32xf32> -> vector<3x6x32xf32>
    %71 = vector.extract_strided_slice %66 {offsets = [0, 0, 0], sizes = [3, 1, 32], strides = [1, 1, 1]} : vector<3x6x32xf32> to vector<3x1x32xf32>
    %72 = vector.extract_strided_slice %66 {offsets = [0, 2, 0], sizes = [3, 1, 32], strides = [1, 1, 1]} : vector<3x6x32xf32> to vector<3x1x32xf32>
    %73 = vector.extract_strided_slice %66 {offsets = [0, 4, 0], sizes = [3, 1, 32], strides = [1, 1, 1]} : vector<3x6x32xf32> to vector<3x1x32xf32>
    %74 = tpu.concatenate %71, %72, %73 in 1 : vector<3x1x32xf32>, vector<3x1x32xf32>, vector<3x1x32xf32> -> vector<3x3x32xf32>
    %75 = vector.extract_strided_slice %66 {offsets = [0, 1, 0], sizes = [3, 1, 32], strides = [1, 1, 1]} : vector<3x6x32xf32> to vector<3x1x32xf32>
    %76 = vector.extract_strided_slice %66 {offsets = [0, 3, 0], sizes = [3, 1, 32], strides = [1, 1, 1]} : vector<3x6x32xf32> to vector<3x1x32xf32>
    %77 = vector.extract_strided_slice %66 {offsets = [0, 5, 0], sizes = [3, 1, 32], strides = [1, 1, 1]} : vector<3x6x32xf32> to vector<3x1x32xf32>
    %78 = tpu.concatenate %75, %76, %77 in 1 : vector<3x1x32xf32>, vector<3x1x32xf32>, vector<3x1x32xf32> -> vector<3x3x32xf32>
    %79 = vector.extract_strided_slice %70 {offsets = [0, 0, 0], sizes = [3, 1, 32], strides = [1, 1, 1]} : vector<3x6x32xf32> to vector<3x1x32xf32>
    %80 = vector.extract_strided_slice %70 {offsets = [0, 2, 0], sizes = [3, 1, 32], strides = [1, 1, 1]} : vector<3x6x32xf32> to vector<3x1x32xf32>
    %81 = vector.extract_strided_slice %70 {offsets = [0, 4, 0], sizes = [3, 1, 32], strides = [1, 1, 1]} : vector<3x6x32xf32> to vector<3x1x32xf32>
    %82 = tpu.concatenate %79, %80, %81 in 1 : vector<3x1x32xf32>, vector<3x1x32xf32>, vector<3x1x32xf32> -> vector<3x3x32xf32>
    %83 = vector.extract_strided_slice %70 {offsets = [0, 1, 0], sizes = [3, 1, 32], strides = [1, 1, 1]} : vector<3x6x32xf32> to vector<3x1x32xf32>
    %84 = vector.extract_strided_slice %70 {offsets = [0, 3, 0], sizes = [3, 1, 32], strides = [1, 1, 1]} : vector<3x6x32xf32> to vector<3x1x32xf32>
    %85 = vector.extract_strided_slice %70 {offsets = [0, 5, 0], sizes = [3, 1, 32], strides = [1, 1, 1]} : vector<3x6x32xf32> to vector<3x1x32xf32>
    %86 = tpu.concatenate %83, %84, %85 in 1 : vector<3x1x32xf32>, vector<3x1x32xf32>, vector<3x1x32xf32> -> vector<3x3x32xf32>
    %87 = tpu.concatenate %74, %78, %82, %86 in 2 : vector<3x3x32xf32>, vector<3x3x32xf32>, vector<3x3x32xf32>, vector<3x3x32xf32> -> vector<3x3x128xf32>
    %c0_20 = arith.constant 0 : index
    %c0_21 = arith.constant 0 : index
    %88 = vector.load %arg4[%c0_20, %c0_21] : memref<512x32xbf16, #tpu.memory_space<vmem>>, vector<512x32xbf16>
    %c0_22 = arith.constant 0 : index
    %c0_23 = arith.constant 0 : index
    %89 = vector.load %arg5[%c0_22, %c0_23] : memref<1x32xf32, #tpu.memory_space<vmem>>, vector<1x32xf32>
    %90 = vector.extract_strided_slice %87 {offsets = [0, 0, 0], sizes = [2, 2, 128], strides = [1, 1, 1]} : vector<3x3x128xf32> to vector<2x2x128xf32>
    %91 = vector.extract_strided_slice %87 {offsets = [0, 1, 0], sizes = [2, 2, 128], strides = [1, 1, 1]} : vector<3x3x128xf32> to vector<2x2x128xf32>
    %92 = vector.extract_strided_slice %87 {offsets = [1, 0, 0], sizes = [2, 2, 128], strides = [1, 1, 1]} : vector<3x3x128xf32> to vector<2x2x128xf32>
    %93 = vector.extract_strided_slice %87 {offsets = [1, 1, 0], sizes = [2, 2, 128], strides = [1, 1, 1]} : vector<3x3x128xf32> to vector<2x2x128xf32>
    %94 = tpu.concatenate %90, %91, %92, %93 in 2 : vector<2x2x128xf32>, vector<2x2x128xf32>, vector<2x2x128xf32>, vector<2x2x128xf32> -> vector<2x2x512xf32>
    %95 = vector.extract_strided_slice %94 {offsets = [0, 0, 0], sizes = [1, 2, 512], strides = [1, 1, 1]} : vector<2x2x512xf32> to vector<1x2x512xf32>
    %96 = vector.shape_cast %95 : vector<1x2x512xf32> to vector<2x512xf32>
    %97 = arith.truncf %96 : vector<2x512xf32> to vector<2x512xbf16>
    %cst_24 = arith.constant dense<0.000000e+00> : vector<2x32xf32>
    %98 = tpu.matmul %97, %88, %cst_24 {dimension_numbers = #tpu.dot_dimension_numbers<[1], [0], [0], [1], [0, 0, 1, 1], [], []>} : vector<2x512xbf16>, vector<512x32xbf16>, vector<2x32xf32> -> vector<2x32xf32>
    %99 = vector.broadcast %89 : vector<1x32xf32> to vector<2x32xf32>
    %100 = arith.addf %98, %99 : vector<2x32xf32>
    %cst_25 = arith.constant 0.000000e+00 : f32
    %101 = vector.broadcast %cst_25 : f32 to vector<2x32xf32>
    %102 = arith.cmpf oge, %100, %101 : vector<2x32xf32>
    %cst_26 = arith.constant 2.000000e-01 : f32
    %103 = vector.broadcast %cst_26 : f32 to vector<2x32xf32>
    %104 = arith.mulf %103, %100 : vector<2x32xf32>
    %105 = arith.select %102, %100, %104 : vector<2x32xi1>, vector<2x32xf32>
    %106 = vector.shape_cast %105 : vector<2x32xf32> to vector<1x2x32xf32>
    %107 = vector.extract_strided_slice %94 {offsets = [1, 0, 0], sizes = [1, 2, 512], strides = [1, 1, 1]} : vector<2x2x512xf32> to vector<1x2x512xf32>
    %108 = vector.shape_cast %107 : vector<1x2x512xf32> to vector<2x512xf32>
    %109 = arith.truncf %108 : vector<2x512xf32> to vector<2x512xbf16>
    %cst_27 = arith.constant dense<0.000000e+00> : vector<2x32xf32>
    %110 = tpu.matmul %109, %88, %cst_27 {dimension_numbers = #tpu.dot_dimension_numbers<[1], [0], [0], [1], [0, 0, 1, 1], [], []>} : vector<2x512xbf16>, vector<512x32xbf16>, vector<2x32xf32> -> vector<2x32xf32>
    %111 = vector.broadcast %89 : vector<1x32xf32> to vector<2x32xf32>
    %112 = arith.addf %110, %111 : vector<2x32xf32>
    %cst_28 = arith.constant 0.000000e+00 : f32
    %113 = vector.broadcast %cst_28 : f32 to vector<2x32xf32>
    %114 = arith.cmpf oge, %112, %113 : vector<2x32xf32>
    %cst_29 = arith.constant 2.000000e-01 : f32
    %115 = vector.broadcast %cst_29 : f32 to vector<2x32xf32>
    %116 = arith.mulf %115, %112 : vector<2x32xf32>
    %117 = arith.select %114, %112, %116 : vector<2x32xi1>, vector<2x32xf32>
    %118 = vector.shape_cast %117 : vector<2x32xf32> to vector<1x2x32xf32>
    %119 = tpu.concatenate %106, %118 in 0 : vector<1x2x32xf32>, vector<1x2x32xf32> -> vector<2x2x32xf32>
    %cst_30 = arith.constant 0.000000e+00 : f32
    %120 = vector.broadcast %cst_30 : f32 to vector<2x1x32xf32>
    %121 = tpu.concatenate %120, %119, %120 in 1 : vector<2x1x32xf32>, vector<2x2x32xf32>, vector<2x1x32xf32> -> vector<2x4x32xf32>
    %cst_31 = arith.constant 0.000000e+00 : f32
    %122 = vector.broadcast %cst_31 : f32 to vector<1x4x32xf32>
    %123 = tpu.concatenate %122, %121, %122 in 0 : vector<1x4x32xf32>, vector<2x4x32xf32>, vector<1x4x32xf32> -> vector<4x4x32xf32>
    %124 = vector.extract_strided_slice %123 {offsets = [0, 0, 0], sizes = [1, 4, 32], strides = [1, 1, 1]} : vector<4x4x32xf32> to vector<1x4x32xf32>
    %125 = vector.extract_strided_slice %123 {offsets = [2, 0, 0], sizes = [1, 4, 32], strides = [1, 1, 1]} : vector<4x4x32xf32> to vector<1x4x32xf32>
    %126 = tpu.concatenate %124, %125 in 0 : vector<1x4x32xf32>, vector<1x4x32xf32> -> vector<2x4x32xf32>
    %127 = vector.extract_strided_slice %123 {offsets = [1, 0, 0], sizes = [1, 4, 32], strides = [1, 1, 1]} : vector<4x4x32xf32> to vector<1x4x32xf32>
    %128 = vector.extract_strided_slice %123 {offsets = [3, 0, 0], sizes = [1, 4, 32], strides = [1, 1, 1]} : vector<4x4x32xf32> to vector<1x4x32xf32>
    %129 = tpu.concatenate %127, %128 in 0 : vector<1x4x32xf32>, vector<1x4x32xf32> -> vector<2x4x32xf32>
    %130 = vector.extract_strided_slice %126 {offsets = [0, 0, 0], sizes = [2, 1, 32], strides = [1, 1, 1]} : vector<2x4x32xf32> to vector<2x1x32xf32>
    %131 = vector.extract_strided_slice %126 {offsets = [0, 2, 0], sizes = [2, 1, 32], strides = [1, 1, 1]} : vector<2x4x32xf32> to vector<2x1x32xf32>
    %132 = tpu.concatenate %130, %131 in 1 : vector<2x1x32xf32>, vector<2x1x32xf32> -> vector<2x2x32xf32>
    %133 = vector.extract_strided_slice %126 {offsets = [0, 1, 0], sizes = [2, 1, 32], strides = [1, 1, 1]} : vector<2x4x32xf32> to vector<2x1x32xf32>
    %134 = vector.extract_strided_slice %126 {offsets = [0, 3, 0], sizes = [2, 1, 32], strides = [1, 1, 1]} : vector<2x4x32xf32> to vector<2x1x32xf32>
    %135 = tpu.concatenate %133, %134 in 1 : vector<2x1x32xf32>, vector<2x1x32xf32> -> vector<2x2x32xf32>
    %136 = vector.extract_strided_slice %129 {offsets = [0, 0, 0], sizes = [2, 1, 32], strides = [1, 1, 1]} : vector<2x4x32xf32> to vector<2x1x32xf32>
    %137 = vector.extract_strided_slice %129 {offsets = [0, 2, 0], sizes = [2, 1, 32], strides = [1, 1, 1]} : vector<2x4x32xf32> to vector<2x1x32xf32>
    %138 = tpu.concatenate %136, %137 in 1 : vector<2x1x32xf32>, vector<2x1x32xf32> -> vector<2x2x32xf32>
    %139 = vector.extract_strided_slice %129 {offsets = [0, 1, 0], sizes = [2, 1, 32], strides = [1, 1, 1]} : vector<2x4x32xf32> to vector<2x1x32xf32>
    %140 = vector.extract_strided_slice %129 {offsets = [0, 3, 0], sizes = [2, 1, 32], strides = [1, 1, 1]} : vector<2x4x32xf32> to vector<2x1x32xf32>
    %141 = tpu.concatenate %139, %140 in 1 : vector<2x1x32xf32>, vector<2x1x32xf32> -> vector<2x2x32xf32>
    %142 = tpu.concatenate %132, %135, %138, %141 in 2 : vector<2x2x32xf32>, vector<2x2x32xf32>, vector<2x2x32xf32>, vector<2x2x32xf32> -> vector<2x2x128xf32>
    %c0_32 = arith.constant 0 : index
    %c0_33 = arith.constant 0 : index
    %143 = vector.load %arg6[%c0_32, %c0_33] : memref<512x32xbf16, #tpu.memory_space<vmem>>, vector<512x32xbf16>
    %c0_34 = arith.constant 0 : index
    %c0_35 = arith.constant 0 : index
    %144 = vector.load %arg7[%c0_34, %c0_35] : memref<1x32xf32, #tpu.memory_space<vmem>>, vector<1x32xf32>
    %145 = vector.extract_strided_slice %142 {offsets = [0, 0, 0], sizes = [1, 1, 128], strides = [1, 1, 1]} : vector<2x2x128xf32> to vector<1x1x128xf32>
    %146 = vector.extract_strided_slice %142 {offsets = [0, 1, 0], sizes = [1, 1, 128], strides = [1, 1, 1]} : vector<2x2x128xf32> to vector<1x1x128xf32>
    %147 = vector.extract_strided_slice %142 {offsets = [1, 0, 0], sizes = [1, 1, 128], strides = [1, 1, 1]} : vector<2x2x128xf32> to vector<1x1x128xf32>
    %148 = vector.extract_strided_slice %142 {offsets = [1, 1, 0], sizes = [1, 1, 128], strides = [1, 1, 1]} : vector<2x2x128xf32> to vector<1x1x128xf32>
    %149 = tpu.concatenate %145, %146, %147, %148 in 2 : vector<1x1x128xf32>, vector<1x1x128xf32>, vector<1x1x128xf32>, vector<1x1x128xf32> -> vector<1x1x512xf32>
    %150 = vector.shape_cast %149 : vector<1x1x512xf32> to vector<1x512xf32>
    %151 = arith.truncf %150 : vector<1x512xf32> to vector<1x512xbf16>
    %cst_36 = arith.constant dense<0.000000e+00> : vector<1x32xf32>
    %152 = tpu.matmul %151, %143, %cst_36 {dimension_numbers = #tpu.dot_dimension_numbers<[1], [0], [0], [1], [0, 0, 1, 1], [], []>} : vector<1x512xbf16>, vector<512x32xbf16>, vector<1x32xf32> -> vector<1x32xf32>
    %153 = arith.addf %152, %144 : vector<1x32xf32>
    %cst_37 = arith.constant 0.000000e+00 : f32
    %154 = vector.broadcast %cst_37 : f32 to vector<1x32xf32>
    %155 = arith.cmpf oge, %153, %154 : vector<1x32xf32>
    %cst_38 = arith.constant 2.000000e-01 : f32
    %156 = vector.broadcast %cst_38 : f32 to vector<1x32xf32>
    %157 = arith.mulf %156, %153 : vector<1x32xf32>
    %158 = arith.select %155, %153, %157 : vector<1x32xi1>, vector<1x32xf32>
    %159 = vector.shape_cast %158 : vector<1x32xf32> to vector<1x1x32xf32>
    %cst_39 = arith.constant 0.000000e+00 : f32
    %160 = vector.broadcast %cst_39 : f32 to vector<1x3x32xf32>
    %161 = tpu.concatenate %160, %159, %160 in 1 : vector<1x3x32xf32>, vector<1x1x32xf32>, vector<1x3x32xf32> -> vector<1x7x32xf32>
    %cst_40 = arith.constant 0.000000e+00 : f32
    %162 = vector.broadcast %cst_40 : f32 to vector<3x7x32xf32>
    %163 = tpu.concatenate %162, %161, %162 in 0 : vector<3x7x32xf32>, vector<1x7x32xf32>, vector<3x7x32xf32> -> vector<7x7x32xf32>
    %c0_41 = arith.constant 0 : index
    %c0_42 = arith.constant 0 : index
    %164 = vector.load %arg8[%c0_41, %c0_42] : memref<1568x1xbf16, #tpu.memory_space<vmem>>, vector<1568x1xbf16>
    %c0_43 = arith.constant 0 : index
    %c0_44 = arith.constant 0 : index
    %165 = vector.load %arg9[%c0_43, %c0_44] : memref<1x1xf32, #tpu.memory_space<vmem>>, vector<1x1xf32>
    %166 = vector.extract_strided_slice %163 {offsets = [0, 0, 0], sizes = [1, 1, 32], strides = [1, 1, 1]} : vector<7x7x32xf32> to vector<1x1x32xf32>
    %167 = vector.extract_strided_slice %163 {offsets = [0, 1, 0], sizes = [1, 1, 32], strides = [1, 1, 1]} : vector<7x7x32xf32> to vector<1x1x32xf32>
    %168 = vector.extract_strided_slice %163 {offsets = [0, 2, 0], sizes = [1, 1, 32], strides = [1, 1, 1]} : vector<7x7x32xf32> to vector<1x1x32xf32>
    %169 = vector.extract_strided_slice %163 {offsets = [0, 3, 0], sizes = [1, 1, 32], strides = [1, 1, 1]} : vector<7x7x32xf32> to vector<1x1x32xf32>
    %170 = vector.extract_strided_slice %163 {offsets = [0, 4, 0], sizes = [1, 1, 32], strides = [1, 1, 1]} : vector<7x7x32xf32> to vector<1x1x32xf32>
    %171 = vector.extract_strided_slice %163 {offsets = [0, 5, 0], sizes = [1, 1, 32], strides = [1, 1, 1]} : vector<7x7x32xf32> to vector<1x1x32xf32>
    %172 = vector.extract_strided_slice %163 {offsets = [0, 6, 0], sizes = [1, 1, 32], strides = [1, 1, 1]} : vector<7x7x32xf32> to vector<1x1x32xf32>
    %173 = vector.extract_strided_slice %163 {offsets = [1, 0, 0], sizes = [1, 1, 32], strides = [1, 1, 1]} : vector<7x7x32xf32> to vector<1x1x32xf32>
    %174 = vector.extract_strided_slice %163 {offsets = [1, 1, 0], sizes = [1, 1, 32], strides = [1, 1, 1]} : vector<7x7x32xf32> to vector<1x1x32xf32>
    %175 = vector.extract_strided_slice %163 {offsets = [1, 2, 0], sizes = [1, 1, 32], strides = [1, 1, 1]} : vector<7x7x32xf32> to vector<1x1x32xf32>
    %176 = vector.extract_strided_slice %163 {offsets = [1, 3, 0], sizes = [1, 1, 32], strides = [1, 1, 1]} : vector<7x7x32xf32> to vector<1x1x32xf32>
    %177 = vector.extract_strided_slice %163 {offsets = [1, 4, 0], sizes = [1, 1, 32], strides = [1, 1, 1]} : vector<7x7x32xf32> to vector<1x1x32xf32>
    %178 = vector.extract_strided_slice %163 {offsets = [1, 5, 0], sizes = [1, 1, 32], strides = [1, 1, 1]} : vector<7x7x32xf32> to vector<1x1x32xf32>
    %179 = vector.extract_strided_slice %163 {offsets = [1, 6, 0], sizes = [1, 1, 32], strides = [1, 1, 1]} : vector<7x7x32xf32> to vector<1x1x32xf32>
    %180 = vector.extract_strided_slice %163 {offsets = [2, 0, 0], sizes = [1, 1, 32], strides = [1, 1, 1]} : vector<7x7x32xf32> to vector<1x1x32xf32>
    %181 = vector.extract_strided_slice %163 {offsets = [2, 1, 0], sizes = [1, 1, 32], strides = [1, 1, 1]} : vector<7x7x32xf32> to vector<1x1x32xf32>
    %182 = vector.extract_strided_slice %163 {offsets = [2, 2, 0], sizes = [1, 1, 32], strides = [1, 1, 1]} : vector<7x7x32xf32> to vector<1x1x32xf32>
    %183 = vector.extract_strided_slice %163 {offsets = [2, 3, 0], sizes = [1, 1, 32], strides = [1, 1, 1]} : vector<7x7x32xf32> to vector<1x1x32xf32>
    %184 = vector.extract_strided_slice %163 {offsets = [2, 4, 0], sizes = [1, 1, 32], strides = [1, 1, 1]} : vector<7x7x32xf32> to vector<1x1x32xf32>
    %185 = vector.extract_strided_slice %163 {offsets = [2, 5, 0], sizes = [1, 1, 32], strides = [1, 1, 1]} : vector<7x7x32xf32> to vector<1x1x32xf32>
    %186 = vector.extract_strided_slice %163 {offsets = [2, 6, 0], sizes = [1, 1, 32], strides = [1, 1, 1]} : vector<7x7x32xf32> to vector<1x1x32xf32>
    %187 = vector.extract_strided_slice %163 {offsets = [3, 0, 0], sizes = [1, 1, 32], strides = [1, 1, 1]} : vector<7x7x32xf32> to vector<1x1x32xf32>
    %188 = vector.extract_strided_slice %163 {offsets = [3, 1, 0], sizes = [1, 1, 32], strides = [1, 1, 1]} : vector<7x7x32xf32> to vector<1x1x32xf32>
    %189 = vector.extract_strided_slice %163 {offsets = [3, 2, 0], sizes = [1, 1, 32], strides = [1, 1, 1]} : vector<7x7x32xf32> to vector<1x1x32xf32>
    %190 = vector.extract_strided_slice %163 {offsets = [3, 3, 0], sizes = [1, 1, 32], strides = [1, 1, 1]} : vector<7x7x32xf32> to vector<1x1x32xf32>
    %191 = vector.extract_strided_slice %163 {offsets = [3, 4, 0], sizes = [1, 1, 32], strides = [1, 1, 1]} : vector<7x7x32xf32> to vector<1x1x32xf32>
    %192 = vector.extract_strided_slice %163 {offsets = [3, 5, 0], sizes = [1, 1, 32], strides = [1, 1, 1]} : vector<7x7x32xf32> to vector<1x1x32xf32>
    %193 = vector.extract_strided_slice %163 {offsets = [3, 6, 0], sizes = [1, 1, 32], strides = [1, 1, 1]} : vector<7x7x32xf32> to vector<1x1x32xf32>
    %194 = vector.extract_strided_slice %163 {offsets = [4, 0, 0], sizes = [1, 1, 32], strides = [1, 1, 1]} : vector<7x7x32xf32> to vector<1x1x32xf32>
    %195 = vector.extract_strided_slice %163 {offsets = [4, 1, 0], sizes = [1, 1, 32], strides = [1, 1, 1]} : vector<7x7x32xf32> to vector<1x1x32xf32>
    %196 = vector.extract_strided_slice %163 {offsets = [4, 2, 0], sizes = [1, 1, 32], strides = [1, 1, 1]} : vector<7x7x32xf32> to vector<1x1x32xf32>
    %197 = vector.extract_strided_slice %163 {offsets = [4, 3, 0], sizes = [1, 1, 32], strides = [1, 1, 1]} : vector<7x7x32xf32> to vector<1x1x32xf32>
    %198 = vector.extract_strided_slice %163 {offsets = [4, 4, 0], sizes = [1, 1, 32], strides = [1, 1, 1]} : vector<7x7x32xf32> to vector<1x1x32xf32>
    %199 = vector.extract_strided_slice %163 {offsets = [4, 5, 0], sizes = [1, 1, 32], strides = [1, 1, 1]} : vector<7x7x32xf32> to vector<1x1x32xf32>
    %200 = vector.extract_strided_slice %163 {offsets = [4, 6, 0], sizes = [1, 1, 32], strides = [1, 1, 1]} : vector<7x7x32xf32> to vector<1x1x32xf32>
    %201 = vector.extract_strided_slice %163 {offsets = [5, 0, 0], sizes = [1, 1, 32], strides = [1, 1, 1]} : vector<7x7x32xf32> to vector<1x1x32xf32>
    %202 = vector.extract_strided_slice %163 {offsets = [5, 1, 0], sizes = [1, 1, 32], strides = [1, 1, 1]} : vector<7x7x32xf32> to vector<1x1x32xf32>
    %203 = vector.extract_strided_slice %163 {offsets = [5, 2, 0], sizes = [1, 1, 32], strides = [1, 1, 1]} : vector<7x7x32xf32> to vector<1x1x32xf32>
    %204 = vector.extract_strided_slice %163 {offsets = [5, 3, 0], sizes = [1, 1, 32], strides = [1, 1, 1]} : vector<7x7x32xf32> to vector<1x1x32xf32>
    %205 = vector.extract_strided_slice %163 {offsets = [5, 4, 0], sizes = [1, 1, 32], strides = [1, 1, 1]} : vector<7x7x32xf32> to vector<1x1x32xf32>
    %206 = vector.extract_strided_slice %163 {offsets = [5, 5, 0], sizes = [1, 1, 32], strides = [1, 1, 1]} : vector<7x7x32xf32> to vector<1x1x32xf32>
    %207 = vector.extract_strided_slice %163 {offsets = [5, 6, 0], sizes = [1, 1, 32], strides = [1, 1, 1]} : vector<7x7x32xf32> to vector<1x1x32xf32>
    %208 = vector.extract_strided_slice %163 {offsets = [6, 0, 0], sizes = [1, 1, 32], strides = [1, 1, 1]} : vector<7x7x32xf32> to vector<1x1x32xf32>
    %209 = vector.extract_strided_slice %163 {offsets = [6, 1, 0], sizes = [1, 1, 32], strides = [1, 1, 1]} : vector<7x7x32xf32> to vector<1x1x32xf32>
    %210 = vector.extract_strided_slice %163 {offsets = [6, 2, 0], sizes = [1, 1, 32], strides = [1, 1, 1]} : vector<7x7x32xf32> to vector<1x1x32xf32>
    %211 = vector.extract_strided_slice %163 {offsets = [6, 3, 0], sizes = [1, 1, 32], strides = [1, 1, 1]} : vector<7x7x32xf32> to vector<1x1x32xf32>
    %212 = vector.extract_strided_slice %163 {offsets = [6, 4, 0], sizes = [1, 1, 32], strides = [1, 1, 1]} : vector<7x7x32xf32> to vector<1x1x32xf32>
    %213 = vector.extract_strided_slice %163 {offsets = [6, 5, 0], sizes = [1, 1, 32], strides = [1, 1, 1]} : vector<7x7x32xf32> to vector<1x1x32xf32>
    %214 = vector.extract_strided_slice %163 {offsets = [6, 6, 0], sizes = [1, 1, 32], strides = [1, 1, 1]} : vector<7x7x32xf32> to vector<1x1x32xf32>
    %215 = tpu.concatenate %166, %167, %168, %169, %170, %171, %172, %173, %174, %175, %176, %177, %178, %179, %180, %181 in 2 : vector<1x1x32xf32>, vector<1x1x32xf32>, vector<1x1x32xf32>, vector<1x1x32xf32>, vector<1x1x32xf32>, vector<1x1x32xf32>, vector<1x1x32xf32>, vector<1x1x32xf32>, vector<1x1x32xf32>, vector<1x1x32xf32>, vector<1x1x32xf32>, vector<1x1x32xf32>, vector<1x1x32xf32>, vector<1x1x32xf32>, vector<1x1x32xf32>, vector<1x1x32xf32> -> vector<1x1x512xf32>
    %216 = tpu.concatenate %182, %183, %184, %185, %186, %187, %188, %189, %190, %191, %192, %193, %194, %195, %196, %197 in 2 : vector<1x1x32xf32>, vector<1x1x32xf32>, vector<1x1x32xf32>, vector<1x1x32xf32>, vector<1x1x32xf32>, vector<1x1x32xf32>, vector<1x1x32xf32>, vector<1x1x32xf32>, vector<1x1x32xf32>, vector<1x1x32xf32>, vector<1x1x32xf32>, vector<1x1x32xf32>, vector<1x1x32xf32>, vector<1x1x32xf32>, vector<1x1x32xf32>, vector<1x1x32xf32> -> vector<1x1x512xf32>
    %217 = tpu.concatenate %198, %199, %200, %201, %202, %203, %204, %205, %206, %207, %208, %209, %210, %211, %212, %213 in 2 : vector<1x1x32xf32>, vector<1x1x32xf32>, vector<1x1x32xf32>, vector<1x1x32xf32>, vector<1x1x32xf32>, vector<1x1x32xf32>, vector<1x1x32xf32>, vector<1x1x32xf32>, vector<1x1x32xf32>, vector<1x1x32xf32>, vector<1x1x32xf32>, vector<1x1x32xf32>, vector<1x1x32xf32>, vector<1x1x32xf32>, vector<1x1x32xf32>, vector<1x1x32xf32> -> vector<1x1x512xf32>
    %218 = tpu.concatenate %215, %216, %217, %214 in 2 : vector<1x1x512xf32>, vector<1x1x512xf32>, vector<1x1x512xf32>, vector<1x1x32xf32> -> vector<1x1x1568xf32>
    %219 = vector.shape_cast %218 : vector<1x1x1568xf32> to vector<1x1568xf32>
    %220 = arith.truncf %219 : vector<1x1568xf32> to vector<1x1568xbf16>
    %cst_45 = arith.constant dense<0.000000e+00> : vector<1x1xf32>
    %221 = tpu.matmul %220, %164, %cst_45 {dimension_numbers = #tpu.dot_dimension_numbers<[1], [0], [0], [1], [0, 0, 1, 1], [], []>} : vector<1x1568xbf16>, vector<1568x1xbf16>, vector<1x1xf32> -> vector<1x1xf32>
    %222 = arith.addf %221, %165 : vector<1x1xf32>
    %223 = vector.shape_cast %222 : vector<1x1xf32> to vector<1x1x1xf32>
    %c0_46 = arith.constant 0 : index
    %c0_47 = arith.constant 0 : index
    %c0_48 = arith.constant 0 : index
    %c0_49 = arith.constant 0 : index
    %224 = vector.load %arg10[%c0_46, %c0_47, %c0_48, %c0_49] : memref<1x1x1x1xf32, #tpu.memory_space<vmem>>, vector<1x1x1x1xf32>
    %225 = vector.shape_cast %224 : vector<1x1x1x1xf32> to vector<1x1x1xf32>
    %226 = vector.shape_cast %223 : vector<1x1x1xf32> to vector<1x1x1x1xf32>
    tpu.vector_store %arg10[%c0_46, %c0_47, %c0_48, %c0_49], %226 {strides = array<i32>} : memref<1x1x1x1xf32, #tpu.memory_space<vmem>>, vector<1x1x1x1xf32>,
    return
  }
  func.func @transform_0(%arg0: i32) -> (i32, i32, i32, i32) {
    %c0_i32 = arith.constant 0 : i32
    %c0_i32_0 = arith.constant 0 : i32
    %c0_i32_1 = arith.constant 0 : i32
    %c0_i32_2 = arith.constant 0 : i32
    return %arg0, %c0_i32, %c0_i32_0, %c0_i32_1 : i32, i32, i32, i32
  }
  func.func @transform_1(%arg0: i32) -> (i32, i32) {
    %c0_i32 = arith.constant 0 : i32
    %c0_i32_0 = arith.constant 0 : i32
    %c0_i32_1 = arith.constant 0 : i32
    return %c0_i32, %c0_i32_0 : i32, i32
  }
  func.func @transform_2(%arg0: i32) -> (i32, i32) {
    %c0_i32 = arith.constant 0 : i32
    %c0_i32_0 = arith.constant 0 : i32
    %c0_i32_1 = arith.constant 0 : i32
    return %c0_i32, %c0_i32_0 : i32, i32
  }
  func.func @transform_3(%arg0: i32) -> (i32, i32) {
    %c0_i32 = arith.constant 0 : i32
    %c0_i32_0 = arith.constant 0 : i32
    %c0_i32_1 = arith.constant 0 : i32
    return %c0_i32, %c0_i32_0 : i32, i32
  }
  func.func @transform_4(%arg0: i32) -> (i32, i32) {
    %c0_i32 = arith.constant 0 : i32
    %c0_i32_0 = arith.constant 0 : i32
    %c0_i32_1 = arith.constant 0 : i32
    return %c0_i32, %c0_i32_0 : i32, i32
  }
  func.func @transform_5(%arg0: i32) -> (i32, i32) {
    %c0_i32 = arith.constant 0 : i32
    %c0_i32_0 = arith.constant 0 : i32
    %c0_i32_1 = arith.constant 0 : i32
    return %c0_i32, %c0_i32_0 : i32, i32
  }
  func.func @transform_6(%arg0: i32) -> (i32, i32) {
    %c0_i32 = arith.constant 0 : i32
    %c0_i32_0 = arith.constant 0 : i32
    %c0_i32_1 = arith.constant 0 : i32
    return %c0_i32, %c0_i32_0 : i32, i32
  }
  func.func @transform_7(%arg0: i32) -> (i32, i32) {
    %c0_i32 = arith.constant 0 : i32
    %c0_i32_0 = arith.constant 0 : i32
    %c0_i32_1 = arith.constant 0 : i32
    return %c0_i32, %c0_i32_0 : i32, i32
  }
  func.func @transform_8(%arg0: i32) -> (i32, i32) {
    %c0_i32 = arith.constant 0 : i32
    %c0_i32_0 = arith.constant 0 : i32
    %c0_i32_1 = arith.constant 0 : i32
    return %c0_i32, %c0_i32_0 : i32, i32
  }
  func.func @transform_9(%arg0: i32) -> (i32, i32, i32, i32) {
    %c0_i32 = arith.constant 0 : i32
    %c0_i32_0 = arith.constant 0 : i32
    %c0_i32_1 = arith.constant 0 : i32
    %c0_i32_2 = arith.constant 0 : i32
    return %arg0, %c0_i32, %c0_i32_0, %c0_i32_1 : i32, i32, i32, i32
  }
}

</mosaic_0001>

<llo_original>
// kernel: patch_discriminator_forward.4
$region0: #{patch_discriminator_forward.4}
  #allocation0 [shape = 'u32[]', space=smem, size = 0x4, offset = 0x4, fixed_abs, tag = 'smem constant byte address 0x4 - core index']
  #allocation1 [shape = 'u32[72,128]{1,0:T(1,128)}', space=vmem, size = 0x9000, scoped, tag = 'internal scratch']
  %s0 = inlined_call_operand.vmem [shape: bf16[2,9,9,32], index: 0, kind: input, shape index: {}]
  %s1 = inlined_call_operand.vmem [shape: bf16[128,16], index: 1, kind: input, shape index: {}]
  %s2 = inlined_call_operand.vmem [shape: f32[1,16], index: 2, kind: input, shape index: {}]
  %s3 = inlined_call_operand.vmem [shape: bf16[2,8,8,16], index: 3, kind: output, shape index: {}]
  %s4 = sld [smem:[#allocation0]]
  $region45: #{patch_discriminator_forward.4} parent=0
    _
  %s6 = ssub.s32 1, %s4
  %s7 = scalar_select 0, %s6, %s4
  loop: start=0, step=1, limit=4
  $region2: #{patch_discriminator_forward.4} parent=0 // loop_pre_header
    _
  $region3: #{patch_discriminator_forward.4} parent=0 // loop_header
    %s9 = sphi 0, %s13
    %p10 = scmp.ge.s32.totalorder %s9, 4
    %s19 = sphi 0, %s21
    %s22 = sphi 0, %s19
    %s23 = sphi 0, %s22
    %s39 = sphi 0, %s23
    %s43 = sphi 0, %s43
    %s45 = sphi 0, %s43
    %s46 = sphi 0, %s45
    %s60 = sphi 0, %s46
    %s64 = sphi 0, %s64
    %s66 = sphi 0, %s64
    %s67 = sphi 0, %s66
    %s81 = sphi 0, %s67
    %s87 = sphi 0, %s89
    %s90 = sphi 0, %s87
    %s91 = sphi 0, %s90
    %s107 = sphi 0, %s91
  $region4: #{patch_discriminator_forward.4} parent=0 // loop_header_branch
    %12 = sbr.rel (%p10) target = $region8
  $region5: #{patch_discriminator_forward.4} parent=0 // loop_body
    %s14 = ssub.s32 %s9, 1
    %s15 = ssub.s32 %s9, 2
    %s16 = sadd.s32 %s9, 1
    %s17 = ssub.s32 %s9, %s16
    %p18 = scmp.eq.s32.totalorder %s17, 0
    %s20 = sadd.s32 %s19, 1
    %s21 = scalar_select %p18, %s19, %s20
    %p24 = pneg %p18
    %p25 = scmp.eq.s32.totalorder %s9, 1
    %p26 = por %p24, %p25
    %p27 = scmp.ne.s32.totalorder %s19, %s22
    %p28 = scmp.eq.s32.totalorder %s9, 0
    %p29 = por %p27, %p28
    %p30 = scmp.ne.s32.totalorder %s19, %s22
    %p31 = scmp.eq.s32.totalorder %s14, 1
    %p32 = por %p30, %p31
    %p33 = scmp.ne.s32.totalorder %s22, %s23
    %p34 = scmp.eq.s32.totalorder %s14, 0
    %p35 = por %p33, %p34
    %p36 = scmp.ne.s32.totalorder %s22, %s23
    %p37 = scmp.eq.s32.totalorder %s15, 1
    %p38 = por %p36, %p37
    %p40 = scmp.ne.s32.totalorder %s23, %s39
    %p41 = scmp.eq.s32.totalorder %s15, 0
    %p42 = por %p40, %p41
    %s44 = sadd.s32 %s43, 1
    %p47 = scmp.eq.s32.totalorder %s9, 1
    %p48 = scmp.ne.s32.totalorder %s43, %s45
    %p49 = scmp.eq.s32.totalorder %s9, 0
    %p50 = por %p48, %p49
    %p51 = scmp.ne.s32.totalorder %s43, %s45
    %p52 = scmp.eq.s32.totalorder %s14, 1
    %p53 = por %p51, %p52
    %p54 = scmp.ne.s32.totalorder %s45, %s46
    %p55 = scmp.eq.s32.totalorder %s14, 0
    %p56 = por %p54, %p55
    %p57 = scmp.ne.s32.totalorder %s45, %s46
    %p58 = scmp.eq.s32.totalorder %s15, 1
    %p59 = por %p57, %p58
    %p61 = scmp.ne.s32.totalorder %s46, %s60
    %p62 = scmp.eq.s32.totalorder %s15, 0
    %p63 = por %p61, %p62
    %s65 = sadd.s32 %s64, 1
    %p68 = scmp.eq.s32.totalorder %s9, 1
    %p69 = scmp.ne.s32.totalorder %s64, %s66
    %p70 = scmp.eq.s32.totalorder %s9, 0
    %p71 = por %p69, %p70
    %p72 = scmp.ne.s32.totalorder %s64, %s66
    %p73 = scmp.eq.s32.totalorder %s14, 1
    %p74 = por %p72, %p73
    %p75 = scmp.ne.s32.totalorder %s66, %s67
    %p76 = scmp.eq.s32.totalorder %s14, 0
    %p77 = por %p75, %p76
    %p78 = scmp.ne.s32.totalorder %s66, %s67
    %p79 = scmp.eq.s32.totalorder %s15, 1
    %p80 = por %p78, %p79
    %p82 = scmp.ne.s32.totalorder %s67, %s81
    %p83 = scmp.eq.s32.totalorder %s15, 0
    %p84 = por %p82, %p83
    %s85 = ssub.s32 %s9, %s16
    %p86 = scmp.eq.s32.totalorder %s85, 0
    %s88 = sadd.s32 %s87, 1
    %s89 = scalar_select %p86, %s87, %s88
    %p92 = pneg %p86
    %p93 = scmp.eq.s32.totalorder %s9, 1
    %p94 = por %p92, %p93
    %p95 = scmp.ne.s32.totalorder %s87, %s90
    %p96 = scmp.eq.s32.totalorder %s9, 0
    %p97 = por %p95, %p96
    %p98 = scmp.ne.s32.totalorder %s87, %s90
    %p99 = scmp.eq.s32.totalorder %s14, 1
    %p100 = por %p98, %p99
    %p101 = scmp.ne.s32.totalorder %s90, %s91
    %p102 = scmp.eq.s32.totalorder %s14, 0
    %p103 = por %p101, %p102
    %p104 = scmp.ne.s32.totalorder %s90, %s91
    %p105 = scmp.eq.s32.totalorder %s15, 1
    %p106 = por %p104, %p105
    %p108 = scmp.ne.s32.totalorder %s91, %s107
    %p109 = scmp.eq.s32.totalorder %s15, 0
    %p110 = por %p108, %p109
    %p111 = scmp.le.s32.totalorder 1, %s9
    %p112 = scmp.lt.s32.totalorder %s9, 3
    %p113 = pnand %p111, %p112
    %p114 = pneg %p113
    // Predicated region
    $region9: #{patch_discriminator_forward.4} parent=5 // pred_check
      _
    $region10: #{patch_discriminator_forward.4} parent=5 // pred_check_branch
      %116 = sbr.rel (%p113) target = $region12
    $region11: #{patch_discriminator_forward.4} parent=5 // pred_region
      %s117 = ssub.s32 %s9, 1
      // Predicated region
      $region13: #{patch_discriminator_forward.4} parent=11 // pred_check
        %p118 = pneg %p56
      $region14: #{patch_discriminator_forward.4} parent=11 // pred_check_branch
        %120 = sbr.rel (%p118) target = $region16
      $region15: #{patch_discriminator_forward.4} parent=11 // pred_region
        _
      $region16: #{patch_discriminator_forward.4} parent=11 // pred_fallthru
        _
      // Predicated region
      $region17: #{patch_discriminator_forward.4} parent=11 // pred_check
        %p121 = pneg %p77
      $region18: #{patch_discriminator_forward.4} parent=11 // pred_check_branch
        %123 = sbr.rel (%p121) target = $region20
      $region19: #{patch_discriminator_forward.4} parent=11 // pred_region
        _
      $region20: #{patch_discriminator_forward.4} parent=11 // pred_fallthru
        _
    $region12: #{patch_discriminator_forward.4} parent=5 // pred_fallthru
      _
    %p124 = scmp.lt.s32.totalorder %s9, 2
    // Predicated region
    $region21: #{patch_discriminator_forward.4} parent=5 // pred_check
      %p125 = pneg %p124
    $region22: #{patch_discriminator_forward.4} parent=5 // pred_check_branch
      %127 = sbr.rel (%p125) target = $region24
    $region23: #{patch_discriminator_forward.4} parent=5 // pred_region
      // Predicated region
      $region25: #{patch_discriminator_forward.4} parent=23 // pred_check
        %p128 = pneg %p29
      $region26: #{patch_discriminator_forward.4} parent=23 // pred_check_branch
        %130 = sbr.rel (%p128) target = $region28
      $region27: #{patch_discriminator_forward.4} parent=23 // pred_region
        %p131 = scmp.lt.s32.totalorder %s9, 1
        %s132 = scalar_select %p131, %s9, 1
        %s133 = smul.addr %s132, 18
        %s134 = smul.addr %s133, 4
        %s135 = scalar_lea.vmem %s0, %s134
      $region28: #{patch_discriminator_forward.4} parent=23 // pred_fallthru
        _
    $region24: #{patch_discriminator_forward.4} parent=5 // pred_fallthru
      _
    %p136 = scmp.le.s32.totalorder 1, %s9
    %p137 = scmp.lt.s32.totalorder %s9, 3
    %p138 = pnand %p136, %p137
    %p139 = pneg %p138
    // Predicated region
    $region29: #{patch_discriminator_forward.4} parent=5 // pred_check
      _
    $region30: #{patch_discriminator_forward.4} parent=5 // pred_check_branch
      %141 = sbr.rel (%p138) target = $region32
    $region31: #{patch_discriminator_forward.4} parent=5 // pred_region
      %s142 = ssub.s32 %s9, 1
      %p143 = scmp.lt.s32.totalorder %s14, 1
      %s144 = scalar_select %p143, %s14, 1
      %s145 = smul.addr %s144, 18
      %s146 = smul.addr %s145, 4
      %s147 = scalar_lea.vmem %s0, %s146
      %p148 = pneg %p35
      %p149 = pneg %p32
      %p150 = pneg %p56
      %p151 = pneg %p53
      %p152 = pneg %p77
      %p153 = pneg %p74
      %p154 = pneg %p103
      %p155 = pneg %p100
      %p156 = scmp.lt.s32.totalorder %s14, 1
      %s157 = scalar_select %p156, %s14, 1
      %s158 = smul.addr %s157, 8
      %s159 = smul.addr %s158, 4
      %s160 = scalar_lea.vmem %s3, %s159
      %p161 = scmp.lt.s32.totalorder %s14, 1
      %s162 = scalar_select %p161, %s14, 1
      %s163 = smul.addr %s162, 18
      %s164 = smul.addr %s163, 4
      %s165 = scalar_lea.vmem %s0, %s164
      %p166 = scmp.lt.s32.totalorder %s14, 1
      %s167 = scalar_select %p166, %s14, 1
      %s168 = smul.addr %s167, 8
      %s169 = smul.addr %s168, 4
      %s170 = scalar_lea.vmem %s3, %s169
      %v171 = vld [vmem:[%s165] sm:$0xf]
      %v172 = vld [vmem:[%s165 + $0x4] sm:$0x1]
      %v173 = vld [vmem:[%s165 + $0x8] sm:$0xf]
      %v174 = vld [vmem:[%s165 + $0xc] sm:$0x1]
      %v175 = vld [vmem:[%s165 + $0x10] sm:$0xf]
      %v176 = vld [vmem:[%s165 + $0x14] sm:$0x1]
      %v177 = vld [vmem:[%s165 + $0x18] sm:$0xf]
      %v178 = vld [vmem:[%s165 + $0x1c] sm:$0x1]
      %v179 = vld [vmem:[%s165 + $0x20] sm:$0xf]
      %v180 = vld [vmem:[%s165 + $0x24] sm:$0x1]
      %v181 = vld [vmem:[%s165 + $0x28] sm:$0xf]
      %v182 = vld [vmem:[%s165 + $0x2c] sm:$0x1]
      %v183 = vld [vmem:[%s165 + $0x30] sm:$0xf]
      %v184 = vld [vmem:[%s165 + $0x34] sm:$0x1]
      %v185 = vld [vmem:[%s165 + $0x38] sm:$0xf]
      %v186 = vld [vmem:[%s165 + $0x3c] sm:$0x1]
      %v187 = vld [vmem:[%s165 + $0x40] sm:$0xf]
      %v188 = vld [vmem:[%s165 + $0x44] sm:$0x1]
      %v189 = vunpack.c.l.bf16 %v171
      %v190 = vunpack.c.l.bf16 %v172
      %v191 = vunpack.c.l.bf16 %v173
      %v192 = vunpack.c.l.bf16 %v174
      %v193 = vunpack.c.l.bf16 %v175
      %v194 = vunpack.c.l.bf16 %v176
      %v195 = vunpack.c.l.bf16 %v177
      %v196 = vunpack.c.l.bf16 %v178
      %v197 = vunpack.c.l.bf16 %v179
      %v198 = vunpack.c.l.bf16 %v180
      %v199 = vunpack.c.l.bf16 %v181
      %v200 = vunpack.c.l.bf16 %v182
      %v201 = vunpack.c.l.bf16 %v183
      %v202 = vunpack.c.l.bf16 %v184
      %v203 = vunpack.c.l.bf16 %v185
      %v204 = vunpack.c.l.bf16 %v186
      %v205 = vunpack.c.l.bf16 %v187
      %v206 = vunpack.c.l.bf16 %v188
      %v207 = vld [vmem:[%s1] sm:$0xf]
      %v208 = vld [vmem:[%s1 + $0x4] sm:$0xf]
      %v209 = vld [vmem:[%s1 + $0x8] sm:$0xf]
      %v210 = vld [vmem:[%s1 + $0xc] sm:$0xf]
      %v211 = vld [vmem:[%s1 + $0x10] sm:$0xf]
      %v212 = vld [vmem:[%s1 + $0x14] sm:$0xf]
      %v213 = vld [vmem:[%s1 + $0x18] sm:$0xf]
      %v214 = vld [vmem:[%s1 + $0x1c] sm:$0xf]
      %v215 = vld [vmem:[%s1 + $0x20] sm:$0xf]
      %v216 = vld [vmem:[%s1 + $0x24] sm:$0xf]
      %v217 = vld [vmem:[%s1 + $0x28] sm:$0xf]
      %v218 = vld [vmem:[%s1 + $0x2c] sm:$0xf]
      %v219 = vld [vmem:[%s1 + $0x30] sm:$0xf]
      %v220 = vld [vmem:[%s1 + $0x34] sm:$0xf]
      %v221 = vld [vmem:[%s1 + $0x38] sm:$0xf]
      %v222 = vld [vmem:[%s1 + $0x3c] sm:$0xf]
      %v223 = vld [vmem:[%s2] sm:$0x1]
      %vm240 = vcmask 1046528
      %v241 = vrot.slane %v189, 1
      %v242 = vrot.slane %v190, 1
      %v243 = vsel %vm240, %v241, %v242
      %v244 = vrot.slane %v191, 1
      %v245 = vrot.slane %v192, 1
      %v246 = vsel %vm240, %v244, %v245
      %v247 = vrot.slane %v193, 1
      %v248 = vrot.slane %v194, 1
      %v249 = vsel %vm240, %v247, %v248
      %v250 = vrot.slane %v195, 1
      %v251 = vrot.slane %v196, 1
      %v252 = vsel %vm240, %v250, %v251
      %v253 = vrot.slane %v197, 1
      %v254 = vrot.slane %v198, 1
      %v255 = vsel %vm240, %v253, %v254
      %v256 = vrot.slane %v199, 1
      %v257 = vrot.slane %v200, 1
      %v258 = vsel %vm240, %v256, %v257
      %v259 = vrot.slane %v201, 1
      %v260 = vrot.slane %v202, 1
      %v261 = vsel %vm240, %v259, %v260
      %v262 = vrot.slane %v203, 1
      %v263 = vrot.slane %v204, 1
      %v264 = vsel %vm240, %v262, %v263
      %265 = vrot.lane.b32.xlu0 %v243, 32
      %v266 = vpop.permute.xlu0 %265
      %267 = vrot.lane.b32.xlu0 %v246, 32
      %v268 = vpop.permute.xlu0 %267
      %269 = vrot.lane.b32.xlu0 %v249, 32
      %v270 = vpop.permute.xlu0 %269
      %271 = vrot.lane.b32.xlu0 %v252, 32
      %v272 = vpop.permute.xlu0 %271
      %273 = vrot.lane.b32.xlu0 %v255, 32
      %v274 = vpop.permute.xlu0 %273
      %275 = vrot.lane.b32.xlu0 %v258, 32
      %v276 = vpop.permute.xlu0 %275
      %277 = vrot.lane.b32.xlu0 %v261, 32
      %v278 = vpop.permute.xlu0 %277
      %279 = vrot.lane.b32.xlu0 %v264, 32
      %v280 = vpop.permute.xlu0 %279
      %290 = vrot.lane.b32.xlu0 %v191, 64
      %v291 = vpop.permute.xlu0 %290
      %292 = vrot.lane.b32.xlu0 %v193, 64
      %v293 = vpop.permute.xlu0 %292
      %294 = vrot.lane.b32.xlu0 %v195, 64
      %v295 = vpop.permute.xlu0 %294
      %296 = vrot.lane.b32.xlu0 %v197, 64
      %v297 = vpop.permute.xlu0 %296
      %298 = vrot.lane.b32.xlu0 %v199, 64
      %v299 = vpop.permute.xlu0 %298
      %300 = vrot.lane.b32.xlu0 %v201, 64
      %v301 = vpop.permute.xlu0 %300
      %302 = vrot.lane.b32.xlu0 %v203, 64
      %v303 = vpop.permute.xlu0 %302
      %304 = vrot.lane.b32.xlu0 %v205, 64
      %v305 = vpop.permute.xlu0 %304
      %v315 = vrot.slane %v205, 1
      %v316 = vrot.slane %v206, 1
      %v317 = vsel %vm240, %v315, %v316
      %318 = vrot.lane.b32.xlu0 %v246, 96
      %v319 = vpop.permute.xlu0 %318
      %320 = vrot.lane.b32.xlu0 %v249, 96
      %v321 = vpop.permute.xlu0 %320
      %322 = vrot.lane.b32.xlu0 %v252, 96
      %v323 = vpop.permute.xlu0 %322
      %324 = vrot.lane.b32.xlu0 %v255, 96
      %v325 = vpop.permute.xlu0 %324
      %326 = vrot.lane.b32.xlu0 %v258, 96
      %v327 = vpop.permute.xlu0 %326
      %328 = vrot.lane.b32.xlu0 %v261, 96
      %v329 = vpop.permute.xlu0 %328
      %330 = vrot.lane.b32.xlu0 %v264, 96
      %v331 = vpop.permute.xlu0 %330
      %332 = vrot.lane.b32.xlu0 %v317, 96
      %v333 = vpop.permute.xlu0 %332
      %vm342 = vcmask 261120
      %v343 = vsel %vm342, %v189, %v266
      %v344 = vsel %vm342, %v191, %v268
      %v345 = vsel %vm342, %v193, %v270
      %v346 = vsel %vm342, %v195, %v272
      %v347 = vsel %vm342, %v197, %v274
      %v348 = vsel %vm342, %v199, %v276
      %v349 = vsel %vm342, %v201, %v278
      %v350 = vsel %vm342, %v203, %v280
      %vm351 = vcmask 523264
      %v352 = vsel %vm351, %v343, %v291
      %v353 = vsel %vm351, %v344, %v293
      %v354 = vsel %vm351, %v345, %v295
      %v355 = vsel %vm351, %v346, %v297
      %v356 = vsel %vm351, %v347, %v299
      %v357 = vsel %vm351, %v348, %v301
      %v358 = vsel %vm351, %v349, %v303
      %v359 = vsel %vm351, %v350, %v305
      %vm360 = vcmask 785408
      %v361 = vsel %vm360, %v352, %v319
      %v362 = vsel %vm360, %v353, %v321
      %v363 = vsel %vm360, %v354, %v323
      %v364 = vsel %vm360, %v355, %v325
      %v365 = vsel %vm360, %v356, %v327
      %v366 = vsel %vm360, %v357, %v329
      %v367 = vsel %vm360, %v358, %v331
      %v368 = vsel %vm360, %v359, %v333
      %v369 = vpack.c.bf16 %v361, %v361
      %v371 = vperm.slane %v223, 0
      %v389 = vunpack.c.l.b16 %v207
      %v390 = vunpack.c.l.b16 %v208
      %v391 = vunpack.c.l.b16 %v209
      %v392 = vunpack.c.l.b16 %v210
      %v393 = vunpack.c.l.b16 %v211
      %v394 = vunpack.c.l.b16 %v212
      %v395 = vunpack.c.l.b16 %v213
      %v396 = vunpack.c.l.b16 %v214
      %v397 = vunpack.c.l.b16 %v215
      %v398 = vunpack.c.l.b16 %v216
      %v399 = vunpack.c.l.b16 %v217
      %v400 = vunpack.c.l.b16 %v218
      %v401 = vunpack.c.l.b16 %v219
      %v402 = vunpack.c.l.b16 %v220
      %v403 = vunpack.c.l.b16 %v221
      %v404 = vunpack.c.l.b16 %v222
      %v405 = vpack.c.b16 %v390, %v389
      %v406 = vpack.c.b16 %v392, %v391
      %v407 = vpack.c.b16 %v394, %v393
      %v408 = vpack.c.b16 %v396, %v395
      %v409 = vpack.c.b16 %v398, %v397
      %v410 = vpack.c.b16 %v400, %v399
      %v411 = vpack.c.b16 %v402, %v401
      %v412 = vpack.c.b16 %v404, %v403
      %421 = vmatpush.bf16.msra.mxu0 %v412
      %422 = vmatpush.bf16.msra.mxu0 %v411
      %423 = vmatpush.bf16.msra.mxu0 %v410
      %424 = vmatpush.bf16.msra.mxu0 %v409
      %425 = vmatpush.bf16.msra.mxu0 %v408
      %426 = vmatpush.bf16.msra.mxu0 %v407
      %427 = vmatpush.bf16.msra.mxu0 %v406
      %428 = vmatpush.bf16.msra.mxu0 %v405
      %429 = vmatmul.bf16.gmra.mxu0 %v369
      %v430 = vpop.f32.mrf.mxu0
      %v431 = vadd.f32 %v371, %v430
      %v432 = vpop.f32.mrf.mxu0
      %433 = vdwg.mxu0
      %vm434 = vcmp.ge.f32.partialorder %v431, 0.0
      %v435 = vmul.f32 %v431, 0.2
      %v436 = vsel %vm434, %v431, %v435
      %v437 = vpack.c.bf16 %v362, %v362
      %438 = vmatpush.bf16.msra.mxu0 %v412
      %439 = vmatpush.bf16.msra.mxu0 %v411
      %440 = vmatpush.bf16.msra.mxu0 %v410
      %441 = vmatpush.bf16.msra.mxu0 %v409
      %442 = vmatpush.bf16.msra.mxu0 %v408
      %443 = vmatpush.bf16.msra.mxu0 %v407
      %444 = vmatpush.bf16.msra.mxu0 %v406
      %445 = vmatpush.bf16.msra.mxu0 %v405
      %446 = vmatmul.bf16.gmra.mxu0 %v437
      %v447 = vpop.f32.mrf.mxu0
      %v448 = vadd.f32 %v371, %v447
      %v449 = vpop.f32.mrf.mxu0
      %450 = vdwg.mxu0
      %vm451 = vcmp.ge.f32.partialorder %v448, 0.0
      %v452 = vmul.f32 %v448, 0.2
      %v453 = vsel %vm451, %v448, %v452
      %v454 = vpack.c.bf16 %v363, %v363
      %455 = vmatpush.bf16.msra.mxu0 %v412
      %456 = vmatpush.bf16.msra.mxu0 %v411
      %457 = vmatpush.bf16.msra.mxu0 %v410
      %458 = vmatpush.bf16.msra.mxu0 %v409
      %459 = vmatpush.bf16.msra.mxu0 %v408
      %460 = vmatpush.bf16.msra.mxu0 %v407
      %461 = vmatpush.bf16.msra.mxu0 %v406
      %462 = vmatpush.bf16.msra.mxu0 %v405
      %463 = vmatmul.bf16.gmra.mxu0 %v454
      %v464 = vpop.f32.mrf.mxu0
      %v465 = vadd.f32 %v371, %v464
      %v466 = vpop.f32.mrf.mxu0
      %467 = vdwg.mxu0
      %vm468 = vcmp.ge.f32.partialorder %v465, 0.0
      %v469 = vmul.f32 %v465, 0.2
      %v470 = vsel %vm468, %v465, %v469
      %v471 = vpack.c.bf16 %v364, %v364
      %472 = vmatpush.bf16.msra.mxu0 %v412
      %473 = vmatpush.bf16.msra.mxu0 %v411
      %474 = vmatpush.bf16.msra.mxu0 %v410
      %475 = vmatpush.bf16.msra.mxu0 %v409
      %476 = vmatpush.bf16.msra.mxu0 %v408
      %477 = vmatpush.bf16.msra.mxu0 %v407
      %478 = vmatpush.bf16.msra.mxu0 %v406
      %479 = vmatpush.bf16.msra.mxu0 %v405
      %480 = vmatmul.bf16.gmra.mxu0 %v471
      %v481 = vpop.f32.mrf.mxu0
      %v482 = vadd.f32 %v371, %v481
      %v483 = vpop.f32.mrf.mxu0
      %484 = vdwg.mxu0
      %vm485 = vcmp.ge.f32.partialorder %v482, 0.0
      %v486 = vmul.f32 %v482, 0.2
      %v487 = vsel %vm485, %v482, %v486
      %v488 = vpack.c.bf16 %v365, %v365
      %489 = vmatpush.bf16.msra.mxu0 %v412
      %490 = vmatpush.bf16.msra.mxu0 %v411
      %491 = vmatpush.bf16.msra.mxu0 %v410
      %492 = vmatpush.bf16.msra.mxu0 %v409
      %493 = vmatpush.bf16.msra.mxu0 %v408
      %494 = vmatpush.bf16.msra.mxu0 %v407
      %495 = vmatpush.bf16.msra.mxu0 %v406
      %496 = vmatpush.bf16.msra.mxu0 %v405
      %497 = vmatmul.bf16.gmra.mxu0 %v488
      %v498 = vpop.f32.mrf.mxu0
      %v499 = vadd.f32 %v371, %v498
      %v500 = vpop.f32.mrf.mxu0
      %501 = vdwg.mxu0
      %vm502 = vcmp.ge.f32.partialorder %v499, 0.0
      %v503 = vmul.f32 %v499, 0.2
      %v504 = vsel %vm502, %v499, %v503
      %v505 = vpack.c.bf16 %v366, %v366
      %506 = vmatpush.bf16.msra.mxu0 %v412
      %507 = vmatpush.bf16.msra.mxu0 %v411
      %508 = vmatpush.bf16.msra.mxu0 %v410
      %509 = vmatpush.bf16.msra.mxu0 %v409
      %510 = vmatpush.bf16.msra.mxu0 %v408
      %511 = vmatpush.bf16.msra.mxu0 %v407
      %512 = vmatpush.bf16.msra.mxu0 %v406
      %513 = vmatpush.bf16.msra.mxu0 %v405
      %514 = vmatmul.bf16.gmra.mxu0 %v505
      %v515 = vpop.f32.mrf.mxu0
      %v516 = vadd.f32 %v371, %v515
      %v517 = vpop.f32.mrf.mxu0
      %518 = vdwg.mxu0
      %vm519 = vcmp.ge.f32.partialorder %v516, 0.0
      %v520 = vmul.f32 %v516, 0.2
      %v521 = vsel %vm519, %v516, %v520
      %v522 = vpack.c.bf16 %v367, %v367
      %523 = vmatpush.bf16.msra.mxu0 %v412
      %524 = vmatpush.bf16.msra.mxu0 %v411
      %525 = vmatpush.bf16.msra.mxu0 %v410
      %526 = vmatpush.bf16.msra.mxu0 %v409
      %527 = vmatpush.bf16.msra.mxu0 %v408
      %528 = vmatpush.bf16.msra.mxu0 %v407
      %529 = vmatpush.bf16.msra.mxu0 %v406
      %530 = vmatpush.bf16.msra.mxu0 %v405
      %531 = vmatmul.bf16.gmra.mxu0 %v522
      %v532 = vpop.f32.mrf.mxu0
      %v533 = vadd.f32 %v371, %v532
      %v534 = vpop.f32.mrf.mxu0
      %535 = vdwg.mxu0
      %vm536 = vcmp.ge.f32.partialorder %v533, 0.0
      %v537 = vmul.f32 %v533, 0.2
      %v538 = vsel %vm536, %v533, %v537
      %v539 = vpack.c.bf16 %v368, %v368
      %540 = vmatpush.bf16.msra.mxu0 %v412
      %541 = vmatpush.bf16.msra.mxu0 %v411
      %542 = vmatpush.bf16.msra.mxu0 %v410
      %543 = vmatpush.bf16.msra.mxu0 %v409
      %544 = vmatpush.bf16.msra.mxu0 %v408
      %545 = vmatpush.bf16.msra.mxu0 %v407
      %546 = vmatpush.bf16.msra.mxu0 %v406
      %547 = vmatpush.bf16.msra.mxu0 %v405
      %548 = vmatmul.bf16.gmra.mxu0 %v539
      %v549 = vpop.f32.mrf.mxu0
      %v550 = vadd.f32 %v371, %v549
      %v551 = vpop.f32.mrf.mxu0
      %552 = vdwg.mxu0
      %vm553 = vcmp.ge.f32.partialorder %v550, 0.0
      %v554 = vmul.f32 %v550, 0.2
      %v555 = vsel %vm553, %v550, %v554
      %v556 = vpack.c.bf16 %v436, %v436
      %v557 = vpack.c.bf16 %v453, %v453
      %v558 = vpack.c.bf16 %v470, %v470
      %v559 = vpack.c.bf16 %v487, %v487
      %v560 = vpack.c.bf16 %v504, %v504
      %v561 = vpack.c.bf16 %v521, %v521
      %v562 = vpack.c.bf16 %v538, %v538
      %v563 = vpack.c.bf16 %v555, %v555
      %vm564 = vcmask 125952
      %565 = vst.msk [vmem:[%s170] sm:$0xf] %vm564, %v556
      %566 = vst.msk [vmem:[%s170 + $0x4] sm:$0xf] %vm564, %v557
      %567 = vst.msk [vmem:[%s170 + $0x8] sm:$0xf] %vm564, %v558
      %568 = vst.msk [vmem:[%s170 + $0xc] sm:$0xf] %vm564, %v559
      %569 = vst.msk [vmem:[%s170 + $0x10] sm:$0xf] %vm564, %v560
      %570 = vst.msk [vmem:[%s170 + $0x14] sm:$0xf] %vm564, %v561
      %571 = vst.msk [vmem:[%s170 + $0x18] sm:$0xf] %vm564, %v562
      %572 = vst.msk [vmem:[%s170 + $0x1c] sm:$0xf] %vm564, %v563
      %p573 = scmp.lt.s32.totalorder %s14, 1
      %s574 = scalar_select %p573, %s14, 1
      %s575 = smul.addr %s574, 8
      %s576 = smul.addr %s575, 4
      %s577 = scalar_lea.vmem %s3, %s576
      // Predicated region
      $region33: #{patch_discriminator_forward.4} parent=31 // pred_check
        %p578 = pneg %p100
      $region34: #{patch_discriminator_forward.4} parent=31 // pred_check_branch
        %580 = sbr.rel (%p578) target = $region36
      $region35: #{patch_discriminator_forward.4} parent=31 // pred_region
        _
      $region36: #{patch_discriminator_forward.4} parent=31 // pred_fallthru
        _
    $region32: #{patch_discriminator_forward.4} parent=5 // pred_fallthru
      _
    %p581 = scmp.le.s32.totalorder 2, %s9
    // Predicated region
    $region37: #{patch_discriminator_forward.4} parent=5 // pred_check
      %p582 = pneg %p581
    $region38: #{patch_discriminator_forward.4} parent=5 // pred_check_branch
      %584 = sbr.rel (%p582) target = $region40
    $region39: #{patch_discriminator_forward.4} parent=5 // pred_region
      %s585 = ssub.s32 %s9, 2
      // Predicated region
      $region41: #{patch_discriminator_forward.4} parent=39 // pred_check
        %p586 = pneg %p106
      $region42: #{patch_discriminator_forward.4} parent=39 // pred_check_branch
        %588 = sbr.rel (%p586) target = $region44
      $region43: #{patch_discriminator_forward.4} parent=39 // pred_region
        %p589 = scmp.lt.s32.totalorder %s15, 1
        %s590 = scalar_select %p589, %s15, 1
        %s591 = smul.addr %s590, 8
        %s592 = smul.addr %s591, 4
        %s593 = scalar_lea.vmem %s3, %s592
      $region44: #{patch_discriminator_forward.4} parent=39 // pred_fallthru
        _
    $region40: #{patch_discriminator_forward.4} parent=5 // pred_fallthru
      _
  $region6: #{patch_discriminator_forward.4} parent=0 // loop_footer
    %s13 = sadd.s32 1, %s9
  $region7: #{patch_discriminator_forward.4} parent=0 // loop_footer_branch
    %8 = sbr.rel target = $region3
  $region8: #{patch_discriminator_forward.4} parent=0 // loop_exit
    _

// kernel: patch_discriminator_forward.5
$region0: #{patch_discriminator_forward.5}
  #allocation0 [shape = 'u32[]', space=smem, size = 0x4, offset = 0x4, fixed_abs, tag = 'smem constant byte address 0x4 - core index']
  #allocation1 [shape = 'u32[72,128]{1,0:T(1,128)}', space=vmem, size = 0x9000, scoped, tag = 'internal scratch']
  #allocation2 [shape = 'f32[1,1]{1,0:T(1,128)S(1)}', space=vmem, size = 0x200, scoped, tag = 'scoped memory for patch_discriminator_forward.5']
  %s0 = inlined_call_operand.vmem [shape: bf16[2,5,5,64], index: 0, kind: input, shape index: {}]
  %s1 = inlined_call_operand.vmem [shape: bf16[256,32], index: 1, kind: input, shape index: {}]
  %s2 = inlined_call_operand.vmem [shape: f32[1,32], index: 2, kind: input, shape index: {}]
  %s3 = inlined_call_operand.vmem [shape: bf16[512,32], index: 3, kind: input, shape index: {}]
  %s4 = inlined_call_operand.vmem [shape: f32[1,32], index: 4, kind: input, shape index: {}]
  %s5 = inlined_call_operand.vmem [shape: bf16[512,32], index: 5, kind: input, shape index: {}]
  %s6 = inlined_call_operand.vmem [shape: f32[1,32], index: 6, kind: input, shape index: {}]
  %s7 = inlined_call_operand.vmem [shape: bf16[1568,1], index: 7, kind: input, shape index: {}]
  %s8 = inlined_call_operand.<no memory space> [shape: f32[1,1], index: 8, kind: input, shape index: {}]
  %s9 = inlined_call_operand.vmem [shape: f32[2,1,1,1], index: 9, kind: output, shape index: {}]
  %s10 = sld [smem:[#allocation0]]
  $region69: #{patch_discriminator_forward.5} parent=0
    _
  %s12 = ssub.s32 1, %s10
  %s13 = scalar_select 0, %s12, %s10
  %v14 = vstv %s8
  %15 = vst [vmem:[#allocation2] sm:$0x1] %v14
  loop: start=0, step=1, limit=4
  $region2: #{patch_discriminator_forward.5} parent=0 // loop_pre_header
    _
  $region3: #{patch_discriminator_forward.5} parent=0 // loop_header
    %s17 = sphi 0, %s21
    %p18 = scmp.ge.s32.totalorder %s17, 4
    %s27 = sphi 0, %s29
    %s30 = sphi 0, %s27
    %s31 = sphi 0, %s30
    %s47 = sphi 0, %s31
    %s51 = sphi 0, %s51
    %s53 = sphi 0, %s51
    %s54 = sphi 0, %s53
    %s68 = sphi 0, %s54
    %s72 = sphi 0, %s72
    %s74 = sphi 0, %s72
    %s75 = sphi 0, %s74
    %s89 = sphi 0, %s75
    %s93 = sphi 0, %s93
    %s95 = sphi 0, %s93
    %s96 = sphi 0, %s95
    %s110 = sphi 0, %s96
    %s114 = sphi 0, %s114
    %s116 = sphi 0, %s114
    %s117 = sphi 0, %s116
    %s131 = sphi 0, %s117
    %s135 = sphi 0, %s135
    %s137 = sphi 0, %s135
    %s138 = sphi 0, %s137
    %s152 = sphi 0, %s138
    %s156 = sphi 0, %s156
    %s158 = sphi 0, %s156
    %s159 = sphi 0, %s158
    %s173 = sphi 0, %s159
    %s177 = sphi 0, %s177
    %s179 = sphi 0, %s177
    %s180 = sphi 0, %s179
    %s194 = sphi 0, %s180
    %s198 = sphi 0, %s198
    %s200 = sphi 0, %s198
    %s201 = sphi 0, %s200
    %s215 = sphi 0, %s201
    %s221 = sphi 0, %s223
    %s224 = sphi 0, %s221
    %s225 = sphi 0, %s224
    %s241 = sphi 0, %s225
  $region4: #{patch_discriminator_forward.5} parent=0 // loop_header_branch
    %20 = sbr.rel (%p18) target = $region8
  $region5: #{patch_discriminator_forward.5} parent=0 // loop_body
    %s22 = ssub.s32 %s17, 1
    %s23 = ssub.s32 %s17, 2
    %s24 = sadd.s32 %s17, 1
    %s25 = ssub.s32 %s17, %s24
    %p26 = scmp.eq.s32.totalorder %s25, 0
    %s28 = sadd.s32 %s27, 1
    %s29 = scalar_select %p26, %s27, %s28
    %p32 = pneg %p26
    %p33 = scmp.eq.s32.totalorder %s17, 1
    %p34 = por %p32, %p33
    %p35 = scmp.ne.s32.totalorder %s27, %s30
    %p36 = scmp.eq.s32.totalorder %s17, 0
    %p37 = por %p35, %p36
    %p38 = scmp.ne.s32.totalorder %s27, %s30
    %p39 = scmp.eq.s32.totalorder %s22, 1
    %p40 = por %p38, %p39
    %p41 = scmp.ne.s32.totalorder %s30, %s31
    %p42 = scmp.eq.s32.totalorder %s22, 0
    %p43 = por %p41, %p42
    %p44 = scmp.ne.s32.totalorder %s30, %s31
    %p45 = scmp.eq.s32.totalorder %s23, 1
    %p46 = por %p44, %p45
    %p48 = scmp.ne.s32.totalorder %s31, %s47
    %p49 = scmp.eq.s32.totalorder %s23, 0
    %p50 = por %p48, %p49
    %s52 = sadd.s32 %s51, 1
    %p55 = scmp.eq.s32.totalorder %s17, 1
    %p56 = scmp.ne.s32.totalorder %s51, %s53
    %p57 = scmp.eq.s32.totalorder %s17, 0
    %p58 = por %p56, %p57
    %p59 = scmp.ne.s32.totalorder %s51, %s53
    %p60 = scmp.eq.s32.totalorder %s22, 1
    %p61 = por %p59, %p60
    %p62 = scmp.ne.s32.totalorder %s53, %s54
    %p63 = scmp.eq.s32.totalorder %s22, 0
    %p64 = por %p62, %p63
    %p65 = scmp.ne.s32.totalorder %s53, %s54
    %p66 = scmp.eq.s32.totalorder %s23, 1
    %p67 = por %p65, %p66
    %p69 = scmp.ne.s32.totalorder %s54, %s68
    %p70 = scmp.eq.s32.totalorder %s23, 0
    %p71 = por %p69, %p70
    %s73 = sadd.s32 %s72, 1
    %p76 = scmp.eq.s32.totalorder %s17, 1
    %p77 = scmp.ne.s32.totalorder %s72, %s74
    %p78 = scmp.eq.s32.totalorder %s17, 0
    %p79 = por %p77, %p78
    %p80 = scmp.ne.s32.totalorder %s72, %s74
    %p81 = scmp.eq.s32.totalorder %s22, 1
    %p82 = por %p80, %p81
    %p83 = scmp.ne.s32.totalorder %s74, %s75
    %p84 = scmp.eq.s32.totalorder %s22, 0
    %p85 = por %p83, %p84
    %p86 = scmp.ne.s32.totalorder %s74, %s75
    %p87 = scmp.eq.s32.totalorder %s23, 1
    %p88 = por %p86, %p87
    %p90 = scmp.ne.s32.totalorder %s75, %s89
    %p91 = scmp.eq.s32.totalorder %s23, 0
    %p92 = por %p90, %p91
    %s94 = sadd.s32 %s93, 1
    %p97 = scmp.eq.s32.totalorder %s17, 1
    %p98 = scmp.ne.s32.totalorder %s93, %s95
    %p99 = scmp.eq.s32.totalorder %s17, 0
    %p100 = por %p98, %p99
    %p101 = scmp.ne.s32.totalorder %s93, %s95
    %p102 = scmp.eq.s32.totalorder %s22, 1
    %p103 = por %p101, %p102
    %p104 = scmp.ne.s32.totalorder %s95, %s96
    %p105 = scmp.eq.s32.totalorder %s22, 0
    %p106 = por %p104, %p105
    %p107 = scmp.ne.s32.totalorder %s95, %s96
    %p108 = scmp.eq.s32.totalorder %s23, 1
    %p109 = por %p107, %p108
    %p111 = scmp.ne.s32.totalorder %s96, %s110
    %p112 = scmp.eq.s32.totalorder %s23, 0
    %p113 = por %p111, %p112
    %s115 = sadd.s32 %s114, 1
    %p118 = scmp.eq.s32.totalorder %s17, 1
    %p119 = scmp.ne.s32.totalorder %s114, %s116
    %p120 = scmp.eq.s32.totalorder %s17, 0
    %p121 = por %p119, %p120
    %p122 = scmp.ne.s32.totalorder %s114, %s116
    %p123 = scmp.eq.s32.totalorder %s22, 1
    %p124 = por %p122, %p123
    %p125 = scmp.ne.s32.totalorder %s116, %s117
    %p126 = scmp.eq.s32.totalorder %s22, 0
    %p127 = por %p125, %p126
    %p128 = scmp.ne.s32.totalorder %s116, %s117
    %p129 = scmp.eq.s32.totalorder %s23, 1
    %p130 = por %p128, %p129
    %p132 = scmp.ne.s32.totalorder %s117, %s131
    %p133 = scmp.eq.s32.totalorder %s23, 0
    %p134 = por %p132, %p133
    %s136 = sadd.s32 %s135, 1
    %p139 = scmp.eq.s32.totalorder %s17, 1
    %p140 = scmp.ne.s32.totalorder %s135, %s137
    %p141 = scmp.eq.s32.totalorder %s17, 0
    %p142 = por %p140, %p141
    %p143 = scmp.ne.s32.totalorder %s135, %s137
    %p144 = scmp.eq.s32.totalorder %s22, 1
    %p145 = por %p143, %p144
    %p146 = scmp.ne.s32.totalorder %s137, %s138
    %p147 = scmp.eq.s32.totalorder %s22, 0
    %p148 = por %p146, %p147
    %p149 = scmp.ne.s32.totalorder %s137, %s138
    %p150 = scmp.eq.s32.totalorder %s23, 1
    %p151 = por %p149, %p150
    %p153 = scmp.ne.s32.totalorder %s138, %s152
    %p154 = scmp.eq.s32.totalorder %s23, 0
    %p155 = por %p153, %p154
    %s157 = sadd.s32 %s156, 1
    %p160 = scmp.eq.s32.totalorder %s17, 1
    %p161 = scmp.ne.s32.totalorder %s156, %s158
    %p162 = scmp.eq.s32.totalorder %s17, 0
    %p163 = por %p161, %p162
    %p164 = scmp.ne.s32.totalorder %s156, %s158
    %p165 = scmp.eq.s32.totalorder %s22, 1
    %p166 = por %p164, %p165
    %p167 = scmp.ne.s32.totalorder %s158, %s159
    %p168 = scmp.eq.s32.totalorder %s22, 0
    %p169 = por %p167, %p168
    %p170 = scmp.ne.s32.totalorder %s158, %s159
    %p171 = scmp.eq.s32.totalorder %s23, 1
    %p172 = por %p170, %p171
    %p174 = scmp.ne.s32.totalorder %s159, %s173
    %p175 = scmp.eq.s32.totalorder %s23, 0
    %p176 = por %p174, %p175
    %s178 = sadd.s32 %s177, 1
    %p181 = scmp.eq.s32.totalorder %s17, 1
    %p182 = scmp.ne.s32.totalorder %s177, %s179
    %p183 = scmp.eq.s32.totalorder %s17, 0
    %p184 = por %p182, %p183
    %p185 = scmp.ne.s32.totalorder %s177, %s179
    %p186 = scmp.eq.s32.totalorder %s22, 1
    %p187 = por %p185, %p186
    %p188 = scmp.ne.s32.totalorder %s179, %s180
    %p189 = scmp.eq.s32.totalorder %s22, 0
    %p190 = por %p188, %p189
    %p191 = scmp.ne.s32.totalorder %s179, %s180
    %p192 = scmp.eq.s32.totalorder %s23, 1
    %p193 = por %p191, %p192
    %p195 = scmp.ne.s32.totalorder %s180, %s194
    %p196 = scmp.eq.s32.totalorder %s23, 0
    %p197 = por %p195, %p196
    %s199 = sadd.s32 %s198, 1
    %p202 = scmp.eq.s32.totalorder %s17, 1
    %p203 = scmp.ne.s32.totalorder %s198, %s200
    %p204 = scmp.eq.s32.totalorder %s17, 0
    %p205 = por %p203, %p204
    %p206 = scmp.ne.s32.totalorder %s198, %s200
    %p207 = scmp.eq.s32.totalorder %s22, 1
    %p208 = por %p206, %p207
    %p209 = scmp.ne.s32.totalorder %s200, %s201
    %p210 = scmp.eq.s32.totalorder %s22, 0
    %p211 = por %p209, %p210
    %p212 = scmp.ne.s32.totalorder %s200, %s201
    %p213 = scmp.eq.s32.totalorder %s23, 1
    %p214 = por %p212, %p213
    %p216 = scmp.ne.s32.totalorder %s201, %s215
    %p217 = scmp.eq.s32.totalorder %s23, 0
    %p218 = por %p216, %p217
    %s219 = ssub.s32 %s17, %s24
    %p220 = scmp.eq.s32.totalorder %s219, 0
    %s222 = sadd.s32 %s221, 1
    %s223 = scalar_select %p220, %s221, %s222
    %p226 = pneg %p220
    %p227 = scmp.eq.s32.totalorder %s17, 1
    %p228 = por %p226, %p227
    %p229 = scmp.ne.s32.totalorder %s221, %s224
    %p230 = scmp.eq.s32.totalorder %s17, 0
    %p231 = por %p229, %p230
    %p232 = scmp.ne.s32.totalorder %s221, %s224
    %p233 = scmp.eq.s32.totalorder %s22, 1
    %p234 = por %p232, %p233
    %p235 = scmp.ne.s32.totalorder %s224, %s225
    %p236 = scmp.eq.s32.totalorder %s22, 0
    %p237 = por %p235, %p236
    %p238 = scmp.ne.s32.totalorder %s224, %s225
    %p239 = scmp.eq.s32.totalorder %s23, 1
    %p240 = por %p238, %p239
    %p242 = scmp.ne.s32.totalorder %s225, %s241
    %p243 = scmp.eq.s32.totalorder %s23, 0
    %p244 = por %p242, %p243
    %p245 = scmp.le.s32.totalorder 1, %s17
    %p246 = scmp.lt.s32.totalorder %s17, 3
    %p247 = pnand %p245, %p246
    %p248 = pneg %p247
    // Predicated region
    $region9: #{patch_discriminator_forward.5} parent=5 // pred_check
      _
    $region10: #{patch_discriminator_forward.5} parent=5 // pred_check_branch
      %250 = sbr.rel (%p247) target = $region12
    $region11: #{patch_discriminator_forward.5} parent=5 // pred_region
      %s251 = ssub.s32 %s17, 1
      // Predicated region
      $region13: #{patch_discriminator_forward.5} parent=11 // pred_check
        %p252 = pneg %p64
      $region14: #{patch_discriminator_forward.5} parent=11 // pred_check_branch
        %254 = sbr.rel (%p252) target = $region16
      $region15: #{patch_discriminator_forward.5} parent=11 // pred_region
        _
      $region16: #{patch_discriminator_forward.5} parent=11 // pred_fallthru
        _
      // Predicated region
      $region17: #{patch_discriminator_forward.5} parent=11 // pred_check
        %p255 = pneg %p85
      $region18: #{patch_discriminator_forward.5} parent=11 // pred_check_branch
        %257 = sbr.rel (%p255) target = $region20
      $region19: #{patch_discriminator_forward.5} parent=11 // pred_region
        _
      $region20: #{patch_discriminator_forward.5} parent=11 // pred_fallthru
        _
      // Predicated region
      $region21: #{patch_discriminator_forward.5} parent=11 // pred_check
        %p258 = pneg %p106
      $region22: #{patch_discriminator_forward.5} parent=11 // pred_check_branch
        %260 = sbr.rel (%p258) target = $region24
      $region23: #{patch_discriminator_forward.5} parent=11 // pred_region
        _
      $region24: #{patch_discriminator_forward.5} parent=11 // pred_fallthru
        _
      // Predicated region
      $region25: #{patch_discriminator_forward.5} parent=11 // pred_check
        %p261 = pneg %p127
      $region26: #{patch_discriminator_forward.5} parent=11 // pred_check_branch
        %263 = sbr.rel (%p261) target = $region28
      $region27: #{patch_discriminator_forward.5} parent=11 // pred_region
        _
      $region28: #{patch_discriminator_forward.5} parent=11 // pred_fallthru
        _
      // Predicated region
      $region29: #{patch_discriminator_forward.5} parent=11 // pred_check
        %p264 = pneg %p148
      $region30: #{patch_discriminator_forward.5} parent=11 // pred_check_branch
        %266 = sbr.rel (%p264) target = $region32
      $region31: #{patch_discriminator_forward.5} parent=11 // pred_region
        _
      $region32: #{patch_discriminator_forward.5} parent=11 // pred_fallthru
        _
      // Predicated region
      $region33: #{patch_discriminator_forward.5} parent=11 // pred_check
        %p267 = pneg %p169
      $region34: #{patch_discriminator_forward.5} parent=11 // pred_check_branch
        %269 = sbr.rel (%p267) target = $region36
      $region35: #{patch_discriminator_forward.5} parent=11 // pred_region
        _
      $region36: #{patch_discriminator_forward.5} parent=11 // pred_fallthru
        _
      // Predicated region
      $region37: #{patch_discriminator_forward.5} parent=11 // pred_check
        %p270 = pneg %p190
      $region38: #{patch_discriminator_forward.5} parent=11 // pred_check_branch
        %272 = sbr.rel (%p270) target = $region40
      $region39: #{patch_discriminator_forward.5} parent=11 // pred_region
        _
      $region40: #{patch_discriminator_forward.5} parent=11 // pred_fallthru
        _
      // Predicated region
      $region41: #{patch_discriminator_forward.5} parent=11 // pred_check
        %p273 = pneg %p211
      $region42: #{patch_discriminator_forward.5} parent=11 // pred_check_branch
        %275 = sbr.rel (%p273) target = $region44
      $region43: #{patch_discriminator_forward.5} parent=11 // pred_region
        _
      $region44: #{patch_discriminator_forward.5} parent=11 // pred_fallthru
        _
    $region12: #{patch_discriminator_forward.5} parent=5 // pred_fallthru
      _
    %p276 = scmp.lt.s32.totalorder %s17, 2
    // Predicated region
    $region45: #{patch_discriminator_forward.5} parent=5 // pred_check
      %p277 = pneg %p276
    $region46: #{patch_discriminator_forward.5} parent=5 // pred_check_branch
      %279 = sbr.rel (%p277) target = $region48
    $region47: #{patch_discriminator_forward.5} parent=5 // pred_region
      // Predicated region
      $region49: #{patch_discriminator_forward.5} parent=47 // pred_check
        %p280 = pneg %p37
      $region50: #{patch_discriminator_forward.5} parent=47 // pred_check_branch
        %282 = sbr.rel (%p280) target = $region52
      $region51: #{patch_discriminator_forward.5} parent=47 // pred_region
        %p283 = scmp.lt.s32.totalorder %s17, 1
        %s284 = scalar_select %p283, %s17, 1
        %s285 = smul.addr %s284, 5
        %s286 = smul.addr %s285, 4
        %s287 = scalar_lea.vmem %s0, %s286
      $region52: #{patch_discriminator_forward.5} parent=47 // pred_fallthru
        _
    $region48: #{patch_discriminator_forward.5} parent=5 // pred_fallthru
      _
    %p288 = scmp.le.s32.totalorder 1, %s17
    %p289 = scmp.lt.s32.totalorder %s17, 3
    %p290 = pnand %p288, %p289
    %p291 = pneg %p290
    // Predicated region
    $region53: #{patch_discriminator_forward.5} parent=5 // pred_check
      _
    $region54: #{patch_discriminator_forward.5} parent=5 // pred_check_branch
      %293 = sbr.rel (%p290) target = $region56
    $region55: #{patch_discriminator_forward.5} parent=5 // pred_region
      %s294 = ssub.s32 %s17, 1
      %p295 = scmp.lt.s32.totalorder %s22, 1
      %s296 = scalar_select %p295, %s22, 1
      %s297 = smul.addr %s296, 5
      %s298 = smul.addr %s297, 4
      %s299 = scalar_lea.vmem %s0, %s298
      %p300 = pneg %p43
      %p301 = pneg %p40
      %p302 = pneg %p64
      %p303 = pneg %p61
      %p304 = pneg %p85
      %p305 = pneg %p82
      %p306 = pneg %p106
      %p307 = pneg %p103
      %p308 = pneg %p127
      %p309 = pneg %p124
      %p310 = pneg %p148
      %p311 = pneg %p145
      %p312 = pneg %p169
      %p313 = pneg %p166
      %p314 = pneg %p190
      %p315 = pneg %p187
      %p316 = pneg %p211
      %p317 = pneg %p208
      %p318 = pneg %p237
      %p319 = pneg %p234
      %p320 = scmp.lt.s32.totalorder %s22, 1
      %s321 = scalar_select %p320, %s22, 1
      %s322 = scalar_lea.vmem %s9, %s321
      %p323 = scmp.lt.s32.totalorder %s22, 1
      %s324 = scalar_select %p323, %s22, 1
      %s325 = smul.addr %s324, 5
      %s326 = smul.addr %s325, 4
      %s327 = scalar_lea.vmem %s0, %s326
      %p328 = scmp.lt.s32.totalorder %s22, 1
      %s329 = scalar_select %p328, %s22, 1
      %s330 = scalar_lea.vmem %s9, %s329
      %v332 = vld [vmem:[%s327] sm:$0x7]
      %v333 = vld [vmem:[%s327 + $0x4] sm:$0x7]
      %v334 = vld [vmem:[%s327 + $0x8] sm:$0x7]
      %v335 = vld [vmem:[%s327 + $0xc] sm:$0x7]
      %v336 = vld [vmem:[%s327 + $0x10] sm:$0x7]
      %v337 = vunpack.c.l.bf16 %v332
      %v338 = vunpack.c.l.bf16 %v333
      %v339 = vunpack.c.l.bf16 %v334
      %v340 = vunpack.c.l.bf16 %v335
      %v341 = vunpack.c.l.bf16 %v336
      %v342 = vld [vmem:[%s1] sm:$0xf]
      %v343 = vld [vmem:[%s1 + $0x4] sm:$0xf]
      %v344 = vld [vmem:[%s1 + $0x8] sm:$0xf]
      %v345 = vld [vmem:[%s1 + $0xc] sm:$0xf]
      %v346 = vld [vmem:[%s1 + $0x10] sm:$0xf]
      %v347 = vld [vmem:[%s1 + $0x14] sm:$0xf]
      %v348 = vld [vmem:[%s1 + $0x18] sm:$0xf]
      %v349 = vld [vmem:[%s1 + $0x1c] sm:$0xf]
      %v350 = vld [vmem:[%s1 + $0x20] sm:$0xf]
      %v351 = vld [vmem:[%s1 + $0x24] sm:$0xf]
      %v352 = vld [vmem:[%s1 + $0x28] sm:$0xf]
      %v353 = vld [vmem:[%s1 + $0x2c] sm:$0xf]
      %v354 = vld [vmem:[%s1 + $0x30] sm:$0xf]
      %v355 = vld [vmem:[%s1 + $0x34] sm:$0xf]
      %v356 = vld [vmem:[%s1 + $0x38] sm:$0xf]
      %v357 = vld [vmem:[%s1 + $0x3c] sm:$0xf]
      %v358 = vld [vmem:[%s1 + $0x40] sm:$0xf]
      %v359 = vld [vmem:[%s1 + $0x44] sm:$0xf]
      %v360 = vld [vmem:[%s1 + $0x48] sm:$0xf]
      %v361 = vld [vmem:[%s1 + $0x4c] sm:$0xf]
      %v362 = vld [vmem:[%s1 + $0x50] sm:$0xf]
      %v363 = vld [vmem:[%s1 + $0x54] sm:$0xf]
      %v364 = vld [vmem:[%s1 + $0x58] sm:$0xf]
      %v365 = vld [vmem:[%s1 + $0x5c] sm:$0xf]
      %v366 = vld [vmem:[%s1 + $0x60] sm:$0xf]
      %v367 = vld [vmem:[%s1 + $0x64] sm:$0xf]
      %v368 = vld [vmem:[%s1 + $0x68] sm:$0xf]
      %v369 = vld [vmem:[%s1 + $0x6c] sm:$0xf]
      %v370 = vld [vmem:[%s1 + $0x70] sm:$0xf]
      %v371 = vld [vmem:[%s1 + $0x74] sm:$0xf]
      %v372 = vld [vmem:[%s1 + $0x78] sm:$0xf]
      %v373 = vld [vmem:[%s1 + $0x7c] sm:$0xf]
      %v374 = vld [vmem:[%s2] sm:$0x1]
      %v379 = vrot.slane %v337, 1
      %v380 = vrot.slane %v338, 1
      %v381 = vrot.slane %v339, 1
      %v382 = vrot.slane %v340, 1
      %383 = vrot.lane.b32.xlu0 %v379, 64
      %v384 = vpop.permute.xlu0 %383
      %385 = vrot.lane.b32.xlu0 %v380, 64
      %v386 = vpop.permute.xlu0 %385
      %387 = vrot.lane.b32.xlu0 %v381, 64
      %v388 = vpop.permute.xlu0 %387
      %389 = vrot.lane.b32.xlu0 %v382, 64
      %v390 = vpop.permute.xlu0 %389
      %v396 = vrot.slane %v341, 1
      %397 = vrot.lane.b32.xlu0 %v396, 64
      %v398 = vpop.permute.xlu0 %397
      %vm400 = vcmask 523264
      %v401 = vsel %vm400, %v337, %v384
      %v402 = vsel %vm400, %v338, %v386
      %v403 = vsel %vm400, %v339, %v388
      %v404 = vsel %vm400, %v340, %v390
      %v405 = vsel %vm400, %v341, %v398
      %v406 = vpack.c.bf16 %v401, %v401
      %v407 = vpack.c.bf16 %v402, %v402
      %v409 = vperm.slane %v374, 0
      %v443 = vunpack.c.l.b16 %v342
      %v444 = vunpack.c.l.b16 %v343
      %v445 = vunpack.c.l.b16 %v344
      %v446 = vunpack.c.l.b16 %v345
      %v447 = vunpack.c.l.b16 %v346
      %v448 = vunpack.c.l.b16 %v347
      %v449 = vunpack.c.l.b16 %v348
      %v450 = vunpack.c.l.b16 %v349
      %v451 = vunpack.c.l.b16 %v350
      %v452 = vunpack.c.l.b16 %v351
      %v453 = vunpack.c.l.b16 %v352
      %v454 = vunpack.c.l.b16 %v353
      %v455 = vunpack.c.l.b16 %v354
      %v456 = vunpack.c.l.b16 %v355
      %v457 = vunpack.c.l.b16 %v356
      %v458 = vunpack.c.l.b16 %v357
      %v459 = vunpack.c.l.b16 %v358
      %v460 = vunpack.c.l.b16 %v359
      %v461 = vunpack.c.l.b16 %v360
      %v462 = vunpack.c.l.b16 %v361
      %v463 = vunpack.c.l.b16 %v362
      %v464 = vunpack.c.l.b16 %v363
      %v465 = vunpack.c.l.b16 %v364
      %v466 = vunpack.c.l.b16 %v365
      %v467 = vunpack.c.l.b16 %v366
      %v468 = vunpack.c.l.b16 %v367
      %v469 = vunpack.c.l.b16 %v368
      %v470 = vunpack.c.l.b16 %v369
      %v471 = vunpack.c.l.b16 %v370
      %v472 = vunpack.c.l.b16 %v371
      %v473 = vunpack.c.l.b16 %v372
      %v474 = vunpack.c.l.b16 %v373
      %v475 = vpack.c.b16 %v444, %v443
      %v476 = vpack.c.b16 %v446, %v445
      %v477 = vpack.c.b16 %v448, %v447
      %v478 = vpack.c.b16 %v450, %v449
      %v479 = vpack.c.b16 %v452, %v451
      %v480 = vpack.c.b16 %v454, %v453
      %v481 = vpack.c.b16 %v456, %v455
      %v482 = vpack.c.b16 %v458, %v457
      %v483 = vpack.c.b16 %v460, %v459
      %v484 = vpack.c.b16 %v462, %v461
      %v485 = vpack.c.b16 %v464, %v463
      %v486 = vpack.c.b16 %v466, %v465
      %v487 = vpack.c.b16 %v468, %v467
      %v488 = vpack.c.b16 %v470, %v469
      %v489 = vpack.c.b16 %v472, %v471
      %v490 = vpack.c.b16 %v474, %v473
      %507 = vmatpush.bf16.msra.mxu0 %v482
      %508 = vmatpush.bf16.msra.mxu0 %v481
      %509 = vmatpush.bf16.msra.mxu0 %v480
      %510 = vmatpush.bf16.msra.mxu0 %v479
      %511 = vmatpush.bf16.msra.mxu0 %v478
      %512 = vmatpush.bf16.msra.mxu0 %v477
      %513 = vmatpush.bf16.msra.mxu0 %v476
      %514 = vmatpush.bf16.msra.mxu0 %v475
      %515 = vmatmul.bf16.gmra.mxu0 %v406
      %v516 = vpop.f32.mrf.mxu0
      %v517 = vadd.f32 %v409, %v516
      %v518 = vpop.f32.mrf.mxu0
      %519 = vdwg.mxu0
      %520 = vmatpush.bf16.msra.mxu0 %v490
      %521 = vmatpush.bf16.msra.mxu0 %v489
      %522 = vmatpush.bf16.msra.mxu0 %v488
      %523 = vmatpush.bf16.msra.mxu0 %v487
      %524 = vmatpush.bf16.msra.mxu0 %v486
      %525 = vmatpush.bf16.msra.mxu0 %v485
      %526 = vmatpush.bf16.msra.mxu0 %v484
      %527 = vmatpush.bf16.msra.mxu0 %v483
      %528 = vmatmul.bf16.gmra.mxu0 %v407
      %v529 = vpop.f32.mrf.mxu0
      %v530 = vadd.f32 %v517, %v529
      %v531 = vpop.f32.mrf.mxu0
      %532 = vdwg.mxu0
      %vm533 = vcmp.ge.f32.partialorder %v530, 0.0
      %v534 = vmul.f32 %v530, 0.2
      %v535 = vsel %vm533, %v530, %v534
      %v536 = vpack.c.bf16 %v403, %v403
      %537 = vmatpush.bf16.msra.mxu0 %v482
      %538 = vmatpush.bf16.msra.mxu0 %v481
      %539 = vmatpush.bf16.msra.mxu0 %v480
      %540 = vmatpush.bf16.msra.mxu0 %v479
      %541 = vmatpush.bf16.msra.mxu0 %v478
      %542 = vmatpush.bf16.msra.mxu0 %v477
      %543 = vmatpush.bf16.msra.mxu0 %v476
      %544 = vmatpush.bf16.msra.mxu0 %v475
      %545 = vmatmul.bf16.gmra.mxu0 %v407
      %v546 = vpop.f32.mrf.mxu0
      %v547 = vadd.f32 %v409, %v546
      %v548 = vpop.f32.mrf.mxu0
      %549 = vdwg.mxu0
      %550 = vmatpush.bf16.msra.mxu0 %v490
      %551 = vmatpush.bf16.msra.mxu0 %v489
      %552 = vmatpush.bf16.msra.mxu0 %v488
      %553 = vmatpush.bf16.msra.mxu0 %v487
      %554 = vmatpush.bf16.msra.mxu0 %v486
      %555 = vmatpush.bf16.msra.mxu0 %v485
      %556 = vmatpush.bf16.msra.mxu0 %v484
      %557 = vmatpush.bf16.msra.mxu0 %v483
      %558 = vmatmul.bf16.gmra.mxu0 %v536
      %v559 = vpop.f32.mrf.mxu0
      %v560 = vadd.f32 %v547, %v559
      %v561 = vpop.f32.mrf.mxu0
      %562 = vdwg.mxu0
      %vm563 = vcmp.ge.f32.partialorder %v560, 0.0
      %v564 = vmul.f32 %v560, 0.2
      %v565 = vsel %vm563, %v560, %v564
      %v566 = vpack.c.bf16 %v404, %v404
      %567 = vmatpush.bf16.msra.mxu0 %v482
      %568 = vmatpush.bf16.msra.mxu0 %v481
      %569 = vmatpush.bf16.msra.mxu0 %v480
      %570 = vmatpush.bf16.msra.mxu0 %v479
      %571 = vmatpush.bf16.msra.mxu0 %v478
      %572 = vmatpush.bf16.msra.mxu0 %v477
      %573 = vmatpush.bf16.msra.mxu0 %v476
      %574 = vmatpush.bf16.msra.mxu0 %v475
      %575 = vmatmul.bf16.gmra.mxu0 %v536
      %v576 = vpop.f32.mrf.mxu0
      %v577 = vadd.f32 %v409, %v576
      %v578 = vpop.f32.mrf.mxu0
      %579 = vdwg.mxu0
      %580 = vmatpush.bf16.msra.mxu0 %v490
      %581 = vmatpush.bf16.msra.mxu0 %v489
      %582 = vmatpush.bf16.msra.mxu0 %v488
      %583 = vmatpush.bf16.msra.mxu0 %v487
      %584 = vmatpush.bf16.msra.mxu0 %v486
      %585 = vmatpush.bf16.msra.mxu0 %v485
      %586 = vmatpush.bf16.msra.mxu0 %v484
      %587 = vmatpush.bf16.msra.mxu0 %v483
      %588 = vmatmul.bf16.gmra.mxu0 %v566
      %v589 = vpop.f32.mrf.mxu0
      %v590 = vadd.f32 %v577, %v589
      %v591 = vpop.f32.mrf.mxu0
      %592 = vdwg.mxu0
      %vm593 = vcmp.ge.f32.partialorder %v590, 0.0
      %v594 = vmul.f32 %v590, 0.2
      %v595 = vsel %vm593, %v590, %v594
      %v596 = vpack.c.bf16 %v405, %v405
      %597 = vmatpush.bf16.msra.mxu0 %v482
      %598 = vmatpush.bf16.msra.mxu0 %v481
      %599 = vmatpush.bf16.msra.mxu0 %v480
      %600 = vmatpush.bf16.msra.mxu0 %v479
      %601 = vmatpush.bf16.msra.mxu0 %v478
      %602 = vmatpush.bf16.msra.mxu0 %v477
      %603 = vmatpush.bf16.msra.mxu0 %v476
      %604 = vmatpush.bf16.msra.mxu0 %v475
      %605 = vmatmul.bf16.gmra.mxu0 %v566
      %v606 = vpop.f32.mrf.mxu0
      %v607 = vadd.f32 %v409, %v606
      %v608 = vpop.f32.mrf.mxu0
      %609 = vdwg.mxu0
      %610 = vmatpush.bf16.msra.mxu0 %v490
      %611 = vmatpush.bf16.msra.mxu0 %v489
      %612 = vmatpush.bf16.msra.mxu0 %v488
      %613 = vmatpush.bf16.msra.mxu0 %v487
      %614 = vmatpush.bf16.msra.mxu0 %v486
      %615 = vmatpush.bf16.msra.mxu0 %v485
      %616 = vmatpush.bf16.msra.mxu0 %v484
      %617 = vmatpush.bf16.msra.mxu0 %v483
      %618 = vmatmul.bf16.gmra.mxu0 %v596
      %v619 = vpop.f32.mrf.mxu0
      %v620 = vadd.f32 %v607, %v619
      %v621 = vpop.f32.mrf.mxu0
      %622 = vdwg.mxu0
      %vm623 = vcmp.ge.f32.partialorder %v620, 0.0
      %v624 = vmul.f32 %v620, 0.2
      %v625 = vsel %vm623, %v620, %v624
      %v630 = vrot.slane %v535, 7
      %v631 = vrot.slane %v565, 7
      %v632 = vrot.slane %v595, 7
      %v633 = vrot.slane %v625, 7
      %vm638 = vcmask 1040384
      %v639 = vsel %vm638, 0.0, %v630
      %v640 = vsel %vm638, 0.0, %v631
      %v641 = vsel %vm638, 0.0, %v632
      %v642 = vsel %vm638, 0.0, %v633
      %vm643 = vcmask 1044480
      %v644 = vsel %vm643, %v639, 0.0
      %v645 = vsel %vm643, %v640, 0.0
      %v646 = vsel %vm643, %v641, 0.0
      %v647 = vsel %vm643, %v642, 0.0
      %v651 = vrot.slane 0.0, 1
      %v652 = vrot.slane %v645, 1
      %v653 = vrot.slane %v647, 1
      %v657 = vrot.slane 0.0, 2
      %v658 = vrot.slane %v645, 2
      %v659 = vrot.slane %v647, 2
      %v663 = vsel %vm638, 0.0, %v651
      %v664 = vsel %vm638, %v645, %v652
      %v665 = vsel %vm638, %v647, %v653
      %vm666 = vcmask 1041408
      %v667 = vsel %vm666, %v663, %v657
      %v668 = vsel %vm666, %v664, %v658
      %v669 = vsel %vm666, %v665, %v659
      %v670 = vrot.slane 0.0, 3
      %v671 = vrot.slane %v645, 3
      %v672 = vrot.slane %v647, 3
      %v676 = vsel %vm638, %v651, %v657
      %v677 = vsel %vm638, %v652, %v658
      %v678 = vsel %vm638, %v653, %v659
      %v679 = vsel %vm666, %v676, %v670
      %v680 = vsel %vm666, %v677, %v671
      %v681 = vsel %vm666, %v678, %v672
      %v684 = vrot.slane %v644, 1
      %v685 = vrot.slane %v646, 1
      %v688 = vrot.slane %v644, 2
      %v689 = vrot.slane %v646, 2
      %v692 = vsel %vm638, %v644, %v684
      %v693 = vsel %vm638, %v646, %v685
      %v694 = vsel %vm666, %v692, %v688
      %v695 = vsel %vm666, %v693, %v689
      %v696 = vrot.slane %v644, 3
      %v697 = vrot.slane %v646, 3
      %v700 = vsel %vm638, %v684, %v688
      %v701 = vsel %vm638, %v685, %v689
      %v702 = vsel %vm666, %v700, %v696
      %v703 = vsel %vm666, %v701, %v697
      %707 = vrot.lane.b32.xlu0 %v679, 32
      %v708 = vpop.permute.xlu0 %707
      %709 = vrot.lane.b32.xlu0 %v680, 32
      %v710 = vpop.permute.xlu0 %709
      %711 = vrot.lane.b32.xlu0 %v681, 32
      %v712 = vpop.permute.xlu0 %711
      %719 = vrot.lane.b32.xlu0 %v694, 64
      %v720 = vpop.permute.xlu0 %719
      %721 = vrot.lane.b32.xlu0 %v695, 64
      %v722 = vpop.permute.xlu0 %721
      %723 = vrot.lane.b32.xlu0 %v667, 64
      %v724 = vpop.permute.xlu0 %723
      %730 = vrot.lane.b32.xlu0 %v702, 96
      %v731 = vpop.permute.xlu0 %730
      %732 = vrot.lane.b32.xlu0 %v703, 96
      %v733 = vpop.permute.xlu0 %732
      %734 = vrot.lane.b32.xlu0 %v679, 96
      %v735 = vpop.permute.xlu0 %734
      %vm739 = vcmask 261120
      %v740 = vsel %vm739, %v667, %v708
      %v741 = vsel %vm739, %v668, %v710
      %v742 = vsel %vm739, %v669, %v712
      %v743 = vsel %vm400, %v740, %v720
      %v744 = vsel %vm400, %v741, %v722
      %v745 = vsel %vm400, %v742, %v724
      %vm746 = vcmask 785408
      %v747 = vsel %vm746, %v743, %v731
      %v748 = vsel %vm746, %v744, %v733
      %v749 = vsel %vm746, %v745, %v735
      %v750 = vld [vmem:[%s3] sm:$0xf]
      %v751 = vld [vmem:[%s3 + $0x4] sm:$0xf]
      %v752 = vld [vmem:[%s3 + $0x8] sm:$0xf]
      %v753 = vld [vmem:[%s3 + $0xc] sm:$0xf]
      %v754 = vld [vmem:[%s3 + $0x10] sm:$0xf]
      %v755 = vld [vmem:[%s3 + $0x14] sm:$0xf]
      %v756 = vld [vmem:[%s3 + $0x18] sm:$0xf]
      %v757 = vld [vmem:[%s3 + $0x1c] sm:$0xf]
      %v758 = vld [vmem:[%s3 + $0x20] sm:$0xf]
      %v759 = vld [vmem:[%s3 + $0x24] sm:$0xf]
      %v760 = vld [vmem:[%s3 + $0x28] sm:$0xf]
      %v761 = vld [vmem:[%s3 + $0x2c] sm:$0xf]
      %v762 = vld [vmem:[%s3 + $0x30] sm:$0xf]
      %v763 = vld [vmem:[%s3 + $0x34] sm:$0xf]
      %v764 = vld [vmem:[%s3 + $0x38] sm:$0xf]
      %v765 = vld [vmem:[%s3 + $0x3c] sm:$0xf]
      %v766 = vld [vmem:[%s3 + $0x40] sm:$0xf]
      %v767 = vld [vmem:[%s3 + $0x44] sm:$0xf]
      %v768 = vld [vmem:[%s3 + $0x48] sm:$0xf]
      %v769 = vld [vmem:[%s3 + $0x4c] sm:$0xf]
      %v770 = vld [vmem:[%s3 + $0x50] sm:$0xf]
      %v771 = vld [vmem:[%s3 + $0x54] sm:$0xf]
      %v772 = vld [vmem:[%s3 + $0x58] sm:$0xf]
      %v773 = vld [vmem:[%s3 + $0x5c] sm:$0xf]
      %v774 = vld [vmem:[%s3 + $0x60] sm:$0xf]
      %v775 = vld [vmem:[%s3 + $0x64] sm:$0xf]
      %v776 = vld [vmem:[%s3 + $0x68] sm:$0xf]
      %v777 = vld [vmem:[%s3 + $0x6c] sm:$0xf]
      %v778 = vld [vmem:[%s3 + $0x70] sm:$0xf]
      %v779 = vld [vmem:[%s3 + $0x74] sm:$0xf]
      %v780 = vld [vmem:[%s3 + $0x78] sm:$0xf]
      %v781 = vld [vmem:[%s3 + $0x7c] sm:$0xf]
      %v782 = vld [vmem:[%s3 + $0x80] sm:$0xf]
      %v783 = vld [vmem:[%s3 + $0x84] sm:$0xf]
      %v784 = vld [vmem:[%s3 + $0x88] sm:$0xf]
      %v785 = vld [vmem:[%s3 + $0x8c] sm:$0xf]
      %v786 = vld [vmem:[%s3 + $0x90] sm:$0xf]
      %v787 = vld [vmem:[%s3 + $0x94] sm:$0xf]
      %v788 = vld [vmem:[%s3 + $0x98] sm:$0xf]
      %v789 = vld [vmem:[%s3 + $0x9c] sm:$0xf]
      %v790 = vld [vmem:[%s3 + $0xa0] sm:$0xf]
      %v791 = vld [vmem:[%s3 + $0xa4] sm:$0xf]
      %v792 = vld [vmem:[%s3 + $0xa8] sm:$0xf]
      %v793 = vld [vmem:[%s3 + $0xac] sm:$0xf]
      %v794 = vld [vmem:[%s3 + $0xb0] sm:$0xf]
      %v795 = vld [vmem:[%s3 + $0xb4] sm:$0xf]
      %v796 = vld [vmem:[%s3 + $0xb8] sm:$0xf]
      %v797 = vld [vmem:[%s3 + $0xbc] sm:$0xf]
      %v798 = vld [vmem:[%s3 + $0xc0] sm:$0xf]
      %v799 = vld [vmem:[%s3 + $0xc4] sm:$0xf]
      %v800 = vld [vmem:[%s3 + $0xc8] sm:$0xf]
      %v801 = vld [vmem:[%s3 + $0xcc] sm:$0xf]
      %v802 = vld [vmem:[%s3 + $0xd0] sm:$0xf]
      %v803 = vld [vmem:[%s3 + $0xd4] sm:$0xf]
      %v804 = vld [vmem:[%s3 + $0xd8] sm:$0xf]
      %v805 = vld [vmem:[%s3 + $0xdc] sm:$0xf]
      %v806 = vld [vmem:[%s3 + $0xe0] sm:$0xf]
      %v807 = vld [vmem:[%s3 + $0xe4] sm:$0xf]
      %v808 = vld [vmem:[%s3 + $0xe8] sm:$0xf]
      %v809 = vld [vmem:[%s3 + $0xec] sm:$0xf]
      %v810 = vld [vmem:[%s3 + $0xf0] sm:$0xf]
      %v811 = vld [vmem:[%s3 + $0xf4] sm:$0xf]
      %v812 = vld [vmem:[%s3 + $0xf8] sm:$0xf]
      %v813 = vld [vmem:[%s3 + $0xfc] sm:$0xf]
      %v814 = vld [vmem:[%s4] sm:$0x1]
      %v817 = vrot.slane %v747, 1
      %v818 = vrot.slane %v748, 1
      %v822 = vrot.slane %v749, 1
      %v824 = vpack.c.bf16 %v747, %v747
      %v825 = vpack.c.bf16 %v817, %v817
      %v826 = vpack.c.bf16 %v748, %v748
      %v827 = vpack.c.bf16 %v818, %v818
      %v829 = vperm.slane %v814, 0
      %v895 = vunpack.c.l.b16 %v750
      %v896 = vunpack.c.l.b16 %v751
      %v897 = vunpack.c.l.b16 %v752
      %v898 = vunpack.c.l.b16 %v753
      %v899 = vunpack.c.l.b16 %v754
      %v900 = vunpack.c.l.b16 %v755
      %v901 = vunpack.c.l.b16 %v756
      %v902 = vunpack.c.l.b16 %v757
      %v903 = vunpack.c.l.b16 %v758
      %v904 = vunpack.c.l.b16 %v759
      %v905 = vunpack.c.l.b16 %v760
      %v906 = vunpack.c.l.b16 %v761
      %v907 = vunpack.c.l.b16 %v762
      %v908 = vunpack.c.l.b16 %v763
      %v909 = vunpack.c.l.b16 %v764
      %v910 = vunpack.c.l.b16 %v765
      %v911 = vunpack.c.l.b16 %v766
      %v912 = vunpack.c.l.b16 %v767
      %v913 = vunpack.c.l.b16 %v768
      %v914 = vunpack.c.l.b16 %v769
      %v915 = vunpack.c.l.b16 %v770
      %v916 = vunpack.c.l.b16 %v771
      %v917 = vunpack.c.l.b16 %v772
      %v918 = vunpack.c.l.b16 %v773
      %v919 = vunpack.c.l.b16 %v774
      %v920 = vunpack.c.l.b16 %v775
      %v921 = vunpack.c.l.b16 %v776
      %v922 = vunpack.c.l.b16 %v777
      %v923 = vunpack.c.l.b16 %v778
      %v924 = vunpack.c.l.b16 %v779
      %v925 = vunpack.c.l.b16 %v780
      %v926 = vunpack.c.l.b16 %v781
      %v927 = vunpack.c.l.b16 %v782
      %v928 = vunpack.c.l.b16 %v783
      %v929 = vunpack.c.l.b16 %v784
      %v930 = vunpack.c.l.b16 %v785
      %v931 = vunpack.c.l.b16 %v786
      %v932 = vunpack.c.l.b16 %v787
      %v933 = vunpack.c.l.b16 %v788
      %v934 = vunpack.c.l.b16 %v789
      %v935 = vunpack.c.l.b16 %v790
      %v936 = vunpack.c.l.b16 %v791
      %v937 = vunpack.c.l.b16 %v792
      %v938 = vunpack.c.l.b16 %v793
      %v939 = vunpack.c.l.b16 %v794
      %v940 = vunpack.c.l.b16 %v795
      %v941 = vunpack.c.l.b16 %v796
      %v942 = vunpack.c.l.b16 %v797
      %v943 = vunpack.c.l.b16 %v798
      %v944 = vunpack.c.l.b16 %v799
      %v945 = vunpack.c.l.b16 %v800
      %v946 = vunpack.c.l.b16 %v801
      %v947 = vunpack.c.l.b16 %v802
      %v948 = vunpack.c.l.b16 %v803
      %v949 = vunpack.c.l.b16 %v804
      %v950 = vunpack.c.l.b16 %v805
      %v951 = vunpack.c.l.b16 %v806
      %v952 = vunpack.c.l.b16 %v807
      %v953 = vunpack.c.l.b16 %v808
      %v954 = vunpack.c.l.b16 %v809
      %v955 = vunpack.c.l.b16 %v810
      %v956 = vunpack.c.l.b16 %v811
      %v957 = vunpack.c.l.b16 %v812
      %v958 = vunpack.c.l.b16 %v813
      %v959 = vpack.c.b16 %v896, %v895
      %v960 = vpack.c.b16 %v898, %v897
      %v961 = vpack.c.b16 %v900, %v899
      %v962 = vpack.c.b16 %v902, %v901
      %v963 = vpack.c.b16 %v904, %v903
      %v964 = vpack.c.b16 %v906, %v905
      %v965 = vpack.c.b16 %v908, %v907
      %v966 = vpack.c.b16 %v910, %v909
      %v967 = vpack.c.b16 %v912, %v911
      %v968 = vpack.c.b16 %v914, %v913
      %v969 = vpack.c.b16 %v916, %v915
      %v970 = vpack.c.b16 %v918, %v917
      %v971 = vpack.c.b16 %v920, %v919
      %v972 = vpack.c.b16 %v922, %v921
      %v973 = vpack.c.b16 %v924, %v923
      %v974 = vpack.c.b16 %v926, %v925
      %v975 = vpack.c.b16 %v928, %v927
      %v976 = vpack.c.b16 %v930, %v929
      %v977 = vpack.c.b16 %v932, %v931
      %v978 = vpack.c.b16 %v934, %v933
      %v979 = vpack.c.b16 %v936, %v935
      %v980 = vpack.c.b16 %v938, %v937
      %v981 = vpack.c.b16 %v940, %v939
      %v982 = vpack.c.b16 %v942, %v941
      %v983 = vpack.c.b16 %v944, %v943
      %v984 = vpack.c.b16 %v946, %v945
      %v985 = vpack.c.b16 %v948, %v947
      %v986 = vpack.c.b16 %v950, %v949
      %v987 = vpack.c.b16 %v952, %v951
      %v988 = vpack.c.b16 %v954, %v953
      %v989 = vpack.c.b16 %v956, %v955
      %v990 = vpack.c.b16 %v958, %v957
      %1023 = vmatpush.bf16.msra.mxu0 %v966
      %1024 = vmatpush.bf16.msra.mxu0 %v965
      %1025 = vmatpush.bf16.msra.mxu0 %v964
      %1026 = vmatpush.bf16.msra.mxu0 %v963
      %1027 = vmatpush.bf16.msra.mxu0 %v962
      %1028 = vmatpush.bf16.msra.mxu0 %v961
      %1029 = vmatpush.bf16.msra.mxu0 %v960
      %1030 = vmatpush.bf16.msra.mxu0 %v959
      %1031 = vmatmul.bf16.gmra.mxu0 %v824
      %v1032 = vpop.f32.mrf.mxu0
      %v1033 = vadd.f32 %v829, %v1032
      %v1034 = vpop.f32.mrf.mxu0
      %1035 = vdwg.mxu0
      %1036 = vmatpush.bf16.msra.mxu0 %v974
      %1037 = vmatpush.bf16.msra.mxu0 %v973
      %1038 = vmatpush.bf16.msra.mxu0 %v972
      %1039 = vmatpush.bf16.msra.mxu0 %v971
      %1040 = vmatpush.bf16.msra.mxu0 %v970
      %1041 = vmatpush.bf16.msra.mxu0 %v969
      %1042 = vmatpush.bf16.msra.mxu0 %v968
      %1043 = vmatpush.bf16.msra.mxu0 %v967
      %1044 = vmatmul.bf16.gmra.mxu0 %v825
      %v1045 = vpop.f32.mrf.mxu0
      %v1046 = vadd.f32 %v1033, %v1045
      %v1047 = vpop.f32.mrf.mxu0
      %1048 = vdwg.mxu0
      %1049 = vmatpush.bf16.msra.mxu0 %v982
      %1050 = vmatpush.bf16.msra.mxu0 %v981
      %1051 = vmatpush.bf16.msra.mxu0 %v980
      %1052 = vmatpush.bf16.msra.mxu0 %v979
      %1053 = vmatpush.bf16.msra.mxu0 %v978
      %1054 = vmatpush.bf16.msra.mxu0 %v977
      %1055 = vmatpush.bf16.msra.mxu0 %v976
      %1056 = vmatpush.bf16.msra.mxu0 %v975
      %1057 = vmatmul.bf16.gmra.mxu0 %v826
      %v1058 = vpop.f32.mrf.mxu0
      %v1059 = vadd.f32 %v1046, %v1058
      %v1060 = vpop.f32.mrf.mxu0
      %1061 = vdwg.mxu0
      %1062 = vmatpush.bf16.msra.mxu0 %v990
      %1063 = vmatpush.bf16.msra.mxu0 %v989
      %1064 = vmatpush.bf16.msra.mxu0 %v988
      %1065 = vmatpush.bf16.msra.mxu0 %v987
      %1066 = vmatpush.bf16.msra.mxu0 %v986
      %1067 = vmatpush.bf16.msra.mxu0 %v985
      %1068 = vmatpush.bf16.msra.mxu0 %v984
      %1069 = vmatpush.bf16.msra.mxu0 %v983
      %1070 = vmatmul.bf16.gmra.mxu0 %v827
      %v1071 = vpop.f32.mrf.mxu0
      %v1072 = vadd.f32 %v1059, %v1071
      %v1073 = vpop.f32.mrf.mxu0
      %1074 = vdwg.mxu0
      %vm1075 = vcmp.ge.f32.partialorder %v1072, 0.0
      %v1076 = vmul.f32 %v1072, 0.2
      %v1077 = vsel %vm1075, %v1072, %v1076
      %v1078 = vpack.c.bf16 %v749, %v749
      %v1079 = vpack.c.bf16 %v822, %v822
      %1080 = vmatpush.bf16.msra.mxu0 %v966
      %1081 = vmatpush.bf16.msra.mxu0 %v965
      %1082 = vmatpush.bf16.msra.mxu0 %v964
      %1083 = vmatpush.bf16.msra.mxu0 %v963
      %1084 = vmatpush.bf16.msra.mxu0 %v962
      %1085 = vmatpush.bf16.msra.mxu0 %v961
      %1086 = vmatpush.bf16.msra.mxu0 %v960
      %1087 = vmatpush.bf16.msra.mxu0 %v959
      %1088 = vmatmul.bf16.gmra.mxu0 %v826
      %v1089 = vpop.f32.mrf.mxu0
      %v1090 = vadd.f32 %v829, %v1089
      %v1091 = vpop.f32.mrf.mxu0
      %1092 = vdwg.mxu0
      %1093 = vmatpush.bf16.msra.mxu0 %v974
      %1094 = vmatpush.bf16.msra.mxu0 %v973
      %1095 = vmatpush.bf16.msra.mxu0 %v972
      %1096 = vmatpush.bf16.msra.mxu0 %v971
      %1097 = vmatpush.bf16.msra.mxu0 %v970
      %1098 = vmatpush.bf16.msra.mxu0 %v969
      %1099 = vmatpush.bf16.msra.mxu0 %v968
      %1100 = vmatpush.bf16.msra.mxu0 %v967
      %1101 = vmatmul.bf16.gmra.mxu0 %v827
      %v1102 = vpop.f32.mrf.mxu0
      %v1103 = vadd.f32 %v1090, %v1102
      %v1104 = vpop.f32.mrf.mxu0
      %1105 = vdwg.mxu0
      %1106 = vmatpush.bf16.msra.mxu0 %v982
      %1107 = vmatpush.bf16.msra.mxu0 %v981
      %1108 = vmatpush.bf16.msra.mxu0 %v980
      %1109 = vmatpush.bf16.msra.mxu0 %v979
      %1110 = vmatpush.bf16.msra.mxu0 %v978
      %1111 = vmatpush.bf16.msra.mxu0 %v977
      %1112 = vmatpush.bf16.msra.mxu0 %v976
      %1113 = vmatpush.bf16.msra.mxu0 %v975
      %1114 = vmatmul.bf16.gmra.mxu0 %v1078
      %v1115 = vpop.f32.mrf.mxu0
      %v1116 = vadd.f32 %v1103, %v1115
      %v1117 = vpop.f32.mrf.mxu0
      %1118 = vdwg.mxu0
      %1119 = vmatpush.bf16.msra.mxu0 %v990
      %1120 = vmatpush.bf16.msra.mxu0 %v989
      %1121 = vmatpush.bf16.msra.mxu0 %v988
      %1122 = vmatpush.bf16.msra.mxu0 %v987
      %1123 = vmatpush.bf16.msra.mxu0 %v986
      %1124 = vmatpush.bf16.msra.mxu0 %v985
      %1125 = vmatpush.bf16.msra.mxu0 %v984
      %1126 = vmatpush.bf16.msra.mxu0 %v983
      %1127 = vmatmul.bf16.gmra.mxu0 %v1079
      %v1128 = vpop.f32.mrf.mxu0
      %v1129 = vadd.f32 %v1116, %v1128
      %v1130 = vpop.f32.mrf.mxu0
      %1131 = vdwg.mxu0
      %vm1132 = vcmp.ge.f32.partialorder %v1129, 0.0
      %v1133 = vmul.f32 %v1129, 0.2
      %v1134 = vsel %vm1132, %v1129, %v1133
      %v1137 = vrot.slane %v1077, 7
      %v1138 = vrot.slane %v1134, 7
      %v1141 = vsel %vm638, 0.0, %v1137
      %v1142 = vsel %vm638, 0.0, %v1138
      %vm1143 = vcmask 1042432
      %v1144 = vsel %vm1143, %v1141, 0.0
      %v1145 = vsel %vm1143, %v1142, 0.0
      %v1147 = vrot.slane %v1145, 1
      %v1149 = vsel %vm638, %v1145, %v1147
      %v1150 = vrot.slane %v1145, 2
      %v1152 = vsel %vm638, %v1147, %v1150
      %v1154 = vrot.slane %v1144, 1
      %v1156 = vsel %vm638, %v1144, %v1154
      %v1157 = vrot.slane %v1144, 2
      %v1159 = vsel %vm638, %v1154, %v1157
      %1162 = vrot.lane.b32.xlu0 %v676, 32
      %v1163 = vpop.permute.xlu0 %1162
      %1164 = vrot.lane.b32.xlu0 %v1152, 32
      %v1165 = vpop.permute.xlu0 %1164
      %1170 = vrot.lane.b32.xlu0 %v1156, 64
      %v1171 = vpop.permute.xlu0 %1170
      %1172 = vrot.lane.b32.xlu0 %v663, 64
      %v1173 = vpop.permute.xlu0 %1172
      %1177 = vrot.lane.b32.xlu0 %v1159, 96
      %v1178 = vpop.permute.xlu0 %1177
      %1179 = vrot.lane.b32.xlu0 %v676, 96
      %v1180 = vpop.permute.xlu0 %1179
      %v1183 = vsel %vm739, %v663, %v1163
      %v1184 = vsel %vm739, %v1149, %v1165
      %v1185 = vsel %vm400, %v1183, %v1171
      %v1186 = vsel %vm400, %v1184, %v1173
      %v1187 = vsel %vm746, %v1185, %v1178
      %v1188 = vsel %vm746, %v1186, %v1180
      %v1189 = vld [vmem:[%s5] sm:$0xf]
      %v1190 = vld [vmem:[%s5 + $0x4] sm:$0xf]
      %v1191 = vld [vmem:[%s5 + $0x8] sm:$0xf]
      %v1192 = vld [vmem:[%s5 + $0xc] sm:$0xf]
      %v1193 = vld [vmem:[%s5 + $0x10] sm:$0xf]
      %v1194 = vld [vmem:[%s5 + $0x14] sm:$0xf]
      %v1195 = vld [vmem:[%s5 + $0x18] sm:$0xf]
      %v1196 = vld [vmem:[%s5 + $0x1c] sm:$0xf]
      %v1197 = vld [vmem:[%s5 + $0x20] sm:$0xf]
      %v1198 = vld [vmem:[%s5 + $0x24] sm:$0xf]
      %v1199 = vld [vmem:[%s5 + $0x28] sm:$0xf]
      %v1200 = vld [vmem:[%s5 + $0x2c] sm:$0xf]
      %v1201 = vld [vmem:[%s5 + $0x30] sm:$0xf]
      %v1202 = vld [vmem:[%s5 + $0x34] sm:$0xf]
      %v1203 = vld [vmem:[%s5 + $0x38] sm:$0xf]
      %v1204 = vld [vmem:[%s5 + $0x3c] sm:$0xf]
      %v1205 = vld [vmem:[%s5 + $0x40] sm:$0xf]
      %v1206 = vld [vmem:[%s5 + $0x44] sm:$0xf]
      %v1207 = vld [vmem:[%s5 + $0x48] sm:$0xf]
      %v1208 = vld [vmem:[%s5 + $0x4c] sm:$0xf]
      %v1209 = vld [vmem:[%s5 + $0x50] sm:$0xf]
      %v1210 = vld [vmem:[%s5 + $0x54] sm:$0xf]
      %v1211 = vld [vmem:[%s5 + $0x58] sm:$0xf]
      %v1212 = vld [vmem:[%s5 + $0x5c] sm:$0xf]
      %v1213 = vld [vmem:[%s5 + $0x60] sm:$0xf]
      %v1214 = vld [vmem:[%s5 + $0x64] sm:$0xf]
      %v1215 = vld [vmem:[%s5 + $0x68] sm:$0xf]
      %v1216 = vld [vmem:[%s5 + $0x6c] sm:$0xf]
      %v1217 = vld [vmem:[%s5 + $0x70] sm:$0xf]
      %v1218 = vld [vmem:[%s5 + $0x74] sm:$0xf]
      %v1219 = vld [vmem:[%s5 + $0x78] sm:$0xf]
      %v1220 = vld [vmem:[%s5 + $0x7c] sm:$0xf]
      %v1221 = vld [vmem:[%s5 + $0x80] sm:$0xf]
      %v1222 = vld [vmem:[%s5 + $0x84] sm:$0xf]
      %v1223 = vld [vmem:[%s5 + $0x88] sm:$0xf]
      %v1224 = vld [vmem:[%s5 + $0x8c] sm:$0xf]
      %v1225 = vld [vmem:[%s5 + $0x90] sm:$0xf]
      %v1226 = vld [vmem:[%s5 + $0x94] sm:$0xf]
      %v1227 = vld [vmem:[%s5 + $0x98] sm:$0xf]
      %v1228 = vld [vmem:[%s5 + $0x9c] sm:$0xf]
      %v1229 = vld [vmem:[%s5 + $0xa0] sm:$0xf]
      %v1230 = vld [vmem:[%s5 + $0xa4] sm:$0xf]
      %v1231 = vld [vmem:[%s5 + $0xa8] sm:$0xf]
      %v1232 = vld [vmem:[%s5 + $0xac] sm:$0xf]
      %v1233 = vld [vmem:[%s5 + $0xb0] sm:$0xf]
      %v1234 = vld [vmem:[%s5 + $0xb4] sm:$0xf]
      %v1235 = vld [vmem:[%s5 + $0xb8] sm:$0xf]
      %v1236 = vld [vmem:[%s5 + $0xbc] sm:$0xf]
      %v1237 = vld [vmem:[%s5 + $0xc0] sm:$0xf]
      %v1238 = vld [vmem:[%s5 + $0xc4] sm:$0xf]
      %v1239 = vld [vmem:[%s5 + $0xc8] sm:$0xf]
      %v1240 = vld [vmem:[%s5 + $0xcc] sm:$0xf]
      %v1241 = vld [vmem:[%s5 + $0xd0] sm:$0xf]
      %v1242 = vld [vmem:[%s5 + $0xd4] sm:$0xf]
      %v1243 = vld [vmem:[%s5 + $0xd8] sm:$0xf]
      %v1244 = vld [vmem:[%s5 + $0xdc] sm:$0xf]
      %v1245 = vld [vmem:[%s5 + $0xe0] sm:$0xf]
      %v1246 = vld [vmem:[%s5 + $0xe4] sm:$0xf]
      %v1247 = vld [vmem:[%s5 + $0xe8] sm:$0xf]
      %v1248 = vld [vmem:[%s5 + $0xec] sm:$0xf]
      %v1249 = vld [vmem:[%s5 + $0xf0] sm:$0xf]
      %v1250 = vld [vmem:[%s5 + $0xf4] sm:$0xf]
      %v1251 = vld [vmem:[%s5 + $0xf8] sm:$0xf]
      %v1252 = vld [vmem:[%s5 + $0xfc] sm:$0xf]
      %v1253 = vld [vmem:[%s6] sm:$0x1]
      %v1255 = vrot.slane %v1187, 1
      %v1258 = vrot.slane %v1188, 1
      %v1260 = vpack.c.bf16 %v1187, %v1187
      %v1261 = vpack.c.bf16 %v1255, %v1255
      %v1262 = vpack.c.bf16 %v1188, %v1188
      %v1263 = vpack.c.bf16 %v1258, %v1258
      %v1328 = vunpack.c.l.b16 %v1189
      %v1329 = vunpack.c.l.b16 %v1190
      %v1330 = vunpack.c.l.b16 %v1191
      %v1331 = vunpack.c.l.b16 %v1192
      %v1332 = vunpack.c.l.b16 %v1193
      %v1333 = vunpack.c.l.b16 %v1194
      %v1334 = vunpack.c.l.b16 %v1195
      %v1335 = vunpack.c.l.b16 %v1196
      %v1336 = vunpack.c.l.b16 %v1197
      %v1337 = vunpack.c.l.b16 %v1198
      %v1338 = vunpack.c.l.b16 %v1199
      %v1339 = vunpack.c.l.b16 %v1200
      %v1340 = vunpack.c.l.b16 %v1201
      %v1341 = vunpack.c.l.b16 %v1202
      %v1342 = vunpack.c.l.b16 %v1203
      %v1343 = vunpack.c.l.b16 %v1204
      %v1344 = vunpack.c.l.b16 %v1205
      %v1345 = vunpack.c.l.b16 %v1206
      %v1346 = vunpack.c.l.b16 %v1207
      %v1347 = vunpack.c.l.b16 %v1208
      %v1348 = vunpack.c.l.b16 %v1209
      %v1349 = vunpack.c.l.b16 %v1210
      %v1350 = vunpack.c.l.b16 %v1211
      %v1351 = vunpack.c.l.b16 %v1212
      %v1352 = vunpack.c.l.b16 %v1213
      %v1353 = vunpack.c.l.b16 %v1214
      %v1354 = vunpack.c.l.b16 %v1215
      %v1355 = vunpack.c.l.b16 %v1216
      %v1356 = vunpack.c.l.b16 %v1217
      %v1357 = vunpack.c.l.b16 %v1218
      %v1358 = vunpack.c.l.b16 %v1219
      %v1359 = vunpack.c.l.b16 %v1220
      %v1360 = vunpack.c.l.b16 %v1221
      %v1361 = vunpack.c.l.b16 %v1222
      %v1362 = vunpack.c.l.b16 %v1223
      %v1363 = vunpack.c.l.b16 %v1224
      %v1364 = vunpack.c.l.b16 %v1225
      %v1365 = vunpack.c.l.b16 %v1226
      %v1366 = vunpack.c.l.b16 %v1227
      %v1367 = vunpack.c.l.b16 %v1228
      %v1368 = vunpack.c.l.b16 %v1229
      %v1369 = vunpack.c.l.b16 %v1230
      %v1370 = vunpack.c.l.b16 %v1231
      %v1371 = vunpack.c.l.b16 %v1232
      %v1372 = vunpack.c.l.b16 %v1233
      %v1373 = vunpack.c.l.b16 %v1234
      %v1374 = vunpack.c.l.b16 %v1235
      %v1375 = vunpack.c.l.b16 %v1236
      %v1376 = vunpack.c.l.b16 %v1237
      %v1377 = vunpack.c.l.b16 %v1238
      %v1378 = vunpack.c.l.b16 %v1239
      %v1379 = vunpack.c.l.b16 %v1240
      %v1380 = vunpack.c.l.b16 %v1241
      %v1381 = vunpack.c.l.b16 %v1242
      %v1382 = vunpack.c.l.b16 %v1243
      %v1383 = vunpack.c.l.b16 %v1244
      %v1384 = vunpack.c.l.b16 %v1245
      %v1385 = vunpack.c.l.b16 %v1246
      %v1386 = vunpack.c.l.b16 %v1247
      %v1387 = vunpack.c.l.b16 %v1248
      %v1388 = vunpack.c.l.b16 %v1249
      %v1389 = vunpack.c.l.b16 %v1250
      %v1390 = vunpack.c.l.b16 %v1251
      %v1391 = vunpack.c.l.b16 %v1252
      %v1392 = vpack.c.b16 %v1329, %v1328
      %v1393 = vpack.c.b16 %v1331, %v1330
      %v1394 = vpack.c.b16 %v1333, %v1332
      %v1395 = vpack.c.b16 %v1335, %v1334
      %v1396 = vpack.c.b16 %v1337, %v1336
      %v1397 = vpack.c.b16 %v1339, %v1338
      %v1398 = vpack.c.b16 %v1341, %v1340
      %v1399 = vpack.c.b16 %v1343, %v1342
      %v1400 = vpack.c.b16 %v1345, %v1344
      %v1401 = vpack.c.b16 %v1347, %v1346
      %v1402 = vpack.c.b16 %v1349, %v1348
      %v1403 = vpack.c.b16 %v1351, %v1350
      %v1404 = vpack.c.b16 %v1353, %v1352
      %v1405 = vpack.c.b16 %v1355, %v1354
      %v1406 = vpack.c.b16 %v1357, %v1356
      %v1407 = vpack.c.b16 %v1359, %v1358
      %v1408 = vpack.c.b16 %v1361, %v1360
      %v1409 = vpack.c.b16 %v1363, %v1362
      %v1410 = vpack.c.b16 %v1365, %v1364
      %v1411 = vpack.c.b16 %v1367, %v1366
      %v1412 = vpack.c.b16 %v1369, %v1368
      %v1413 = vpack.c.b16 %v1371, %v1370
      %v1414 = vpack.c.b16 %v1373, %v1372
      %v1415 = vpack.c.b16 %v1375, %v1374
      %v1416 = vpack.c.b16 %v1377, %v1376
      %v1417 = vpack.c.b16 %v1379, %v1378
      %v1418 = vpack.c.b16 %v1381, %v1380
      %v1419 = vpack.c.b16 %v1383, %v1382
      %v1420 = vpack.c.b16 %v1385, %v1384
      %v1421 = vpack.c.b16 %v1387, %v1386
      %v1422 = vpack.c.b16 %v1389, %v1388
      %v1423 = vpack.c.b16 %v1391, %v1390
      %1456 = vmatpush.bf16.msra.mxu0 %v1399
      %1457 = vmatpush.bf16.msra.mxu0 %v1398
      %1458 = vmatpush.bf16.msra.mxu0 %v1397
      %1459 = vmatpush.bf16.msra.mxu0 %v1396
      %1460 = vmatpush.bf16.msra.mxu0 %v1395
      %1461 = vmatpush.bf16.msra.mxu0 %v1394
      %1462 = vmatpush.bf16.msra.mxu0 %v1393
      %1463 = vmatpush.bf16.msra.mxu0 %v1392
      %1464 = vmatmul.bf16.gmra.mxu0 %v1260
      %v1465 = vpop.f32.mrf.mxu0
      %v1466 = vadd.f32 %v1253, %v1465
      %v1467 = vpop.f32.mrf.mxu0
      %1468 = vdwg.mxu0
      %1469 = vmatpush.bf16.msra.mxu0 %v1407
      %1470 = vmatpush.bf16.msra.mxu0 %v1406
      %1471 = vmatpush.bf16.msra.mxu0 %v1405
      %1472 = vmatpush.bf16.msra.mxu0 %v1404
      %1473 = vmatpush.bf16.msra.mxu0 %v1403
      %1474 = vmatpush.bf16.msra.mxu0 %v1402
      %1475 = vmatpush.bf16.msra.mxu0 %v1401
      %1476 = vmatpush.bf16.msra.mxu0 %v1400
      %1477 = vmatmul.bf16.gmra.mxu0 %v1261
      %v1478 = vpop.f32.mrf.mxu0
      %v1479 = vadd.f32 %v1466, %v1478
      %v1480 = vpop.f32.mrf.mxu0
      %1481 = vdwg.mxu0
      %1482 = vmatpush.bf16.msra.mxu0 %v1415
      %1483 = vmatpush.bf16.msra.mxu0 %v1414
      %1484 = vmatpush.bf16.msra.mxu0 %v1413
      %1485 = vmatpush.bf16.msra.mxu0 %v1412
      %1486 = vmatpush.bf16.msra.mxu0 %v1411
      %1487 = vmatpush.bf16.msra.mxu0 %v1410
      %1488 = vmatpush.bf16.msra.mxu0 %v1409
      %1489 = vmatpush.bf16.msra.mxu0 %v1408
      %1490 = vmatmul.bf16.gmra.mxu0 %v1262
      %v1491 = vpop.f32.mrf.mxu0
      %v1492 = vadd.f32 %v1479, %v1491
      %v1493 = vpop.f32.mrf.mxu0
      %1494 = vdwg.mxu0
      %1495 = vmatpush.bf16.msra.mxu0 %v1423
      %1496 = vmatpush.bf16.msra.mxu0 %v1422
      %1497 = vmatpush.bf16.msra.mxu0 %v1421
      %1498 = vmatpush.bf16.msra.mxu0 %v1420
      %1499 = vmatpush.bf16.msra.mxu0 %v1419
      %1500 = vmatpush.bf16.msra.mxu0 %v1418
      %1501 = vmatpush.bf16.msra.mxu0 %v1417
      %1502 = vmatpush.bf16.msra.mxu0 %v1416
      %1503 = vmatmul.bf16.gmra.mxu0 %v1263
      %v1504 = vpop.f32.mrf.mxu0
      %v1505 = vadd.f32 %v1492, %v1504
      %v1506 = vpop.f32.mrf.mxu0
      %1507 = vdwg.mxu0
      %vm1508 = vcmp.ge.f32.partialorder %v1505, 0.0
      %v1509 = vmul.f32 %v1505, 0.2
      %v1510 = vsel %vm1508, %v1505, %v1509
      %v1512 = vrot.slane %v1510, 5
      %v1514 = vsel %vm1143, 0.0, %v1512
      %vm1515 = vcmask 1043456
      %v1516 = vsel %vm1515, %v1514, 0.0
      %v1517 = vld [vmem:[%s7] sm:$0xf]
      %v1518 = vld [vmem:[%s7 + $0x4] sm:$0xf]
      %v1519 = vld [vmem:[%s7 + $0x8] sm:$0xf]
      %v1520 = vld [vmem:[%s7 + $0xc] sm:$0xf]
      %v1521 = vld [vmem:[%s7 + $0x10] sm:$0xf]
      %v1522 = vld [vmem:[%s7 + $0x14] sm:$0xf]
      %v1523 = vld [vmem:[%s7 + $0x18] sm:$0xf]
      %v1524 = vld [vmem:[%s7 + $0x1c] sm:$0xf]
      %v1525 = vld [vmem:[%s7 + $0x20] sm:$0xf]
      %v1526 = vld [vmem:[%s7 + $0x24] sm:$0xf]
      %v1527 = vld [vmem:[%s7 + $0x28] sm:$0xf]
      %v1528 = vld [vmem:[%s7 + $0x2c] sm:$0xf]
      %v1529 = vld [vmem:[%s7 + $0x30] sm:$0xf]
      %v1530 = vld [vmem:[%s7 + $0x34] sm:$0xf]
      %v1531 = vld [vmem:[%s7 + $0x38] sm:$0xf]
      %v1532 = vld [vmem:[%s7 + $0x3c] sm:$0xf]
      %v1533 = vld [vmem:[%s7 + $0x40] sm:$0xf]
      %v1534 = vld [vmem:[%s7 + $0x44] sm:$0xf]
      %v1535 = vld [vmem:[%s7 + $0x48] sm:$0xf]
      %v1536 = vld [vmem:[%s7 + $0x4c] sm:$0xf]
      %v1537 = vld [vmem:[%s7 + $0x50] sm:$0xf]
      %v1538 = vld [vmem:[%s7 + $0x54] sm:$0xf]
      %v1539 = vld [vmem:[%s7 + $0x58] sm:$0xf]
      %v1540 = vld [vmem:[%s7 + $0x5c] sm:$0xf]
      %v1541 = vld [vmem:[%s7 + $0x60] sm:$0xf]
      %v1542 = vld [vmem:[%s7 + $0x64] sm:$0xf]
      %v1543 = vld [vmem:[%s7 + $0x68] sm:$0xf]
      %v1544 = vld [vmem:[%s7 + $0x6c] sm:$0xf]
      %v1545 = vld [vmem:[%s7 + $0x70] sm:$0xf]
      %v1546 = vld [vmem:[%s7 + $0x74] sm:$0xf]
      %v1547 = vld [vmem:[%s7 + $0x78] sm:$0xf]
      %v1548 = vld [vmem:[%s7 + $0x7c] sm:$0xf]
      %v1549 = vld [vmem:[%s7 + $0x80] sm:$0xf]
      %v1550 = vld [vmem:[%s7 + $0x84] sm:$0xf]
      %v1551 = vld [vmem:[%s7 + $0x88] sm:$0xf]
      %v1552 = vld [vmem:[%s7 + $0x8c] sm:$0xf]
      %v1553 = vld [vmem:[%s7 + $0x90] sm:$0xf]
      %v1554 = vld [vmem:[%s7 + $0x94] sm:$0xf]
      %v1555 = vld [vmem:[%s7 + $0x98] sm:$0xf]
      %v1556 = vld [vmem:[%s7 + $0x9c] sm:$0xf]
      %v1557 = vld [vmem:[%s7 + $0xa0] sm:$0xf]
      %v1558 = vld [vmem:[%s7 + $0xa4] sm:$0xf]
      %v1559 = vld [vmem:[%s7 + $0xa8] sm:$0xf]
      %v1560 = vld [vmem:[%s7 + $0xac] sm:$0xf]
      %v1561 = vld [vmem:[%s7 + $0xb0] sm:$0xf]
      %v1562 = vld [vmem:[%s7 + $0xb4] sm:$0xf]
      %v1563 = vld [vmem:[%s7 + $0xb8] sm:$0xf]
      %v1564 = vld [vmem:[%s7 + $0xbc] sm:$0xf]
      %v1565 = vld [vmem:[%s7 + $0xc0] sm:$0xf]
      %v1566 = vld [vmem:[%s7 + $0xc4] sm:$0xf]
      %v1567 = vld [vmem:[%s7 + $0xc8] sm:$0xf]
      %v1568 = vld [vmem:[%s7 + $0xcc] sm:$0xf]
      %v1569 = vld [vmem:[%s7 + $0xd0] sm:$0xf]
      %v1570 = vld [vmem:[%s7 + $0xd4] sm:$0xf]
      %v1571 = vld [vmem:[%s7 + $0xd8] sm:$0xf]
      %v1572 = vld [vmem:[%s7 + $0xdc] sm:$0xf]
      %v1573 = vld [vmem:[%s7 + $0xe0] sm:$0xf]
      %v1574 = vld [vmem:[%s7 + $0xe4] sm:$0xf]
      %v1575 = vld [vmem:[%s7 + $0xe8] sm:$0xf]
      %v1576 = vld [vmem:[%s7 + $0xec] sm:$0xf]
      %v1577 = vld [vmem:[%s7 + $0xf0] sm:$0xf]
      %v1578 = vld [vmem:[%s7 + $0xf4] sm:$0xf]
      %v1579 = vld [vmem:[%s7 + $0xf8] sm:$0xf]
      %v1580 = vld [vmem:[%s7 + $0xfc] sm:$0xf]
      %v1581 = vld [vmem:[%s7 + $0x100] sm:$0xf]
      %v1582 = vld [vmem:[%s7 + $0x104] sm:$0xf]
      %v1583 = vld [vmem:[%s7 + $0x108] sm:$0xf]
      %v1584 = vld [vmem:[%s7 + $0x10c] sm:$0xf]
      %v1585 = vld [vmem:[%s7 + $0x110] sm:$0xf]
      %v1586 = vld [vmem:[%s7 + $0x114] sm:$0xf]
      %v1587 = vld [vmem:[%s7 + $0x118] sm:$0xf]
      %v1588 = vld [vmem:[%s7 + $0x11c] sm:$0xf]
      %v1589 = vld [vmem:[%s7 + $0x120] sm:$0xf]
      %v1590 = vld [vmem:[%s7 + $0x124] sm:$0xf]
      %v1591 = vld [vmem:[%s7 + $0x128] sm:$0xf]
      %v1592 = vld [vmem:[%s7 + $0x12c] sm:$0xf]
      %v1593 = vld [vmem:[%s7 + $0x130] sm:$0xf]
      %v1594 = vld [vmem:[%s7 + $0x134] sm:$0xf]
      %v1595 = vld [vmem:[%s7 + $0x138] sm:$0xf]
      %v1596 = vld [vmem:[%s7 + $0x13c] sm:$0xf]
      %v1597 = vld [vmem:[%s7 + $0x140] sm:$0xf]
      %v1598 = vld [vmem:[%s7 + $0x144] sm:$0xf]
      %v1599 = vld [vmem:[%s7 + $0x148] sm:$0xf]
      %v1600 = vld [vmem:[%s7 + $0x14c] sm:$0xf]
      %v1601 = vld [vmem:[%s7 + $0x150] sm:$0xf]
      %v1602 = vld [vmem:[%s7 + $0x154] sm:$0xf]
      %v1603 = vld [vmem:[%s7 + $0x158] sm:$0xf]
      %v1604 = vld [vmem:[%s7 + $0x15c] sm:$0xf]
      %v1605 = vld [vmem:[%s7 + $0x160] sm:$0xf]
      %v1606 = vld [vmem:[%s7 + $0x164] sm:$0xf]
      %v1607 = vld [vmem:[%s7 + $0x168] sm:$0xf]
      %v1608 = vld [vmem:[%s7 + $0x16c] sm:$0xf]
      %v1609 = vld [vmem:[%s7 + $0x170] sm:$0xf]
      %v1610 = vld [vmem:[%s7 + $0x174] sm:$0xf]
      %v1611 = vld [vmem:[%s7 + $0x178] sm:$0xf]
      %v1612 = vld [vmem:[%s7 + $0x17c] sm:$0xf]
      %v1613 = vld [vmem:[%s7 + $0x180] sm:$0xf]
      %v1614 = vld [vmem:[%s7 + $0x184] sm:$0xf]
      %v1615 = vld [vmem:[%s7 + $0x188] sm:$0xf]
      %v1616 = vld [vmem:[%s7 + $0x18c] sm:$0xf]
      %v1617 = vld [vmem:[%s7 + $0x190] sm:$0xf]
      %v1618 = vld [vmem:[%s7 + $0x194] sm:$0xf]
      %v1619 = vld [vmem:[%s7 + $0x198] sm:$0xf]
      %v1620 = vld [vmem:[%s7 + $0x19c] sm:$0xf]
      %v1621 = vld [vmem:[%s7 + $0x1a0] sm:$0xf]
      %v1622 = vld [vmem:[%s7 + $0x1a4] sm:$0xf]
      %v1623 = vld [vmem:[%s7 + $0x1a8] sm:$0xf]
      %v1624 = vld [vmem:[%s7 + $0x1ac] sm:$0xf]
      %v1625 = vld [vmem:[%s7 + $0x1b0] sm:$0xf]
      %v1626 = vld [vmem:[%s7 + $0x1b4] sm:$0xf]
      %v1627 = vld [vmem:[%s7 + $0x1b8] sm:$0xf]
      %v1628 = vld [vmem:[%s7 + $0x1bc] sm:$0xf]
      %v1629 = vld [vmem:[%s7 + $0x1c0] sm:$0xf]
      %v1630 = vld [vmem:[%s7 + $0x1c4] sm:$0xf]
      %v1631 = vld [vmem:[%s7 + $0x1c8] sm:$0xf]
      %v1632 = vld [vmem:[%s7 + $0x1cc] sm:$0xf]
      %v1633 = vld [vmem:[%s7 + $0x1d0] sm:$0xf]
      %v1634 = vld [vmem:[%s7 + $0x1d4] sm:$0xf]
      %v1635 = vld [vmem:[%s7 + $0x1d8] sm:$0xf]
      %v1636 = vld [vmem:[%s7 + $0x1dc] sm:$0xf]
      %v1637 = vld [vmem:[%s7 + $0x1e0] sm:$0xf]
      %v1638 = vld [vmem:[%s7 + $0x1e4] sm:$0xf]
      %v1639 = vld [vmem:[%s7 + $0x1e8] sm:$0xf]
      %v1640 = vld [vmem:[%s7 + $0x1ec] sm:$0xf]
      %v1641 = vld [vmem:[%s7 + $0x1f0] sm:$0xf]
      %v1642 = vld [vmem:[%s7 + $0x1f4] sm:$0xf]
      %v1643 = vld [vmem:[%s7 + $0x1f8] sm:$0xf]
      %v1644 = vld [vmem:[%s7 + $0x1fc] sm:$0xf]
      %v1645 = vld [vmem:[%s7 + $0x200] sm:$0xf]
      %v1646 = vld [vmem:[%s7 + $0x204] sm:$0xf]
      %v1647 = vld [vmem:[%s7 + $0x208] sm:$0xf]
      %v1648 = vld [vmem:[%s7 + $0x20c] sm:$0xf]
      %v1649 = vld [vmem:[%s7 + $0x210] sm:$0xf]
      %v1650 = vld [vmem:[%s7 + $0x214] sm:$0xf]
      %v1651 = vld [vmem:[%s7 + $0x218] sm:$0xf]
      %v1652 = vld [vmem:[%s7 + $0x21c] sm:$0xf]
      %v1653 = vld [vmem:[%s7 + $0x220] sm:$0xf]
      %v1654 = vld [vmem:[%s7 + $0x224] sm:$0xf]
      %v1655 = vld [vmem:[%s7 + $0x228] sm:$0xf]
      %v1656 = vld [vmem:[%s7 + $0x22c] sm:$0xf]
      %v1657 = vld [vmem:[%s7 + $0x230] sm:$0xf]
      %v1658 = vld [vmem:[%s7 + $0x234] sm:$0xf]
      %v1659 = vld [vmem:[%s7 + $0x238] sm:$0xf]
      %v1660 = vld [vmem:[%s7 + $0x23c] sm:$0xf]
      %v1661 = vld [vmem:[%s7 + $0x240] sm:$0xf]
      %v1662 = vld [vmem:[%s7 + $0x244] sm:$0xf]
      %v1663 = vld [vmem:[%s7 + $0x248] sm:$0xf]
      %v1664 = vld [vmem:[%s7 + $0x24c] sm:$0xf]
      %v1665 = vld [vmem:[%s7 + $0x250] sm:$0xf]
      %v1666 = vld [vmem:[%s7 + $0x254] sm:$0xf]
      %v1667 = vld [vmem:[%s7 + $0x258] sm:$0xf]
      %v1668 = vld [vmem:[%s7 + $0x25c] sm:$0xf]
      %v1669 = vld [vmem:[%s7 + $0x260] sm:$0xf]
      %v1670 = vld [vmem:[%s7 + $0x264] sm:$0xf]
      %v1671 = vld [vmem:[%s7 + $0x268] sm:$0xf]
      %v1672 = vld [vmem:[%s7 + $0x26c] sm:$0xf]
      %v1673 = vld [vmem:[%s7 + $0x270] sm:$0xf]
      %v1674 = vld [vmem:[%s7 + $0x274] sm:$0xf]
      %v1675 = vld [vmem:[%s7 + $0x278] sm:$0xf]
      %v1676 = vld [vmem:[%s7 + $0x27c] sm:$0xf]
      %v1677 = vld [vmem:[%s7 + $0x280] sm:$0xf]
      %v1678 = vld [vmem:[%s7 + $0x284] sm:$0xf]
      %v1679 = vld [vmem:[%s7 + $0x288] sm:$0xf]
      %v1680 = vld [vmem:[%s7 + $0x28c] sm:$0xf]
      %v1681 = vld [vmem:[%s7 + $0x290] sm:$0xf]
      %v1682 = vld [vmem:[%s7 + $0x294] sm:$0xf]
      %v1683 = vld [vmem:[%s7 + $0x298] sm:$0xf]
      %v1684 = vld [vmem:[%s7 + $0x29c] sm:$0xf]
      %v1685 = vld [vmem:[%s7 + $0x2a0] sm:$0xf]
      %v1686 = vld [vmem:[%s7 + $0x2a4] sm:$0xf]
      %v1687 = vld [vmem:[%s7 + $0x2a8] sm:$0xf]
      %v1688 = vld [vmem:[%s7 + $0x2ac] sm:$0xf]
      %v1689 = vld [vmem:[%s7 + $0x2b0] sm:$0xf]
      %v1690 = vld [vmem:[%s7 + $0x2b4] sm:$0xf]
      %v1691 = vld [vmem:[%s7 + $0x2b8] sm:$0xf]
      %v1692 = vld [vmem:[%s7 + $0x2bc] sm:$0xf]
      %v1693 = vld [vmem:[%s7 + $0x2c0] sm:$0xf]
      %v1694 = vld [vmem:[%s7 + $0x2c4] sm:$0xf]
      %v1695 = vld [vmem:[%s7 + $0x2c8] sm:$0xf]
      %v1696 = vld [vmem:[%s7 + $0x2cc] sm:$0xf]
      %v1697 = vld [vmem:[%s7 + $0x2d0] sm:$0xf]
      %v1698 = vld [vmem:[%s7 + $0x2d4] sm:$0xf]
      %v1699 = vld [vmem:[%s7 + $0x2d8] sm:$0xf]
      %v1700 = vld [vmem:[%s7 + $0x2dc] sm:$0xf]
      %v1701 = vld [vmem:[%s7 + $0x2e0] sm:$0xf]
      %v1702 = vld [vmem:[%s7 + $0x2e4] sm:$0xf]
      %v1703 = vld [vmem:[%s7 + $0x2e8] sm:$0xf]
      %v1704 = vld [vmem:[%s7 + $0x2ec] sm:$0xf]
      %v1705 = vld [vmem:[%s7 + $0x2f0] sm:$0xf]
      %v1706 = vld [vmem:[%s7 + $0x2f4] sm:$0xf]
      %v1707 = vld [vmem:[%s7 + $0x2f8] sm:$0xf]
      %v1708 = vld [vmem:[%s7 + $0x2fc] sm:$0xf]
      %v1709 = vld [vmem:[%s7 + $0x300] sm:$0xf]
      %v1710 = vld [vmem:[%s7 + $0x304] sm:$0xf]
      %v1711 = vld [vmem:[%s7 + $0x308] sm:$0xf]
      %v1712 = vld [vmem:[%s7 + $0x30c] sm:$0xf]
      %v1713 = vld [vmem:[#allocation2] sm:$0x1]
      %1714 = vrot.lane.b32.xlu0 %v651, 32
      %v1715 = vpop.permute.xlu0 %1714
      %1717 = vrot.lane.b32.xlu0 %v657, 64
      %v1718 = vpop.permute.xlu0 %1717
      %1720 = vrot.lane.b32.xlu0 %v670, 96
      %v1721 = vpop.permute.xlu0 %1720
      %v1723 = vrot.slane 0.0, 4
      %v1725 = vrot.slane 0.0, 5
      %1726 = vrot.lane.b32.xlu0 %v1725, 32
      %v1727 = vpop.permute.xlu0 %1726
      %v1729 = vrot.slane 0.0, 6
      %1730 = vrot.lane.b32.xlu0 %v1729, 64
      %v1731 = vpop.permute.xlu0 %1730
      %1733 = vrot.lane.b32.xlu0 0.0, 96
      %v1734 = vpop.permute.xlu0 %1733
      %1736 = vrot.lane.b32.xlu0 %v657, 32
      %v1737 = vpop.permute.xlu0 %1736
      %1739 = vrot.lane.b32.xlu0 %v670, 64
      %v1740 = vpop.permute.xlu0 %1739
      %1742 = vrot.lane.b32.xlu0 %v1723, 96
      %v1743 = vpop.permute.xlu0 %1742
      %1746 = vrot.lane.b32.xlu0 %v1729, 32
      %v1747 = vpop.permute.xlu0 %1746
      %1749 = vrot.lane.b32.xlu0 0.0, 64
      %v1750 = vpop.permute.xlu0 %1749
      %1752 = vrot.lane.b32.xlu0 %v651, 96
      %v1753 = vpop.permute.xlu0 %1752
      %v1755 = vsel %vm739, 0.0, %v1715
      %v1756 = vsel %vm400, %v1755, %v1718
      %v1757 = vsel %vm746, %v1756, %v1721
      %v1758 = vsel %vm739, %v1723, %v1727
      %v1759 = vsel %vm400, %v1758, %v1731
      %v1760 = vsel %vm746, %v1759, %v1734
      %v1761 = vsel %vm739, %v651, %v1737
      %v1762 = vsel %vm400, %v1761, %v1740
      %v1763 = vsel %vm746, %v1762, %v1743
      %v1764 = vsel %vm739, %v1725, %v1747
      %v1765 = vsel %vm400, %v1764, %v1750
      %v1766 = vsel %vm746, %v1765, %v1753
      %v1768 = vrot.slane %v1516, 6
      %1769 = vrot.lane.b32.xlu0 %v1768, 32
      %v1770 = vpop.permute.xlu0 %1769
      %v1772 = vrot.slane %v1516, 7
      %1773 = vrot.lane.b32.xlu0 %v1772, 64
      %v1774 = vpop.permute.xlu0 %1773
      %1776 = vrot.lane.b32.xlu0 %v1516, 96
      %v1777 = vpop.permute.xlu0 %1776
      %v1779 = vrot.slane %v1516, 1
      %v1781 = vrot.slane %v1516, 2
      %1782 = vrot.lane.b32.xlu0 %v1781, 32
      %v1783 = vpop.permute.xlu0 %1782
      %v1785 = vrot.slane %v1516, 3
      %1786 = vrot.lane.b32.xlu0 %v1785, 64
      %v1787 = vpop.permute.xlu0 %1786
      %v1789 = vrot.slane %v1516, 4
      %1790 = vrot.lane.b32.xlu0 %v1789, 96
      %v1791 = vpop.permute.xlu0 %1790
      %v1794 = vrot.slane 0.0, 7
      %1795 = vrot.lane.b32.xlu0 %v1794, 32
      %v1796 = vpop.permute.xlu0 %1795
      %v1798 = vsel %vm739, %v1723, %v1770
      %v1799 = vsel %vm400, %v1798, %v1774
      %v1800 = vsel %vm746, %v1799, %v1777
      %v1801 = vsel %vm739, %v1779, %v1783
      %v1802 = vsel %vm400, %v1801, %v1787
      %v1803 = vsel %vm746, %v1802, %v1791
      %v1804 = vsel %vm739, %v1729, %v1796
      %v1805 = vsel %vm400, %v1804, %v1750
      %v1806 = vsel %vm746, %v1805, %v1753
      %1807 = vrot.lane.b32.xlu0 %v1794, 64
      %v1808 = vpop.permute.xlu0 %1807
      %1810 = vrot.lane.b32.xlu0 %v1723, 64
      %v1811 = vpop.permute.xlu0 %1810
      %1813 = vrot.lane.b32.xlu0 %v1725, 96
      %v1814 = vpop.permute.xlu0 %1813
      %v1816 = vsel %vm746, %v1756, %v1743
      %v1817 = vsel %vm400, %v1764, %v1808
      %v1818 = vsel %vm746, %v1817, %v1734
      %v1819 = vsel %vm400, %v1761, %v1811
      %v1820 = vsel %vm746, %v1819, %v1814
      %v1825 = vrot.slane %v1757, 2
      %v1826 = vrot.slane %v1800, 2
      %v1827 = vrot.slane %v1803, 2
      %v1828 = vrot.slane %v1806, 2
      %v1836 = vrot.slane %v1816, 4
      %v1837 = vrot.slane %v1818, 4
      %v1838 = vrot.slane %v1820, 4
      %v1839 = vrot.slane %v1806, 4
      %v1844 = vpack.c.bf16 %v1757, %v1757
      %v1845 = vpack.c.bf16 %v1760, %v1760
      %v1846 = vpack.c.bf16 %v1763, %v1763
      %v1847 = vpack.c.bf16 %v1766, %v1766
      %v1848 = vpack.c.bf16 %v1825, %v1825
      %v1849 = vpack.c.bf16 %v1826, %v1826
      %v1850 = vpack.c.bf16 %v1827, %v1827
      %v1851 = vpack.c.bf16 %v1828, %v1828
      %v1852 = vpack.c.bf16 %v1836, %v1836
      %v1853 = vpack.c.bf16 %v1837, %v1837
      %v1854 = vpack.c.bf16 %v1838, %v1838
      %v1855 = vpack.c.bf16 %v1839, %v1839
      %v1856 = vpack.c.bf16 %v1729, %v1729
      %v2053 = vunpack.c.l.b16 %v1517
      %v2054 = vunpack.c.l.b16 %v1518
      %v2055 = vunpack.c.l.b16 %v1519
      %v2056 = vunpack.c.l.b16 %v1520
      %v2057 = vunpack.c.l.b16 %v1521
      %v2058 = vunpack.c.l.b16 %v1522
      %v2059 = vunpack.c.l.b16 %v1523
      %v2060 = vunpack.c.l.b16 %v1524
      %v2061 = vunpack.c.l.b16 %v1525
      %v2062 = vunpack.c.l.b16 %v1526
      %v2063 = vunpack.c.l.b16 %v1527
      %v2064 = vunpack.c.l.b16 %v1528
      %v2065 = vunpack.c.l.b16 %v1529
      %v2066 = vunpack.c.l.b16 %v1530
      %v2067 = vunpack.c.l.b16 %v1531
      %v2068 = vunpack.c.l.b16 %v1532
      %v2069 = vunpack.c.l.b16 %v1533
      %v2070 = vunpack.c.l.b16 %v1534
      %v2071 = vunpack.c.l.b16 %v1535
      %v2072 = vunpack.c.l.b16 %v1536
      %v2073 = vunpack.c.l.b16 %v1537
      %v2074 = vunpack.c.l.b16 %v1538
      %v2075 = vunpack.c.l.b16 %v1539
      %v2076 = vunpack.c.l.b16 %v1540
      %v2077 = vunpack.c.l.b16 %v1541
      %v2078 = vunpack.c.l.b16 %v1542
      %v2079 = vunpack.c.l.b16 %v1543
      %v2080 = vunpack.c.l.b16 %v1544
      %v2081 = vunpack.c.l.b16 %v1545
      %v2082 = vunpack.c.l.b16 %v1546
      %v2083 = vunpack.c.l.b16 %v1547
      %v2084 = vunpack.c.l.b16 %v1548
      %v2085 = vunpack.c.l.b16 %v1549
      %v2086 = vunpack.c.l.b16 %v1550
      %v2087 = vunpack.c.l.b16 %v1551
      %v2088 = vunpack.c.l.b16 %v1552
      %v2089 = vunpack.c.l.b16 %v1553
      %v2090 = vunpack.c.l.b16 %v1554
      %v2091 = vunpack.c.l.b16 %v1555
      %v2092 = vunpack.c.l.b16 %v1556
      %v2093 = vunpack.c.l.b16 %v1557
      %v2094 = vunpack.c.l.b16 %v1558
      %v2095 = vunpack.c.l.b16 %v1559
      %v2096 = vunpack.c.l.b16 %v1560
      %v2097 = vunpack.c.l.b16 %v1561
      %v2098 = vunpack.c.l.b16 %v1562
      %v2099 = vunpack.c.l.b16 %v1563
      %v2100 = vunpack.c.l.b16 %v1564
      %v2101 = vunpack.c.l.b16 %v1565
      %v2102 = vunpack.c.l.b16 %v1566
      %v2103 = vunpack.c.l.b16 %v1567
      %v2104 = vunpack.c.l.b16 %v1568
      %v2105 = vunpack.c.l.b16 %v1569
      %v2106 = vunpack.c.l.b16 %v1570
      %v2107 = vunpack.c.l.b16 %v1571
      %v2108 = vunpack.c.l.b16 %v1572
      %v2109 = vunpack.c.l.b16 %v1573
      %v2110 = vunpack.c.l.b16 %v1574
      %v2111 = vunpack.c.l.b16 %v1575
      %v2112 = vunpack.c.l.b16 %v1576
      %v2113 = vunpack.c.l.b16 %v1577
      %v2114 = vunpack.c.l.b16 %v1578
      %v2115 = vunpack.c.l.b16 %v1579
      %v2116 = vunpack.c.l.b16 %v1580
      %v2117 = vunpack.c.l.b16 %v1581
      %v2118 = vunpack.c.l.b16 %v1582
      %v2119 = vunpack.c.l.b16 %v1583
      %v2120 = vunpack.c.l.b16 %v1584
      %v2121 = vunpack.c.l.b16 %v1585
      %v2122 = vunpack.c.l.b16 %v1586
      %v2123 = vunpack.c.l.b16 %v1587
      %v2124 = vunpack.c.l.b16 %v1588
      %v2125 = vunpack.c.l.b16 %v1589
      %v2126 = vunpack.c.l.b16 %v1590
      %v2127 = vunpack.c.l.b16 %v1591
      %v2128 = vunpack.c.l.b16 %v1592
      %v2129 = vunpack.c.l.b16 %v1593
      %v2130 = vunpack.c.l.b16 %v1594
      %v2131 = vunpack.c.l.b16 %v1595
      %v2132 = vunpack.c.l.b16 %v1596
      %v2133 = vunpack.c.l.b16 %v1597
      %v2134 = vunpack.c.l.b16 %v1598
      %v2135 = vunpack.c.l.b16 %v1599
      %v2136 = vunpack.c.l.b16 %v1600
      %v2137 = vunpack.c.l.b16 %v1601
      %v2138 = vunpack.c.l.b16 %v1602
      %v2139 = vunpack.c.l.b16 %v1603
      %v2140 = vunpack.c.l.b16 %v1604
      %v2141 = vunpack.c.l.b16 %v1605
      %v2142 = vunpack.c.l.b16 %v1606
      %v2143 = vunpack.c.l.b16 %v1607
      %v2144 = vunpack.c.l.b16 %v1608
      %v2145 = vunpack.c.l.b16 %v1609
      %v2146 = vunpack.c.l.b16 %v1610
      %v2147 = vunpack.c.l.b16 %v1611
      %v2148 = vunpack.c.l.b16 %v1612
      %v2149 = vunpack.c.l.b16 %v1613
      %v2150 = vunpack.c.l.b16 %v1614
      %v2151 = vunpack.c.l.b16 %v1615
      %v2152 = vunpack.c.l.b16 %v1616
      %v2153 = vunpack.c.l.b16 %v1617
      %v2154 = vunpack.c.l.b16 %v1618
      %v2155 = vunpack.c.l.b16 %v1619
      %v2156 = vunpack.c.l.b16 %v1620
      %v2157 = vunpack.c.l.b16 %v1621
      %v2158 = vunpack.c.l.b16 %v1622
      %v2159 = vunpack.c.l.b16 %v1623
      %v2160 = vunpack.c.l.b16 %v1624
      %v2161 = vunpack.c.l.b16 %v1625
      %v2162 = vunpack.c.l.b16 %v1626
      %v2163 = vunpack.c.l.b16 %v1627
      %v2164 = vunpack.c.l.b16 %v1628
      %v2165 = vunpack.c.l.b16 %v1629
      %v2166 = vunpack.c.l.b16 %v1630
      %v2167 = vunpack.c.l.b16 %v1631
      %v2168 = vunpack.c.l.b16 %v1632
      %v2169 = vunpack.c.l.b16 %v1633
      %v2170 = vunpack.c.l.b16 %v1634
      %v2171 = vunpack.c.l.b16 %v1635
      %v2172 = vunpack.c.l.b16 %v1636
      %v2173 = vunpack.c.l.b16 %v1637
      %v2174 = vunpack.c.l.b16 %v1638
      %v2175 = vunpack.c.l.b16 %v1639
      %v2176 = vunpack.c.l.b16 %v1640
      %v2177 = vunpack.c.l.b16 %v1641
      %v2178 = vunpack.c.l.b16 %v1642
      %v2179 = vunpack.c.l.b16 %v1643
      %v2180 = vunpack.c.l.b16 %v1644
      %v2181 = vunpack.c.l.b16 %v1645
      %v2182 = vunpack.c.l.b16 %v1646
      %v2183 = vunpack.c.l.b16 %v1647
      %v2184 = vunpack.c.l.b16 %v1648
      %v2185 = vunpack.c.l.b16 %v1649
      %v2186 = vunpack.c.l.b16 %v1650
      %v2187 = vunpack.c.l.b16 %v1651
      %v2188 = vunpack.c.l.b16 %v1652
      %v2189 = vunpack.c.l.b16 %v1653
      %v2190 = vunpack.c.l.b16 %v1654
      %v2191 = vunpack.c.l.b16 %v1655
      %v2192 = vunpack.c.l.b16 %v1656
      %v2193 = vunpack.c.l.b16 %v1657
      %v2194 = vunpack.c.l.b16 %v1658
      %v2195 = vunpack.c.l.b16 %v1659
      %v2196 = vunpack.c.l.b16 %v1660
      %v2197 = vunpack.c.l.b16 %v1661
      %v2198 = vunpack.c.l.b16 %v1662
      %v2199 = vunpack.c.l.b16 %v1663
      %v2200 = vunpack.c.l.b16 %v1664
      %v2201 = vunpack.c.l.b16 %v1665
      %v2202 = vunpack.c.l.b16 %v1666
      %v2203 = vunpack.c.l.b16 %v1667
      %v2204 = vunpack.c.l.b16 %v1668
      %v2205 = vunpack.c.l.b16 %v1669
      %v2206 = vunpack.c.l.b16 %v1670
      %v2207 = vunpack.c.l.b16 %v1671
      %v2208 = vunpack.c.l.b16 %v1672
      %v2209 = vunpack.c.l.b16 %v1673
      %v2210 = vunpack.c.l.b16 %v1674
      %v2211 = vunpack.c.l.b16 %v1675
      %v2212 = vunpack.c.l.b16 %v1676
      %v2213 = vunpack.c.l.b16 %v1677
      %v2214 = vunpack.c.l.b16 %v1678
      %v2215 = vunpack.c.l.b16 %v1679
      %v2216 = vunpack.c.l.b16 %v1680
      %v2217 = vunpack.c.l.b16 %v1681
      %v2218 = vunpack.c.l.b16 %v1682
      %v2219 = vunpack.c.l.b16 %v1683
      %v2220 = vunpack.c.l.b16 %v1684
      %v2221 = vunpack.c.l.b16 %v1685
      %v2222 = vunpack.c.l.b16 %v1686
      %v2223 = vunpack.c.l.b16 %v1687
      %v2224 = vunpack.c.l.b16 %v1688
      %v2225 = vunpack.c.l.b16 %v1689
      %v2226 = vunpack.c.l.b16 %v1690
      %v2227 = vunpack.c.l.b16 %v1691
      %v2228 = vunpack.c.l.b16 %v1692
      %v2229 = vunpack.c.l.b16 %v1693
      %v2230 = vunpack.c.l.b16 %v1694
      %v2231 = vunpack.c.l.b16 %v1695
      %v2232 = vunpack.c.l.b16 %v1696
      %v2233 = vunpack.c.l.b16 %v1697
      %v2234 = vunpack.c.l.b16 %v1698
      %v2235 = vunpack.c.l.b16 %v1699
      %v2236 = vunpack.c.l.b16 %v1700
      %v2237 = vunpack.c.l.b16 %v1701
      %v2238 = vunpack.c.l.b16 %v1702
      %v2239 = vunpack.c.l.b16 %v1703
      %v2240 = vunpack.c.l.b16 %v1704
      %v2241 = vunpack.c.l.b16 %v1705
      %v2242 = vunpack.c.l.b16 %v1706
      %v2243 = vunpack.c.l.b16 %v1707
      %v2244 = vunpack.c.l.b16 %v1708
      %v2245 = vunpack.c.l.b16 %v1709
      %v2246 = vunpack.c.l.b16 %v1710
      %v2247 = vunpack.c.l.b16 %v1711
      %v2248 = vunpack.c.l.b16 %v1712
      %v2249 = vpack.c.b16 %v2054, %v2053
      %v2250 = vpack.c.b16 %v2056, %v2055
      %v2251 = vpack.c.b16 %v2058, %v2057
      %v2252 = vpack.c.b16 %v2060, %v2059
      %v2253 = vpack.c.b16 %v2062, %v2061
      %v2254 = vpack.c.b16 %v2064, %v2063
      %v2255 = vpack.c.b16 %v2066, %v2065
      %v2256 = vpack.c.b16 %v2068, %v2067
      %v2257 = vpack.c.b16 %v2070, %v2069
      %v2258 = vpack.c.b16 %v2072, %v2071
      %v2259 = vpack.c.b16 %v2074, %v2073
      %v2260 = vpack.c.b16 %v2076, %v2075
      %v2261 = vpack.c.b16 %v2078, %v2077
      %v2262 = vpack.c.b16 %v2080, %v2079
      %v2263 = vpack.c.b16 %v2082, %v2081
      %v2264 = vpack.c.b16 %v2084, %v2083
      %v2265 = vpack.c.b16 %v2086, %v2085
      %v2266 = vpack.c.b16 %v2088, %v2087
      %v2267 = vpack.c.b16 %v2090, %v2089
      %v2268 = vpack.c.b16 %v2092, %v2091
      %v2269 = vpack.c.b16 %v2094, %v2093
      %v2270 = vpack.c.b16 %v2096, %v2095
      %v2271 = vpack.c.b16 %v2098, %v2097
      %v2272 = vpack.c.b16 %v2100, %v2099
      %v2273 = vpack.c.b16 %v2102, %v2101
      %v2274 = vpack.c.b16 %v2104, %v2103
      %v2275 = vpack.c.b16 %v2106, %v2105
      %v2276 = vpack.c.b16 %v2108, %v2107
      %v2277 = vpack.c.b16 %v2110, %v2109
      %v2278 = vpack.c.b16 %v2112, %v2111
      %v2279 = vpack.c.b16 %v2114, %v2113
      %v2280 = vpack.c.b16 %v2116, %v2115
      %v2281 = vpack.c.b16 %v2118, %v2117
      %v2282 = vpack.c.b16 %v2120, %v2119
      %v2283 = vpack.c.b16 %v2122, %v2121
      %v2284 = vpack.c.b16 %v2124, %v2123
      %v2285 = vpack.c.b16 %v2126, %v2125
      %v2286 = vpack.c.b16 %v2128, %v2127
      %v2287 = vpack.c.b16 %v2130, %v2129
      %v2288 = vpack.c.b16 %v2132, %v2131
      %v2289 = vpack.c.b16 %v2134, %v2133
      %v2290 = vpack.c.b16 %v2136, %v2135
      %v2291 = vpack.c.b16 %v2138, %v2137
      %v2292 = vpack.c.b16 %v2140, %v2139
      %v2293 = vpack.c.b16 %v2142, %v2141
      %v2294 = vpack.c.b16 %v2144, %v2143
      %v2295 = vpack.c.b16 %v2146, %v2145
      %v2296 = vpack.c.b16 %v2148, %v2147
      %v2297 = vpack.c.b16 %v2150, %v2149
      %v2298 = vpack.c.b16 %v2152, %v2151
      %v2299 = vpack.c.b16 %v2154, %v2153
      %v2300 = vpack.c.b16 %v2156, %v2155
      %v2301 = vpack.c.b16 %v2158, %v2157
      %v2302 = vpack.c.b16 %v2160, %v2159
      %v2303 = vpack.c.b16 %v2162, %v2161
      %v2304 = vpack.c.b16 %v2164, %v2163
      %v2305 = vpack.c.b16 %v2166, %v2165
      %v2306 = vpack.c.b16 %v2168, %v2167
      %v2307 = vpack.c.b16 %v2170, %v2169
      %v2308 = vpack.c.b16 %v2172, %v2171
      %v2309 = vpack.c.b16 %v2174, %v2173
      %v2310 = vpack.c.b16 %v2176, %v2175
      %v2311 = vpack.c.b16 %v2178, %v2177
      %v2312 = vpack.c.b16 %v2180, %v2179
      %v2313 = vpack.c.b16 %v2182, %v2181
      %v2314 = vpack.c.b16 %v2184, %v2183
      %v2315 = vpack.c.b16 %v2186, %v2185
      %v2316 = vpack.c.b16 %v2188, %v2187
      %v2317 = vpack.c.b16 %v2190, %v2189
      %v2318 = vpack.c.b16 %v2192, %v2191
      %v2319 = vpack.c.b16 %v2194, %v2193
      %v2320 = vpack.c.b16 %v2196, %v2195
      %v2321 = vpack.c.b16 %v2198, %v2197
      %v2322 = vpack.c.b16 %v2200, %v2199
      %v2323 = vpack.c.b16 %v2202, %v2201
      %v2324 = vpack.c.b16 %v2204, %v2203
      %v2325 = vpack.c.b16 %v2206, %v2205
      %v2326 = vpack.c.b16 %v2208, %v2207
      %v2327 = vpack.c.b16 %v2210, %v2209
      %v2328 = vpack.c.b16 %v2212, %v2211
      %v2329 = vpack.c.b16 %v2214, %v2213
      %v2330 = vpack.c.b16 %v2216, %v2215
      %v2331 = vpack.c.b16 %v2218, %v2217
      %v2332 = vpack.c.b16 %v2220, %v2219
      %v2333 = vpack.c.b16 %v2222, %v2221
      %v2334 = vpack.c.b16 %v2224, %v2223
      %v2335 = vpack.c.b16 %v2226, %v2225
      %v2336 = vpack.c.b16 %v2228, %v2227
      %v2337 = vpack.c.b16 %v2230, %v2229
      %v2338 = vpack.c.b16 %v2232, %v2231
      %v2339 = vpack.c.b16 %v2234, %v2233
      %v2340 = vpack.c.b16 %v2236, %v2235
      %v2341 = vpack.c.b16 %v2238, %v2237
      %v2342 = vpack.c.b16 %v2240, %v2239
      %v2343 = vpack.c.b16 %v2242, %v2241
      %v2344 = vpack.c.b16 %v2244, %v2243
      %v2345 = vpack.c.b16 %v2246, %v2245
      %v2346 = vpack.c.b16 %v2248, %v2247
      %v2446 = vsel %vm739, %v1856, 0
      %2448 = vmatpush.bf16.msra.mxu0 %v2256
      %2449 = vmatpush.bf16.msra.mxu0 %v2255
      %2450 = vmatpush.bf16.msra.mxu0 %v2254
      %2451 = vmatpush.bf16.msra.mxu0 %v2253
      %2452 = vmatpush.bf16.msra.mxu0 %v2252
      %2453 = vmatpush.bf16.msra.mxu0 %v2251
      %2454 = vmatpush.bf16.msra.mxu0 %v2250
      %2455 = vmatpush.bf16.msra.mxu0 %v2249
      %2456 = vmatmul.bf16.gmra.mxu0 %v1844
      %v2457 = vpop.f32.mrf.mxu0
      %v2458 = vadd.f32 %v1713, %v2457
      %v2459 = vpop.f32.mrf.mxu0
      %2460 = vdwg.mxu0
      %2461 = vmatpush.bf16.msra.mxu0 %v2264
      %2462 = vmatpush.bf16.msra.mxu0 %v2263
      %2463 = vmatpush.bf16.msra.mxu0 %v2262
      %2464 = vmatpush.bf16.msra.mxu0 %v2261
      %2465 = vmatpush.bf16.msra.mxu0 %v2260
      %2466 = vmatpush.bf16.msra.mxu0 %v2259
      %2467 = vmatpush.bf16.msra.mxu0 %v2258
      %2468 = vmatpush.bf16.msra.mxu0 %v2257
      %2469 = vmatmul.bf16.gmra.mxu0 %v1845
      %v2470 = vpop.f32.mrf.mxu0
      %v2471 = vadd.f32 %v2458, %v2470
      %v2472 = vpop.f32.mrf.mxu0
      %2473 = vdwg.mxu0
      %2474 = vmatpush.bf16.msra.mxu0 %v2272
      %2475 = vmatpush.bf16.msra.mxu0 %v2271
      %2476 = vmatpush.bf16.msra.mxu0 %v2270
      %2477 = vmatpush.bf16.msra.mxu0 %v2269
      %2478 = vmatpush.bf16.msra.mxu0 %v2268
      %2479 = vmatpush.bf16.msra.mxu0 %v2267
      %2480 = vmatpush.bf16.msra.mxu0 %v2266
      %2481 = vmatpush.bf16.msra.mxu0 %v2265
      %2482 = vmatmul.bf16.gmra.mxu0 %v1846
      %v2483 = vpop.f32.mrf.mxu0
      %v2484 = vadd.f32 %v2471, %v2483
      %v2485 = vpop.f32.mrf.mxu0
      %2486 = vdwg.mxu0
      %2487 = vmatpush.bf16.msra.mxu0 %v2280
      %2488 = vmatpush.bf16.msra.mxu0 %v2279
      %2489 = vmatpush.bf16.msra.mxu0 %v2278
      %2490 = vmatpush.bf16.msra.mxu0 %v2277
      %2491 = vmatpush.bf16.msra.mxu0 %v2276
      %2492 = vmatpush.bf16.msra.mxu0 %v2275
      %2493 = vmatpush.bf16.msra.mxu0 %v2274
      %2494 = vmatpush.bf16.msra.mxu0 %v2273
      %2495 = vmatmul.bf16.gmra.mxu0 %v1847
      %v2496 = vpop.f32.mrf.mxu0
      %v2497 = vadd.f32 %v2484, %v2496
      %v2498 = vpop.f32.mrf.mxu0
      %2499 = vdwg.mxu0
      %2500 = vmatpush.bf16.msra.mxu0 %v2288
      %2501 = vmatpush.bf16.msra.mxu0 %v2287
      %2502 = vmatpush.bf16.msra.mxu0 %v2286
      %2503 = vmatpush.bf16.msra.mxu0 %v2285
      %2504 = vmatpush.bf16.msra.mxu0 %v2284
      %2505 = vmatpush.bf16.msra.mxu0 %v2283
      %2506 = vmatpush.bf16.msra.mxu0 %v2282
      %2507 = vmatpush.bf16.msra.mxu0 %v2281
      %2508 = vmatmul.bf16.gmra.mxu0 %v1848
      %v2509 = vpop.f32.mrf.mxu0
      %v2510 = vadd.f32 %v2497, %v2509
      %v2511 = vpop.f32.mrf.mxu0
      %2512 = vdwg.mxu0
      %2513 = vmatpush.bf16.msra.mxu0 %v2296
      %2514 = vmatpush.bf16.msra.mxu0 %v2295
      %2515 = vmatpush.bf16.msra.mxu0 %v2294
      %2516 = vmatpush.bf16.msra.mxu0 %v2293
      %2517 = vmatpush.bf16.msra.mxu0 %v2292
      %2518 = vmatpush.bf16.msra.mxu0 %v2291
      %2519 = vmatpush.bf16.msra.mxu0 %v2290
      %2520 = vmatpush.bf16.msra.mxu0 %v2289
      %2521 = vmatmul.bf16.gmra.mxu0 %v1849
      %v2522 = vpop.f32.mrf.mxu0
      %v2523 = vadd.f32 %v2510, %v2522
      %v2524 = vpop.f32.mrf.mxu0
      %2525 = vdwg.mxu0
      %2526 = vmatpush.bf16.msra.mxu0 %v2304
      %2527 = vmatpush.bf16.msra.mxu0 %v2303
      %2528 = vmatpush.bf16.msra.mxu0 %v2302
      %2529 = vmatpush.bf16.msra.mxu0 %v2301
      %2530 = vmatpush.bf16.msra.mxu0 %v2300
      %2531 = vmatpush.bf16.msra.mxu0 %v2299
      %2532 = vmatpush.bf16.msra.mxu0 %v2298
      %2533 = vmatpush.bf16.msra.mxu0 %v2297
      %2534 = vmatmul.bf16.gmra.mxu0 %v1850
      %v2535 = vpop.f32.mrf.mxu0
      %v2536 = vadd.f32 %v2523, %v2535
      %v2537 = vpop.f32.mrf.mxu0
      %2538 = vdwg.mxu0
      %2539 = vmatpush.bf16.msra.mxu0 %v2312
      %2540 = vmatpush.bf16.msra.mxu0 %v2311
      %2541 = vmatpush.bf16.msra.mxu0 %v2310
      %2542 = vmatpush.bf16.msra.mxu0 %v2309
      %2543 = vmatpush.bf16.msra.mxu0 %v2308
      %2544 = vmatpush.bf16.msra.mxu0 %v2307
      %2545 = vmatpush.bf16.msra.mxu0 %v2306
      %2546 = vmatpush.bf16.msra.mxu0 %v2305
      %2547 = vmatmul.bf16.gmra.mxu0 %v1851
      %v2548 = vpop.f32.mrf.mxu0
      %v2549 = vadd.f32 %v2536, %v2548
      %v2550 = vpop.f32.mrf.mxu0
      %2551 = vdwg.mxu0
      %2552 = vmatpush.bf16.msra.mxu0 %v2320
      %2553 = vmatpush.bf16.msra.mxu0 %v2319
      %2554 = vmatpush.bf16.msra.mxu0 %v2318
      %2555 = vmatpush.bf16.msra.mxu0 %v2317
      %2556 = vmatpush.bf16.msra.mxu0 %v2316
      %2557 = vmatpush.bf16.msra.mxu0 %v2315
      %2558 = vmatpush.bf16.msra.mxu0 %v2314
      %2559 = vmatpush.bf16.msra.mxu0 %v2313
      %2560 = vmatmul.bf16.gmra.mxu0 %v1852
      %v2561 = vpop.f32.mrf.mxu0
      %v2562 = vadd.f32 %v2549, %v2561
      %v2563 = vpop.f32.mrf.mxu0
      %2564 = vdwg.mxu0
      %2565 = vmatpush.bf16.msra.mxu0 %v2328
      %2566 = vmatpush.bf16.msra.mxu0 %v2327
      %2567 = vmatpush.bf16.msra.mxu0 %v2326
      %2568 = vmatpush.bf16.msra.mxu0 %v2325
      %2569 = vmatpush.bf16.msra.mxu0 %v2324
      %2570 = vmatpush.bf16.msra.mxu0 %v2323
      %2571 = vmatpush.bf16.msra.mxu0 %v2322
      %2572 = vmatpush.bf16.msra.mxu0 %v2321
      %2573 = vmatmul.bf16.gmra.mxu0 %v1853
      %v2574 = vpop.f32.mrf.mxu0
      %v2575 = vadd.f32 %v2562, %v2574
      %v2576 = vpop.f32.mrf.mxu0
      %2577 = vdwg.mxu0
      %2578 = vmatpush.bf16.msra.mxu0 %v2336
      %2579 = vmatpush.bf16.msra.mxu0 %v2335
      %2580 = vmatpush.bf16.msra.mxu0 %v2334
      %2581 = vmatpush.bf16.msra.mxu0 %v2333
      %2582 = vmatpush.bf16.msra.mxu0 %v2332
      %2583 = vmatpush.bf16.msra.mxu0 %v2331
      %2584 = vmatpush.bf16.msra.mxu0 %v2330
      %2585 = vmatpush.bf16.msra.mxu0 %v2329
      %2586 = vmatmul.bf16.gmra.mxu0 %v1854
      %v2587 = vpop.f32.mrf.mxu0
      %v2588 = vadd.f32 %v2575, %v2587
      %v2589 = vpop.f32.mrf.mxu0
      %2590 = vdwg.mxu0
      %2591 = vmatpush.bf16.msra.mxu0 %v2344
      %2592 = vmatpush.bf16.msra.mxu0 %v2343
      %2593 = vmatpush.bf16.msra.mxu0 %v2342
      %2594 = vmatpush.bf16.msra.mxu0 %v2341
      %2595 = vmatpush.bf16.msra.mxu0 %v2340
      %2596 = vmatpush.bf16.msra.mxu0 %v2339
      %2597 = vmatpush.bf16.msra.mxu0 %v2338
      %2598 = vmatpush.bf16.msra.mxu0 %v2337
      %2599 = vmatmul.bf16.gmra.mxu0 %v1855
      %v2600 = vpop.f32.mrf.mxu0
      %v2601 = vadd.f32 %v2588, %v2600
      %v2602 = vpop.f32.mrf.mxu0
      %2603 = vdwg.mxu0
      %2604 = vmatpush.bf16.msra.mxu0 0
      %2605 = vmatpush.bf16.msra.mxu0 0
      %2606 = vmatpush.bf16.msra.mxu0 0
      %2607 = vmatpush.bf16.msra.mxu0 0
      %2608 = vmatpush.bf16.msra.mxu0 0
      %2609 = vmatpush.bf16.msra.mxu0 0
      %2610 = vmatpush.bf16.msra.mxu0 %v2346
      %2611 = vmatpush.bf16.msra.mxu0 %v2345
      %2612 = vmatmul.bf16.gmra.mxu0 %v2446
      %v2613 = vpop.f32.mrf.mxu0
      %v2614 = vadd.f32 %v2601, %v2613
      %v2615 = vpop.f32.mrf.mxu0
      %2616 = vdwg.mxu0
      %vm2617 = vcmask 0
      %2618 = vst.msk [vmem:[%s330] sm:$0x1] %vm2617, %v2614
      %p2619 = scmp.lt.s32.totalorder %s22, 1
      %s2620 = scalar_select %p2619, %s22, 1
      %s2621 = scalar_lea.vmem %s9, %s2620
      // Predicated region
      $region57: #{patch_discriminator_forward.5} parent=55 // pred_check
        %p2622 = pneg %p234
      $region58: #{patch_discriminator_forward.5} parent=55 // pred_check_branch
        %2624 = sbr.rel (%p2622) target = $region60
      $region59: #{patch_discriminator_forward.5} parent=55 // pred_region
        _
      $region60: #{patch_discriminator_forward.5} parent=55 // pred_fallthru
        _
    $region56: #{patch_discriminator_forward.5} parent=5 // pred_fallthru
      _
    %p2625 = scmp.le.s32.totalorder 2, %s17
    // Predicated region
    $region61: #{patch_discriminator_forward.5} parent=5 // pred_check
      %p2626 = pneg %p2625
    $region62: #{patch_discriminator_forward.5} parent=5 // pred_check_branch
      %2628 = sbr.rel (%p2626) target = $region64
    $region63: #{patch_discriminator_forward.5} parent=5 // pred_region
      %s2629 = ssub.s32 %s17, 2
      // Predicated region
      $region65: #{patch_discriminator_forward.5} parent=63 // pred_check
        %p2630 = pneg %p240
      $region66: #{patch_discriminator_forward.5} parent=63 // pred_check_branch
        %2632 = sbr.rel (%p2630) target = $region68
      $region67: #{patch_discriminator_forward.5} parent=63 // pred_region
        %p2633 = scmp.lt.s32.totalorder %s23, 1
        %s2634 = scalar_select %p2633, %s23, 1
        %s2635 = scalar_lea.vmem %s9, %s2634
      $region68: #{patch_discriminator_forward.5} parent=63 // pred_fallthru
        _
    $region64: #{patch_discriminator_forward.5} parent=5 // pred_fallthru
      _
  $region6: #{patch_discriminator_forward.5} parent=0 // loop_footer
    %s21 = sadd.s32 1, %s17
  $region7: #{patch_discriminator_forward.5} parent=0 // loop_footer_branch
    %16 = sbr.rel target = $region3
  $region8: #{patch_discriminator_forward.5} parent=0 // loop_exit
    _

// kernel: patch_discriminator_forward.3
$region0: #{patch_discriminator_forward.3}
  #allocation0 [shape = 'u32[]', space=smem, size = 0x4, offset = 0x4, fixed_abs, tag = 'smem constant byte address 0x4 - core index']
  #allocation1 [shape = 'u32[72,128]{1,0:T(1,128)}', space=vmem, size = 0x9000, scoped, tag = 'internal scratch']
  %s0 = inlined_call_operand.vmem [shape: bf16[2,22,22,4], index: 0, kind: input, shape index: {}]
  %s1 = inlined_call_operand.vmem [shape: bf16[196,8], index: 1, kind: input, shape index: {}]
  %s2 = inlined_call_operand.vmem [shape: f32[1,8], index: 2, kind: input, shape index: {}]
  %s3 = inlined_call_operand.vmem [shape: bf16[2,16,16,8], index: 3, kind: output, shape index: {}]
  %s4 = sld [smem:[#allocation0]]
  $region45: #{patch_discriminator_forward.3} parent=0
    _
  %s6 = ssub.s32 1, %s4
  %s7 = scalar_select 0, %s6, %s4
  loop: start=0, step=1, limit=4
  $region2: #{patch_discriminator_forward.3} parent=0 // loop_pre_header
    _
  $region3: #{patch_discriminator_forward.3} parent=0 // loop_header
    %s9 = sphi 0, %s13
    %p10 = scmp.ge.s32.totalorder %s9, 4
    %s19 = sphi 0, %s21
    %s22 = sphi 0, %s19
    %s23 = sphi 0, %s22
    %s39 = sphi 0, %s23
    %s43 = sphi 0, %s43
    %s45 = sphi 0, %s43
    %s46 = sphi 0, %s45
    %s60 = sphi 0, %s46
    %s64 = sphi 0, %s64
    %s66 = sphi 0, %s64
    %s67 = sphi 0, %s66
    %s81 = sphi 0, %s67
    %s87 = sphi 0, %s89
    %s90 = sphi 0, %s87
    %s91 = sphi 0, %s90
    %s107 = sphi 0, %s91
  $region4: #{patch_discriminator_forward.3} parent=0 // loop_header_branch
    %12 = sbr.rel (%p10) target = $region8
  $region5: #{patch_discriminator_forward.3} parent=0 // loop_body
    %s14 = ssub.s32 %s9, 1
    %s15 = ssub.s32 %s9, 2
    %s16 = sadd.s32 %s9, 1
    %s17 = ssub.s32 %s9, %s16
    %p18 = scmp.eq.s32.totalorder %s17, 0
    %s20 = sadd.s32 %s19, 1
    %s21 = scalar_select %p18, %s19, %s20
    %p24 = pneg %p18
    %p25 = scmp.eq.s32.totalorder %s9, 1
    %p26 = por %p24, %p25
    %p27 = scmp.ne.s32.totalorder %s19, %s22
    %p28 = scmp.eq.s32.totalorder %s9, 0
    %p29 = por %p27, %p28
    %p30 = scmp.ne.s32.totalorder %s19, %s22
    %p31 = scmp.eq.s32.totalorder %s14, 1
    %p32 = por %p30, %p31
    %p33 = scmp.ne.s32.totalorder %s22, %s23
    %p34 = scmp.eq.s32.totalorder %s14, 0
    %p35 = por %p33, %p34
    %p36 = scmp.ne.s32.totalorder %s22, %s23
    %p37 = scmp.eq.s32.totalorder %s15, 1
    %p38 = por %p36, %p37
    %p40 = scmp.ne.s32.totalorder %s23, %s39
    %p41 = scmp.eq.s32.totalorder %s15, 0
    %p42 = por %p40, %p41
    %s44 = sadd.s32 %s43, 1
    %p47 = scmp.eq.s32.totalorder %s9, 1
    %p48 = scmp.ne.s32.totalorder %s43, %s45
    %p49 = scmp.eq.s32.totalorder %s9, 0
    %p50 = por %p48, %p49
    %p51 = scmp.ne.s32.totalorder %s43, %s45
    %p52 = scmp.eq.s32.totalorder %s14, 1
    %p53 = por %p51, %p52
    %p54 = scmp.ne.s32.totalorder %s45, %s46
    %p55 = scmp.eq.s32.totalorder %s14, 0
    %p56 = por %p54, %p55
    %p57 = scmp.ne.s32.totalorder %s45, %s46
    %p58 = scmp.eq.s32.totalorder %s15, 1
    %p59 = por %p57, %p58
    %p61 = scmp.ne.s32.totalorder %s46, %s60
    %p62 = scmp.eq.s32.totalorder %s15, 0
    %p63 = por %p61, %p62
    %s65 = sadd.s32 %s64, 1
    %p68 = scmp.eq.s32.totalorder %s9, 1
    %p69 = scmp.ne.s32.totalorder %s64, %s66
    %p70 = scmp.eq.s32.totalorder %s9, 0
    %p71 = por %p69, %p70
    %p72 = scmp.ne.s32.totalorder %s64, %s66
    %p73 = scmp.eq.s32.totalorder %s14, 1
    %p74 = por %p72, %p73
    %p75 = scmp.ne.s32.totalorder %s66, %s67
    %p76 = scmp.eq.s32.totalorder %s14, 0
    %p77 = por %p75, %p76
    %p78 = scmp.ne.s32.totalorder %s66, %s67
    %p79 = scmp.eq.s32.totalorder %s15, 1
    %p80 = por %p78, %p79
    %p82 = scmp.ne.s32.totalorder %s67, %s81
    %p83 = scmp.eq.s32.totalorder %s15, 0
    %p84 = por %p82, %p83
    %s85 = ssub.s32 %s9, %s16
    %p86 = scmp.eq.s32.totalorder %s85, 0
    %s88 = sadd.s32 %s87, 1
    %s89 = scalar_select %p86, %s87, %s88
    %p92 = pneg %p86
    %p93 = scmp.eq.s32.totalorder %s9, 1
    %p94 = por %p92, %p93
    %p95 = scmp.ne.s32.totalorder %s87, %s90
    %p96 = scmp.eq.s32.totalorder %s9, 0
    %p97 = por %p95, %p96
    %p98 = scmp.ne.s32.totalorder %s87, %s90
    %p99 = scmp.eq.s32.totalorder %s14, 1
    %p100 = por %p98, %p99
    %p101 = scmp.ne.s32.totalorder %s90, %s91
    %p102 = scmp.eq.s32.totalorder %s14, 0
    %p103 = por %p101, %p102
    %p104 = scmp.ne.s32.totalorder %s90, %s91
    %p105 = scmp.eq.s32.totalorder %s15, 1
    %p106 = por %p104, %p105
    %p108 = scmp.ne.s32.totalorder %s91, %s107
    %p109 = scmp.eq.s32.totalorder %s15, 0
    %p110 = por %p108, %p109
    %p111 = scmp.le.s32.totalorder 1, %s9
    %p112 = scmp.lt.s32.totalorder %s9, 3
    %p113 = pnand %p111, %p112
    %p114 = pneg %p113
    // Predicated region
    $region9: #{patch_discriminator_forward.3} parent=5 // pred_check
      _
    $region10: #{patch_discriminator_forward.3} parent=5 // pred_check_branch
      %116 = sbr.rel (%p113) target = $region12
    $region11: #{patch_discriminator_forward.3} parent=5 // pred_region
      %s117 = ssub.s32 %s9, 1
      // Predicated region
      $region13: #{patch_discriminator_forward.3} parent=11 // pred_check
        %p118 = pneg %p56
      $region14: #{patch_discriminator_forward.3} parent=11 // pred_check_branch
        %120 = sbr.rel (%p118) target = $region16
      $region15: #{patch_discriminator_forward.3} parent=11 // pred_region
        _
      $region16: #{patch_discriminator_forward.3} parent=11 // pred_fallthru
        _
      // Predicated region
      $region17: #{patch_discriminator_forward.3} parent=11 // pred_check
        %p121 = pneg %p77
      $region18: #{patch_discriminator_forward.3} parent=11 // pred_check_branch
        %123 = sbr.rel (%p121) target = $region20
      $region19: #{patch_discriminator_forward.3} parent=11 // pred_region
        _
      $region20: #{patch_discriminator_forward.3} parent=11 // pred_fallthru
        _
    $region12: #{patch_discriminator_forward.3} parent=5 // pred_fallthru
      _
    %p124 = scmp.lt.s32.totalorder %s9, 2
    // Predicated region
    $region21: #{patch_discriminator_forward.3} parent=5 // pred_check
      %p125 = pneg %p124
    $region22: #{patch_discriminator_forward.3} parent=5 // pred_check_branch
      %127 = sbr.rel (%p125) target = $region24
    $region23: #{patch_discriminator_forward.3} parent=5 // pred_region
      // Predicated region
      $region25: #{patch_discriminator_forward.3} parent=23 // pred_check
        %p128 = pneg %p29
      $region26: #{patch_discriminator_forward.3} parent=23 // pred_check_branch
        %130 = sbr.rel (%p128) target = $region28
      $region27: #{patch_discriminator_forward.3} parent=23 // pred_region
        %p131 = scmp.lt.s32.totalorder %s9, 1
        %s132 = scalar_select %p131, %s9, 1
        %s133 = smul.addr %s132, 66
        %s134 = smul.addr %s133, 4
        %s135 = scalar_lea.vmem %s0, %s134
      $region28: #{patch_discriminator_forward.3} parent=23 // pred_fallthru
        _
    $region24: #{patch_discriminator_forward.3} parent=5 // pred_fallthru
      _
    %p136 = scmp.le.s32.totalorder 1, %s9
    %p137 = scmp.lt.s32.totalorder %s9, 3
    %p138 = pnand %p136, %p137
    %p139 = pneg %p138
    // Predicated region
    $region29: #{patch_discriminator_forward.3} parent=5 // pred_check
      _
    $region30: #{patch_discriminator_forward.3} parent=5 // pred_check_branch
      %141 = sbr.rel (%p138) target = $region32
    $region31: #{patch_discriminator_forward.3} parent=5 // pred_region
      %s142 = ssub.s32 %s9, 1
      %p143 = scmp.lt.s32.totalorder %s14, 1
      %s144 = scalar_select %p143, %s14, 1
      %s145 = smul.addr %s144, 66
      %s146 = smul.addr %s145, 4
      %s147 = scalar_lea.vmem %s0, %s146
      %p148 = pneg %p35
      %p149 = pneg %p32
      %p150 = pneg %p56
      %p151 = pneg %p53
      %p152 = pneg %p77
      %p153 = pneg %p74
      %p154 = pneg %p103
      %p155 = pneg %p100
      %p156 = scmp.lt.s32.totalorder %s14, 1
      %s157 = scalar_select %p156, %s14, 1
      %s158 = smul.addr %s157, 32
      %s159 = smul.addr %s158, 4
      %s160 = scalar_lea.vmem %s3, %s159
      %p161 = scmp.lt.s32.totalorder %s14, 1
      %s162 = scalar_select %p161, %s14, 1
      %s163 = smul.addr %s162, 66
      %s164 = smul.addr %s163, 4
      %s165 = scalar_lea.vmem %s0, %s164
      %p166 = scmp.lt.s32.totalorder %s14, 1
      %s167 = scalar_select %p166, %s14, 1
      %s168 = smul.addr %s167, 32
      %s169 = smul.addr %s168, 4
      %s170 = scalar_lea.vmem %s3, %s169
      %v172 = vld [vmem:[%s165] sm:$0xf]
      %v173 = vld [vmem:[%s165 + $0x4] sm:$0xf]
      %v174 = vld [vmem:[%s165 + $0x8] sm:$0x7]
      %v175 = vld [vmem:[%s165 + $0xc] sm:$0xf]
      %v176 = vld [vmem:[%s165 + $0x10] sm:$0xf]
      %v177 = vld [vmem:[%s165 + $0x14] sm:$0x7]
      %v178 = vld [vmem:[%s165 + $0x18] sm:$0xf]
      %v179 = vld [vmem:[%s165 + $0x1c] sm:$0xf]
      %v180 = vld [vmem:[%s165 + $0x20] sm:$0x7]
      %v181 = vld [vmem:[%s165 + $0x24] sm:$0xf]
      %v182 = vld [vmem:[%s165 + $0x28] sm:$0xf]
      %v183 = vld [vmem:[%s165 + $0x2c] sm:$0x7]
      %v184 = vld [vmem:[%s165 + $0x30] sm:$0xf]
      %v185 = vld [vmem:[%s165 + $0x34] sm:$0xf]
      %v186 = vld [vmem:[%s165 + $0x38] sm:$0x7]
      %v187 = vld [vmem:[%s165 + $0x3c] sm:$0xf]
      %v188 = vld [vmem:[%s165 + $0x40] sm:$0xf]
      %v189 = vld [vmem:[%s165 + $0x44] sm:$0x7]
      %v190 = vld [vmem:[%s165 + $0x48] sm:$0xf]
      %v191 = vld [vmem:[%s165 + $0x4c] sm:$0xf]
      %v192 = vld [vmem:[%s165 + $0x50] sm:$0x7]
      %v193 = vld [vmem:[%s165 + $0x54] sm:$0xf]
      %v194 = vld [vmem:[%s165 + $0x58] sm:$0xf]
      %v195 = vld [vmem:[%s165 + $0x5c] sm:$0x7]
      %v196 = vld [vmem:[%s165 + $0x60] sm:$0xf]
      %v197 = vld [vmem:[%s165 + $0x64] sm:$0xf]
      %v198 = vld [vmem:[%s165 + $0x68] sm:$0x7]
      %v199 = vld [vmem:[%s165 + $0x6c] sm:$0xf]
      %v200 = vld [vmem:[%s165 + $0x70] sm:$0xf]
      %v201 = vld [vmem:[%s165 + $0x74] sm:$0x7]
      %v202 = vld [vmem:[%s165 + $0x78] sm:$0xf]
      %v203 = vld [vmem:[%s165 + $0x7c] sm:$0xf]
      %v204 = vld [vmem:[%s165 + $0x80] sm:$0x7]
      %v205 = vld [vmem:[%s165 + $0x84] sm:$0xf]
      %v206 = vld [vmem:[%s165 + $0x88] sm:$0xf]
      %v207 = vld [vmem:[%s165 + $0x8c] sm:$0x7]
      %v208 = vld [vmem:[%s165 + $0x90] sm:$0xf]
      %v209 = vld [vmem:[%s165 + $0x94] sm:$0xf]
      %v210 = vld [vmem:[%s165 + $0x98] sm:$0x7]
      %v211 = vld [vmem:[%s165 + $0x9c] sm:$0xf]
      %v212 = vld [vmem:[%s165 + $0xa0] sm:$0xf]
      %v213 = vld [vmem:[%s165 + $0xa4] sm:$0x7]
      %v214 = vld [vmem:[%s165 + $0xa8] sm:$0xf]
      %v215 = vld [vmem:[%s165 + $0xac] sm:$0xf]
      %v216 = vld [vmem:[%s165 + $0xb0] sm:$0x7]
      %v217 = vld [vmem:[%s165 + $0xb4] sm:$0xf]
      %v218 = vld [vmem:[%s165 + $0xb8] sm:$0xf]
      %v219 = vld [vmem:[%s165 + $0xbc] sm:$0x7]
      %v220 = vld [vmem:[%s165 + $0xc0] sm:$0xf]
      %v221 = vld [vmem:[%s165 + $0xc4] sm:$0xf]
      %v222 = vld [vmem:[%s165 + $0xc8] sm:$0x7]
      %v223 = vld [vmem:[%s165 + $0xcc] sm:$0xf]
      %v224 = vld [vmem:[%s165 + $0xd0] sm:$0xf]
      %v225 = vld [vmem:[%s165 + $0xd4] sm:$0x7]
      %v226 = vld [vmem:[%s165 + $0xd8] sm:$0xf]
      %v227 = vld [vmem:[%s165 + $0xdc] sm:$0xf]
      %v228 = vld [vmem:[%s165 + $0xe0] sm:$0x7]
      %v229 = vld [vmem:[%s165 + $0xe4] sm:$0xf]
      %v230 = vld [vmem:[%s165 + $0xe8] sm:$0xf]
      %v231 = vld [vmem:[%s165 + $0xec] sm:$0x7]
      %v232 = vld [vmem:[%s165 + $0xf0] sm:$0xf]
      %v233 = vld [vmem:[%s165 + $0xf4] sm:$0xf]
      %v234 = vld [vmem:[%s165 + $0xf8] sm:$0x7]
      %v235 = vld [vmem:[%s165 + $0xfc] sm:$0xf]
      %v236 = vld [vmem:[%s165 + $0x100] sm:$0xf]
      %v237 = vld [vmem:[%s165 + $0x104] sm:$0x7]
      %v238 = vunpack.c.l.bf16 %v172
      %v239 = vunpack.c.l.bf16 %v173
      %v240 = vunpack.c.l.bf16 %v174
      %v241 = vunpack.c.l.bf16 %v175
      %v242 = vunpack.c.l.bf16 %v176
      %v243 = vunpack.c.l.bf16 %v177
      %v244 = vunpack.c.l.bf16 %v178
      %v245 = vunpack.c.l.bf16 %v179
      %v246 = vunpack.c.l.bf16 %v180
      %v247 = vunpack.c.l.bf16 %v181
      %v248 = vunpack.c.l.bf16 %v182
      %v249 = vunpack.c.l.bf16 %v183
      %v250 = vunpack.c.l.bf16 %v184
      %v251 = vunpack.c.l.bf16 %v185
      %v252 = vunpack.c.l.bf16 %v186
      %v253 = vunpack.c.l.bf16 %v187
      %v254 = vunpack.c.l.bf16 %v188
      %v255 = vunpack.c.l.bf16 %v189
      %v256 = vunpack.c.l.bf16 %v190
      %v257 = vunpack.c.l.bf16 %v191
      %v258 = vunpack.c.l.bf16 %v192
      %v259 = vunpack.c.l.bf16 %v193
      %v260 = vunpack.c.l.bf16 %v194
      %v261 = vunpack.c.l.bf16 %v195
      %v262 = vunpack.c.l.bf16 %v196
      %v263 = vunpack.c.l.bf16 %v197
      %v264 = vunpack.c.l.bf16 %v198
      %v265 = vunpack.c.l.bf16 %v199
      %v266 = vunpack.c.l.bf16 %v200
      %v267 = vunpack.c.l.bf16 %v201
      %v268 = vunpack.c.l.bf16 %v202
      %v269 = vunpack.c.l.bf16 %v203
      %v270 = vunpack.c.l.bf16 %v204
      %v271 = vunpack.c.l.bf16 %v205
      %v272 = vunpack.c.l.bf16 %v206
      %v273 = vunpack.c.l.bf16 %v207
      %v274 = vunpack.c.l.bf16 %v208
      %v275 = vunpack.c.l.bf16 %v209
      %v276 = vunpack.c.l.bf16 %v210
      %v277 = vunpack.c.l.bf16 %v211
      %v278 = vunpack.c.l.bf16 %v212
      %v279 = vunpack.c.l.bf16 %v213
      %v280 = vunpack.c.l.bf16 %v214
      %v281 = vunpack.c.l.bf16 %v215
      %v282 = vunpack.c.l.bf16 %v216
      %v283 = vunpack.c.l.bf16 %v217
      %v284 = vunpack.c.l.bf16 %v218
      %v285 = vunpack.c.l.bf16 %v219
      %v286 = vunpack.c.l.bf16 %v220
      %v287 = vunpack.c.l.bf16 %v221
      %v288 = vunpack.c.l.bf16 %v222
      %v289 = vunpack.c.l.bf16 %v223
      %v290 = vunpack.c.l.bf16 %v224
      %v291 = vunpack.c.l.bf16 %v225
      %v292 = vunpack.c.l.bf16 %v226
      %v293 = vunpack.c.l.bf16 %v227
      %v294 = vunpack.c.l.bf16 %v228
      %v295 = vunpack.c.l.bf16 %v229
      %v296 = vunpack.c.l.bf16 %v230
      %v297 = vunpack.c.l.bf16 %v231
      %v298 = vunpack.c.l.bf16 %v232
      %v299 = vunpack.c.l.bf16 %v233
      %v300 = vunpack.c.l.bf16 %v234
      %v301 = vunpack.c.l.bf16 %v235
      %v302 = vunpack.c.l.bf16 %v236
      %v303 = vunpack.c.l.bf16 %v237
      %v304 = vld [vmem:[%s1] sm:$0xf]
      %v305 = vld [vmem:[%s1 + $0x4] sm:$0xf]
      %v306 = vld [vmem:[%s1 + $0x8] sm:$0xf]
      %v307 = vld [vmem:[%s1 + $0xc] sm:$0xf]
      %v308 = vld [vmem:[%s1 + $0x10] sm:$0xf]
      %v309 = vld [vmem:[%s1 + $0x14] sm:$0xf]
      %v310 = vld [vmem:[%s1 + $0x18] sm:$0xf]
      %v311 = vld [vmem:[%s1 + $0x1c] sm:$0xf]
      %v312 = vld [vmem:[%s1 + $0x20] sm:$0xf]
      %v313 = vld [vmem:[%s1 + $0x24] sm:$0xf]
      %v314 = vld [vmem:[%s1 + $0x28] sm:$0xf]
      %v315 = vld [vmem:[%s1 + $0x2c] sm:$0xf]
      %v316 = vld [vmem:[%s1 + $0x30] sm:$0xf]
      %v317 = vld [vmem:[%s1 + $0x34] sm:$0xf]
      %v318 = vld [vmem:[%s1 + $0x38] sm:$0xf]
      %v319 = vld [vmem:[%s1 + $0x3c] sm:$0xf]
      %v320 = vld [vmem:[%s1 + $0x40] sm:$0xf]
      %v321 = vld [vmem:[%s1 + $0x44] sm:$0xf]
      %v322 = vld [vmem:[%s1 + $0x48] sm:$0xf]
      %v323 = vld [vmem:[%s1 + $0x4c] sm:$0xf]
      %v324 = vld [vmem:[%s1 + $0x50] sm:$0xf]
      %v325 = vld [vmem:[%s1 + $0x54] sm:$0xf]
      %v326 = vld [vmem:[%s1 + $0x58] sm:$0xf]
      %v327 = vld [vmem:[%s1 + $0x5c] sm:$0xf]
      %v328 = vld [vmem:[%s1 + $0x60] sm:$0x3]
      %v329 = vld [vmem:[%s2] sm:$0x1]
      %vm378 = vcmask 1046528
      %v379 = vrot.slane %v238, 1
      %v380 = vrot.slane %v239, 1
      %v381 = vsel %vm378, %v379, %v380
      %v382 = vrot.slane %v240, 1
      %v383 = vsel %vm378, %v380, %v382
      %v384 = vrot.slane %v241, 1
      %v385 = vrot.slane %v242, 1
      %v386 = vsel %vm378, %v384, %v385
      %v387 = vrot.slane %v243, 1
      %v388 = vsel %vm378, %v385, %v387
      %v389 = vrot.slane %v244, 1
      %v390 = vrot.slane %v245, 1
      %v391 = vsel %vm378, %v389, %v390
      %v392 = vrot.slane %v246, 1
      %v393 = vsel %vm378, %v390, %v392
      %v394 = vrot.slane %v247, 1
      %v395 = vrot.slane %v248, 1
      %v396 = vsel %vm378, %v394, %v395
      %v397 = vrot.slane %v249, 1
      %v398 = vsel %vm378, %v395, %v397
      %v399 = vrot.slane %v250, 1
      %v400 = vrot.slane %v251, 1
      %v401 = vsel %vm378, %v399, %v400
      %v402 = vrot.slane %v252, 1
      %v403 = vsel %vm378, %v400, %v402
      %v404 = vrot.slane %v253, 1
      %v405 = vrot.slane %v254, 1
      %v406 = vsel %vm378, %v404, %v405
      %v407 = vrot.slane %v255, 1
      %v408 = vsel %vm378, %v405, %v407
      %v409 = vrot.slane %v256, 1
      %v410 = vrot.slane %v257, 1
      %v411 = vsel %vm378, %v409, %v410
      %v412 = vrot.slane %v258, 1
      %v413 = vsel %vm378, %v410, %v412
      %v414 = vrot.slane %v259, 1
      %v415 = vrot.slane %v260, 1
      %v416 = vsel %vm378, %v414, %v415
      %v417 = vrot.slane %v261, 1
      %v418 = vsel %vm378, %v415, %v417
      %v419 = vrot.slane %v262, 1
      %v420 = vrot.slane %v263, 1
      %v421 = vsel %vm378, %v419, %v420
      %v422 = vrot.slane %v264, 1
      %v423 = vsel %vm378, %v420, %v422
      %v424 = vrot.slane %v265, 1
      %v425 = vrot.slane %v266, 1
      %v426 = vsel %vm378, %v424, %v425
      %v427 = vrot.slane %v267, 1
      %v428 = vsel %vm378, %v425, %v427
      %v429 = vrot.slane %v268, 1
      %v430 = vrot.slane %v269, 1
      %v431 = vsel %vm378, %v429, %v430
      %v432 = vrot.slane %v270, 1
      %v433 = vsel %vm378, %v430, %v432
      %v434 = vrot.slane %v271, 1
      %v435 = vrot.slane %v272, 1
      %v436 = vsel %vm378, %v434, %v435
      %v437 = vrot.slane %v273, 1
      %v438 = vsel %vm378, %v435, %v437
      %v439 = vrot.slane %v274, 1
      %v440 = vrot.slane %v275, 1
      %v441 = vsel %vm378, %v439, %v440
      %v442 = vrot.slane %v276, 1
      %v443 = vsel %vm378, %v440, %v442
      %v444 = vrot.slane %v277, 1
      %v445 = vrot.slane %v278, 1
      %v446 = vsel %vm378, %v444, %v445
      %v447 = vrot.slane %v279, 1
      %v448 = vsel %vm378, %v445, %v447
      %v449 = vrot.slane %v280, 1
      %v450 = vrot.slane %v281, 1
      %v451 = vsel %vm378, %v449, %v450
      %v452 = vrot.slane %v282, 1
      %v453 = vsel %vm378, %v450, %v452
      %v454 = vrot.slane %v283, 1
      %v455 = vrot.slane %v284, 1
      %v456 = vsel %vm378, %v454, %v455
      %v457 = vrot.slane %v285, 1
      %v458 = vsel %vm378, %v455, %v457
      %459 = vrot.lane.b32.xlu0 %v381, 4
      %v460 = vpop.permute.xlu0 %459
      %461 = vrot.lane.b32.xlu0 %v383, 4
      %v462 = vpop.permute.xlu0 %461
      %463 = vrot.lane.b32.xlu0 %v386, 4
      %v464 = vpop.permute.xlu0 %463
      %465 = vrot.lane.b32.xlu0 %v388, 4
      %v466 = vpop.permute.xlu0 %465
      %467 = vrot.lane.b32.xlu0 %v391, 4
      %v468 = vpop.permute.xlu0 %467
      %469 = vrot.lane.b32.xlu0 %v393, 4
      %v470 = vpop.permute.xlu0 %469
      %471 = vrot.lane.b32.xlu0 %v396, 4
      %v472 = vpop.permute.xlu0 %471
      %473 = vrot.lane.b32.xlu0 %v398, 4
      %v474 = vpop.permute.xlu0 %473
      %475 = vrot.lane.b32.xlu0 %v401, 4
      %v476 = vpop.permute.xlu0 %475
      %477 = vrot.lane.b32.xlu0 %v403, 4
      %v478 = vpop.permute.xlu0 %477
      %479 = vrot.lane.b32.xlu0 %v406, 4
      %v480 = vpop.permute.xlu0 %479
      %481 = vrot.lane.b32.xlu0 %v408, 4
      %v482 = vpop.permute.xlu0 %481
      %483 = vrot.lane.b32.xlu0 %v411, 4
      %v484 = vpop.permute.xlu0 %483
      %485 = vrot.lane.b32.xlu0 %v413, 4
      %v486 = vpop.permute.xlu0 %485
      %487 = vrot.lane.b32.xlu0 %v416, 4
      %v488 = vpop.permute.xlu0 %487
      %489 = vrot.lane.b32.xlu0 %v418, 4
      %v490 = vpop.permute.xlu0 %489
      %491 = vrot.lane.b32.xlu0 %v421, 4
      %v492 = vpop.permute.xlu0 %491
      %493 = vrot.lane.b32.xlu0 %v423, 4
      %v494 = vpop.permute.xlu0 %493
      %495 = vrot.lane.b32.xlu0 %v426, 4
      %v496 = vpop.permute.xlu0 %495
      %497 = vrot.lane.b32.xlu0 %v428, 4
      %v498 = vpop.permute.xlu0 %497
      %499 = vrot.lane.b32.xlu0 %v431, 4
      %v500 = vpop.permute.xlu0 %499
      %501 = vrot.lane.b32.xlu0 %v433, 4
      %v502 = vpop.permute.xlu0 %501
      %503 = vrot.lane.b32.xlu0 %v436, 4
      %v504 = vpop.permute.xlu0 %503
      %505 = vrot.lane.b32.xlu0 %v438, 4
      %v506 = vpop.permute.xlu0 %505
      %507 = vrot.lane.b32.xlu0 %v441, 4
      %v508 = vpop.permute.xlu0 %507
      %509 = vrot.lane.b32.xlu0 %v443, 4
      %v510 = vpop.permute.xlu0 %509
      %511 = vrot.lane.b32.xlu0 %v446, 4
      %v512 = vpop.permute.xlu0 %511
      %513 = vrot.lane.b32.xlu0 %v448, 4
      %v514 = vpop.permute.xlu0 %513
      %515 = vrot.lane.b32.xlu0 %v451, 4
      %v516 = vpop.permute.xlu0 %515
      %517 = vrot.lane.b32.xlu0 %v453, 4
      %v518 = vpop.permute.xlu0 %517
      %519 = vrot.lane.b32.xlu0 %v456, 4
      %v520 = vpop.permute.xlu0 %519
      %521 = vrot.lane.b32.xlu0 %v458, 4
      %v522 = vpop.permute.xlu0 %521
      %vm555 = vcmask 1045504
      %v556 = vrot.slane %v238, 2
      %v557 = vrot.slane %v239, 2
      %v558 = vsel %vm555, %v556, %v557
      %v559 = vrot.slane %v240, 2
      %v560 = vsel %vm555, %v557, %v559
      %v561 = vrot.slane %v241, 2
      %v562 = vrot.slane %v242, 2
      %v563 = vsel %vm555, %v561, %v562
      %v564 = vrot.slane %v243, 2
      %v565 = vsel %vm555, %v562, %v564
      %v566 = vrot.slane %v244, 2
      %v567 = vrot.slane %v245, 2
      %v568 = vsel %vm555, %v566, %v567
      %v569 = vrot.slane %v246, 2
      %v570 = vsel %vm555, %v567, %v569
      %v571 = vrot.slane %v247, 2
      %v572 = vrot.slane %v248, 2
      %v573 = vsel %vm555, %v571, %v572
      %v574 = vrot.slane %v249, 2
      %v575 = vsel %vm555, %v572, %v574
      %v576 = vrot.slane %v250, 2
      %v577 = vrot.slane %v251, 2
      %v578 = vsel %vm555, %v576, %v577
      %v579 = vrot.slane %v252, 2
      %v580 = vsel %vm555, %v577, %v579
      %v581 = vrot.slane %v253, 2
      %v582 = vrot.slane %v254, 2
      %v583 = vsel %vm555, %v581, %v582
      %v584 = vrot.slane %v255, 2
      %v585 = vsel %vm555, %v582, %v584
      %v586 = vrot.slane %v256, 2
      %v587 = vrot.slane %v257, 2
      %v588 = vsel %vm555, %v586, %v587
      %v589 = vrot.slane %v258, 2
      %v590 = vsel %vm555, %v587, %v589
      %v591 = vrot.slane %v259, 2
      %v592 = vrot.slane %v260, 2
      %v593 = vsel %vm555, %v591, %v592
      %v594 = vrot.slane %v261, 2
      %v595 = vsel %vm555, %v592, %v594
      %v596 = vrot.slane %v262, 2
      %v597 = vrot.slane %v263, 2
      %v598 = vsel %vm555, %v596, %v597
      %v599 = vrot.slane %v264, 2
      %v600 = vsel %vm555, %v597, %v599
      %v601 = vrot.slane %v265, 2
      %v602 = vrot.slane %v266, 2
      %v603 = vsel %vm555, %v601, %v602
      %v604 = vrot.slane %v267, 2
      %v605 = vsel %vm555, %v602, %v604
      %v606 = vrot.slane %v268, 2
      %v607 = vrot.slane %v269, 2
      %v608 = vsel %vm555, %v606, %v607
      %v609 = vrot.slane %v270, 2
      %v610 = vsel %vm555, %v607, %v609
      %v611 = vrot.slane %v271, 2
      %v612 = vrot.slane %v272, 2
      %v613 = vsel %vm555, %v611, %v612
      %v614 = vrot.slane %v273, 2
      %v615 = vsel %vm555, %v612, %v614
      %v616 = vrot.slane %v274, 2
      %v617 = vrot.slane %v275, 2
      %v618 = vsel %vm555, %v616, %v617
      %v619 = vrot.slane %v276, 2
      %v620 = vsel %vm555, %v617, %v619
      %v621 = vrot.slane %v277, 2
      %v622 = vrot.slane %v278, 2
      %v623 = vsel %vm555, %v621, %v622
      %v624 = vrot.slane %v279, 2
      %v625 = vsel %vm555, %v622, %v624
      %v626 = vrot.slane %v280, 2
      %v627 = vrot.slane %v281, 2
      %v628 = vsel %vm555, %v626, %v627
      %v629 = vrot.slane %v282, 2
      %v630 = vsel %vm555, %v627, %v629
      %v631 = vrot.slane %v283, 2
      %v632 = vrot.slane %v284, 2
      %v633 = vsel %vm555, %v631, %v632
      %v634 = vrot.slane %v285, 2
      %v635 = vsel %vm555, %v632, %v634
      %636 = vrot.lane.b32.xlu0 %v558, 8
      %v637 = vpop.permute.xlu0 %636
      %638 = vrot.lane.b32.xlu0 %v560, 8
      %v639 = vpop.permute.xlu0 %638
      %640 = vrot.lane.b32.xlu0 %v563, 8
      %v641 = vpop.permute.xlu0 %640
      %642 = vrot.lane.b32.xlu0 %v565, 8
      %v643 = vpop.permute.xlu0 %642
      %644 = vrot.lane.b32.xlu0 %v568, 8
      %v645 = vpop.permute.xlu0 %644
      %646 = vrot.lane.b32.xlu0 %v570, 8
      %v647 = vpop.permute.xlu0 %646
      %648 = vrot.lane.b32.xlu0 %v573, 8
      %v649 = vpop.permute.xlu0 %648
      %650 = vrot.lane.b32.xlu0 %v575, 8
      %v651 = vpop.permute.xlu0 %650
      %652 = vrot.lane.b32.xlu0 %v578, 8
      %v653 = vpop.permute.xlu0 %652
      %654 = vrot.lane.b32.xlu0 %v580, 8
      %v655 = vpop.permute.xlu0 %654
      %656 = vrot.lane.b32.xlu0 %v583, 8
      %v657 = vpop.permute.xlu0 %656
      %658 = vrot.lane.b32.xlu0 %v585, 8
      %v659 = vpop.permute.xlu0 %658
      %660 = vrot.lane.b32.xlu0 %v588, 8
      %v661 = vpop.permute.xlu0 %660
      %662 = vrot.lane.b32.xlu0 %v590, 8
      %v663 = vpop.permute.xlu0 %662
      %664 = vrot.lane.b32.xlu0 %v593, 8
      %v665 = vpop.permute.xlu0 %664
      %666 = vrot.lane.b32.xlu0 %v595, 8
      %v667 = vpop.permute.xlu0 %666
      %668 = vrot.lane.b32.xlu0 %v598, 8
      %v669 = vpop.permute.xlu0 %668
      %670 = vrot.lane.b32.xlu0 %v600, 8
      %v671 = vpop.permute.xlu0 %670
      %672 = vrot.lane.b32.xlu0 %v603, 8
      %v673 = vpop.permute.xlu0 %672
      %674 = vrot.lane.b32.xlu0 %v605, 8
      %v675 = vpop.permute.xlu0 %674
      %676 = vrot.lane.b32.xlu0 %v608, 8
      %v677 = vpop.permute.xlu0 %676
      %678 = vrot.lane.b32.xlu0 %v610, 8
      %v679 = vpop.permute.xlu0 %678
      %680 = vrot.lane.b32.xlu0 %v613, 8
      %v681 = vpop.permute.xlu0 %680
      %682 = vrot.lane.b32.xlu0 %v615, 8
      %v683 = vpop.permute.xlu0 %682
      %684 = vrot.lane.b32.xlu0 %v618, 8
      %v685 = vpop.permute.xlu0 %684
      %686 = vrot.lane.b32.xlu0 %v620, 8
      %v687 = vpop.permute.xlu0 %686
      %688 = vrot.lane.b32.xlu0 %v623, 8
      %v689 = vpop.permute.xlu0 %688
      %690 = vrot.lane.b32.xlu0 %v625, 8
      %v691 = vpop.permute.xlu0 %690
      %692 = vrot.lane.b32.xlu0 %v628, 8
      %v693 = vpop.permute.xlu0 %692
      %694 = vrot.lane.b32.xlu0 %v630, 8
      %v695 = vpop.permute.xlu0 %694
      %696 = vrot.lane.b32.xlu0 %v633, 8
      %v697 = vpop.permute.xlu0 %696
      %698 = vrot.lane.b32.xlu0 %v635, 8
      %v699 = vpop.permute.xlu0 %698
      %vm732 = vcmask 1044480
      %v733 = vrot.slane %v238, 3
      %v734 = vrot.slane %v239, 3
      %v735 = vsel %vm732, %v733, %v734
      %v736 = vrot.slane %v240, 3
      %v737 = vsel %vm732, %v734, %v736
      %v738 = vrot.slane %v241, 3
      %v739 = vrot.slane %v242, 3
      %v740 = vsel %vm732, %v738, %v739
      %v741 = vrot.slane %v243, 3
      %v742 = vsel %vm732, %v739, %v741
      %v743 = vrot.slane %v244, 3
      %v744 = vrot.slane %v245, 3
      %v745 = vsel %vm732, %v743, %v744
      %v746 = vrot.slane %v246, 3
      %v747 = vsel %vm732, %v744, %v746
      %v748 = vrot.slane %v247, 3
      %v749 = vrot.slane %v248, 3
      %v750 = vsel %vm732, %v748, %v749
      %v751 = vrot.slane %v249, 3
      %v752 = vsel %vm732, %v749, %v751
      %v753 = vrot.slane %v250, 3
      %v754 = vrot.slane %v251, 3
      %v755 = vsel %vm732, %v753, %v754
      %v756 = vrot.slane %v252, 3
      %v757 = vsel %vm732, %v754, %v756
      %v758 = vrot.slane %v253, 3
      %v759 = vrot.slane %v254, 3
      %v760 = vsel %vm732, %v758, %v759
      %v761 = vrot.slane %v255, 3
      %v762 = vsel %vm732, %v759, %v761
      %v763 = vrot.slane %v256, 3
      %v764 = vrot.slane %v257, 3
      %v765 = vsel %vm732, %v763, %v764
      %v766 = vrot.slane %v258, 3
      %v767 = vsel %vm732, %v764, %v766
      %v768 = vrot.slane %v259, 3
      %v769 = vrot.slane %v260, 3
      %v770 = vsel %vm732, %v768, %v769
      %v771 = vrot.slane %v261, 3
      %v772 = vsel %vm732, %v769, %v771
      %v773 = vrot.slane %v262, 3
      %v774 = vrot.slane %v263, 3
      %v775 = vsel %vm732, %v773, %v774
      %v776 = vrot.slane %v264, 3
      %v777 = vsel %vm732, %v774, %v776
      %v778 = vrot.slane %v265, 3
      %v779 = vrot.slane %v266, 3
      %v780 = vsel %vm732, %v778, %v779
      %v781 = vrot.slane %v267, 3
      %v782 = vsel %vm732, %v779, %v781
      %v783 = vrot.slane %v268, 3
      %v784 = vrot.slane %v269, 3
      %v785 = vsel %vm732, %v783, %v784
      %v786 = vrot.slane %v270, 3
      %v787 = vsel %vm732, %v784, %v786
      %v788 = vrot.slane %v271, 3
      %v789 = vrot.slane %v272, 3
      %v790 = vsel %vm732, %v788, %v789
      %v791 = vrot.slane %v273, 3
      %v792 = vsel %vm732, %v789, %v791
      %v793 = vrot.slane %v274, 3
      %v794 = vrot.slane %v275, 3
      %v795 = vsel %vm732, %v793, %v794
      %v796 = vrot.slane %v276, 3
      %v797 = vsel %vm732, %v794, %v796
      %v798 = vrot.slane %v277, 3
      %v799 = vrot.slane %v278, 3
      %v800 = vsel %vm732, %v798, %v799
      %v801 = vrot.slane %v279, 3
      %v802 = vsel %vm732, %v799, %v801
      %v803 = vrot.slane %v280, 3
      %v804 = vrot.slane %v281, 3
      %v805 = vsel %vm732, %v803, %v804
      %v806 = vrot.slane %v282, 3
      %v807 = vsel %vm732, %v804, %v806
      %v808 = vrot.slane %v283, 3
      %v809 = vrot.slane %v284, 3
      %v810 = vsel %vm732, %v808, %v809
      %v811 = vrot.slane %v285, 3
      %v812 = vsel %vm732, %v809, %v811
      %813 = vrot.lane.b32.xlu0 %v735, 12
      %v814 = vpop.permute.xlu0 %813
      %815 = vrot.lane.b32.xlu0 %v737, 12
      %v816 = vpop.permute.xlu0 %815
      %817 = vrot.lane.b32.xlu0 %v740, 12
      %v818 = vpop.permute.xlu0 %817
      %819 = vrot.lane.b32.xlu0 %v742, 12
      %v820 = vpop.permute.xlu0 %819
      %821 = vrot.lane.b32.xlu0 %v745, 12
      %v822 = vpop.permute.xlu0 %821
      %823 = vrot.lane.b32.xlu0 %v747, 12
      %v824 = vpop.permute.xlu0 %823
      %825 = vrot.lane.b32.xlu0 %v750, 12
      %v826 = vpop.permute.xlu0 %825
      %827 = vrot.lane.b32.xlu0 %v752, 12
      %v828 = vpop.permute.xlu0 %827
      %829 = vrot.lane.b32.xlu0 %v755, 12
      %v830 = vpop.permute.xlu0 %829
      %831 = vrot.lane.b32.xlu0 %v757, 12
      %v832 = vpop.permute.xlu0 %831
      %833 = vrot.lane.b32.xlu0 %v760, 12
      %v834 = vpop.permute.xlu0 %833
      %835 = vrot.lane.b32.xlu0 %v762, 12
      %v836 = vpop.permute.xlu0 %835
      %837 = vrot.lane.b32.xlu0 %v765, 12
      %v838 = vpop.permute.xlu0 %837
      %839 = vrot.lane.b32.xlu0 %v767, 12
      %v840 = vpop.permute.xlu0 %839
      %841 = vrot.lane.b32.xlu0 %v770, 12
      %v842 = vpop.permute.xlu0 %841
      %843 = vrot.lane.b32.xlu0 %v772, 12
      %v844 = vpop.permute.xlu0 %843
      %845 = vrot.lane.b32.xlu0 %v775, 12
      %v846 = vpop.permute.xlu0 %845
      %847 = vrot.lane.b32.xlu0 %v777, 12
      %v848 = vpop.permute.xlu0 %847
      %849 = vrot.lane.b32.xlu0 %v780, 12
      %v850 = vpop.permute.xlu0 %849
      %851 = vrot.lane.b32.xlu0 %v782, 12
      %v852 = vpop.permute.xlu0 %851
      %853 = vrot.lane.b32.xlu0 %v785, 12
      %v854 = vpop.permute.xlu0 %853
      %855 = vrot.lane.b32.xlu0 %v787, 12
      %v856 = vpop.permute.xlu0 %855
      %857 = vrot.lane.b32.xlu0 %v790, 12
      %v858 = vpop.permute.xlu0 %857
      %859 = vrot.lane.b32.xlu0 %v792, 12
      %v860 = vpop.permute.xlu0 %859
      %861 = vrot.lane.b32.xlu0 %v795, 12
      %v862 = vpop.permute.xlu0 %861
      %863 = vrot.lane.b32.xlu0 %v797, 12
      %v864 = vpop.permute.xlu0 %863
      %865 = vrot.lane.b32.xlu0 %v800, 12
      %v866 = vpop.permute.xlu0 %865
      %867 = vrot.lane.b32.xlu0 %v802, 12
      %v868 = vpop.permute.xlu0 %867
      %869 = vrot.lane.b32.xlu0 %v805, 12
      %v870 = vpop.permute.xlu0 %869
      %871 = vrot.lane.b32.xlu0 %v807, 12
      %v872 = vpop.permute.xlu0 %871
      %873 = vrot.lane.b32.xlu0 %v810, 12
      %v874 = vpop.permute.xlu0 %873
      %875 = vrot.lane.b32.xlu0 %v812, 12
      %v876 = vpop.permute.xlu0 %875
      %vm909 = vcmask 1043456
      %v910 = vrot.slane %v238, 4
      %v911 = vrot.slane %v239, 4
      %v912 = vsel %vm909, %v910, %v911
      %v913 = vrot.slane %v240, 4
      %v914 = vsel %vm909, %v911, %v913
      %v915 = vrot.slane %v241, 4
      %v916 = vrot.slane %v242, 4
      %v917 = vsel %vm909, %v915, %v916
      %v918 = vrot.slane %v243, 4
      %v919 = vsel %vm909, %v916, %v918
      %v920 = vrot.slane %v244, 4
      %v921 = vrot.slane %v245, 4
      %v922 = vsel %vm909, %v920, %v921
      %v923 = vrot.slane %v246, 4
      %v924 = vsel %vm909, %v921, %v923
      %v925 = vrot.slane %v247, 4
      %v926 = vrot.slane %v248, 4
      %v927 = vsel %vm909, %v925, %v926
      %v928 = vrot.slane %v249, 4
      %v929 = vsel %vm909, %v926, %v928
      %v930 = vrot.slane %v250, 4
      %v931 = vrot.slane %v251, 4
      %v932 = vsel %vm909, %v930, %v931
      %v933 = vrot.slane %v252, 4
      %v934 = vsel %vm909, %v931, %v933
      %v935 = vrot.slane %v253, 4
      %v936 = vrot.slane %v254, 4
      %v937 = vsel %vm909, %v935, %v936
      %v938 = vrot.slane %v255, 4
      %v939 = vsel %vm909, %v936, %v938
      %v940 = vrot.slane %v256, 4
      %v941 = vrot.slane %v257, 4
      %v942 = vsel %vm909, %v940, %v941
      %v943 = vrot.slane %v258, 4
      %v944 = vsel %vm909, %v941, %v943
      %v945 = vrot.slane %v259, 4
      %v946 = vrot.slane %v260, 4
      %v947 = vsel %vm909, %v945, %v946
      %v948 = vrot.slane %v261, 4
      %v949 = vsel %vm909, %v946, %v948
      %v950 = vrot.slane %v262, 4
      %v951 = vrot.slane %v263, 4
      %v952 = vsel %vm909, %v950, %v951
      %v953 = vrot.slane %v264, 4
      %v954 = vsel %vm909, %v951, %v953
      %v955 = vrot.slane %v265, 4
      %v956 = vrot.slane %v266, 4
      %v957 = vsel %vm909, %v955, %v956
      %v958 = vrot.slane %v267, 4
      %v959 = vsel %vm909, %v956, %v958
      %v960 = vrot.slane %v268, 4
      %v961 = vrot.slane %v269, 4
      %v962 = vsel %vm909, %v960, %v961
      %v963 = vrot.slane %v270, 4
      %v964 = vsel %vm909, %v961, %v963
      %v965 = vrot.slane %v271, 4
      %v966 = vrot.slane %v272, 4
      %v967 = vsel %vm909, %v965, %v966
      %v968 = vrot.slane %v273, 4
      %v969 = vsel %vm909, %v966, %v968
      %v970 = vrot.slane %v274, 4
      %v971 = vrot.slane %v275, 4
      %v972 = vsel %vm909, %v970, %v971
      %v973 = vrot.slane %v276, 4
      %v974 = vsel %vm909, %v971, %v973
      %v975 = vrot.slane %v277, 4
      %v976 = vrot.slane %v278, 4
      %v977 = vsel %vm909, %v975, %v976
      %v978 = vrot.slane %v279, 4
      %v979 = vsel %vm909, %v976, %v978
      %v980 = vrot.slane %v280, 4
      %v981 = vrot.slane %v281, 4
      %v982 = vsel %vm909, %v980, %v981
      %v983 = vrot.slane %v282, 4
      %v984 = vsel %vm909, %v981, %v983
      %v985 = vrot.slane %v283, 4
      %v986 = vrot.slane %v284, 4
      %v987 = vsel %vm909, %v985, %v986
      %v988 = vrot.slane %v285, 4
      %v989 = vsel %vm909, %v986, %v988
      %990 = vrot.lane.b32.xlu0 %v912, 16
      %v991 = vpop.permute.xlu0 %990
      %992 = vrot.lane.b32.xlu0 %v914, 16
      %v993 = vpop.permute.xlu0 %992
      %994 = vrot.lane.b32.xlu0 %v917, 16
      %v995 = vpop.permute.xlu0 %994
      %996 = vrot.lane.b32.xlu0 %v919, 16
      %v997 = vpop.permute.xlu0 %996
      %998 = vrot.lane.b32.xlu0 %v922, 16
      %v999 = vpop.permute.xlu0 %998
      %1000 = vrot.lane.b32.xlu0 %v924, 16
      %v1001 = vpop.permute.xlu0 %1000
      %1002 = vrot.lane.b32.xlu0 %v927, 16
      %v1003 = vpop.permute.xlu0 %1002
      %1004 = vrot.lane.b32.xlu0 %v929, 16
      %v1005 = vpop.permute.xlu0 %1004
      %1006 = vrot.lane.b32.xlu0 %v932, 16
      %v1007 = vpop.permute.xlu0 %1006
      %1008 = vrot.lane.b32.xlu0 %v934, 16
      %v1009 = vpop.permute.xlu0 %1008
      %1010 = vrot.lane.b32.xlu0 %v937, 16
      %v1011 = vpop.permute.xlu0 %1010
      %1012 = vrot.lane.b32.xlu0 %v939, 16
      %v1013 = vpop.permute.xlu0 %1012
      %1014 = vrot.lane.b32.xlu0 %v942, 16
      %v1015 = vpop.permute.xlu0 %1014
      %1016 = vrot.lane.b32.xlu0 %v944, 16
      %v1017 = vpop.permute.xlu0 %1016
      %1018 = vrot.lane.b32.xlu0 %v947, 16
      %v1019 = vpop.permute.xlu0 %1018
      %1020 = vrot.lane.b32.xlu0 %v949, 16
      %v1021 = vpop.permute.xlu0 %1020
      %1022 = vrot.lane.b32.xlu0 %v952, 16
      %v1023 = vpop.permute.xlu0 %1022
      %1024 = vrot.lane.b32.xlu0 %v954, 16
      %v1025 = vpop.permute.xlu0 %1024
      %1026 = vrot.lane.b32.xlu0 %v957, 16
      %v1027 = vpop.permute.xlu0 %1026
      %1028 = vrot.lane.b32.xlu0 %v959, 16
      %v1029 = vpop.permute.xlu0 %1028
      %1030 = vrot.lane.b32.xlu0 %v962, 16
      %v1031 = vpop.permute.xlu0 %1030
      %1032 = vrot.lane.b32.xlu0 %v964, 16
      %v1033 = vpop.permute.xlu0 %1032
      %1034 = vrot.lane.b32.xlu0 %v967, 16
      %v1035 = vpop.permute.xlu0 %1034
      %1036 = vrot.lane.b32.xlu0 %v969, 16
      %v1037 = vpop.permute.xlu0 %1036
      %1038 = vrot.lane.b32.xlu0 %v972, 16
      %v1039 = vpop.permute.xlu0 %1038
      %1040 = vrot.lane.b32.xlu0 %v974, 16
      %v1041 = vpop.permute.xlu0 %1040
      %1042 = vrot.lane.b32.xlu0 %v977, 16
      %v1043 = vpop.permute.xlu0 %1042
      %1044 = vrot.lane.b32.xlu0 %v979, 16
      %v1045 = vpop.permute.xlu0 %1044
      %1046 = vrot.lane.b32.xlu0 %v982, 16
      %v1047 = vpop.permute.xlu0 %1046
      %1048 = vrot.lane.b32.xlu0 %v984, 16
      %v1049 = vpop.permute.xlu0 %1048
      %1050 = vrot.lane.b32.xlu0 %v987, 16
      %v1051 = vpop.permute.xlu0 %1050
      %1052 = vrot.lane.b32.xlu0 %v989, 16
      %v1053 = vpop.permute.xlu0 %1052
      %vm1086 = vcmask 1042432
      %v1087 = vrot.slane %v238, 5
      %v1088 = vrot.slane %v239, 5
      %v1089 = vsel %vm1086, %v1087, %v1088
      %v1090 = vrot.slane %v240, 5
      %v1091 = vsel %vm1086, %v1088, %v1090
      %v1092 = vrot.slane %v241, 5
      %v1093 = vrot.slane %v242, 5
      %v1094 = vsel %vm1086, %v1092, %v1093
      %v1095 = vrot.slane %v243, 5
      %v1096 = vsel %vm1086, %v1093, %v1095
      %v1097 = vrot.slane %v244, 5
      %v1098 = vrot.slane %v245, 5
      %v1099 = vsel %vm1086, %v1097, %v1098
      %v1100 = vrot.slane %v246, 5
      %v1101 = vsel %vm1086, %v1098, %v1100
      %v1102 = vrot.slane %v247, 5
      %v1103 = vrot.slane %v248, 5
      %v1104 = vsel %vm1086, %v1102, %v1103
      %v1105 = vrot.slane %v249, 5
      %v1106 = vsel %vm1086, %v1103, %v1105
      %v1107 = vrot.slane %v250, 5
      %v1108 = vrot.slane %v251, 5
      %v1109 = vsel %vm1086, %v1107, %v1108
      %v1110 = vrot.slane %v252, 5
      %v1111 = vsel %vm1086, %v1108, %v1110
      %v1112 = vrot.slane %v253, 5
      %v1113 = vrot.slane %v254, 5
      %v1114 = vsel %vm1086, %v1112, %v1113
      %v1115 = vrot.slane %v255, 5
      %v1116 = vsel %vm1086, %v1113, %v1115
      %v1117 = vrot.slane %v256, 5
      %v1118 = vrot.slane %v257, 5
      %v1119 = vsel %vm1086, %v1117, %v1118
      %v1120 = vrot.slane %v258, 5
      %v1121 = vsel %vm1086, %v1118, %v1120
      %v1122 = vrot.slane %v259, 5
      %v1123 = vrot.slane %v260, 5
      %v1124 = vsel %vm1086, %v1122, %v1123
      %v1125 = vrot.slane %v261, 5
      %v1126 = vsel %vm1086, %v1123, %v1125
      %v1127 = vrot.slane %v262, 5
      %v1128 = vrot.slane %v263, 5
      %v1129 = vsel %vm1086, %v1127, %v1128
      %v1130 = vrot.slane %v264, 5
      %v1131 = vsel %vm1086, %v1128, %v1130
      %v1132 = vrot.slane %v265, 5
      %v1133 = vrot.slane %v266, 5
      %v1134 = vsel %vm1086, %v1132, %v1133
      %v1135 = vrot.slane %v267, 5
      %v1136 = vsel %vm1086, %v1133, %v1135
      %v1137 = vrot.slane %v268, 5
      %v1138 = vrot.slane %v269, 5
      %v1139 = vsel %vm1086, %v1137, %v1138
      %v1140 = vrot.slane %v270, 5
      %v1141 = vsel %vm1086, %v1138, %v1140
      %v1142 = vrot.slane %v271, 5
      %v1143 = vrot.slane %v272, 5
      %v1144 = vsel %vm1086, %v1142, %v1143
      %v1145 = vrot.slane %v273, 5
      %v1146 = vsel %vm1086, %v1143, %v1145
      %v1147 = vrot.slane %v274, 5
      %v1148 = vrot.slane %v275, 5
      %v1149 = vsel %vm1086, %v1147, %v1148
      %v1150 = vrot.slane %v276, 5
      %v1151 = vsel %vm1086, %v1148, %v1150
      %v1152 = vrot.slane %v277, 5
      %v1153 = vrot.slane %v278, 5
      %v1154 = vsel %vm1086, %v1152, %v1153
      %v1155 = vrot.slane %v279, 5
      %v1156 = vsel %vm1086, %v1153, %v1155
      %v1157 = vrot.slane %v280, 5
      %v1158 = vrot.slane %v281, 5
      %v1159 = vsel %vm1086, %v1157, %v1158
      %v1160 = vrot.slane %v282, 5
      %v1161 = vsel %vm1086, %v1158, %v1160
      %v1162 = vrot.slane %v283, 5
      %v1163 = vrot.slane %v284, 5
      %v1164 = vsel %vm1086, %v1162, %v1163
      %v1165 = vrot.slane %v285, 5
      %v1166 = vsel %vm1086, %v1163, %v1165
      %1167 = vrot.lane.b32.xlu0 %v1089, 20
      %v1168 = vpop.permute.xlu0 %1167
      %1169 = vrot.lane.b32.xlu0 %v1091, 20
      %v1170 = vpop.permute.xlu0 %1169
      %1171 = vrot.lane.b32.xlu0 %v1094, 20
      %v1172 = vpop.permute.xlu0 %1171
      %1173 = vrot.lane.b32.xlu0 %v1096, 20
      %v1174 = vpop.permute.xlu0 %1173
      %1175 = vrot.lane.b32.xlu0 %v1099, 20
      %v1176 = vpop.permute.xlu0 %1175
      %1177 = vrot.lane.b32.xlu0 %v1101, 20
      %v1178 = vpop.permute.xlu0 %1177
      %1179 = vrot.lane.b32.xlu0 %v1104, 20
      %v1180 = vpop.permute.xlu0 %1179
      %1181 = vrot.lane.b32.xlu0 %v1106, 20
      %v1182 = vpop.permute.xlu0 %1181
      %1183 = vrot.lane.b32.xlu0 %v1109, 20
      %v1184 = vpop.permute.xlu0 %1183
      %1185 = vrot.lane.b32.xlu0 %v1111, 20
      %v1186 = vpop.permute.xlu0 %1185
      %1187 = vrot.lane.b32.xlu0 %v1114, 20
      %v1188 = vpop.permute.xlu0 %1187
      %1189 = vrot.lane.b32.xlu0 %v1116, 20
      %v1190 = vpop.permute.xlu0 %1189
      %1191 = vrot.lane.b32.xlu0 %v1119, 20
      %v1192 = vpop.permute.xlu0 %1191
      %1193 = vrot.lane.b32.xlu0 %v1121, 20
      %v1194 = vpop.permute.xlu0 %1193
      %1195 = vrot.lane.b32.xlu0 %v1124, 20
      %v1196 = vpop.permute.xlu0 %1195
      %1197 = vrot.lane.b32.xlu0 %v1126, 20
      %v1198 = vpop.permute.xlu0 %1197
      %1199 = vrot.lane.b32.xlu0 %v1129, 20
      %v1200 = vpop.permute.xlu0 %1199
      %1201 = vrot.lane.b32.xlu0 %v1131, 20
      %v1202 = vpop.permute.xlu0 %1201
      %1203 = vrot.lane.b32.xlu0 %v1134, 20
      %v1204 = vpop.permute.xlu0 %1203
      %1205 = vrot.lane.b32.xlu0 %v1136, 20
      %v1206 = vpop.permute.xlu0 %1205
      %1207 = vrot.lane.b32.xlu0 %v1139, 20
      %v1208 = vpop.permute.xlu0 %1207
      %1209 = vrot.lane.b32.xlu0 %v1141, 20
      %v1210 = vpop.permute.xlu0 %1209
      %1211 = vrot.lane.b32.xlu0 %v1144, 20
      %v1212 = vpop.permute.xlu0 %1211
      %1213 = vrot.lane.b32.xlu0 %v1146, 20
      %v1214 = vpop.permute.xlu0 %1213
      %1215 = vrot.lane.b32.xlu0 %v1149, 20
      %v1216 = vpop.permute.xlu0 %1215
      %1217 = vrot.lane.b32.xlu0 %v1151, 20
      %v1218 = vpop.permute.xlu0 %1217
      %1219 = vrot.lane.b32.xlu0 %v1154, 20
      %v1220 = vpop.permute.xlu0 %1219
      %1221 = vrot.lane.b32.xlu0 %v1156, 20
      %v1222 = vpop.permute.xlu0 %1221
      %1223 = vrot.lane.b32.xlu0 %v1159, 20
      %v1224 = vpop.permute.xlu0 %1223
      %1225 = vrot.lane.b32.xlu0 %v1161, 20
      %v1226 = vpop.permute.xlu0 %1225
      %1227 = vrot.lane.b32.xlu0 %v1164, 20
      %v1228 = vpop.permute.xlu0 %1227
      %1229 = vrot.lane.b32.xlu0 %v1166, 20
      %v1230 = vpop.permute.xlu0 %1229
      %vm1263 = vcmask 1041408
      %v1264 = vrot.slane %v238, 6
      %v1265 = vrot.slane %v239, 6
      %v1266 = vsel %vm1263, %v1264, %v1265
      %v1267 = vrot.slane %v240, 6
      %v1268 = vsel %vm1263, %v1265, %v1267
      %v1269 = vrot.slane %v241, 6
      %v1270 = vrot.slane %v242, 6
      %v1271 = vsel %vm1263, %v1269, %v1270
      %v1272 = vrot.slane %v243, 6
      %v1273 = vsel %vm1263, %v1270, %v1272
      %v1274 = vrot.slane %v244, 6
      %v1275 = vrot.slane %v245, 6
      %v1276 = vsel %vm1263, %v1274, %v1275
      %v1277 = vrot.slane %v246, 6
      %v1278 = vsel %vm1263, %v1275, %v1277
      %v1279 = vrot.slane %v247, 6
      %v1280 = vrot.slane %v248, 6
      %v1281 = vsel %vm1263, %v1279, %v1280
      %v1282 = vrot.slane %v249, 6
      %v1283 = vsel %vm1263, %v1280, %v1282
      %v1284 = vrot.slane %v250, 6
      %v1285 = vrot.slane %v251, 6
      %v1286 = vsel %vm1263, %v1284, %v1285
      %v1287 = vrot.slane %v252, 6
      %v1288 = vsel %vm1263, %v1285, %v1287
      %v1289 = vrot.slane %v253, 6
      %v1290 = vrot.slane %v254, 6
      %v1291 = vsel %vm1263, %v1289, %v1290
      %v1292 = vrot.slane %v255, 6
      %v1293 = vsel %vm1263, %v1290, %v1292
      %v1294 = vrot.slane %v256, 6
      %v1295 = vrot.slane %v257, 6
      %v1296 = vsel %vm1263, %v1294, %v1295
      %v1297 = vrot.slane %v258, 6
      %v1298 = vsel %vm1263, %v1295, %v1297
      %v1299 = vrot.slane %v259, 6
      %v1300 = vrot.slane %v260, 6
      %v1301 = vsel %vm1263, %v1299, %v1300
      %v1302 = vrot.slane %v261, 6
      %v1303 = vsel %vm1263, %v1300, %v1302
      %v1304 = vrot.slane %v262, 6
      %v1305 = vrot.slane %v263, 6
      %v1306 = vsel %vm1263, %v1304, %v1305
      %v1307 = vrot.slane %v264, 6
      %v1308 = vsel %vm1263, %v1305, %v1307
      %v1309 = vrot.slane %v265, 6
      %v1310 = vrot.slane %v266, 6
      %v1311 = vsel %vm1263, %v1309, %v1310
      %v1312 = vrot.slane %v267, 6
      %v1313 = vsel %vm1263, %v1310, %v1312
      %v1314 = vrot.slane %v268, 6
      %v1315 = vrot.slane %v269, 6
      %v1316 = vsel %vm1263, %v1314, %v1315
      %v1317 = vrot.slane %v270, 6
      %v1318 = vsel %vm1263, %v1315, %v1317
      %v1319 = vrot.slane %v271, 6
      %v1320 = vrot.slane %v272, 6
      %v1321 = vsel %vm1263, %v1319, %v1320
      %v1322 = vrot.slane %v273, 6
      %v1323 = vsel %vm1263, %v1320, %v1322
      %v1324 = vrot.slane %v274, 6
      %v1325 = vrot.slane %v275, 6
      %v1326 = vsel %vm1263, %v1324, %v1325
      %v1327 = vrot.slane %v276, 6
      %v1328 = vsel %vm1263, %v1325, %v1327
      %v1329 = vrot.slane %v277, 6
      %v1330 = vrot.slane %v278, 6
      %v1331 = vsel %vm1263, %v1329, %v1330
      %v1332 = vrot.slane %v279, 6
      %v1333 = vsel %vm1263, %v1330, %v1332
      %v1334 = vrot.slane %v280, 6
      %v1335 = vrot.slane %v281, 6
      %v1336 = vsel %vm1263, %v1334, %v1335
      %v1337 = vrot.slane %v282, 6
      %v1338 = vsel %vm1263, %v1335, %v1337
      %v1339 = vrot.slane %v283, 6
      %v1340 = vrot.slane %v284, 6
      %v1341 = vsel %vm1263, %v1339, %v1340
      %v1342 = vrot.slane %v285, 6
      %v1343 = vsel %vm1263, %v1340, %v1342
      %1344 = vrot.lane.b32.xlu0 %v1266, 24
      %v1345 = vpop.permute.xlu0 %1344
      %1346 = vrot.lane.b32.xlu0 %v1268, 24
      %v1347 = vpop.permute.xlu0 %1346
      %1348 = vrot.lane.b32.xlu0 %v1271, 24
      %v1349 = vpop.permute.xlu0 %1348
      %1350 = vrot.lane.b32.xlu0 %v1273, 24
      %v1351 = vpop.permute.xlu0 %1350
      %1352 = vrot.lane.b32.xlu0 %v1276, 24
      %v1353 = vpop.permute.xlu0 %1352
      %1354 = vrot.lane.b32.xlu0 %v1278, 24
      %v1355 = vpop.permute.xlu0 %1354
      %1356 = vrot.lane.b32.xlu0 %v1281, 24
      %v1357 = vpop.permute.xlu0 %1356
      %1358 = vrot.lane.b32.xlu0 %v1283, 24
      %v1359 = vpop.permute.xlu0 %1358
      %1360 = vrot.lane.b32.xlu0 %v1286, 24
      %v1361 = vpop.permute.xlu0 %1360
      %1362 = vrot.lane.b32.xlu0 %v1288, 24
      %v1363 = vpop.permute.xlu0 %1362
      %1364 = vrot.lane.b32.xlu0 %v1291, 24
      %v1365 = vpop.permute.xlu0 %1364
      %1366 = vrot.lane.b32.xlu0 %v1293, 24
      %v1367 = vpop.permute.xlu0 %1366
      %1368 = vrot.lane.b32.xlu0 %v1296, 24
      %v1369 = vpop.permute.xlu0 %1368
      %1370 = vrot.lane.b32.xlu0 %v1298, 24
      %v1371 = vpop.permute.xlu0 %1370
      %1372 = vrot.lane.b32.xlu0 %v1301, 24
      %v1373 = vpop.permute.xlu0 %1372
      %1374 = vrot.lane.b32.xlu0 %v1303, 24
      %v1375 = vpop.permute.xlu0 %1374
      %1376 = vrot.lane.b32.xlu0 %v1306, 24
      %v1377 = vpop.permute.xlu0 %1376
      %1378 = vrot.lane.b32.xlu0 %v1308, 24
      %v1379 = vpop.permute.xlu0 %1378
      %1380 = vrot.lane.b32.xlu0 %v1311, 24
      %v1381 = vpop.permute.xlu0 %1380
      %1382 = vrot.lane.b32.xlu0 %v1313, 24
      %v1383 = vpop.permute.xlu0 %1382
      %1384 = vrot.lane.b32.xlu0 %v1316, 24
      %v1385 = vpop.permute.xlu0 %1384
      %1386 = vrot.lane.b32.xlu0 %v1318, 24
      %v1387 = vpop.permute.xlu0 %1386
      %1388 = vrot.lane.b32.xlu0 %v1321, 24
      %v1389 = vpop.permute.xlu0 %1388
      %1390 = vrot.lane.b32.xlu0 %v1323, 24
      %v1391 = vpop.permute.xlu0 %1390
      %1392 = vrot.lane.b32.xlu0 %v1326, 24
      %v1393 = vpop.permute.xlu0 %1392
      %1394 = vrot.lane.b32.xlu0 %v1328, 24
      %v1395 = vpop.permute.xlu0 %1394
      %1396 = vrot.lane.b32.xlu0 %v1331, 24
      %v1397 = vpop.permute.xlu0 %1396
      %1398 = vrot.lane.b32.xlu0 %v1333, 24
      %v1399 = vpop.permute.xlu0 %1398
      %1400 = vrot.lane.b32.xlu0 %v1336, 24
      %v1401 = vpop.permute.xlu0 %1400
      %1402 = vrot.lane.b32.xlu0 %v1338, 24
      %v1403 = vpop.permute.xlu0 %1402
      %1404 = vrot.lane.b32.xlu0 %v1341, 24
      %v1405 = vpop.permute.xlu0 %1404
      %1406 = vrot.lane.b32.xlu0 %v1343, 24
      %v1407 = vpop.permute.xlu0 %1406
      %1442 = vrot.lane.b32.xlu0 %v241, 28
      %v1443 = vpop.permute.xlu0 %1442
      %1444 = vrot.lane.b32.xlu0 %v242, 28
      %v1445 = vpop.permute.xlu0 %1444
      %1446 = vrot.lane.b32.xlu0 %v244, 28
      %v1447 = vpop.permute.xlu0 %1446
      %1448 = vrot.lane.b32.xlu0 %v245, 28
      %v1449 = vpop.permute.xlu0 %1448
      %1450 = vrot.lane.b32.xlu0 %v247, 28
      %v1451 = vpop.permute.xlu0 %1450
      %1452 = vrot.lane.b32.xlu0 %v248, 28
      %v1453 = vpop.permute.xlu0 %1452
      %1454 = vrot.lane.b32.xlu0 %v250, 28
      %v1455 = vpop.permute.xlu0 %1454
      %1456 = vrot.lane.b32.xlu0 %v251, 28
      %v1457 = vpop.permute.xlu0 %1456
      %1458 = vrot.lane.b32.xlu0 %v253, 28
      %v1459 = vpop.permute.xlu0 %1458
      %1460 = vrot.lane.b32.xlu0 %v254, 28
      %v1461 = vpop.permute.xlu0 %1460
      %1462 = vrot.lane.b32.xlu0 %v256, 28
      %v1463 = vpop.permute.xlu0 %1462
      %1464 = vrot.lane.b32.xlu0 %v257, 28
      %v1465 = vpop.permute.xlu0 %1464
      %1466 = vrot.lane.b32.xlu0 %v259, 28
      %v1467 = vpop.permute.xlu0 %1466
      %1468 = vrot.lane.b32.xlu0 %v260, 28
      %v1469 = vpop.permute.xlu0 %1468
      %1470 = vrot.lane.b32.xlu0 %v262, 28
      %v1471 = vpop.permute.xlu0 %1470
      %1472 = vrot.lane.b32.xlu0 %v263, 28
      %v1473 = vpop.permute.xlu0 %1472
      %1474 = vrot.lane.b32.xlu0 %v265, 28
      %v1475 = vpop.permute.xlu0 %1474
      %1476 = vrot.lane.b32.xlu0 %v266, 28
      %v1477 = vpop.permute.xlu0 %1476
      %1478 = vrot.lane.b32.xlu0 %v268, 28
      %v1479 = vpop.permute.xlu0 %1478
      %1480 = vrot.lane.b32.xlu0 %v269, 28
      %v1481 = vpop.permute.xlu0 %1480
      %1482 = vrot.lane.b32.xlu0 %v271, 28
      %v1483 = vpop.permute.xlu0 %1482
      %1484 = vrot.lane.b32.xlu0 %v272, 28
      %v1485 = vpop.permute.xlu0 %1484
      %1486 = vrot.lane.b32.xlu0 %v274, 28
      %v1487 = vpop.permute.xlu0 %1486
      %1488 = vrot.lane.b32.xlu0 %v275, 28
      %v1489 = vpop.permute.xlu0 %1488
      %1490 = vrot.lane.b32.xlu0 %v277, 28
      %v1491 = vpop.permute.xlu0 %1490
      %1492 = vrot.lane.b32.xlu0 %v278, 28
      %v1493 = vpop.permute.xlu0 %1492
      %1494 = vrot.lane.b32.xlu0 %v280, 28
      %v1495 = vpop.permute.xlu0 %1494
      %1496 = vrot.lane.b32.xlu0 %v281, 28
      %v1497 = vpop.permute.xlu0 %1496
      %1498 = vrot.lane.b32.xlu0 %v283, 28
      %v1499 = vpop.permute.xlu0 %1498
      %1500 = vrot.lane.b32.xlu0 %v284, 28
      %v1501 = vpop.permute.xlu0 %1500
      %1502 = vrot.lane.b32.xlu0 %v286, 28
      %v1503 = vpop.permute.xlu0 %1502
      %1504 = vrot.lane.b32.xlu0 %v287, 28
      %v1505 = vpop.permute.xlu0 %1504
      %v1539 = vrot.slane %v286, 1
      %v1540 = vrot.slane %v287, 1
      %v1541 = vsel %vm378, %v1539, %v1540
      %v1542 = vrot.slane %v288, 1
      %v1543 = vsel %vm378, %v1540, %v1542
      %1544 = vrot.lane.b32.xlu0 %v386, 32
      %v1545 = vpop.permute.xlu0 %1544
      %1546 = vrot.lane.b32.xlu0 %v388, 32
      %v1547 = vpop.permute.xlu0 %1546
      %1548 = vrot.lane.b32.xlu0 %v391, 32
      %v1549 = vpop.permute.xlu0 %1548
      %1550 = vrot.lane.b32.xlu0 %v393, 32
      %v1551 = vpop.permute.xlu0 %1550
      %1552 = vrot.lane.b32.xlu0 %v396, 32
      %v1553 = vpop.permute.xlu0 %1552
      %1554 = vrot.lane.b32.xlu0 %v398, 32
      %v1555 = vpop.permute.xlu0 %1554
      %1556 = vrot.lane.b32.xlu0 %v401, 32
      %v1557 = vpop.permute.xlu0 %1556
      %1558 = vrot.lane.b32.xlu0 %v403, 32
      %v1559 = vpop.permute.xlu0 %1558
      %1560 = vrot.lane.b32.xlu0 %v406, 32
      %v1561 = vpop.permute.xlu0 %1560
      %1562 = vrot.lane.b32.xlu0 %v408, 32
      %v1563 = vpop.permute.xlu0 %1562
      %1564 = vrot.lane.b32.xlu0 %v411, 32
      %v1565 = vpop.permute.xlu0 %1564
      %1566 = vrot.lane.b32.xlu0 %v413, 32
      %v1567 = vpop.permute.xlu0 %1566
      %1568 = vrot.lane.b32.xlu0 %v416, 32
      %v1569 = vpop.permute.xlu0 %1568
      %1570 = vrot.lane.b32.xlu0 %v418, 32
      %v1571 = vpop.permute.xlu0 %1570
      %1572 = vrot.lane.b32.xlu0 %v421, 32
      %v1573 = vpop.permute.xlu0 %1572
      %1574 = vrot.lane.b32.xlu0 %v423, 32
      %v1575 = vpop.permute.xlu0 %1574
      %1576 = vrot.lane.b32.xlu0 %v426, 32
      %v1577 = vpop.permute.xlu0 %1576
      %1578 = vrot.lane.b32.xlu0 %v428, 32
      %v1579 = vpop.permute.xlu0 %1578
      %1580 = vrot.lane.b32.xlu0 %v431, 32
      %v1581 = vpop.permute.xlu0 %1580
      %1582 = vrot.lane.b32.xlu0 %v433, 32
      %v1583 = vpop.permute.xlu0 %1582
      %1584 = vrot.lane.b32.xlu0 %v436, 32
      %v1585 = vpop.permute.xlu0 %1584
      %1586 = vrot.lane.b32.xlu0 %v438, 32
      %v1587 = vpop.permute.xlu0 %1586
      %1588 = vrot.lane.b32.xlu0 %v441, 32
      %v1589 = vpop.permute.xlu0 %1588
      %1590 = vrot.lane.b32.xlu0 %v443, 32
      %v1591 = vpop.permute.xlu0 %1590
      %1592 = vrot.lane.b32.xlu0 %v446, 32
      %v1593 = vpop.permute.xlu0 %1592
      %1594 = vrot.lane.b32.xlu0 %v448, 32
      %v1595 = vpop.permute.xlu0 %1594
      %1596 = vrot.lane.b32.xlu0 %v451, 32
      %v1597 = vpop.permute.xlu0 %1596
      %1598 = vrot.lane.b32.xlu0 %v453, 32
      %v1599 = vpop.permute.xlu0 %1598
      %1600 = vrot.lane.b32.xlu0 %v456, 32
      %v1601 = vpop.permute.xlu0 %1600
      %1602 = vrot.lane.b32.xlu0 %v458, 32
      %v1603 = vpop.permute.xlu0 %1602
      %1604 = vrot.lane.b32.xlu0 %v1541, 32
      %v1605 = vpop.permute.xlu0 %1604
      %1606 = vrot.lane.b32.xlu0 %v1543, 32
      %v1607 = vpop.permute.xlu0 %1606
      %v1640 = vrot.slane %v286, 2
      %v1641 = vrot.slane %v287, 2
      %v1642 = vsel %vm555, %v1640, %v1641
      %v1643 = vrot.slane %v288, 2
      %v1644 = vsel %vm555, %v1641, %v1643
      %1645 = vrot.lane.b32.xlu0 %v563, 36
      %v1646 = vpop.permute.xlu0 %1645
      %1647 = vrot.lane.b32.xlu0 %v565, 36
      %v1648 = vpop.permute.xlu0 %1647
      %1649 = vrot.lane.b32.xlu0 %v568, 36
      %v1650 = vpop.permute.xlu0 %1649
      %1651 = vrot.lane.b32.xlu0 %v570, 36
      %v1652 = vpop.permute.xlu0 %1651
      %1653 = vrot.lane.b32.xlu0 %v573, 36
      %v1654 = vpop.permute.xlu0 %1653
      %1655 = vrot.lane.b32.xlu0 %v575, 36
      %v1656 = vpop.permute.xlu0 %1655
      %1657 = vrot.lane.b32.xlu0 %v578, 36
      %v1658 = vpop.permute.xlu0 %1657
      %1659 = vrot.lane.b32.xlu0 %v580, 36
      %v1660 = vpop.permute.xlu0 %1659
      %1661 = vrot.lane.b32.xlu0 %v583, 36
      %v1662 = vpop.permute.xlu0 %1661
      %1663 = vrot.lane.b32.xlu0 %v585, 36
      %v1664 = vpop.permute.xlu0 %1663
      %1665 = vrot.lane.b32.xlu0 %v588, 36
      %v1666 = vpop.permute.xlu0 %1665
      %1667 = vrot.lane.b32.xlu0 %v590, 36
      %v1668 = vpop.permute.xlu0 %1667
      %1669 = vrot.lane.b32.xlu0 %v593, 36
      %v1670 = vpop.permute.xlu0 %1669
      %1671 = vrot.lane.b32.xlu0 %v595, 36
      %v1672 = vpop.permute.xlu0 %1671
      %1673 = vrot.lane.b32.xlu0 %v598, 36
      %v1674 = vpop.permute.xlu0 %1673
      %1675 = vrot.lane.b32.xlu0 %v600, 36
      %v1676 = vpop.permute.xlu0 %1675
      %1677 = vrot.lane.b32.xlu0 %v603, 36
      %v1678 = vpop.permute.xlu0 %1677
      %1679 = vrot.lane.b32.xlu0 %v605, 36
      %v1680 = vpop.permute.xlu0 %1679
      %1681 = vrot.lane.b32.xlu0 %v608, 36
      %v1682 = vpop.permute.xlu0 %1681
      %1683 = vrot.lane.b32.xlu0 %v610, 36
      %v1684 = vpop.permute.xlu0 %1683
      %1685 = vrot.lane.b32.xlu0 %v613, 36
      %v1686 = vpop.permute.xlu0 %1685
      %1687 = vrot.lane.b32.xlu0 %v615, 36
      %v1688 = vpop.permute.xlu0 %1687
      %1689 = vrot.lane.b32.xlu0 %v618, 36
      %v1690 = vpop.permute.xlu0 %1689
      %1691 = vrot.lane.b32.xlu0 %v620, 36
      %v1692 = vpop.permute.xlu0 %1691
      %1693 = vrot.lane.b32.xlu0 %v623, 36
      %v1694 = vpop.permute.xlu0 %1693
      %1695 = vrot.lane.b32.xlu0 %v625, 36
      %v1696 = vpop.permute.xlu0 %1695
      %1697 = vrot.lane.b32.xlu0 %v628, 36
      %v1698 = vpop.permute.xlu0 %1697
      %1699 = vrot.lane.b32.xlu0 %v630, 36
      %v1700 = vpop.permute.xlu0 %1699
      %1701 = vrot.lane.b32.xlu0 %v633, 36
      %v1702 = vpop.permute.xlu0 %1701
      %1703 = vrot.lane.b32.xlu0 %v635, 36
      %v1704 = vpop.permute.xlu0 %1703
      %1705 = vrot.lane.b32.xlu0 %v1642, 36
      %v1706 = vpop.permute.xlu0 %1705
      %1707 = vrot.lane.b32.xlu0 %v1644, 36
      %v1708 = vpop.permute.xlu0 %1707
      %v1741 = vrot.slane %v286, 3
      %v1742 = vrot.slane %v287, 3
      %v1743 = vsel %vm732, %v1741, %v1742
      %v1744 = vrot.slane %v288, 3
      %v1745 = vsel %vm732, %v1742, %v1744
      %1746 = vrot.lane.b32.xlu0 %v740, 40
      %v1747 = vpop.permute.xlu0 %1746
      %1748 = vrot.lane.b32.xlu0 %v742, 40
      %v1749 = vpop.permute.xlu0 %1748
      %1750 = vrot.lane.b32.xlu0 %v745, 40
      %v1751 = vpop.permute.xlu0 %1750
      %1752 = vrot.lane.b32.xlu0 %v747, 40
      %v1753 = vpop.permute.xlu0 %1752
      %1754 = vrot.lane.b32.xlu0 %v750, 40
      %v1755 = vpop.permute.xlu0 %1754
      %1756 = vrot.lane.b32.xlu0 %v752, 40
      %v1757 = vpop.permute.xlu0 %1756
      %1758 = vrot.lane.b32.xlu0 %v755, 40
      %v1759 = vpop.permute.xlu0 %1758
      %1760 = vrot.lane.b32.xlu0 %v757, 40
      %v1761 = vpop.permute.xlu0 %1760
      %1762 = vrot.lane.b32.xlu0 %v760, 40
      %v1763 = vpop.permute.xlu0 %1762
      %1764 = vrot.lane.b32.xlu0 %v762, 40
      %v1765 = vpop.permute.xlu0 %1764
      %1766 = vrot.lane.b32.xlu0 %v765, 40
      %v1767 = vpop.permute.xlu0 %1766
      %1768 = vrot.lane.b32.xlu0 %v767, 40
      %v1769 = vpop.permute.xlu0 %1768
      %1770 = vrot.lane.b32.xlu0 %v770, 40
      %v1771 = vpop.permute.xlu0 %1770
      %1772 = vrot.lane.b32.xlu0 %v772, 40
      %v1773 = vpop.permute.xlu0 %1772
      %1774 = vrot.lane.b32.xlu0 %v775, 40
      %v1775 = vpop.permute.xlu0 %1774
      %1776 = vrot.lane.b32.xlu0 %v777, 40
      %v1777 = vpop.permute.xlu0 %1776
      %1778 = vrot.lane.b32.xlu0 %v780, 40
      %v1779 = vpop.permute.xlu0 %1778
      %1780 = vrot.lane.b32.xlu0 %v782, 40
      %v1781 = vpop.permute.xlu0 %1780
      %1782 = vrot.lane.b32.xlu0 %v785, 40
      %v1783 = vpop.permute.xlu0 %1782
      %1784 = vrot.lane.b32.xlu0 %v787, 40
      %v1785 = vpop.permute.xlu0 %1784
      %1786 = vrot.lane.b32.xlu0 %v790, 40
      %v1787 = vpop.permute.xlu0 %1786
      %1788 = vrot.lane.b32.xlu0 %v792, 40
      %v1789 = vpop.permute.xlu0 %1788
      %1790 = vrot.lane.b32.xlu0 %v795, 40
      %v1791 = vpop.permute.xlu0 %1790
      %1792 = vrot.lane.b32.xlu0 %v797, 40
      %v1793 = vpop.permute.xlu0 %1792
      %1794 = vrot.lane.b32.xlu0 %v800, 40
      %v1795 = vpop.permute.xlu0 %1794
      %1796 = vrot.lane.b32.xlu0 %v802, 40
      %v1797 = vpop.permute.xlu0 %1796
      %1798 = vrot.lane.b32.xlu0 %v805, 40
      %v1799 = vpop.permute.xlu0 %1798
      %1800 = vrot.lane.b32.xlu0 %v807, 40
      %v1801 = vpop.permute.xlu0 %1800
      %1802 = vrot.lane.b32.xlu0 %v810, 40
      %v1803 = vpop.permute.xlu0 %1802
      %1804 = vrot.lane.b32.xlu0 %v812, 40
      %v1805 = vpop.permute.xlu0 %1804
      %1806 = vrot.lane.b32.xlu0 %v1743, 40
      %v1807 = vpop.permute.xlu0 %1806
      %1808 = vrot.lane.b32.xlu0 %v1745, 40
      %v1809 = vpop.permute.xlu0 %1808
      %v1842 = vrot.slane %v286, 4
      %v1843 = vrot.slane %v287, 4
      %v1844 = vsel %vm909, %v1842, %v1843
      %v1845 = vrot.slane %v288, 4
      %v1846 = vsel %vm909, %v1843, %v1845
      %1847 = vrot.lane.b32.xlu0 %v917, 44
      %v1848 = vpop.permute.xlu0 %1847
      %1849 = vrot.lane.b32.xlu0 %v919, 44
      %v1850 = vpop.permute.xlu0 %1849
      %1851 = vrot.lane.b32.xlu0 %v922, 44
      %v1852 = vpop.permute.xlu0 %1851
      %1853 = vrot.lane.b32.xlu0 %v924, 44
      %v1854 = vpop.permute.xlu0 %1853
      %1855 = vrot.lane.b32.xlu0 %v927, 44
      %v1856 = vpop.permute.xlu0 %1855
      %1857 = vrot.lane.b32.xlu0 %v929, 44
      %v1858 = vpop.permute.xlu0 %1857
      %1859 = vrot.lane.b32.xlu0 %v932, 44
      %v1860 = vpop.permute.xlu0 %1859
      %1861 = vrot.lane.b32.xlu0 %v934, 44
      %v1862 = vpop.permute.xlu0 %1861
      %1863 = vrot.lane.b32.xlu0 %v937, 44
      %v1864 = vpop.permute.xlu0 %1863
      %1865 = vrot.lane.b32.xlu0 %v939, 44
      %v1866 = vpop.permute.xlu0 %1865
      %1867 = vrot.lane.b32.xlu0 %v942, 44
      %v1868 = vpop.permute.xlu0 %1867
      %1869 = vrot.lane.b32.xlu0 %v944, 44
      %v1870 = vpop.permute.xlu0 %1869
      %1871 = vrot.lane.b32.xlu0 %v947, 44
      %v1872 = vpop.permute.xlu0 %1871
      %1873 = vrot.lane.b32.xlu0 %v949, 44
      %v1874 = vpop.permute.xlu0 %1873
      %1875 = vrot.lane.b32.xlu0 %v952, 44
      %v1876 = vpop.permute.xlu0 %1875
      %1877 = vrot.lane.b32.xlu0 %v954, 44
      %v1878 = vpop.permute.xlu0 %1877
      %1879 = vrot.lane.b32.xlu0 %v957, 44
      %v1880 = vpop.permute.xlu0 %1879
      %1881 = vrot.lane.b32.xlu0 %v959, 44
      %v1882 = vpop.permute.xlu0 %1881
      %1883 = vrot.lane.b32.xlu0 %v962, 44
      %v1884 = vpop.permute.xlu0 %1883
      %1885 = vrot.lane.b32.xlu0 %v964, 44
      %v1886 = vpop.permute.xlu0 %1885
      %1887 = vrot.lane.b32.xlu0 %v967, 44
      %v1888 = vpop.permute.xlu0 %1887
      %1889 = vrot.lane.b32.xlu0 %v969, 44
      %v1890 = vpop.permute.xlu0 %1889
      %1891 = vrot.lane.b32.xlu0 %v972, 44
      %v1892 = vpop.permute.xlu0 %1891
      %1893 = vrot.lane.b32.xlu0 %v974, 44
      %v1894 = vpop.permute.xlu0 %1893
      %1895 = vrot.lane.b32.xlu0 %v977, 44
      %v1896 = vpop.permute.xlu0 %1895
      %1897 = vrot.lane.b32.xlu0 %v979, 44
      %v1898 = vpop.permute.xlu0 %1897
      %1899 = vrot.lane.b32.xlu0 %v982, 44
      %v1900 = vpop.permute.xlu0 %1899
      %1901 = vrot.lane.b32.xlu0 %v984, 44
      %v1902 = vpop.permute.xlu0 %1901
      %1903 = vrot.lane.b32.xlu0 %v987, 44
      %v1904 = vpop.permute.xlu0 %1903
      %1905 = vrot.lane.b32.xlu0 %v989, 44
      %v1906 = vpop.permute.xlu0 %1905
      %1907 = vrot.lane.b32.xlu0 %v1844, 44
      %v1908 = vpop.permute.xlu0 %1907
      %1909 = vrot.lane.b32.xlu0 %v1846, 44
      %v1910 = vpop.permute.xlu0 %1909
      %v1943 = vrot.slane %v286, 5
      %v1944 = vrot.slane %v287, 5
      %v1945 = vsel %vm1086, %v1943, %v1944
      %v1946 = vrot.slane %v288, 5
      %v1947 = vsel %vm1086, %v1944, %v1946
      %1948 = vrot.lane.b32.xlu0 %v1094, 48
      %v1949 = vpop.permute.xlu0 %1948
      %1950 = vrot.lane.b32.xlu0 %v1096, 48
      %v1951 = vpop.permute.xlu0 %1950
      %1952 = vrot.lane.b32.xlu0 %v1099, 48
      %v1953 = vpop.permute.xlu0 %1952
      %1954 = vrot.lane.b32.xlu0 %v1101, 48
      %v1955 = vpop.permute.xlu0 %1954
      %1956 = vrot.lane.b32.xlu0 %v1104, 48
      %v1957 = vpop.permute.xlu0 %1956
      %1958 = vrot.lane.b32.xlu0 %v1106, 48
      %v1959 = vpop.permute.xlu0 %1958
      %1960 = vrot.lane.b32.xlu0 %v1109, 48
      %v1961 = vpop.permute.xlu0 %1960
      %1962 = vrot.lane.b32.xlu0 %v1111, 48
      %v1963 = vpop.permute.xlu0 %1962
      %1964 = vrot.lane.b32.xlu0 %v1114, 48
      %v1965 = vpop.permute.xlu0 %1964
      %1966 = vrot.lane.b32.xlu0 %v1116, 48
      %v1967 = vpop.permute.xlu0 %1966
      %1968 = vrot.lane.b32.xlu0 %v1119, 48
      %v1969 = vpop.permute.xlu0 %1968
      %1970 = vrot.lane.b32.xlu0 %v1121, 48
      %v1971 = vpop.permute.xlu0 %1970
      %1972 = vrot.lane.b32.xlu0 %v1124, 48
      %v1973 = vpop.permute.xlu0 %1972
      %1974 = vrot.lane.b32.xlu0 %v1126, 48
      %v1975 = vpop.permute.xlu0 %1974
      %1976 = vrot.lane.b32.xlu0 %v1129, 48
      %v1977 = vpop.permute.xlu0 %1976
      %1978 = vrot.lane.b32.xlu0 %v1131, 48
      %v1979 = vpop.permute.xlu0 %1978
      %1980 = vrot.lane.b32.xlu0 %v1134, 48
      %v1981 = vpop.permute.xlu0 %1980
      %1982 = vrot.lane.b32.xlu0 %v1136, 48
      %v1983 = vpop.permute.xlu0 %1982
      %1984 = vrot.lane.b32.xlu0 %v1139, 48
      %v1985 = vpop.permute.xlu0 %1984
      %1986 = vrot.lane.b32.xlu0 %v1141, 48
      %v1987 = vpop.permute.xlu0 %1986
      %1988 = vrot.lane.b32.xlu0 %v1144, 48
      %v1989 = vpop.permute.xlu0 %1988
      %1990 = vrot.lane.b32.xlu0 %v1146, 48
      %v1991 = vpop.permute.xlu0 %1990
      %1992 = vrot.lane.b32.xlu0 %v1149, 48
      %v1993 = vpop.permute.xlu0 %1992
      %1994 = vrot.lane.b32.xlu0 %v1151, 48
      %v1995 = vpop.permute.xlu0 %1994
      %1996 = vrot.lane.b32.xlu0 %v1154, 48
      %v1997 = vpop.permute.xlu0 %1996
      %1998 = vrot.lane.b32.xlu0 %v1156, 48
      %v1999 = vpop.permute.xlu0 %1998
      %2000 = vrot.lane.b32.xlu0 %v1159, 48
      %v2001 = vpop.permute.xlu0 %2000
      %2002 = vrot.lane.b32.xlu0 %v1161, 48
      %v2003 = vpop.permute.xlu0 %2002
      %2004 = vrot.lane.b32.xlu0 %v1164, 48
      %v2005 = vpop.permute.xlu0 %2004
      %2006 = vrot.lane.b32.xlu0 %v1166, 48
      %v2007 = vpop.permute.xlu0 %2006
      %2008 = vrot.lane.b32.xlu0 %v1945, 48
      %v2009 = vpop.permute.xlu0 %2008
      %2010 = vrot.lane.b32.xlu0 %v1947, 48
      %v2011 = vpop.permute.xlu0 %2010
      %v2044 = vrot.slane %v286, 6
      %v2045 = vrot.slane %v287, 6
      %v2046 = vsel %vm1263, %v2044, %v2045
      %v2047 = vrot.slane %v288, 6
      %v2048 = vsel %vm1263, %v2045, %v2047
      %2049 = vrot.lane.b32.xlu0 %v1271, 52
      %v2050 = vpop.permute.xlu0 %2049
      %2051 = vrot.lane.b32.xlu0 %v1273, 52
      %v2052 = vpop.permute.xlu0 %2051
      %2053 = vrot.lane.b32.xlu0 %v1276, 52
      %v2054 = vpop.permute.xlu0 %2053
      %2055 = vrot.lane.b32.xlu0 %v1278, 52
      %v2056 = vpop.permute.xlu0 %2055
      %2057 = vrot.lane.b32.xlu0 %v1281, 52
      %v2058 = vpop.permute.xlu0 %2057
      %2059 = vrot.lane.b32.xlu0 %v1283, 52
      %v2060 = vpop.permute.xlu0 %2059
      %2061 = vrot.lane.b32.xlu0 %v1286, 52
      %v2062 = vpop.permute.xlu0 %2061
      %2063 = vrot.lane.b32.xlu0 %v1288, 52
      %v2064 = vpop.permute.xlu0 %2063
      %2065 = vrot.lane.b32.xlu0 %v1291, 52
      %v2066 = vpop.permute.xlu0 %2065
      %2067 = vrot.lane.b32.xlu0 %v1293, 52
      %v2068 = vpop.permute.xlu0 %2067
      %2069 = vrot.lane.b32.xlu0 %v1296, 52
      %v2070 = vpop.permute.xlu0 %2069
      %2071 = vrot.lane.b32.xlu0 %v1298, 52
      %v2072 = vpop.permute.xlu0 %2071
      %2073 = vrot.lane.b32.xlu0 %v1301, 52
      %v2074 = vpop.permute.xlu0 %2073
      %2075 = vrot.lane.b32.xlu0 %v1303, 52
      %v2076 = vpop.permute.xlu0 %2075
      %2077 = vrot.lane.b32.xlu0 %v1306, 52
      %v2078 = vpop.permute.xlu0 %2077
      %2079 = vrot.lane.b32.xlu0 %v1308, 52
      %v2080 = vpop.permute.xlu0 %2079
      %2081 = vrot.lane.b32.xlu0 %v1311, 52
      %v2082 = vpop.permute.xlu0 %2081
      %2083 = vrot.lane.b32.xlu0 %v1313, 52
      %v2084 = vpop.permute.xlu0 %2083
      %2085 = vrot.lane.b32.xlu0 %v1316, 52
      %v2086 = vpop.permute.xlu0 %2085
      %2087 = vrot.lane.b32.xlu0 %v1318, 52
      %v2088 = vpop.permute.xlu0 %2087
      %2089 = vrot.lane.b32.xlu0 %v1321, 52
      %v2090 = vpop.permute.xlu0 %2089
      %2091 = vrot.lane.b32.xlu0 %v1323, 52
      %v2092 = vpop.permute.xlu0 %2091
      %2093 = vrot.lane.b32.xlu0 %v1326, 52
      %v2094 = vpop.permute.xlu0 %2093
      %2095 = vrot.lane.b32.xlu0 %v1328, 52
      %v2096 = vpop.permute.xlu0 %2095
      %2097 = vrot.lane.b32.xlu0 %v1331, 52
      %v2098 = vpop.permute.xlu0 %2097
      %2099 = vrot.lane.b32.xlu0 %v1333, 52
      %v2100 = vpop.permute.xlu0 %2099
      %2101 = vrot.lane.b32.xlu0 %v1336, 52
      %v2102 = vpop.permute.xlu0 %2101
      %2103 = vrot.lane.b32.xlu0 %v1338, 52
      %v2104 = vpop.permute.xlu0 %2103
      %2105 = vrot.lane.b32.xlu0 %v1341, 52
      %v2106 = vpop.permute.xlu0 %2105
      %2107 = vrot.lane.b32.xlu0 %v1343, 52
      %v2108 = vpop.permute.xlu0 %2107
      %2109 = vrot.lane.b32.xlu0 %v2046, 52
      %v2110 = vpop.permute.xlu0 %2109
      %2111 = vrot.lane.b32.xlu0 %v2048, 52
      %v2112 = vpop.permute.xlu0 %2111
      %2147 = vrot.lane.b32.xlu0 %v244, 56
      %v2148 = vpop.permute.xlu0 %2147
      %2149 = vrot.lane.b32.xlu0 %v245, 56
      %v2150 = vpop.permute.xlu0 %2149
      %2151 = vrot.lane.b32.xlu0 %v247, 56
      %v2152 = vpop.permute.xlu0 %2151
      %2153 = vrot.lane.b32.xlu0 %v248, 56
      %v2154 = vpop.permute.xlu0 %2153
      %2155 = vrot.lane.b32.xlu0 %v250, 56
      %v2156 = vpop.permute.xlu0 %2155
      %2157 = vrot.lane.b32.xlu0 %v251, 56
      %v2158 = vpop.permute.xlu0 %2157
      %2159 = vrot.lane.b32.xlu0 %v253, 56
      %v2160 = vpop.permute.xlu0 %2159
      %2161 = vrot.lane.b32.xlu0 %v254, 56
      %v2162 = vpop.permute.xlu0 %2161
      %2163 = vrot.lane.b32.xlu0 %v256, 56
      %v2164 = vpop.permute.xlu0 %2163
      %2165 = vrot.lane.b32.xlu0 %v257, 56
      %v2166 = vpop.permute.xlu0 %2165
      %2167 = vrot.lane.b32.xlu0 %v259, 56
      %v2168 = vpop.permute.xlu0 %2167
      %2169 = vrot.lane.b32.xlu0 %v260, 56
      %v2170 = vpop.permute.xlu0 %2169
      %2171 = vrot.lane.b32.xlu0 %v262, 56
      %v2172 = vpop.permute.xlu0 %2171
      %2173 = vrot.lane.b32.xlu0 %v263, 56
      %v2174 = vpop.permute.xlu0 %2173
      %2175 = vrot.lane.b32.xlu0 %v265, 56
      %v2176 = vpop.permute.xlu0 %2175
      %2177 = vrot.lane.b32.xlu0 %v266, 56
      %v2178 = vpop.permute.xlu0 %2177
      %2179 = vrot.lane.b32.xlu0 %v268, 56
      %v2180 = vpop.permute.xlu0 %2179
      %2181 = vrot.lane.b32.xlu0 %v269, 56
      %v2182 = vpop.permute.xlu0 %2181
      %2183 = vrot.lane.b32.xlu0 %v271, 56
      %v2184 = vpop.permute.xlu0 %2183
      %2185 = vrot.lane.b32.xlu0 %v272, 56
      %v2186 = vpop.permute.xlu0 %2185
      %2187 = vrot.lane.b32.xlu0 %v274, 56
      %v2188 = vpop.permute.xlu0 %2187
      %2189 = vrot.lane.b32.xlu0 %v275, 56
      %v2190 = vpop.permute.xlu0 %2189
      %2191 = vrot.lane.b32.xlu0 %v277, 56
      %v2192 = vpop.permute.xlu0 %2191
      %2193 = vrot.lane.b32.xlu0 %v278, 56
      %v2194 = vpop.permute.xlu0 %2193
      %2195 = vrot.lane.b32.xlu0 %v280, 56
      %v2196 = vpop.permute.xlu0 %2195
      %2197 = vrot.lane.b32.xlu0 %v281, 56
      %v2198 = vpop.permute.xlu0 %2197
      %2199 = vrot.lane.b32.xlu0 %v283, 56
      %v2200 = vpop.permute.xlu0 %2199
      %2201 = vrot.lane.b32.xlu0 %v284, 56
      %v2202 = vpop.permute.xlu0 %2201
      %2203 = vrot.lane.b32.xlu0 %v286, 56
      %v2204 = vpop.permute.xlu0 %2203
      %2205 = vrot.lane.b32.xlu0 %v287, 56
      %v2206 = vpop.permute.xlu0 %2205
      %2207 = vrot.lane.b32.xlu0 %v289, 56
      %v2208 = vpop.permute.xlu0 %2207
      %2209 = vrot.lane.b32.xlu0 %v290, 56
      %v2210 = vpop.permute.xlu0 %2209
      %v2244 = vrot.slane %v289, 1
      %v2245 = vrot.slane %v290, 1
      %v2246 = vsel %vm378, %v2244, %v2245
      %v2247 = vrot.slane %v291, 1
      %v2248 = vsel %vm378, %v2245, %v2247
      %2249 = vrot.lane.b32.xlu0 %v391, 60
      %v2250 = vpop.permute.xlu0 %2249
      %2251 = vrot.lane.b32.xlu0 %v393, 60
      %v2252 = vpop.permute.xlu0 %2251
      %2253 = vrot.lane.b32.xlu0 %v396, 60
      %v2254 = vpop.permute.xlu0 %2253
      %2255 = vrot.lane.b32.xlu0 %v398, 60
      %v2256 = vpop.permute.xlu0 %2255
      %2257 = vrot.lane.b32.xlu0 %v401, 60
      %v2258 = vpop.permute.xlu0 %2257
      %2259 = vrot.lane.b32.xlu0 %v403, 60
      %v2260 = vpop.permute.xlu0 %2259
      %2261 = vrot.lane.b32.xlu0 %v406, 60
      %v2262 = vpop.permute.xlu0 %2261
      %2263 = vrot.lane.b32.xlu0 %v408, 60
      %v2264 = vpop.permute.xlu0 %2263
      %2265 = vrot.lane.b32.xlu0 %v411, 60
      %v2266 = vpop.permute.xlu0 %2265
      %2267 = vrot.lane.b32.xlu0 %v413, 60
      %v2268 = vpop.permute.xlu0 %2267
      %2269 = vrot.lane.b32.xlu0 %v416, 60
      %v2270 = vpop.permute.xlu0 %2269
      %2271 = vrot.lane.b32.xlu0 %v418, 60
      %v2272 = vpop.permute.xlu0 %2271
      %2273 = vrot.lane.b32.xlu0 %v421, 60
      %v2274 = vpop.permute.xlu0 %2273
      %2275 = vrot.lane.b32.xlu0 %v423, 60
      %v2276 = vpop.permute.xlu0 %2275
      %2277 = vrot.lane.b32.xlu0 %v426, 60
      %v2278 = vpop.permute.xlu0 %2277
      %2279 = vrot.lane.b32.xlu0 %v428, 60
      %v2280 = vpop.permute.xlu0 %2279
      %2281 = vrot.lane.b32.xlu0 %v431, 60
      %v2282 = vpop.permute.xlu0 %2281
      %2283 = vrot.lane.b32.xlu0 %v433, 60
      %v2284 = vpop.permute.xlu0 %2283
      %2285 = vrot.lane.b32.xlu0 %v436, 60
      %v2286 = vpop.permute.xlu0 %2285
      %2287 = vrot.lane.b32.xlu0 %v438, 60
      %v2288 = vpop.permute.xlu0 %2287
      %2289 = vrot.lane.b32.xlu0 %v441, 60
      %v2290 = vpop.permute.xlu0 %2289
      %2291 = vrot.lane.b32.xlu0 %v443, 60
      %v2292 = vpop.permute.xlu0 %2291
      %2293 = vrot.lane.b32.xlu0 %v446, 60
      %v2294 = vpop.permute.xlu0 %2293
      %2295 = vrot.lane.b32.xlu0 %v448, 60
      %v2296 = vpop.permute.xlu0 %2295
      %2297 = vrot.lane.b32.xlu0 %v451, 60
      %v2298 = vpop.permute.xlu0 %2297
      %2299 = vrot.lane.b32.xlu0 %v453, 60
      %v2300 = vpop.permute.xlu0 %2299
      %2301 = vrot.lane.b32.xlu0 %v456, 60
      %v2302 = vpop.permute.xlu0 %2301
      %2303 = vrot.lane.b32.xlu0 %v458, 60
      %v2304 = vpop.permute.xlu0 %2303
      %2305 = vrot.lane.b32.xlu0 %v1541, 60
      %v2306 = vpop.permute.xlu0 %2305
      %2307 = vrot.lane.b32.xlu0 %v1543, 60
      %v2308 = vpop.permute.xlu0 %2307
      %2309 = vrot.lane.b32.xlu0 %v2246, 60
      %v2310 = vpop.permute.xlu0 %2309
      %2311 = vrot.lane.b32.xlu0 %v2248, 60
      %v2312 = vpop.permute.xlu0 %2311
      %vm2345 = vcmask 31744
      %v2346 = vsel %vm2345, %v238, %v460
      %v2347 = vsel %vm2345, %v239, %v462
      %v2348 = vsel %vm2345, %v241, %v464
      %v2349 = vsel %vm2345, %v242, %v466
      %v2350 = vsel %vm2345, %v244, %v468
      %v2351 = vsel %vm2345, %v245, %v470
      %v2352 = vsel %vm2345, %v247, %v472
      %v2353 = vsel %vm2345, %v248, %v474
      %v2354 = vsel %vm2345, %v250, %v476
      %v2355 = vsel %vm2345, %v251, %v478
      %v2356 = vsel %vm2345, %v253, %v480
      %v2357 = vsel %vm2345, %v254, %v482
      %v2358 = vsel %vm2345, %v256, %v484
      %v2359 = vsel %vm2345, %v257, %v486
      %v2360 = vsel %vm2345, %v259, %v488
      %v2361 = vsel %vm2345, %v260, %v490
      %v2362 = vsel %vm2345, %v262, %v492
      %v2363 = vsel %vm2345, %v263, %v494
      %v2364 = vsel %vm2345, %v265, %v496
      %v2365 = vsel %vm2345, %v266, %v498
      %v2366 = vsel %vm2345, %v268, %v500
      %v2367 = vsel %vm2345, %v269, %v502
      %v2368 = vsel %vm2345, %v271, %v504
      %v2369 = vsel %vm2345, %v272, %v506
      %v2370 = vsel %vm2345, %v274, %v508
      %v2371 = vsel %vm2345, %v275, %v510
      %v2372 = vsel %vm2345, %v277, %v512
      %v2373 = vsel %vm2345, %v278, %v514
      %v2374 = vsel %vm2345, %v280, %v516
      %v2375 = vsel %vm2345, %v281, %v518
      %v2376 = vsel %vm2345, %v283, %v520
      %v2377 = vsel %vm2345, %v284, %v522
      %vm2378 = vcmask 64512
      %v2379 = vsel %vm2378, %v2346, %v637
      %v2380 = vsel %vm2378, %v2347, %v639
      %v2381 = vsel %vm2378, %v2348, %v641
      %v2382 = vsel %vm2378, %v2349, %v643
      %v2383 = vsel %vm2378, %v2350, %v645
      %v2384 = vsel %vm2378, %v2351, %v647
      %v2385 = vsel %vm2378, %v2352, %v649
      %v2386 = vsel %vm2378, %v2353, %v651
      %v2387 = vsel %vm2378, %v2354, %v653
      %v2388 = vsel %vm2378, %v2355, %v655
      %v2389 = vsel %vm2378, %v2356, %v657
      %v2390 = vsel %vm2378, %v2357, %v659
      %v2391 = vsel %vm2378, %v2358, %v661
      %v2392 = vsel %vm2378, %v2359, %v663
      %v2393 = vsel %vm2378, %v2360, %v665
      %v2394 = vsel %vm2378, %v2361, %v667
      %v2395 = vsel %vm2378, %v2362, %v669
      %v2396 = vsel %vm2378, %v2363, %v671
      %v2397 = vsel %vm2378, %v2364, %v673
      %v2398 = vsel %vm2378, %v2365, %v675
      %v2399 = vsel %vm2378, %v2366, %v677
      %v2400 = vsel %vm2378, %v2367, %v679
      %v2401 = vsel %vm2378, %v2368, %v681
      %v2402 = vsel %vm2378, %v2369, %v683
      %v2403 = vsel %vm2378, %v2370, %v685
      %v2404 = vsel %vm2378, %v2371, %v687
      %v2405 = vsel %vm2378, %v2372, %v689
      %v2406 = vsel %vm2378, %v2373, %v691
      %v2407 = vsel %vm2378, %v2374, %v693
      %v2408 = vsel %vm2378, %v2375, %v695
      %v2409 = vsel %vm2378, %v2376, %v697
      %v2410 = vsel %vm2378, %v2377, %v699
      %vm2411 = vcmask 97280
      %v2412 = vsel %vm2411, %v2379, %v814
      %v2413 = vsel %vm2411, %v2380, %v816
      %v2414 = vsel %vm2411, %v2381, %v818
      %v2415 = vsel %vm2411, %v2382, %v820
      %v2416 = vsel %vm2411, %v2383, %v822
      %v2417 = vsel %vm2411, %v2384, %v824
      %v2418 = vsel %vm2411, %v2385, %v826
      %v2419 = vsel %vm2411, %v2386, %v828
      %v2420 = vsel %vm2411, %v2387, %v830
      %v2421 = vsel %vm2411, %v2388, %v832
      %v2422 = vsel %vm2411, %v2389, %v834
      %v2423 = vsel %vm2411, %v2390, %v836
      %v2424 = vsel %vm2411, %v2391, %v838
      %v2425 = vsel %vm2411, %v2392, %v840
      %v2426 = vsel %vm2411, %v2393, %v842
      %v2427 = vsel %vm2411, %v2394, %v844
      %v2428 = vsel %vm2411, %v2395, %v846
      %v2429 = vsel %vm2411, %v2396, %v848
      %v2430 = vsel %vm2411, %v2397, %v850
      %v2431 = vsel %vm2411, %v2398, %v852
      %v2432 = vsel %vm2411, %v2399, %v854
      %v2433 = vsel %vm2411, %v2400, %v856
      %v2434 = vsel %vm2411, %v2401, %v858
      %v2435 = vsel %vm2411, %v2402, %v860
      %v2436 = vsel %vm2411, %v2403, %v862
      %v2437 = vsel %vm2411, %v2404, %v864
      %v2438 = vsel %vm2411, %v2405, %v866
      %v2439 = vsel %vm2411, %v2406, %v868
      %v2440 = vsel %vm2411, %v2407, %v870
      %v2441 = vsel %vm2411, %v2408, %v872
      %v2442 = vsel %vm2411, %v2409, %v874
      %v2443 = vsel %vm2411, %v2410, %v876
      %vm2444 = vcmask 130048
      %v2445 = vsel %vm2444, %v2412, %v991
      %v2446 = vsel %vm2444, %v2413, %v993
      %v2447 = vsel %vm2444, %v2414, %v995
      %v2448 = vsel %vm2444, %v2415, %v997
      %v2449 = vsel %vm2444, %v2416, %v999
      %v2450 = vsel %vm2444, %v2417, %v1001
      %v2451 = vsel %vm2444, %v2418, %v1003
      %v2452 = vsel %vm2444, %v2419, %v1005
      %v2453 = vsel %vm2444, %v2420, %v1007
      %v2454 = vsel %vm2444, %v2421, %v1009
      %v2455 = vsel %vm2444, %v2422, %v1011
      %v2456 = vsel %vm2444, %v2423, %v1013
      %v2457 = vsel %vm2444, %v2424, %v1015
      %v2458 = vsel %vm2444, %v2425, %v1017
      %v2459 = vsel %vm2444, %v2426, %v1019
      %v2460 = vsel %vm2444, %v2427, %v1021
      %v2461 = vsel %vm2444, %v2428, %v1023
      %v2462 = vsel %vm2444, %v2429, %v1025
      %v2463 = vsel %vm2444, %v2430, %v1027
      %v2464 = vsel %vm2444, %v2431, %v1029
      %v2465 = vsel %vm2444, %v2432, %v1031
      %v2466 = vsel %vm2444, %v2433, %v1033
      %v2467 = vsel %vm2444, %v2434, %v1035
      %v2468 = vsel %vm2444, %v2435, %v1037
      %v2469 = vsel %vm2444, %v2436, %v1039
      %v2470 = vsel %vm2444, %v2437, %v1041
      %v2471 = vsel %vm2444, %v2438, %v1043
      %v2472 = vsel %vm2444, %v2439, %v1045
      %v2473 = vsel %vm2444, %v2440, %v1047
      %v2474 = vsel %vm2444, %v2441, %v1049
      %v2475 = vsel %vm2444, %v2442, %v1051
      %v2476 = vsel %vm2444, %v2443, %v1053
      %vm2477 = vcmask 162816
      %v2478 = vsel %vm2477, %v2445, %v1168
      %v2479 = vsel %vm2477, %v2446, %v1170
      %v2480 = vsel %vm2477, %v2447, %v1172
      %v2481 = vsel %vm2477, %v2448, %v1174
      %v2482 = vsel %vm2477, %v2449, %v1176
      %v2483 = vsel %vm2477, %v2450, %v1178
      %v2484 = vsel %vm2477, %v2451, %v1180
      %v2485 = vsel %vm2477, %v2452, %v1182
      %v2486 = vsel %vm2477, %v2453, %v1184
      %v2487 = vsel %vm2477, %v2454, %v1186
      %v2488 = vsel %vm2477, %v2455, %v1188
      %v2489 = vsel %vm2477, %v2456, %v1190
      %v2490 = vsel %vm2477, %v2457, %v1192
      %v2491 = vsel %vm2477, %v2458, %v1194
      %v2492 = vsel %vm2477, %v2459, %v1196
      %v2493 = vsel %vm2477, %v2460, %v1198
      %v2494 = vsel %vm2477, %v2461, %v1200
      %v2495 = vsel %vm2477, %v2462, %v1202
      %v2496 = vsel %vm2477, %v2463, %v1204
      %v2497 = vsel %vm2477, %v2464, %v1206
      %v2498 = vsel %vm2477, %v2465, %v1208
      %v2499 = vsel %vm2477, %v2466, %v1210
      %v2500 = vsel %vm2477, %v2467, %v1212
      %v2501 = vsel %vm2477, %v2468, %v1214
      %v2502 = vsel %vm2477, %v2469, %v1216
      %v2503 = vsel %vm2477, %v2470, %v1218
      %v2504 = vsel %vm2477, %v2471, %v1220
      %v2505 = vsel %vm2477, %v2472, %v1222
      %v2506 = vsel %vm2477, %v2473, %v1224
      %v2507 = vsel %vm2477, %v2474, %v1226
      %v2508 = vsel %vm2477, %v2475, %v1228
      %v2509 = vsel %vm2477, %v2476, %v1230
      %vm2510 = vcmask 195584
      %v2511 = vsel %vm2510, %v2478, %v1345
      %v2512 = vsel %vm2510, %v2479, %v1347
      %v2513 = vsel %vm2510, %v2480, %v1349
      %v2514 = vsel %vm2510, %v2481, %v1351
      %v2515 = vsel %vm2510, %v2482, %v1353
      %v2516 = vsel %vm2510, %v2483, %v1355
      %v2517 = vsel %vm2510, %v2484, %v1357
      %v2518 = vsel %vm2510, %v2485, %v1359
      %v2519 = vsel %vm2510, %v2486, %v1361
      %v2520 = vsel %vm2510, %v2487, %v1363
      %v2521 = vsel %vm2510, %v2488, %v1365
      %v2522 = vsel %vm2510, %v2489, %v1367
      %v2523 = vsel %vm2510, %v2490, %v1369
      %v2524 = vsel %vm2510, %v2491, %v1371
      %v2525 = vsel %vm2510, %v2492, %v1373
      %v2526 = vsel %vm2510, %v2493, %v1375
      %v2527 = vsel %vm2510, %v2494, %v1377
      %v2528 = vsel %vm2510, %v2495, %v1379
      %v2529 = vsel %vm2510, %v2496, %v1381
      %v2530 = vsel %vm2510, %v2497, %v1383
      %v2531 = vsel %vm2510, %v2498, %v1385
      %v2532 = vsel %vm2510, %v2499, %v1387
      %v2533 = vsel %vm2510, %v2500, %v1389
      %v2534 = vsel %vm2510, %v2501, %v1391
      %v2535 = vsel %vm2510, %v2502, %v1393
      %v2536 = vsel %vm2510, %v2503, %v1395
      %v2537 = vsel %vm2510, %v2504, %v1397
      %v2538 = vsel %vm2510, %v2505, %v1399
      %v2539 = vsel %vm2510, %v2506, %v1401
      %v2540 = vsel %vm2510, %v2507, %v1403
      %v2541 = vsel %vm2510, %v2508, %v1405
      %v2542 = vsel %vm2510, %v2509, %v1407
      %vm2543 = vcmask 228352
      %v2544 = vsel %vm2543, %v2511, %v1443
      %v2545 = vsel %vm2543, %v2512, %v1445
      %v2546 = vsel %vm2543, %v2513, %v1447
      %v2547 = vsel %vm2543, %v2514, %v1449
      %v2548 = vsel %vm2543, %v2515, %v1451
      %v2549 = vsel %vm2543, %v2516, %v1453
      %v2550 = vsel %vm2543, %v2517, %v1455
      %v2551 = vsel %vm2543, %v2518, %v1457
      %v2552 = vsel %vm2543, %v2519, %v1459
      %v2553 = vsel %vm2543, %v2520, %v1461
      %v2554 = vsel %vm2543, %v2521, %v1463
      %v2555 = vsel %vm2543, %v2522, %v1465
      %v2556 = vsel %vm2543, %v2523, %v1467
      %v2557 = vsel %vm2543, %v2524, %v1469
      %v2558 = vsel %vm2543, %v2525, %v1471
      %v2559 = vsel %vm2543, %v2526, %v1473
      %v2560 = vsel %vm2543, %v2527, %v1475
      %v2561 = vsel %vm2543, %v2528, %v1477
      %v2562 = vsel %vm2543, %v2529, %v1479
      %v2563 = vsel %vm2543, %v2530, %v1481
      %v2564 = vsel %vm2543, %v2531, %v1483
      %v2565 = vsel %vm2543, %v2532, %v1485
      %v2566 = vsel %vm2543, %v2533, %v1487
      %v2567 = vsel %vm2543, %v2534, %v1489
      %v2568 = vsel %vm2543, %v2535, %v1491
      %v2569 = vsel %vm2543, %v2536, %v1493
      %v2570 = vsel %vm2543, %v2537, %v1495
      %v2571 = vsel %vm2543, %v2538, %v1497
      %v2572 = vsel %vm2543, %v2539, %v1499
      %v2573 = vsel %vm2543, %v2540, %v1501
      %v2574 = vsel %vm2543, %v2541, %v1503
      %v2575 = vsel %vm2543, %v2542, %v1505
      %vm2576 = vcmask 261120
      %v2577 = vsel %vm2576, %v2544, %v1545
      %v2578 = vsel %vm2576, %v2545, %v1547
      %v2579 = vsel %vm2576, %v2546, %v1549
      %v2580 = vsel %vm2576, %v2547, %v1551
      %v2581 = vsel %vm2576, %v2548, %v1553
      %v2582 = vsel %vm2576, %v2549, %v1555
      %v2583 = vsel %vm2576, %v2550, %v1557
      %v2584 = vsel %vm2576, %v2551, %v1559
      %v2585 = vsel %vm2576, %v2552, %v1561
      %v2586 = vsel %vm2576, %v2553, %v1563
      %v2587 = vsel %vm2576, %v2554, %v1565
      %v2588 = vsel %vm2576, %v2555, %v1567
      %v2589 = vsel %vm2576, %v2556, %v1569
      %v2590 = vsel %vm2576, %v2557, %v1571
      %v2591 = vsel %vm2576, %v2558, %v1573
      %v2592 = vsel %vm2576, %v2559, %v1575
      %v2593 = vsel %vm2576, %v2560, %v1577
      %v2594 = vsel %vm2576, %v2561, %v1579
      %v2595 = vsel %vm2576, %v2562, %v1581
      %v2596 = vsel %vm2576, %v2563, %v1583
      %v2597 = vsel %vm2576, %v2564, %v1585
      %v2598 = vsel %vm2576, %v2565, %v1587
      %v2599 = vsel %vm2576, %v2566, %v1589
      %v2600 = vsel %vm2576, %v2567, %v1591
      %v2601 = vsel %vm2576, %v2568, %v1593
      %v2602 = vsel %vm2576, %v2569, %v1595
      %v2603 = vsel %vm2576, %v2570, %v1597
      %v2604 = vsel %vm2576, %v2571, %v1599
      %v2605 = vsel %vm2576, %v2572, %v1601
      %v2606 = vsel %vm2576, %v2573, %v1603
      %v2607 = vsel %vm2576, %v2574, %v1605
      %v2608 = vsel %vm2576, %v2575, %v1607
      %vm2609 = vcmask 293888
      %v2610 = vsel %vm2609, %v2577, %v1646
      %v2611 = vsel %vm2609, %v2578, %v1648
      %v2612 = vsel %vm2609, %v2579, %v1650
      %v2613 = vsel %vm2609, %v2580, %v1652
      %v2614 = vsel %vm2609, %v2581, %v1654
      %v2615 = vsel %vm2609, %v2582, %v1656
      %v2616 = vsel %vm2609, %v2583, %v1658
      %v2617 = vsel %vm2609, %v2584, %v1660
      %v2618 = vsel %vm2609, %v2585, %v1662
      %v2619 = vsel %vm2609, %v2586, %v1664
      %v2620 = vsel %vm2609, %v2587, %v1666
      %v2621 = vsel %vm2609, %v2588, %v1668
      %v2622 = vsel %vm2609, %v2589, %v1670
      %v2623 = vsel %vm2609, %v2590, %v1672
      %v2624 = vsel %vm2609, %v2591, %v1674
      %v2625 = vsel %vm2609, %v2592, %v1676
      %v2626 = vsel %vm2609, %v2593, %v1678
      %v2627 = vsel %vm2609, %v2594, %v1680
      %v2628 = vsel %vm2609, %v2595, %v1682
      %v2629 = vsel %vm2609, %v2596, %v1684
      %v2630 = vsel %vm2609, %v2597, %v1686
      %v2631 = vsel %vm2609, %v2598, %v1688
      %v2632 = vsel %vm2609, %v2599, %v1690
      %v2633 = vsel %vm2609, %v2600, %v1692
      %v2634 = vsel %vm2609, %v2601, %v1694
      %v2635 = vsel %vm2609, %v2602, %v1696
      %v2636 = vsel %vm2609, %v2603, %v1698
      %v2637 = vsel %vm2609, %v2604, %v1700
      %v2638 = vsel %vm2609, %v2605, %v1702
      %v2639 = vsel %vm2609, %v2606, %v1704
      %v2640 = vsel %vm2609, %v2607, %v1706
      %v2641 = vsel %vm2609, %v2608, %v1708
      %vm2642 = vcmask 326656
      %v2643 = vsel %vm2642, %v2610, %v1747
      %v2644 = vsel %vm2642, %v2611, %v1749
      %v2645 = vsel %vm2642, %v2612, %v1751
      %v2646 = vsel %vm2642, %v2613, %v1753
      %v2647 = vsel %vm2642, %v2614, %v1755
      %v2648 = vsel %vm2642, %v2615, %v1757
      %v2649 = vsel %vm2642, %v2616, %v1759
      %v2650 = vsel %vm2642, %v2617, %v1761
      %v2651 = vsel %vm2642, %v2618, %v1763
      %v2652 = vsel %vm2642, %v2619, %v1765
      %v2653 = vsel %vm2642, %v2620, %v1767
      %v2654 = vsel %vm2642, %v2621, %v1769
      %v2655 = vsel %vm2642, %v2622, %v1771
      %v2656 = vsel %vm2642, %v2623, %v1773
      %v2657 = vsel %vm2642, %v2624, %v1775
      %v2658 = vsel %vm2642, %v2625, %v1777
      %v2659 = vsel %vm2642, %v2626, %v1779
      %v2660 = vsel %vm2642, %v2627, %v1781
      %v2661 = vsel %vm2642, %v2628, %v1783
      %v2662 = vsel %vm2642, %v2629, %v1785
      %v2663 = vsel %vm2642, %v2630, %v1787
      %v2664 = vsel %vm2642, %v2631, %v1789
      %v2665 = vsel %vm2642, %v2632, %v1791
      %v2666 = vsel %vm2642, %v2633, %v1793
      %v2667 = vsel %vm2642, %v2634, %v1795
      %v2668 = vsel %vm2642, %v2635, %v1797
      %v2669 = vsel %vm2642, %v2636, %v1799
      %v2670 = vsel %vm2642, %v2637, %v1801
      %v2671 = vsel %vm2642, %v2638, %v1803
      %v2672 = vsel %vm2642, %v2639, %v1805
      %v2673 = vsel %vm2642, %v2640, %v1807
      %v2674 = vsel %vm2642, %v2641, %v1809
      %vm2675 = vcmask 359424
      %v2676 = vsel %vm2675, %v2643, %v1848
      %v2677 = vsel %vm2675, %v2644, %v1850
      %v2678 = vsel %vm2675, %v2645, %v1852
      %v2679 = vsel %vm2675, %v2646, %v1854
      %v2680 = vsel %vm2675, %v2647, %v1856
      %v2681 = vsel %vm2675, %v2648, %v1858
      %v2682 = vsel %vm2675, %v2649, %v1860
      %v2683 = vsel %vm2675, %v2650, %v1862
      %v2684 = vsel %vm2675, %v2651, %v1864
      %v2685 = vsel %vm2675, %v2652, %v1866
      %v2686 = vsel %vm2675, %v2653, %v1868
      %v2687 = vsel %vm2675, %v2654, %v1870
      %v2688 = vsel %vm2675, %v2655, %v1872
      %v2689 = vsel %vm2675, %v2656, %v1874
      %v2690 = vsel %vm2675, %v2657, %v1876
      %v2691 = vsel %vm2675, %v2658, %v1878
      %v2692 = vsel %vm2675, %v2659, %v1880
      %v2693 = vsel %vm2675, %v2660, %v1882
      %v2694 = vsel %vm2675, %v2661, %v1884
      %v2695 = vsel %vm2675, %v2662, %v1886
      %v2696 = vsel %vm2675, %v2663, %v1888
      %v2697 = vsel %vm2675, %v2664, %v1890
      %v2698 = vsel %vm2675, %v2665, %v1892
      %v2699 = vsel %vm2675, %v2666, %v1894
      %v2700 = vsel %vm2675, %v2667, %v1896
      %v2701 = vsel %vm2675, %v2668, %v1898
      %v2702 = vsel %vm2675, %v2669, %v1900
      %v2703 = vsel %vm2675, %v2670, %v1902
      %v2704 = vsel %vm2675, %v2671, %v1904
      %v2705 = vsel %vm2675, %v2672, %v1906
      %v2706 = vsel %vm2675, %v2673, %v1908
      %v2707 = vsel %vm2675, %v2674, %v1910
      %vm2708 = vcmask 392192
      %v2709 = vsel %vm2708, %v2676, %v1949
      %v2710 = vsel %vm2708, %v2677, %v1951
      %v2711 = vsel %vm2708, %v2678, %v1953
      %v2712 = vsel %vm2708, %v2679, %v1955
      %v2713 = vsel %vm2708, %v2680, %v1957
      %v2714 = vsel %vm2708, %v2681, %v1959
      %v2715 = vsel %vm2708, %v2682, %v1961
      %v2716 = vsel %vm2708, %v2683, %v1963
      %v2717 = vsel %vm2708, %v2684, %v1965
      %v2718 = vsel %vm2708, %v2685, %v1967
      %v2719 = vsel %vm2708, %v2686, %v1969
      %v2720 = vsel %vm2708, %v2687, %v1971
      %v2721 = vsel %vm2708, %v2688, %v1973
      %v2722 = vsel %vm2708, %v2689, %v1975
      %v2723 = vsel %vm2708, %v2690, %v1977
      %v2724 = vsel %vm2708, %v2691, %v1979
      %v2725 = vsel %vm2708, %v2692, %v1981
      %v2726 = vsel %vm2708, %v2693, %v1983
      %v2727 = vsel %vm2708, %v2694, %v1985
      %v2728 = vsel %vm2708, %v2695, %v1987
      %v2729 = vsel %vm2708, %v2696, %v1989
      %v2730 = vsel %vm2708, %v2697, %v1991
      %v2731 = vsel %vm2708, %v2698, %v1993
      %v2732 = vsel %vm2708, %v2699, %v1995
      %v2733 = vsel %vm2708, %v2700, %v1997
      %v2734 = vsel %vm2708, %v2701, %v1999
      %v2735 = vsel %vm2708, %v2702, %v2001
      %v2736 = vsel %vm2708, %v2703, %v2003
      %v2737 = vsel %vm2708, %v2704, %v2005
      %v2738 = vsel %vm2708, %v2705, %v2007
      %v2739 = vsel %vm2708, %v2706, %v2009
      %v2740 = vsel %vm2708, %v2707, %v2011
      %vm2741 = vcmask 424960
      %v2742 = vsel %vm2741, %v2709, %v2050
      %v2743 = vsel %vm2741, %v2710, %v2052
      %v2744 = vsel %vm2741, %v2711, %v2054
      %v2745 = vsel %vm2741, %v2712, %v2056
      %v2746 = vsel %vm2741, %v2713, %v2058
      %v2747 = vsel %vm2741, %v2714, %v2060
      %v2748 = vsel %vm2741, %v2715, %v2062
      %v2749 = vsel %vm2741, %v2716, %v2064
      %v2750 = vsel %vm2741, %v2717, %v2066
      %v2751 = vsel %vm2741, %v2718, %v2068
      %v2752 = vsel %vm2741, %v2719, %v2070
      %v2753 = vsel %vm2741, %v2720, %v2072
      %v2754 = vsel %vm2741, %v2721, %v2074
      %v2755 = vsel %vm2741, %v2722, %v2076
      %v2756 = vsel %vm2741, %v2723, %v2078
      %v2757 = vsel %vm2741, %v2724, %v2080
      %v2758 = vsel %vm2741, %v2725, %v2082
      %v2759 = vsel %vm2741, %v2726, %v2084
      %v2760 = vsel %vm2741, %v2727, %v2086
      %v2761 = vsel %vm2741, %v2728, %v2088
      %v2762 = vsel %vm2741, %v2729, %v2090
      %v2763 = vsel %vm2741, %v2730, %v2092
      %v2764 = vsel %vm2741, %v2731, %v2094
      %v2765 = vsel %vm2741, %v2732, %v2096
      %v2766 = vsel %vm2741, %v2733, %v2098
      %v2767 = vsel %vm2741, %v2734, %v2100
      %v2768 = vsel %vm2741, %v2735, %v2102
      %v2769 = vsel %vm2741, %v2736, %v2104
      %v2770 = vsel %vm2741, %v2737, %v2106
      %v2771 = vsel %vm2741, %v2738, %v2108
      %v2772 = vsel %vm2741, %v2739, %v2110
      %v2773 = vsel %vm2741, %v2740, %v2112
      %vm2774 = vcmask 457728
      %v2775 = vsel %vm2774, %v2742, %v2148
      %v2776 = vsel %vm2774, %v2743, %v2150
      %v2777 = vsel %vm2774, %v2744, %v2152
      %v2778 = vsel %vm2774, %v2745, %v2154
      %v2779 = vsel %vm2774, %v2746, %v2156
      %v2780 = vsel %vm2774, %v2747, %v2158
      %v2781 = vsel %vm2774, %v2748, %v2160
      %v2782 = vsel %vm2774, %v2749, %v2162
      %v2783 = vsel %vm2774, %v2750, %v2164
      %v2784 = vsel %vm2774, %v2751, %v2166
      %v2785 = vsel %vm2774, %v2752, %v2168
      %v2786 = vsel %vm2774, %v2753, %v2170
      %v2787 = vsel %vm2774, %v2754, %v2172
      %v2788 = vsel %vm2774, %v2755, %v2174
      %v2789 = vsel %vm2774, %v2756, %v2176
      %v2790 = vsel %vm2774, %v2757, %v2178
      %v2791 = vsel %vm2774, %v2758, %v2180
      %v2792 = vsel %vm2774, %v2759, %v2182
      %v2793 = vsel %vm2774, %v2760, %v2184
      %v2794 = vsel %vm2774, %v2761, %v2186
      %v2795 = vsel %vm2774, %v2762, %v2188
      %v2796 = vsel %vm2774, %v2763, %v2190
      %v2797 = vsel %vm2774, %v2764, %v2192
      %v2798 = vsel %vm2774, %v2765, %v2194
      %v2799 = vsel %vm2774, %v2766, %v2196
      %v2800 = vsel %vm2774, %v2767, %v2198
      %v2801 = vsel %vm2774, %v2768, %v2200
      %v2802 = vsel %vm2774, %v2769, %v2202
      %v2803 = vsel %vm2774, %v2770, %v2204
      %v2804 = vsel %vm2774, %v2771, %v2206
      %v2805 = vsel %vm2774, %v2772, %v2208
      %v2806 = vsel %vm2774, %v2773, %v2210
      %vm2807 = vcmask 490496
      %v2808 = vsel %vm2807, %v2775, %v2250
      %v2809 = vsel %vm2807, %v2776, %v2252
      %v2810 = vsel %vm2807, %v2777, %v2254
      %v2811 = vsel %vm2807, %v2778, %v2256
      %v2812 = vsel %vm2807, %v2779, %v2258
      %v2813 = vsel %vm2807, %v2780, %v2260
      %v2814 = vsel %vm2807, %v2781, %v2262
      %v2815 = vsel %vm2807, %v2782, %v2264
      %v2816 = vsel %vm2807, %v2783, %v2266
      %v2817 = vsel %vm2807, %v2784, %v2268
      %v2818 = vsel %vm2807, %v2785, %v2270
      %v2819 = vsel %vm2807, %v2786, %v2272
      %v2820 = vsel %vm2807, %v2787, %v2274
      %v2821 = vsel %vm2807, %v2788, %v2276
      %v2822 = vsel %vm2807, %v2789, %v2278
      %v2823 = vsel %vm2807, %v2790, %v2280
      %v2824 = vsel %vm2807, %v2791, %v2282
      %v2825 = vsel %vm2807, %v2792, %v2284
      %v2826 = vsel %vm2807, %v2793, %v2286
      %v2827 = vsel %vm2807, %v2794, %v2288
      %v2828 = vsel %vm2807, %v2795, %v2290
      %v2829 = vsel %vm2807, %v2796, %v2292
      %v2830 = vsel %vm2807, %v2797, %v2294
      %v2831 = vsel %vm2807, %v2798, %v2296
      %v2832 = vsel %vm2807, %v2799, %v2298
      %v2833 = vsel %vm2807, %v2800, %v2300
      %v2834 = vsel %vm2807, %v2801, %v2302
      %v2835 = vsel %vm2807, %v2802, %v2304
      %v2836 = vsel %vm2807, %v2803, %v2306
      %v2837 = vsel %vm2807, %v2804, %v2308
      %v2838 = vsel %vm2807, %v2805, %v2310
      %v2839 = vsel %vm2807, %v2806, %v2312
      %2840 = vrot.lane.b32.xlu0 %v392, 4
      %v2841 = vpop.permute.xlu0 %2840
      %2842 = vrot.lane.b32.xlu0 %v397, 4
      %v2843 = vpop.permute.xlu0 %2842
      %2844 = vrot.lane.b32.xlu0 %v402, 4
      %v2845 = vpop.permute.xlu0 %2844
      %2846 = vrot.lane.b32.xlu0 %v407, 4
      %v2847 = vpop.permute.xlu0 %2846
      %2848 = vrot.lane.b32.xlu0 %v412, 4
      %v2849 = vpop.permute.xlu0 %2848
      %2850 = vrot.lane.b32.xlu0 %v417, 4
      %v2851 = vpop.permute.xlu0 %2850
      %2852 = vrot.lane.b32.xlu0 %v422, 4
      %v2853 = vpop.permute.xlu0 %2852
      %2854 = vrot.lane.b32.xlu0 %v427, 4
      %v2855 = vpop.permute.xlu0 %2854
      %2856 = vrot.lane.b32.xlu0 %v432, 4
      %v2857 = vpop.permute.xlu0 %2856
      %2858 = vrot.lane.b32.xlu0 %v437, 4
      %v2859 = vpop.permute.xlu0 %2858
      %2860 = vrot.lane.b32.xlu0 %v442, 4
      %v2861 = vpop.permute.xlu0 %2860
      %2862 = vrot.lane.b32.xlu0 %v447, 4
      %v2863 = vpop.permute.xlu0 %2862
      %2864 = vrot.lane.b32.xlu0 %v452, 4
      %v2865 = vpop.permute.xlu0 %2864
      %2866 = vrot.lane.b32.xlu0 %v457, 4
      %v2867 = vpop.permute.xlu0 %2866
      %2868 = vrot.lane.b32.xlu0 %v1541, 4
      %v2869 = vpop.permute.xlu0 %2868
      %2870 = vrot.lane.b32.xlu0 %v1543, 4
      %v2871 = vpop.permute.xlu0 %2870
      %2872 = vrot.lane.b32.xlu0 %v1542, 4
      %v2873 = vpop.permute.xlu0 %2872
      %2874 = vrot.lane.b32.xlu0 %v2246, 4
      %v2875 = vpop.permute.xlu0 %2874
      %2876 = vrot.lane.b32.xlu0 %v2248, 4
      %v2877 = vpop.permute.xlu0 %2876
      %2878 = vrot.lane.b32.xlu0 %v2247, 4
      %v2879 = vpop.permute.xlu0 %2878
      %v2900 = vrot.slane %v289, 2
      %v2901 = vrot.slane %v290, 2
      %v2902 = vsel %vm555, %v2900, %v2901
      %v2903 = vrot.slane %v291, 2
      %v2904 = vsel %vm555, %v2901, %v2903
      %2905 = vrot.lane.b32.xlu0 %v569, 8
      %v2906 = vpop.permute.xlu0 %2905
      %2907 = vrot.lane.b32.xlu0 %v574, 8
      %v2908 = vpop.permute.xlu0 %2907
      %2909 = vrot.lane.b32.xlu0 %v579, 8
      %v2910 = vpop.permute.xlu0 %2909
      %2911 = vrot.lane.b32.xlu0 %v584, 8
      %v2912 = vpop.permute.xlu0 %2911
      %2913 = vrot.lane.b32.xlu0 %v589, 8
      %v2914 = vpop.permute.xlu0 %2913
      %2915 = vrot.lane.b32.xlu0 %v594, 8
      %v2916 = vpop.permute.xlu0 %2915
      %2917 = vrot.lane.b32.xlu0 %v599, 8
      %v2918 = vpop.permute.xlu0 %2917
      %2919 = vrot.lane.b32.xlu0 %v604, 8
      %v2920 = vpop.permute.xlu0 %2919
      %2921 = vrot.lane.b32.xlu0 %v609, 8
      %v2922 = vpop.permute.xlu0 %2921
      %2923 = vrot.lane.b32.xlu0 %v614, 8
      %v2924 = vpop.permute.xlu0 %2923
      %2925 = vrot.lane.b32.xlu0 %v619, 8
      %v2926 = vpop.permute.xlu0 %2925
      %2927 = vrot.lane.b32.xlu0 %v624, 8
      %v2928 = vpop.permute.xlu0 %2927
      %2929 = vrot.lane.b32.xlu0 %v629, 8
      %v2930 = vpop.permute.xlu0 %2929
      %2931 = vrot.lane.b32.xlu0 %v634, 8
      %v2932 = vpop.permute.xlu0 %2931
      %2933 = vrot.lane.b32.xlu0 %v1642, 8
      %v2934 = vpop.permute.xlu0 %2933
      %2935 = vrot.lane.b32.xlu0 %v1644, 8
      %v2936 = vpop.permute.xlu0 %2935
      %2937 = vrot.lane.b32.xlu0 %v1643, 8
      %v2938 = vpop.permute.xlu0 %2937
      %2939 = vrot.lane.b32.xlu0 %v2902, 8
      %v2940 = vpop.permute.xlu0 %2939
      %2941 = vrot.lane.b32.xlu0 %v2904, 8
      %v2942 = vpop.permute.xlu0 %2941
      %2943 = vrot.lane.b32.xlu0 %v2903, 8
      %v2944 = vpop.permute.xlu0 %2943
      %v2965 = vrot.slane %v289, 3
      %v2966 = vrot.slane %v290, 3
      %v2967 = vsel %vm732, %v2965, %v2966
      %v2968 = vrot.slane %v291, 3
      %v2969 = vsel %vm732, %v2966, %v2968
      %2970 = vrot.lane.b32.xlu0 %v746, 12
      %v2971 = vpop.permute.xlu0 %2970
      %2972 = vrot.lane.b32.xlu0 %v751, 12
      %v2973 = vpop.permute.xlu0 %2972
      %2974 = vrot.lane.b32.xlu0 %v756, 12
      %v2975 = vpop.permute.xlu0 %2974
      %2976 = vrot.lane.b32.xlu0 %v761, 12
      %v2977 = vpop.permute.xlu0 %2976
      %2978 = vrot.lane.b32.xlu0 %v766, 12
      %v2979 = vpop.permute.xlu0 %2978
      %2980 = vrot.lane.b32.xlu0 %v771, 12
      %v2981 = vpop.permute.xlu0 %2980
      %2982 = vrot.lane.b32.xlu0 %v776, 12
      %v2983 = vpop.permute.xlu0 %2982
      %2984 = vrot.lane.b32.xlu0 %v781, 12
      %v2985 = vpop.permute.xlu0 %2984
      %2986 = vrot.lane.b32.xlu0 %v786, 12
      %v2987 = vpop.permute.xlu0 %2986
      %2988 = vrot.lane.b32.xlu0 %v791, 12
      %v2989 = vpop.permute.xlu0 %2988
      %2990 = vrot.lane.b32.xlu0 %v796, 12
      %v2991 = vpop.permute.xlu0 %2990
      %2992 = vrot.lane.b32.xlu0 %v801, 12
      %v2993 = vpop.permute.xlu0 %2992
      %2994 = vrot.lane.b32.xlu0 %v806, 12
      %v2995 = vpop.permute.xlu0 %2994
      %2996 = vrot.lane.b32.xlu0 %v811, 12
      %v2997 = vpop.permute.xlu0 %2996
      %2998 = vrot.lane.b32.xlu0 %v1743, 12
      %v2999 = vpop.permute.xlu0 %2998
      %3000 = vrot.lane.b32.xlu0 %v1745, 12
      %v3001 = vpop.permute.xlu0 %3000
      %3002 = vrot.lane.b32.xlu0 %v1744, 12
      %v3003 = vpop.permute.xlu0 %3002
      %3004 = vrot.lane.b32.xlu0 %v2967, 12
      %v3005 = vpop.permute.xlu0 %3004
      %3006 = vrot.lane.b32.xlu0 %v2969, 12
      %v3007 = vpop.permute.xlu0 %3006
      %3008 = vrot.lane.b32.xlu0 %v2968, 12
      %v3009 = vpop.permute.xlu0 %3008
      %v3030 = vrot.slane %v289, 4
      %v3031 = vrot.slane %v290, 4
      %v3032 = vsel %vm909, %v3030, %v3031
      %v3033 = vrot.slane %v291, 4
      %v3034 = vsel %vm909, %v3031, %v3033
      %3035 = vrot.lane.b32.xlu0 %v923, 16
      %v3036 = vpop.permute.xlu0 %3035
      %3037 = vrot.lane.b32.xlu0 %v928, 16
      %v3038 = vpop.permute.xlu0 %3037
      %3039 = vrot.lane.b32.xlu0 %v933, 16
      %v3040 = vpop.permute.xlu0 %3039
      %3041 = vrot.lane.b32.xlu0 %v938, 16
      %v3042 = vpop.permute.xlu0 %3041
      %3043 = vrot.lane.b32.xlu0 %v943, 16
      %v3044 = vpop.permute.xlu0 %3043
      %3045 = vrot.lane.b32.xlu0 %v948, 16
      %v3046 = vpop.permute.xlu0 %3045
      %3047 = vrot.lane.b32.xlu0 %v953, 16
      %v3048 = vpop.permute.xlu0 %3047
      %3049 = vrot.lane.b32.xlu0 %v958, 16
      %v3050 = vpop.permute.xlu0 %3049
      %3051 = vrot.lane.b32.xlu0 %v963, 16
      %v3052 = vpop.permute.xlu0 %3051
      %3053 = vrot.lane.b32.xlu0 %v968, 16
      %v3054 = vpop.permute.xlu0 %3053
      %3055 = vrot.lane.b32.xlu0 %v973, 16
      %v3056 = vpop.permute.xlu0 %3055
      %3057 = vrot.lane.b32.xlu0 %v978, 16
      %v3058 = vpop.permute.xlu0 %3057
      %3059 = vrot.lane.b32.xlu0 %v983, 16
      %v3060 = vpop.permute.xlu0 %3059
      %3061 = vrot.lane.b32.xlu0 %v988, 16
      %v3062 = vpop.permute.xlu0 %3061
      %3063 = vrot.lane.b32.xlu0 %v1844, 16
      %v3064 = vpop.permute.xlu0 %3063
      %3065 = vrot.lane.b32.xlu0 %v1846, 16
      %v3066 = vpop.permute.xlu0 %3065
      %3067 = vrot.lane.b32.xlu0 %v1845, 16
      %v3068 = vpop.permute.xlu0 %3067
      %3069 = vrot.lane.b32.xlu0 %v3032, 16
      %v3070 = vpop.permute.xlu0 %3069
      %3071 = vrot.lane.b32.xlu0 %v3034, 16
      %v3072 = vpop.permute.xlu0 %3071
      %3073 = vrot.lane.b32.xlu0 %v3033, 16
      %v3074 = vpop.permute.xlu0 %3073
      %v3097 = vrot.slane %v289, 6
      %v3098 = vrot.slane %v290, 6
      %v3099 = vsel %vm1263, %v3097, %v3098
      %v3100 = vrot.slane %v292, 6
      %v3101 = vrot.slane %v293, 6
      %v3102 = vsel %vm1263, %v3100, %v3101
      %3103 = vrot.lane.b32.xlu0 %v1279, 20
      %v3104 = vpop.permute.xlu0 %3103
      %3105 = vrot.lane.b32.xlu0 %v1281, 20
      %v3106 = vpop.permute.xlu0 %3105
      %3107 = vrot.lane.b32.xlu0 %v1280, 20
      %v3108 = vpop.permute.xlu0 %3107
      %3109 = vrot.lane.b32.xlu0 %v1284, 20
      %v3110 = vpop.permute.xlu0 %3109
      %3111 = vrot.lane.b32.xlu0 %v1286, 20
      %v3112 = vpop.permute.xlu0 %3111
      %3113 = vrot.lane.b32.xlu0 %v1285, 20
      %v3114 = vpop.permute.xlu0 %3113
      %3115 = vrot.lane.b32.xlu0 %v1289, 20
      %v3116 = vpop.permute.xlu0 %3115
      %3117 = vrot.lane.b32.xlu0 %v1291, 20
      %v3118 = vpop.permute.xlu0 %3117
      %3119 = vrot.lane.b32.xlu0 %v1290, 20
      %v3120 = vpop.permute.xlu0 %3119
      %3121 = vrot.lane.b32.xlu0 %v1294, 20
      %v3122 = vpop.permute.xlu0 %3121
      %3123 = vrot.lane.b32.xlu0 %v1296, 20
      %v3124 = vpop.permute.xlu0 %3123
      %3125 = vrot.lane.b32.xlu0 %v1295, 20
      %v3126 = vpop.permute.xlu0 %3125
      %3127 = vrot.lane.b32.xlu0 %v1299, 20
      %v3128 = vpop.permute.xlu0 %3127
      %3129 = vrot.lane.b32.xlu0 %v1301, 20
      %v3130 = vpop.permute.xlu0 %3129
      %3131 = vrot.lane.b32.xlu0 %v1300, 20
      %v3132 = vpop.permute.xlu0 %3131
      %3133 = vrot.lane.b32.xlu0 %v1304, 20
      %v3134 = vpop.permute.xlu0 %3133
      %3135 = vrot.lane.b32.xlu0 %v1306, 20
      %v3136 = vpop.permute.xlu0 %3135
      %3137 = vrot.lane.b32.xlu0 %v1305, 20
      %v3138 = vpop.permute.xlu0 %3137
      %3139 = vrot.lane.b32.xlu0 %v1309, 20
      %v3140 = vpop.permute.xlu0 %3139
      %3141 = vrot.lane.b32.xlu0 %v1311, 20
      %v3142 = vpop.permute.xlu0 %3141
      %3143 = vrot.lane.b32.xlu0 %v1310, 20
      %v3144 = vpop.permute.xlu0 %3143
      %3145 = vrot.lane.b32.xlu0 %v1314, 20
      %v3146 = vpop.permute.xlu0 %3145
      %3147 = vrot.lane.b32.xlu0 %v1316, 20
      %v3148 = vpop.permute.xlu0 %3147
      %3149 = vrot.lane.b32.xlu0 %v1315, 20
      %v3150 = vpop.permute.xlu0 %3149
      %3151 = vrot.lane.b32.xlu0 %v1319, 20
      %v3152 = vpop.permute.xlu0 %3151
      %3153 = vrot.lane.b32.xlu0 %v1321, 20
      %v3154 = vpop.permute.xlu0 %3153
      %3155 = vrot.lane.b32.xlu0 %v1320, 20
      %v3156 = vpop.permute.xlu0 %3155
      %3157 = vrot.lane.b32.xlu0 %v1324, 20
      %v3158 = vpop.permute.xlu0 %3157
      %3159 = vrot.lane.b32.xlu0 %v1326, 20
      %v3160 = vpop.permute.xlu0 %3159
      %3161 = vrot.lane.b32.xlu0 %v1325, 20
      %v3162 = vpop.permute.xlu0 %3161
      %3163 = vrot.lane.b32.xlu0 %v1329, 20
      %v3164 = vpop.permute.xlu0 %3163
      %3165 = vrot.lane.b32.xlu0 %v1331, 20
      %v3166 = vpop.permute.xlu0 %3165
      %3167 = vrot.lane.b32.xlu0 %v1330, 20
      %v3168 = vpop.permute.xlu0 %3167
      %3169 = vrot.lane.b32.xlu0 %v1334, 20
      %v3170 = vpop.permute.xlu0 %3169
      %3171 = vrot.lane.b32.xlu0 %v1336, 20
      %v3172 = vpop.permute.xlu0 %3171
      %3173 = vrot.lane.b32.xlu0 %v1335, 20
      %v3174 = vpop.permute.xlu0 %3173
      %3175 = vrot.lane.b32.xlu0 %v1339, 20
      %v3176 = vpop.permute.xlu0 %3175
      %3177 = vrot.lane.b32.xlu0 %v1341, 20
      %v3178 = vpop.permute.xlu0 %3177
      %3179 = vrot.lane.b32.xlu0 %v1340, 20
      %v3180 = vpop.permute.xlu0 %3179
      %3181 = vrot.lane.b32.xlu0 %v2044, 20
      %v3182 = vpop.permute.xlu0 %3181
      %3183 = vrot.lane.b32.xlu0 %v2046, 20
      %v3184 = vpop.permute.xlu0 %3183
      %3185 = vrot.lane.b32.xlu0 %v2045, 20
      %v3186 = vpop.permute.xlu0 %3185
      %3187 = vrot.lane.b32.xlu0 %v3097, 20
      %v3188 = vpop.permute.xlu0 %3187
      %3189 = vrot.lane.b32.xlu0 %v3099, 20
      %v3190 = vpop.permute.xlu0 %3189
      %3191 = vrot.lane.b32.xlu0 %v3098, 20
      %v3192 = vpop.permute.xlu0 %3191
      %3193 = vrot.lane.b32.xlu0 %v3100, 20
      %v3194 = vpop.permute.xlu0 %3193
      %3195 = vrot.lane.b32.xlu0 %v3102, 20
      %v3196 = vpop.permute.xlu0 %3195
      %3197 = vrot.lane.b32.xlu0 %v3101, 20
      %v3198 = vpop.permute.xlu0 %3197
      %vm3248 = vcmask 1040384
      %v3249 = vrot.slane %v247, 7
      %v3250 = vrot.slane %v248, 7
      %v3251 = vsel %vm3248, %v3249, %v3250
      %v3252 = vrot.slane %v249, 7
      %v3253 = vsel %vm3248, %v3250, %v3252
      %v3254 = vrot.slane %v250, 7
      %v3255 = vrot.slane %v251, 7
      %v3256 = vsel %vm3248, %v3254, %v3255
      %v3257 = vrot.slane %v252, 7
      %v3258 = vsel %vm3248, %v3255, %v3257
      %v3259 = vrot.slane %v253, 7
      %v3260 = vrot.slane %v254, 7
      %v3261 = vsel %vm3248, %v3259, %v3260
      %v3262 = vrot.slane %v255, 7
      %v3263 = vsel %vm3248, %v3260, %v3262
      %v3264 = vrot.slane %v256, 7
      %v3265 = vrot.slane %v257, 7
      %v3266 = vsel %vm3248, %v3264, %v3265
      %v3267 = vrot.slane %v258, 7
      %v3268 = vsel %vm3248, %v3265, %v3267
      %v3269 = vrot.slane %v259, 7
      %v3270 = vrot.slane %v260, 7
      %v3271 = vsel %vm3248, %v3269, %v3270
      %v3272 = vrot.slane %v261, 7
      %v3273 = vsel %vm3248, %v3270, %v3272
      %v3274 = vrot.slane %v262, 7
      %v3275 = vrot.slane %v263, 7
      %v3276 = vsel %vm3248, %v3274, %v3275
      %v3277 = vrot.slane %v264, 7
      %v3278 = vsel %vm3248, %v3275, %v3277
      %v3279 = vrot.slane %v265, 7
      %v3280 = vrot.slane %v266, 7
      %v3281 = vsel %vm3248, %v3279, %v3280
      %v3282 = vrot.slane %v267, 7
      %v3283 = vsel %vm3248, %v3280, %v3282
      %v3284 = vrot.slane %v268, 7
      %v3285 = vrot.slane %v269, 7
      %v3286 = vsel %vm3248, %v3284, %v3285
      %v3287 = vrot.slane %v270, 7
      %v3288 = vsel %vm3248, %v3285, %v3287
      %v3289 = vrot.slane %v271, 7
      %v3290 = vrot.slane %v272, 7
      %v3291 = vsel %vm3248, %v3289, %v3290
      %v3292 = vrot.slane %v273, 7
      %v3293 = vsel %vm3248, %v3290, %v3292
      %v3294 = vrot.slane %v274, 7
      %v3295 = vrot.slane %v275, 7
      %v3296 = vsel %vm3248, %v3294, %v3295
      %v3297 = vrot.slane %v276, 7
      %v3298 = vsel %vm3248, %v3295, %v3297
      %v3299 = vrot.slane %v277, 7
      %v3300 = vrot.slane %v278, 7
      %v3301 = vsel %vm3248, %v3299, %v3300
      %v3302 = vrot.slane %v279, 7
      %v3303 = vsel %vm3248, %v3300, %v3302
      %v3304 = vrot.slane %v280, 7
      %v3305 = vrot.slane %v281, 7
      %v3306 = vsel %vm3248, %v3304, %v3305
      %v3307 = vrot.slane %v282, 7
      %v3308 = vsel %vm3248, %v3305, %v3307
      %v3309 = vrot.slane %v283, 7
      %v3310 = vrot.slane %v284, 7
      %v3311 = vsel %vm3248, %v3309, %v3310
      %v3312 = vrot.slane %v285, 7
      %v3313 = vsel %vm3248, %v3310, %v3312
      %v3314 = vrot.slane %v286, 7
      %v3315 = vrot.slane %v287, 7
      %v3316 = vsel %vm3248, %v3314, %v3315
      %v3317 = vrot.slane %v288, 7
      %v3318 = vsel %vm3248, %v3315, %v3317
      %v3319 = vrot.slane %v289, 7
      %v3320 = vrot.slane %v290, 7
      %v3321 = vsel %vm3248, %v3319, %v3320
      %v3322 = vrot.slane %v291, 7
      %v3323 = vsel %vm3248, %v3320, %v3322
      %v3324 = vrot.slane %v292, 7
      %v3325 = vrot.slane %v293, 7
      %v3326 = vsel %vm3248, %v3324, %v3325
      %v3327 = vrot.slane %v294, 7
      %v3328 = vsel %vm3248, %v3325, %v3327
      %3329 = vrot.lane.b32.xlu0 %v3249, 24
      %v3330 = vpop.permute.xlu0 %3329
      %3331 = vrot.lane.b32.xlu0 %v3251, 24
      %v3332 = vpop.permute.xlu0 %3331
      %3333 = vrot.lane.b32.xlu0 %v3253, 24
      %v3334 = vpop.permute.xlu0 %3333
      %3335 = vrot.lane.b32.xlu0 %v3254, 24
      %v3336 = vpop.permute.xlu0 %3335
      %3337 = vrot.lane.b32.xlu0 %v3256, 24
      %v3338 = vpop.permute.xlu0 %3337
      %3339 = vrot.lane.b32.xlu0 %v3258, 24
      %v3340 = vpop.permute.xlu0 %3339
      %3341 = vrot.lane.b32.xlu0 %v3259, 24
      %v3342 = vpop.permute.xlu0 %3341
      %3343 = vrot.lane.b32.xlu0 %v3261, 24
      %v3344 = vpop.permute.xlu0 %3343
      %3345 = vrot.lane.b32.xlu0 %v3263, 24
      %v3346 = vpop.permute.xlu0 %3345
      %3347 = vrot.lane.b32.xlu0 %v3264, 24
      %v3348 = vpop.permute.xlu0 %3347
      %3349 = vrot.lane.b32.xlu0 %v3266, 24
      %v3350 = vpop.permute.xlu0 %3349
      %3351 = vrot.lane.b32.xlu0 %v3268, 24
      %v3352 = vpop.permute.xlu0 %3351
      %3353 = vrot.lane.b32.xlu0 %v3269, 24
      %v3354 = vpop.permute.xlu0 %3353
      %3355 = vrot.lane.b32.xlu0 %v3271, 24
      %v3356 = vpop.permute.xlu0 %3355
      %3357 = vrot.lane.b32.xlu0 %v3273, 24
      %v3358 = vpop.permute.xlu0 %3357
      %3359 = vrot.lane.b32.xlu0 %v3274, 24
      %v3360 = vpop.permute.xlu0 %3359
      %3361 = vrot.lane.b32.xlu0 %v3276, 24
      %v3362 = vpop.permute.xlu0 %3361
      %3363 = vrot.lane.b32.xlu0 %v3278, 24
      %v3364 = vpop.permute.xlu0 %3363
      %3365 = vrot.lane.b32.xlu0 %v3279, 24
      %v3366 = vpop.permute.xlu0 %3365
      %3367 = vrot.lane.b32.xlu0 %v3281, 24
      %v3368 = vpop.permute.xlu0 %3367
      %3369 = vrot.lane.b32.xlu0 %v3283, 24
      %v3370 = vpop.permute.xlu0 %3369
      %3371 = vrot.lane.b32.xlu0 %v3284, 24
      %v3372 = vpop.permute.xlu0 %3371
      %3373 = vrot.lane.b32.xlu0 %v3286, 24
      %v3374 = vpop.permute.xlu0 %3373
      %3375 = vrot.lane.b32.xlu0 %v3288, 24
      %v3376 = vpop.permute.xlu0 %3375
      %3377 = vrot.lane.b32.xlu0 %v3289, 24
      %v3378 = vpop.permute.xlu0 %3377
      %3379 = vrot.lane.b32.xlu0 %v3291, 24
      %v3380 = vpop.permute.xlu0 %3379
      %3381 = vrot.lane.b32.xlu0 %v3293, 24
      %v3382 = vpop.permute.xlu0 %3381
      %3383 = vrot.lane.b32.xlu0 %v3294, 24
      %v3384 = vpop.permute.xlu0 %3383
      %3385 = vrot.lane.b32.xlu0 %v3296, 24
      %v3386 = vpop.permute.xlu0 %3385
      %3387 = vrot.lane.b32.xlu0 %v3298, 24
      %v3388 = vpop.permute.xlu0 %3387
      %3389 = vrot.lane.b32.xlu0 %v3299, 24
      %v3390 = vpop.permute.xlu0 %3389
      %3391 = vrot.lane.b32.xlu0 %v3301, 24
      %v3392 = vpop.permute.xlu0 %3391
      %3393 = vrot.lane.b32.xlu0 %v3303, 24
      %v3394 = vpop.permute.xlu0 %3393
      %3395 = vrot.lane.b32.xlu0 %v3304, 24
      %v3396 = vpop.permute.xlu0 %3395
      %3397 = vrot.lane.b32.xlu0 %v3306, 24
      %v3398 = vpop.permute.xlu0 %3397
      %3399 = vrot.lane.b32.xlu0 %v3308, 24
      %v3400 = vpop.permute.xlu0 %3399
      %3401 = vrot.lane.b32.xlu0 %v3309, 24
      %v3402 = vpop.permute.xlu0 %3401
      %3403 = vrot.lane.b32.xlu0 %v3311, 24
      %v3404 = vpop.permute.xlu0 %3403
      %3405 = vrot.lane.b32.xlu0 %v3313, 24
      %v3406 = vpop.permute.xlu0 %3405
      %3407 = vrot.lane.b32.xlu0 %v3314, 24
      %v3408 = vpop.permute.xlu0 %3407
      %3409 = vrot.lane.b32.xlu0 %v3316, 24
      %v3410 = vpop.permute.xlu0 %3409
      %3411 = vrot.lane.b32.xlu0 %v3318, 24
      %v3412 = vpop.permute.xlu0 %3411
      %3413 = vrot.lane.b32.xlu0 %v3319, 24
      %v3414 = vpop.permute.xlu0 %3413
      %3415 = vrot.lane.b32.xlu0 %v3321, 24
      %v3416 = vpop.permute.xlu0 %3415
      %3417 = vrot.lane.b32.xlu0 %v3323, 24
      %v3418 = vpop.permute.xlu0 %3417
      %3419 = vrot.lane.b32.xlu0 %v3324, 24
      %v3420 = vpop.permute.xlu0 %3419
      %3421 = vrot.lane.b32.xlu0 %v3326, 24
      %v3422 = vpop.permute.xlu0 %3421
      %3423 = vrot.lane.b32.xlu0 %v3328, 24
      %v3424 = vpop.permute.xlu0 %3423
      %3473 = vrot.lane.b32.xlu0 %v249, 28
      %v3474 = vpop.permute.xlu0 %3473
      %3475 = vrot.lane.b32.xlu0 %v252, 28
      %v3476 = vpop.permute.xlu0 %3475
      %3477 = vrot.lane.b32.xlu0 %v255, 28
      %v3478 = vpop.permute.xlu0 %3477
      %3479 = vrot.lane.b32.xlu0 %v258, 28
      %v3480 = vpop.permute.xlu0 %3479
      %3481 = vrot.lane.b32.xlu0 %v261, 28
      %v3482 = vpop.permute.xlu0 %3481
      %3483 = vrot.lane.b32.xlu0 %v264, 28
      %v3484 = vpop.permute.xlu0 %3483
      %3485 = vrot.lane.b32.xlu0 %v267, 28
      %v3486 = vpop.permute.xlu0 %3485
      %3487 = vrot.lane.b32.xlu0 %v270, 28
      %v3488 = vpop.permute.xlu0 %3487
      %3489 = vrot.lane.b32.xlu0 %v273, 28
      %v3490 = vpop.permute.xlu0 %3489
      %3491 = vrot.lane.b32.xlu0 %v276, 28
      %v3492 = vpop.permute.xlu0 %3491
      %3493 = vrot.lane.b32.xlu0 %v279, 28
      %v3494 = vpop.permute.xlu0 %3493
      %3495 = vrot.lane.b32.xlu0 %v282, 28
      %v3496 = vpop.permute.xlu0 %3495
      %3497 = vrot.lane.b32.xlu0 %v285, 28
      %v3498 = vpop.permute.xlu0 %3497
      %3499 = vrot.lane.b32.xlu0 %v288, 28
      %v3500 = vpop.permute.xlu0 %3499
      %3501 = vrot.lane.b32.xlu0 %v289, 28
      %v3502 = vpop.permute.xlu0 %3501
      %3503 = vrot.lane.b32.xlu0 %v290, 28
      %v3504 = vpop.permute.xlu0 %3503
      %3505 = vrot.lane.b32.xlu0 %v291, 28
      %v3506 = vpop.permute.xlu0 %3505
      %3507 = vrot.lane.b32.xlu0 %v292, 28
      %v3508 = vpop.permute.xlu0 %3507
      %3509 = vrot.lane.b32.xlu0 %v293, 28
      %v3510 = vpop.permute.xlu0 %3509
      %3511 = vrot.lane.b32.xlu0 %v294, 28
      %v3512 = vpop.permute.xlu0 %3511
      %v3533 = vrot.slane %v292, 1
      %v3534 = vrot.slane %v293, 1
      %v3535 = vsel %vm378, %v3533, %v3534
      %v3536 = vrot.slane %v294, 1
      %v3537 = vsel %vm378, %v3534, %v3536
      %3538 = vrot.lane.b32.xlu0 %v397, 32
      %v3539 = vpop.permute.xlu0 %3538
      %3540 = vrot.lane.b32.xlu0 %v402, 32
      %v3541 = vpop.permute.xlu0 %3540
      %3542 = vrot.lane.b32.xlu0 %v407, 32
      %v3543 = vpop.permute.xlu0 %3542
      %3544 = vrot.lane.b32.xlu0 %v412, 32
      %v3545 = vpop.permute.xlu0 %3544
      %3546 = vrot.lane.b32.xlu0 %v417, 32
      %v3547 = vpop.permute.xlu0 %3546
      %3548 = vrot.lane.b32.xlu0 %v422, 32
      %v3549 = vpop.permute.xlu0 %3548
      %3550 = vrot.lane.b32.xlu0 %v427, 32
      %v3551 = vpop.permute.xlu0 %3550
      %3552 = vrot.lane.b32.xlu0 %v432, 32
      %v3553 = vpop.permute.xlu0 %3552
      %3554 = vrot.lane.b32.xlu0 %v437, 32
      %v3555 = vpop.permute.xlu0 %3554
      %3556 = vrot.lane.b32.xlu0 %v442, 32
      %v3557 = vpop.permute.xlu0 %3556
      %3558 = vrot.lane.b32.xlu0 %v447, 32
      %v3559 = vpop.permute.xlu0 %3558
      %3560 = vrot.lane.b32.xlu0 %v452, 32
      %v3561 = vpop.permute.xlu0 %3560
      %3562 = vrot.lane.b32.xlu0 %v457, 32
      %v3563 = vpop.permute.xlu0 %3562
      %3564 = vrot.lane.b32.xlu0 %v1542, 32
      %v3565 = vpop.permute.xlu0 %3564
      %3566 = vrot.lane.b32.xlu0 %v2246, 32
      %v3567 = vpop.permute.xlu0 %3566
      %3568 = vrot.lane.b32.xlu0 %v2248, 32
      %v3569 = vpop.permute.xlu0 %3568
      %3570 = vrot.lane.b32.xlu0 %v2247, 32
      %v3571 = vpop.permute.xlu0 %3570
      %3572 = vrot.lane.b32.xlu0 %v3535, 32
      %v3573 = vpop.permute.xlu0 %3572
      %3574 = vrot.lane.b32.xlu0 %v3537, 32
      %v3575 = vpop.permute.xlu0 %3574
      %3576 = vrot.lane.b32.xlu0 %v3536, 32
      %v3577 = vpop.permute.xlu0 %3576
      %v3598 = vrot.slane %v292, 2
      %v3599 = vrot.slane %v293, 2
      %v3600 = vsel %vm555, %v3598, %v3599
      %v3601 = vrot.slane %v294, 2
      %v3602 = vsel %vm555, %v3599, %v3601
      %3603 = vrot.lane.b32.xlu0 %v574, 36
      %v3604 = vpop.permute.xlu0 %3603
      %3605 = vrot.lane.b32.xlu0 %v579, 36
      %v3606 = vpop.permute.xlu0 %3605
      %3607 = vrot.lane.b32.xlu0 %v584, 36
      %v3608 = vpop.permute.xlu0 %3607
      %3609 = vrot.lane.b32.xlu0 %v589, 36
      %v3610 = vpop.permute.xlu0 %3609
      %3611 = vrot.lane.b32.xlu0 %v594, 36
      %v3612 = vpop.permute.xlu0 %3611
      %3613 = vrot.lane.b32.xlu0 %v599, 36
      %v3614 = vpop.permute.xlu0 %3613
      %3615 = vrot.lane.b32.xlu0 %v604, 36
      %v3616 = vpop.permute.xlu0 %3615
      %3617 = vrot.lane.b32.xlu0 %v609, 36
      %v3618 = vpop.permute.xlu0 %3617
      %3619 = vrot.lane.b32.xlu0 %v614, 36
      %v3620 = vpop.permute.xlu0 %3619
      %3621 = vrot.lane.b32.xlu0 %v619, 36
      %v3622 = vpop.permute.xlu0 %3621
      %3623 = vrot.lane.b32.xlu0 %v624, 36
      %v3624 = vpop.permute.xlu0 %3623
      %3625 = vrot.lane.b32.xlu0 %v629, 36
      %v3626 = vpop.permute.xlu0 %3625
      %3627 = vrot.lane.b32.xlu0 %v634, 36
      %v3628 = vpop.permute.xlu0 %3627
      %3629 = vrot.lane.b32.xlu0 %v1643, 36
      %v3630 = vpop.permute.xlu0 %3629
      %3631 = vrot.lane.b32.xlu0 %v2902, 36
      %v3632 = vpop.permute.xlu0 %3631
      %3633 = vrot.lane.b32.xlu0 %v2904, 36
      %v3634 = vpop.permute.xlu0 %3633
      %3635 = vrot.lane.b32.xlu0 %v2903, 36
      %v3636 = vpop.permute.xlu0 %3635
      %3637 = vrot.lane.b32.xlu0 %v3600, 36
      %v3638 = vpop.permute.xlu0 %3637
      %3639 = vrot.lane.b32.xlu0 %v3602, 36
      %v3640 = vpop.permute.xlu0 %3639
      %3641 = vrot.lane.b32.xlu0 %v3601, 36
      %v3642 = vpop.permute.xlu0 %3641
      %v3663 = vrot.slane %v292, 3
      %v3664 = vrot.slane %v293, 3
      %v3665 = vsel %vm732, %v3663, %v3664
      %v3666 = vrot.slane %v294, 3
      %v3667 = vsel %vm732, %v3664, %v3666
      %3668 = vrot.lane.b32.xlu0 %v751, 40
      %v3669 = vpop.permute.xlu0 %3668
      %3670 = vrot.lane.b32.xlu0 %v756, 40
      %v3671 = vpop.permute.xlu0 %3670
      %3672 = vrot.lane.b32.xlu0 %v761, 40
      %v3673 = vpop.permute.xlu0 %3672
      %3674 = vrot.lane.b32.xlu0 %v766, 40
      %v3675 = vpop.permute.xlu0 %3674
      %3676 = vrot.lane.b32.xlu0 %v771, 40
      %v3677 = vpop.permute.xlu0 %3676
      %3678 = vrot.lane.b32.xlu0 %v776, 40
      %v3679 = vpop.permute.xlu0 %3678
      %3680 = vrot.lane.b32.xlu0 %v781, 40
      %v3681 = vpop.permute.xlu0 %3680
      %3682 = vrot.lane.b32.xlu0 %v786, 40
      %v3683 = vpop.permute.xlu0 %3682
      %3684 = vrot.lane.b32.xlu0 %v791, 40
      %v3685 = vpop.permute.xlu0 %3684
      %3686 = vrot.lane.b32.xlu0 %v796, 40
      %v3687 = vpop.permute.xlu0 %3686
      %3688 = vrot.lane.b32.xlu0 %v801, 40
      %v3689 = vpop.permute.xlu0 %3688
      %3690 = vrot.lane.b32.xlu0 %v806, 40
      %v3691 = vpop.permute.xlu0 %3690
      %3692 = vrot.lane.b32.xlu0 %v811, 40
      %v3693 = vpop.permute.xlu0 %3692
      %3694 = vrot.lane.b32.xlu0 %v1744, 40
      %v3695 = vpop.permute.xlu0 %3694
      %3696 = vrot.lane.b32.xlu0 %v2967, 40
      %v3697 = vpop.permute.xlu0 %3696
      %3698 = vrot.lane.b32.xlu0 %v2969, 40
      %v3699 = vpop.permute.xlu0 %3698
      %3700 = vrot.lane.b32.xlu0 %v2968, 40
      %v3701 = vpop.permute.xlu0 %3700
      %3702 = vrot.lane.b32.xlu0 %v3665, 40
      %v3703 = vpop.permute.xlu0 %3702
      %3704 = vrot.lane.b32.xlu0 %v3667, 40
      %v3705 = vpop.permute.xlu0 %3704
      %3706 = vrot.lane.b32.xlu0 %v3666, 40
      %v3707 = vpop.permute.xlu0 %3706
      %v3728 = vrot.slane %v292, 4
      %v3729 = vrot.slane %v293, 4
      %v3730 = vsel %vm909, %v3728, %v3729
      %v3731 = vrot.slane %v294, 4
      %v3732 = vsel %vm909, %v3729, %v3731
      %3733 = vrot.lane.b32.xlu0 %v928, 44
      %v3734 = vpop.permute.xlu0 %3733
      %3735 = vrot.lane.b32.xlu0 %v933, 44
      %v3736 = vpop.permute.xlu0 %3735
      %3737 = vrot.lane.b32.xlu0 %v938, 44
      %v3738 = vpop.permute.xlu0 %3737
      %3739 = vrot.lane.b32.xlu0 %v943, 44
      %v3740 = vpop.permute.xlu0 %3739
      %3741 = vrot.lane.b32.xlu0 %v948, 44
      %v3742 = vpop.permute.xlu0 %3741
      %3743 = vrot.lane.b32.xlu0 %v953, 44
      %v3744 = vpop.permute.xlu0 %3743
      %3745 = vrot.lane.b32.xlu0 %v958, 44
      %v3746 = vpop.permute.xlu0 %3745
      %3747 = vrot.lane.b32.xlu0 %v963, 44
      %v3748 = vpop.permute.xlu0 %3747
      %3749 = vrot.lane.b32.xlu0 %v968, 44
      %v3750 = vpop.permute.xlu0 %3749
      %3751 = vrot.lane.b32.xlu0 %v973, 44
      %v3752 = vpop.permute.xlu0 %3751
      %3753 = vrot.lane.b32.xlu0 %v978, 44
      %v3754 = vpop.permute.xlu0 %3753
      %3755 = vrot.lane.b32.xlu0 %v983, 44
      %v3756 = vpop.permute.xlu0 %3755
      %3757 = vrot.lane.b32.xlu0 %v988, 44
      %v3758 = vpop.permute.xlu0 %3757
      %3759 = vrot.lane.b32.xlu0 %v1845, 44
      %v3760 = vpop.permute.xlu0 %3759
      %3761 = vrot.lane.b32.xlu0 %v3032, 44
      %v3762 = vpop.permute.xlu0 %3761
      %3763 = vrot.lane.b32.xlu0 %v3034, 44
      %v3764 = vpop.permute.xlu0 %3763
      %3765 = vrot.lane.b32.xlu0 %v3033, 44
      %v3766 = vpop.permute.xlu0 %3765
      %3767 = vrot.lane.b32.xlu0 %v3730, 44
      %v3768 = vpop.permute.xlu0 %3767
      %3769 = vrot.lane.b32.xlu0 %v3732, 44
      %v3770 = vpop.permute.xlu0 %3769
      %3771 = vrot.lane.b32.xlu0 %v3731, 44
      %v3772 = vpop.permute.xlu0 %3771
      %v3795 = vrot.slane %v295, 6
      %v3796 = vrot.slane %v296, 6
      %v3797 = vsel %vm1263, %v3795, %v3796
      %3798 = vrot.lane.b32.xlu0 %v1284, 48
      %v3799 = vpop.permute.xlu0 %3798
      %3800 = vrot.lane.b32.xlu0 %v1286, 48
      %v3801 = vpop.permute.xlu0 %3800
      %3802 = vrot.lane.b32.xlu0 %v1285, 48
      %v3803 = vpop.permute.xlu0 %3802
      %3804 = vrot.lane.b32.xlu0 %v1289, 48
      %v3805 = vpop.permute.xlu0 %3804
      %3806 = vrot.lane.b32.xlu0 %v1291, 48
      %v3807 = vpop.permute.xlu0 %3806
      %3808 = vrot.lane.b32.xlu0 %v1290, 48
      %v3809 = vpop.permute.xlu0 %3808
      %3810 = vrot.lane.b32.xlu0 %v1294, 48
      %v3811 = vpop.permute.xlu0 %3810
      %3812 = vrot.lane.b32.xlu0 %v1296, 48
      %v3813 = vpop.permute.xlu0 %3812
      %3814 = vrot.lane.b32.xlu0 %v1295, 48
      %v3815 = vpop.permute.xlu0 %3814
      %3816 = vrot.lane.b32.xlu0 %v1299, 48
      %v3817 = vpop.permute.xlu0 %3816
      %3818 = vrot.lane.b32.xlu0 %v1301, 48
      %v3819 = vpop.permute.xlu0 %3818
      %3820 = vrot.lane.b32.xlu0 %v1300, 48
      %v3821 = vpop.permute.xlu0 %3820
      %3822 = vrot.lane.b32.xlu0 %v1304, 48
      %v3823 = vpop.permute.xlu0 %3822
      %3824 = vrot.lane.b32.xlu0 %v1306, 48
      %v3825 = vpop.permute.xlu0 %3824
      %3826 = vrot.lane.b32.xlu0 %v1305, 48
      %v3827 = vpop.permute.xlu0 %3826
      %3828 = vrot.lane.b32.xlu0 %v1309, 48
      %v3829 = vpop.permute.xlu0 %3828
      %3830 = vrot.lane.b32.xlu0 %v1311, 48
      %v3831 = vpop.permute.xlu0 %3830
      %3832 = vrot.lane.b32.xlu0 %v1310, 48
      %v3833 = vpop.permute.xlu0 %3832
      %3834 = vrot.lane.b32.xlu0 %v1314, 48
      %v3835 = vpop.permute.xlu0 %3834
      %3836 = vrot.lane.b32.xlu0 %v1316, 48
      %v3837 = vpop.permute.xlu0 %3836
      %3838 = vrot.lane.b32.xlu0 %v1315, 48
      %v3839 = vpop.permute.xlu0 %3838
      %3840 = vrot.lane.b32.xlu0 %v1319, 48
      %v3841 = vpop.permute.xlu0 %3840
      %3842 = vrot.lane.b32.xlu0 %v1321, 48
      %v3843 = vpop.permute.xlu0 %3842
      %3844 = vrot.lane.b32.xlu0 %v1320, 48
      %v3845 = vpop.permute.xlu0 %3844
      %3846 = vrot.lane.b32.xlu0 %v1324, 48
      %v3847 = vpop.permute.xlu0 %3846
      %3848 = vrot.lane.b32.xlu0 %v1326, 48
      %v3849 = vpop.permute.xlu0 %3848
      %3850 = vrot.lane.b32.xlu0 %v1325, 48
      %v3851 = vpop.permute.xlu0 %3850
      %3852 = vrot.lane.b32.xlu0 %v1329, 48
      %v3853 = vpop.permute.xlu0 %3852
      %3854 = vrot.lane.b32.xlu0 %v1331, 48
      %v3855 = vpop.permute.xlu0 %3854
      %3856 = vrot.lane.b32.xlu0 %v1330, 48
      %v3857 = vpop.permute.xlu0 %3856
      %3858 = vrot.lane.b32.xlu0 %v1334, 48
      %v3859 = vpop.permute.xlu0 %3858
      %3860 = vrot.lane.b32.xlu0 %v1336, 48
      %v3861 = vpop.permute.xlu0 %3860
      %3862 = vrot.lane.b32.xlu0 %v1335, 48
      %v3863 = vpop.permute.xlu0 %3862
      %3864 = vrot.lane.b32.xlu0 %v1339, 48
      %v3865 = vpop.permute.xlu0 %3864
      %3866 = vrot.lane.b32.xlu0 %v1341, 48
      %v3867 = vpop.permute.xlu0 %3866
      %3868 = vrot.lane.b32.xlu0 %v1340, 48
      %v3869 = vpop.permute.xlu0 %3868
      %3870 = vrot.lane.b32.xlu0 %v2044, 48
      %v3871 = vpop.permute.xlu0 %3870
      %3872 = vrot.lane.b32.xlu0 %v2046, 48
      %v3873 = vpop.permute.xlu0 %3872
      %3874 = vrot.lane.b32.xlu0 %v2045, 48
      %v3875 = vpop.permute.xlu0 %3874
      %3876 = vrot.lane.b32.xlu0 %v3097, 48
      %v3877 = vpop.permute.xlu0 %3876
      %3878 = vrot.lane.b32.xlu0 %v3099, 48
      %v3879 = vpop.permute.xlu0 %3878
      %3880 = vrot.lane.b32.xlu0 %v3098, 48
      %v3881 = vpop.permute.xlu0 %3880
      %3882 = vrot.lane.b32.xlu0 %v3100, 48
      %v3883 = vpop.permute.xlu0 %3882
      %3884 = vrot.lane.b32.xlu0 %v3102, 48
      %v3885 = vpop.permute.xlu0 %3884
      %3886 = vrot.lane.b32.xlu0 %v3101, 48
      %v3887 = vpop.permute.xlu0 %3886
      %3888 = vrot.lane.b32.xlu0 %v3795, 48
      %v3889 = vpop.permute.xlu0 %3888
      %3890 = vrot.lane.b32.xlu0 %v3797, 48
      %v3891 = vpop.permute.xlu0 %3890
      %3892 = vrot.lane.b32.xlu0 %v3796, 48
      %v3893 = vpop.permute.xlu0 %3892
      %v3943 = vrot.slane %v295, 7
      %v3944 = vrot.slane %v296, 7
      %v3945 = vsel %vm3248, %v3943, %v3944
      %v3946 = vrot.slane %v297, 7
      %v3947 = vsel %vm3248, %v3944, %v3946
      %3948 = vrot.lane.b32.xlu0 %v3254, 52
      %v3949 = vpop.permute.xlu0 %3948
      %3950 = vrot.lane.b32.xlu0 %v3256, 52
      %v3951 = vpop.permute.xlu0 %3950
      %3952 = vrot.lane.b32.xlu0 %v3258, 52
      %v3953 = vpop.permute.xlu0 %3952
      %3954 = vrot.lane.b32.xlu0 %v3259, 52
      %v3955 = vpop.permute.xlu0 %3954
      %3956 = vrot.lane.b32.xlu0 %v3261, 52
      %v3957 = vpop.permute.xlu0 %3956
      %3958 = vrot.lane.b32.xlu0 %v3263, 52
      %v3959 = vpop.permute.xlu0 %3958
      %3960 = vrot.lane.b32.xlu0 %v3264, 52
      %v3961 = vpop.permute.xlu0 %3960
      %3962 = vrot.lane.b32.xlu0 %v3266, 52
      %v3963 = vpop.permute.xlu0 %3962
      %3964 = vrot.lane.b32.xlu0 %v3268, 52
      %v3965 = vpop.permute.xlu0 %3964
      %3966 = vrot.lane.b32.xlu0 %v3269, 52
      %v3967 = vpop.permute.xlu0 %3966
      %3968 = vrot.lane.b32.xlu0 %v3271, 52
      %v3969 = vpop.permute.xlu0 %3968
      %3970 = vrot.lane.b32.xlu0 %v3273, 52
      %v3971 = vpop.permute.xlu0 %3970
      %3972 = vrot.lane.b32.xlu0 %v3274, 52
      %v3973 = vpop.permute.xlu0 %3972
      %3974 = vrot.lane.b32.xlu0 %v3276, 52
      %v3975 = vpop.permute.xlu0 %3974
      %3976 = vrot.lane.b32.xlu0 %v3278, 52
      %v3977 = vpop.permute.xlu0 %3976
      %3978 = vrot.lane.b32.xlu0 %v3279, 52
      %v3979 = vpop.permute.xlu0 %3978
      %3980 = vrot.lane.b32.xlu0 %v3281, 52
      %v3981 = vpop.permute.xlu0 %3980
      %3982 = vrot.lane.b32.xlu0 %v3283, 52
      %v3983 = vpop.permute.xlu0 %3982
      %3984 = vrot.lane.b32.xlu0 %v3284, 52
      %v3985 = vpop.permute.xlu0 %3984
      %3986 = vrot.lane.b32.xlu0 %v3286, 52
      %v3987 = vpop.permute.xlu0 %3986
      %3988 = vrot.lane.b32.xlu0 %v3288, 52
      %v3989 = vpop.permute.xlu0 %3988
      %3990 = vrot.lane.b32.xlu0 %v3289, 52
      %v3991 = vpop.permute.xlu0 %3990
      %3992 = vrot.lane.b32.xlu0 %v3291, 52
      %v3993 = vpop.permute.xlu0 %3992
      %3994 = vrot.lane.b32.xlu0 %v3293, 52
      %v3995 = vpop.permute.xlu0 %3994
      %3996 = vrot.lane.b32.xlu0 %v3294, 52
      %v3997 = vpop.permute.xlu0 %3996
      %3998 = vrot.lane.b32.xlu0 %v3296, 52
      %v3999 = vpop.permute.xlu0 %3998
      %4000 = vrot.lane.b32.xlu0 %v3298, 52
      %v4001 = vpop.permute.xlu0 %4000
      %4002 = vrot.lane.b32.xlu0 %v3299, 52
      %v4003 = vpop.permute.xlu0 %4002
      %4004 = vrot.lane.b32.xlu0 %v3301, 52
      %v4005 = vpop.permute.xlu0 %4004
      %4006 = vrot.lane.b32.xlu0 %v3303, 52
      %v4007 = vpop.permute.xlu0 %4006
      %4008 = vrot.lane.b32.xlu0 %v3304, 52
      %v4009 = vpop.permute.xlu0 %4008
      %4010 = vrot.lane.b32.xlu0 %v3306, 52
      %v4011 = vpop.permute.xlu0 %4010
      %4012 = vrot.lane.b32.xlu0 %v3308, 52
      %v4013 = vpop.permute.xlu0 %4012
      %4014 = vrot.lane.b32.xlu0 %v3309, 52
      %v4015 = vpop.permute.xlu0 %4014
      %4016 = vrot.lane.b32.xlu0 %v3311, 52
      %v4017 = vpop.permute.xlu0 %4016
      %4018 = vrot.lane.b32.xlu0 %v3313, 52
      %v4019 = vpop.permute.xlu0 %4018
      %4020 = vrot.lane.b32.xlu0 %v3314, 52
      %v4021 = vpop.permute.xlu0 %4020
      %4022 = vrot.lane.b32.xlu0 %v3316, 52
      %v4023 = vpop.permute.xlu0 %4022
      %4024 = vrot.lane.b32.xlu0 %v3318, 52
      %v4025 = vpop.permute.xlu0 %4024
      %4026 = vrot.lane.b32.xlu0 %v3319, 52
      %v4027 = vpop.permute.xlu0 %4026
      %4028 = vrot.lane.b32.xlu0 %v3321, 52
      %v4029 = vpop.permute.xlu0 %4028
      %4030 = vrot.lane.b32.xlu0 %v3323, 52
      %v4031 = vpop.permute.xlu0 %4030
      %4032 = vrot.lane.b32.xlu0 %v3324, 52
      %v4033 = vpop.permute.xlu0 %4032
      %4034 = vrot.lane.b32.xlu0 %v3326, 52
      %v4035 = vpop.permute.xlu0 %4034
      %4036 = vrot.lane.b32.xlu0 %v3328, 52
      %v4037 = vpop.permute.xlu0 %4036
      %4038 = vrot.lane.b32.xlu0 %v3943, 52
      %v4039 = vpop.permute.xlu0 %4038
      %4040 = vrot.lane.b32.xlu0 %v3945, 52
      %v4041 = vpop.permute.xlu0 %4040
      %4042 = vrot.lane.b32.xlu0 %v3947, 52
      %v4043 = vpop.permute.xlu0 %4042
      %4092 = vrot.lane.b32.xlu0 %v252, 56
      %v4093 = vpop.permute.xlu0 %4092
      %4094 = vrot.lane.b32.xlu0 %v255, 56
      %v4095 = vpop.permute.xlu0 %4094
      %4096 = vrot.lane.b32.xlu0 %v258, 56
      %v4097 = vpop.permute.xlu0 %4096
      %4098 = vrot.lane.b32.xlu0 %v261, 56
      %v4099 = vpop.permute.xlu0 %4098
      %4100 = vrot.lane.b32.xlu0 %v264, 56
      %v4101 = vpop.permute.xlu0 %4100
      %4102 = vrot.lane.b32.xlu0 %v267, 56
      %v4103 = vpop.permute.xlu0 %4102
      %4104 = vrot.lane.b32.xlu0 %v270, 56
      %v4105 = vpop.permute.xlu0 %4104
      %4106 = vrot.lane.b32.xlu0 %v273, 56
      %v4107 = vpop.permute.xlu0 %4106
      %4108 = vrot.lane.b32.xlu0 %v276, 56
      %v4109 = vpop.permute.xlu0 %4108
      %4110 = vrot.lane.b32.xlu0 %v279, 56
      %v4111 = vpop.permute.xlu0 %4110
      %4112 = vrot.lane.b32.xlu0 %v282, 56
      %v4113 = vpop.permute.xlu0 %4112
      %4114 = vrot.lane.b32.xlu0 %v285, 56
      %v4115 = vpop.permute.xlu0 %4114
      %4116 = vrot.lane.b32.xlu0 %v288, 56
      %v4117 = vpop.permute.xlu0 %4116
      %4118 = vrot.lane.b32.xlu0 %v291, 56
      %v4119 = vpop.permute.xlu0 %4118
      %4120 = vrot.lane.b32.xlu0 %v292, 56
      %v4121 = vpop.permute.xlu0 %4120
      %4122 = vrot.lane.b32.xlu0 %v293, 56
      %v4123 = vpop.permute.xlu0 %4122
      %4124 = vrot.lane.b32.xlu0 %v294, 56
      %v4125 = vpop.permute.xlu0 %4124
      %4126 = vrot.lane.b32.xlu0 %v295, 56
      %v4127 = vpop.permute.xlu0 %4126
      %4128 = vrot.lane.b32.xlu0 %v296, 56
      %v4129 = vpop.permute.xlu0 %4128
      %4130 = vrot.lane.b32.xlu0 %v297, 56
      %v4131 = vpop.permute.xlu0 %4130
      %v4152 = vrot.slane %v295, 1
      %v4153 = vrot.slane %v296, 1
      %v4154 = vsel %vm378, %v4152, %v4153
      %v4155 = vrot.slane %v297, 1
      %v4156 = vsel %vm378, %v4153, %v4155
      %4157 = vrot.lane.b32.xlu0 %v402, 60
      %v4158 = vpop.permute.xlu0 %4157
      %4159 = vrot.lane.b32.xlu0 %v407, 60
      %v4160 = vpop.permute.xlu0 %4159
      %4161 = vrot.lane.b32.xlu0 %v412, 60
      %v4162 = vpop.permute.xlu0 %4161
      %4163 = vrot.lane.b32.xlu0 %v417, 60
      %v4164 = vpop.permute.xlu0 %4163
      %4165 = vrot.lane.b32.xlu0 %v422, 60
      %v4166 = vpop.permute.xlu0 %4165
      %4167 = vrot.lane.b32.xlu0 %v427, 60
      %v4168 = vpop.permute.xlu0 %4167
      %4169 = vrot.lane.b32.xlu0 %v432, 60
      %v4170 = vpop.permute.xlu0 %4169
      %4171 = vrot.lane.b32.xlu0 %v437, 60
      %v4172 = vpop.permute.xlu0 %4171
      %4173 = vrot.lane.b32.xlu0 %v442, 60
      %v4174 = vpop.permute.xlu0 %4173
      %4175 = vrot.lane.b32.xlu0 %v447, 60
      %v4176 = vpop.permute.xlu0 %4175
      %4177 = vrot.lane.b32.xlu0 %v452, 60
      %v4178 = vpop.permute.xlu0 %4177
      %4179 = vrot.lane.b32.xlu0 %v457, 60
      %v4180 = vpop.permute.xlu0 %4179
      %4181 = vrot.lane.b32.xlu0 %v1542, 60
      %v4182 = vpop.permute.xlu0 %4181
      %4183 = vrot.lane.b32.xlu0 %v2247, 60
      %v4184 = vpop.permute.xlu0 %4183
      %4185 = vrot.lane.b32.xlu0 %v3535, 60
      %v4186 = vpop.permute.xlu0 %4185
      %4187 = vrot.lane.b32.xlu0 %v3537, 60
      %v4188 = vpop.permute.xlu0 %4187
      %4189 = vrot.lane.b32.xlu0 %v3536, 60
      %v4190 = vpop.permute.xlu0 %4189
      %4191 = vrot.lane.b32.xlu0 %v4154, 60
      %v4192 = vpop.permute.xlu0 %4191
      %4193 = vrot.lane.b32.xlu0 %v4156, 60
      %v4194 = vpop.permute.xlu0 %4193
      %4195 = vrot.lane.b32.xlu0 %v4155, 60
      %v4196 = vpop.permute.xlu0 %4195
      %v4217 = vsel %vm2345, %v246, %v2841
      %v4218 = vsel %vm2345, %v249, %v2843
      %v4219 = vsel %vm2345, %v252, %v2845
      %v4220 = vsel %vm2345, %v255, %v2847
      %v4221 = vsel %vm2345, %v258, %v2849
      %v4222 = vsel %vm2345, %v261, %v2851
      %v4223 = vsel %vm2345, %v264, %v2853
      %v4224 = vsel %vm2345, %v267, %v2855
      %v4225 = vsel %vm2345, %v270, %v2857
      %v4226 = vsel %vm2345, %v273, %v2859
      %v4227 = vsel %vm2345, %v276, %v2861
      %v4228 = vsel %vm2345, %v279, %v2863
      %v4229 = vsel %vm2345, %v282, %v2865
      %v4230 = vsel %vm2345, %v285, %v2867
      %v4231 = vsel %vm2345, %v286, %v2869
      %v4232 = vsel %vm2345, %v287, %v2871
      %v4233 = vsel %vm2345, %v288, %v2873
      %v4234 = vsel %vm2345, %v289, %v2875
      %v4235 = vsel %vm2345, %v290, %v2877
      %v4236 = vsel %vm2345, %v291, %v2879
      %v4237 = vsel %vm2378, %v4217, %v2906
      %v4238 = vsel %vm2378, %v4218, %v2908
      %v4239 = vsel %vm2378, %v4219, %v2910
      %v4240 = vsel %vm2378, %v4220, %v2912
      %v4241 = vsel %vm2378, %v4221, %v2914
      %v4242 = vsel %vm2378, %v4222, %v2916
      %v4243 = vsel %vm2378, %v4223, %v2918
      %v4244 = vsel %vm2378, %v4224, %v2920
      %v4245 = vsel %vm2378, %v4225, %v2922
      %v4246 = vsel %vm2378, %v4226, %v2924
      %v4247 = vsel %vm2378, %v4227, %v2926
      %v4248 = vsel %vm2378, %v4228, %v2928
      %v4249 = vsel %vm2378, %v4229, %v2930
      %v4250 = vsel %vm2378, %v4230, %v2932
      %v4251 = vsel %vm2378, %v4231, %v2934
      %v4252 = vsel %vm2378, %v4232, %v2936
      %v4253 = vsel %vm2378, %v4233, %v2938
      %v4254 = vsel %vm2378, %v4234, %v2940
      %v4255 = vsel %vm2378, %v4235, %v2942
      %v4256 = vsel %vm2378, %v4236, %v2944
      %v4257 = vsel %vm2411, %v4237, %v2971
      %v4258 = vsel %vm2411, %v4238, %v2973
      %v4259 = vsel %vm2411, %v4239, %v2975
      %v4260 = vsel %vm2411, %v4240, %v2977
      %v4261 = vsel %vm2411, %v4241, %v2979
      %v4262 = vsel %vm2411, %v4242, %v2981
      %v4263 = vsel %vm2411, %v4243, %v2983
      %v4264 = vsel %vm2411, %v4244, %v2985
      %v4265 = vsel %vm2411, %v4245, %v2987
      %v4266 = vsel %vm2411, %v4246, %v2989
      %v4267 = vsel %vm2411, %v4247, %v2991
      %v4268 = vsel %vm2411, %v4248, %v2993
      %v4269 = vsel %vm2411, %v4249, %v2995
      %v4270 = vsel %vm2411, %v4250, %v2997
      %v4271 = vsel %vm2411, %v4251, %v2999
      %v4272 = vsel %vm2411, %v4252, %v3001
      %v4273 = vsel %vm2411, %v4253, %v3003
      %v4274 = vsel %vm2411, %v4254, %v3005
      %v4275 = vsel %vm2411, %v4255, %v3007
      %v4276 = vsel %vm2411, %v4256, %v3009
      %v4277 = vsel %vm2444, %v4257, %v3036
      %v4278 = vsel %vm2444, %v4258, %v3038
      %v4279 = vsel %vm2444, %v4259, %v3040
      %v4280 = vsel %vm2444, %v4260, %v3042
      %v4281 = vsel %vm2444, %v4261, %v3044
      %v4282 = vsel %vm2444, %v4262, %v3046
      %v4283 = vsel %vm2444, %v4263, %v3048
      %v4284 = vsel %vm2444, %v4264, %v3050
      %v4285 = vsel %vm2444, %v4265, %v3052
      %v4286 = vsel %vm2444, %v4266, %v3054
      %v4287 = vsel %vm2444, %v4267, %v3056
      %v4288 = vsel %vm2444, %v4268, %v3058
      %v4289 = vsel %vm2444, %v4269, %v3060
      %v4290 = vsel %vm2444, %v4270, %v3062
      %v4291 = vsel %vm2444, %v4271, %v3064
      %v4292 = vsel %vm2444, %v4272, %v3066
      %v4293 = vsel %vm2444, %v4273, %v3068
      %v4294 = vsel %vm2444, %v4274, %v3070
      %v4295 = vsel %vm2444, %v4275, %v3072
      %v4296 = vsel %vm2444, %v4276, %v3074
      %v4297 = vsel %vm2477, %v2449, %v3104
      %v4298 = vsel %vm2477, %v2450, %v3106
      %v4299 = vsel %vm2477, %v4277, %v3108
      %v4300 = vsel %vm2477, %v2451, %v3110
      %v4301 = vsel %vm2477, %v2452, %v3112
      %v4302 = vsel %vm2477, %v4278, %v3114
      %v4303 = vsel %vm2477, %v2453, %v3116
      %v4304 = vsel %vm2477, %v2454, %v3118
      %v4305 = vsel %vm2477, %v4279, %v3120
      %v4306 = vsel %vm2477, %v2455, %v3122
      %v4307 = vsel %vm2477, %v2456, %v3124
      %v4308 = vsel %vm2477, %v4280, %v3126
      %v4309 = vsel %vm2477, %v2457, %v3128
      %v4310 = vsel %vm2477, %v2458, %v3130
      %v4311 = vsel %vm2477, %v4281, %v3132
      %v4312 = vsel %vm2477, %v2459, %v3134
      %v4313 = vsel %vm2477, %v2460, %v3136
      %v4314 = vsel %vm2477, %v4282, %v3138
      %v4315 = vsel %vm2477, %v2461, %v3140
      %v4316 = vsel %vm2477, %v2462, %v3142
      %v4317 = vsel %vm2477, %v4283, %v3144
      %v4318 = vsel %vm2477, %v2463, %v3146
      %v4319 = vsel %vm2477, %v2464, %v3148
      %v4320 = vsel %vm2477, %v4284, %v3150
      %v4321 = vsel %vm2477, %v2465, %v3152
      %v4322 = vsel %vm2477, %v2466, %v3154
      %v4323 = vsel %vm2477, %v4285, %v3156
      %v4324 = vsel %vm2477, %v2467, %v3158
      %v4325 = vsel %vm2477, %v2468, %v3160
      %v4326 = vsel %vm2477, %v4286, %v3162
      %v4327 = vsel %vm2477, %v2469, %v3164
      %v4328 = vsel %vm2477, %v2470, %v3166
      %v4329 = vsel %vm2477, %v4287, %v3168
      %v4330 = vsel %vm2477, %v2471, %v3170
      %v4331 = vsel %vm2477, %v2472, %v3172
      %v4332 = vsel %vm2477, %v4288, %v3174
      %v4333 = vsel %vm2477, %v2473, %v3176
      %v4334 = vsel %vm2477, %v2474, %v3178
      %v4335 = vsel %vm2477, %v4289, %v3180
      %v4336 = vsel %vm2477, %v2475, %v3182
      %v4337 = vsel %vm2477, %v2476, %v3184
      %v4338 = vsel %vm2477, %v4290, %v3186
      %v4339 = vsel %vm2477, %v4291, %v3188
      %v4340 = vsel %vm2477, %v4292, %v3190
      %v4341 = vsel %vm2477, %v4293, %v3192
      %v4342 = vsel %vm2477, %v4294, %v3194
      %v4343 = vsel %vm2477, %v4295, %v3196
      %v4344 = vsel %vm2477, %v4296, %v3198
      %v4345 = vsel %vm2510, %v4297, %v3330
      %v4346 = vsel %vm2510, %v4298, %v3332
      %v4347 = vsel %vm2510, %v4299, %v3334
      %v4348 = vsel %vm2510, %v4300, %v3336
      %v4349 = vsel %vm2510, %v4301, %v3338
      %v4350 = vsel %vm2510, %v4302, %v3340
      %v4351 = vsel %vm2510, %v4303, %v3342
      %v4352 = vsel %vm2510, %v4304, %v3344
      %v4353 = vsel %vm2510, %v4305, %v3346
      %v4354 = vsel %vm2510, %v4306, %v3348
      %v4355 = vsel %vm2510, %v4307, %v3350
      %v4356 = vsel %vm2510, %v4308, %v3352
      %v4357 = vsel %vm2510, %v4309, %v3354
      %v4358 = vsel %vm2510, %v4310, %v3356
      %v4359 = vsel %vm2510, %v4311, %v3358
      %v4360 = vsel %vm2510, %v4312, %v3360
      %v4361 = vsel %vm2510, %v4313, %v3362
      %v4362 = vsel %vm2510, %v4314, %v3364
      %v4363 = vsel %vm2510, %v4315, %v3366
      %v4364 = vsel %vm2510, %v4316, %v3368
      %v4365 = vsel %vm2510, %v4317, %v3370
      %v4366 = vsel %vm2510, %v4318, %v3372
      %v4367 = vsel %vm2510, %v4319, %v3374
      %v4368 = vsel %vm2510, %v4320, %v3376
      %v4369 = vsel %vm2510, %v4321, %v3378
      %v4370 = vsel %vm2510, %v4322, %v3380
      %v4371 = vsel %vm2510, %v4323, %v3382
      %v4372 = vsel %vm2510, %v4324, %v3384
      %v4373 = vsel %vm2510, %v4325, %v3386
      %v4374 = vsel %vm2510, %v4326, %v3388
      %v4375 = vsel %vm2510, %v4327, %v3390
      %v4376 = vsel %vm2510, %v4328, %v3392
      %v4377 = vsel %vm2510, %v4329, %v3394
      %v4378 = vsel %vm2510, %v4330, %v3396
      %v4379 = vsel %vm2510, %v4331, %v3398
      %v4380 = vsel %vm2510, %v4332, %v3400
      %v4381 = vsel %vm2510, %v4333, %v3402
      %v4382 = vsel %vm2510, %v4334, %v3404
      %v4383 = vsel %vm2510, %v4335, %v3406
      %v4384 = vsel %vm2510, %v4336, %v3408
      %v4385 = vsel %vm2510, %v4337, %v3410
      %v4386 = vsel %vm2510, %v4338, %v3412
      %v4387 = vsel %vm2510, %v4339, %v3414
      %v4388 = vsel %vm2510, %v4340, %v3416
      %v4389 = vsel %vm2510, %v4341, %v3418
      %v4390 = vsel %vm2510, %v4342, %v3420
      %v4391 = vsel %vm2510, %v4343, %v3422
      %v4392 = vsel %vm2510, %v4344, %v3424
      %v4393 = vsel %vm2543, %v4345, %v1451
      %v4394 = vsel %vm2543, %v4346, %v1453
      %v4395 = vsel %vm2543, %v4347, %v3474
      %v4396 = vsel %vm2543, %v4348, %v1455
      %v4397 = vsel %vm2543, %v4349, %v1457
      %v4398 = vsel %vm2543, %v4350, %v3476
      %v4399 = vsel %vm2543, %v4351, %v1459
      %v4400 = vsel %vm2543, %v4352, %v1461
      %v4401 = vsel %vm2543, %v4353, %v3478
      %v4402 = vsel %vm2543, %v4354, %v1463
      %v4403 = vsel %vm2543, %v4355, %v1465
      %v4404 = vsel %vm2543, %v4356, %v3480
      %v4405 = vsel %vm2543, %v4357, %v1467
      %v4406 = vsel %vm2543, %v4358, %v1469
      %v4407 = vsel %vm2543, %v4359, %v3482
      %v4408 = vsel %vm2543, %v4360, %v1471
      %v4409 = vsel %vm2543, %v4361, %v1473
      %v4410 = vsel %vm2543, %v4362, %v3484
      %v4411 = vsel %vm2543, %v4363, %v1475
      %v4412 = vsel %vm2543, %v4364, %v1477
      %v4413 = vsel %vm2543, %v4365, %v3486
      %v4414 = vsel %vm2543, %v4366, %v1479
      %v4415 = vsel %vm2543, %v4367, %v1481
      %v4416 = vsel %vm2543, %v4368, %v3488
      %v4417 = vsel %vm2543, %v4369, %v1483
      %v4418 = vsel %vm2543, %v4370, %v1485
      %v4419 = vsel %vm2543, %v4371, %v3490
      %v4420 = vsel %vm2543, %v4372, %v1487
      %v4421 = vsel %vm2543, %v4373, %v1489
      %v4422 = vsel %vm2543, %v4374, %v3492
      %v4423 = vsel %vm2543, %v4375, %v1491
      %v4424 = vsel %vm2543, %v4376, %v1493
      %v4425 = vsel %vm2543, %v4377, %v3494
      %v4426 = vsel %vm2543, %v4378, %v1495
      %v4427 = vsel %vm2543, %v4379, %v1497
      %v4428 = vsel %vm2543, %v4380, %v3496
      %v4429 = vsel %vm2543, %v4381, %v1499
      %v4430 = vsel %vm2543, %v4382, %v1501
      %v4431 = vsel %vm2543, %v4383, %v3498
      %v4432 = vsel %vm2543, %v4384, %v1503
      %v4433 = vsel %vm2543, %v4385, %v1505
      %v4434 = vsel %vm2543, %v4386, %v3500
      %v4435 = vsel %vm2543, %v4387, %v3502
      %v4436 = vsel %vm2543, %v4388, %v3504
      %v4437 = vsel %vm2543, %v4389, %v3506
      %v4438 = vsel %vm2543, %v4390, %v3508
      %v4439 = vsel %vm2543, %v4391, %v3510
      %v4440 = vsel %vm2543, %v4392, %v3512
      %v4441 = vsel %vm2576, %v4393, %v1553
      %v4442 = vsel %vm2576, %v4394, %v1555
      %v4443 = vsel %vm2576, %v4395, %v3539
      %v4444 = vsel %vm2576, %v4396, %v1557
      %v4445 = vsel %vm2576, %v4397, %v1559
      %v4446 = vsel %vm2576, %v4398, %v3541
      %v4447 = vsel %vm2576, %v4399, %v1561
      %v4448 = vsel %vm2576, %v4400, %v1563
      %v4449 = vsel %vm2576, %v4401, %v3543
      %v4450 = vsel %vm2576, %v4402, %v1565
      %v4451 = vsel %vm2576, %v4403, %v1567
      %v4452 = vsel %vm2576, %v4404, %v3545
      %v4453 = vsel %vm2576, %v4405, %v1569
      %v4454 = vsel %vm2576, %v4406, %v1571
      %v4455 = vsel %vm2576, %v4407, %v3547
      %v4456 = vsel %vm2576, %v4408, %v1573
      %v4457 = vsel %vm2576, %v4409, %v1575
      %v4458 = vsel %vm2576, %v4410, %v3549
      %v4459 = vsel %vm2576, %v4411, %v1577
      %v4460 = vsel %vm2576, %v4412, %v1579
      %v4461 = vsel %vm2576, %v4413, %v3551
      %v4462 = vsel %vm2576, %v4414, %v1581
      %v4463 = vsel %vm2576, %v4415, %v1583
      %v4464 = vsel %vm2576, %v4416, %v3553
      %v4465 = vsel %vm2576, %v4417, %v1585
      %v4466 = vsel %vm2576, %v4418, %v1587
      %v4467 = vsel %vm2576, %v4419, %v3555
      %v4468 = vsel %vm2576, %v4420, %v1589
      %v4469 = vsel %vm2576, %v4421, %v1591
      %v4470 = vsel %vm2576, %v4422, %v3557
      %v4471 = vsel %vm2576, %v4423, %v1593
      %v4472 = vsel %vm2576, %v4424, %v1595
      %v4473 = vsel %vm2576, %v4425, %v3559
      %v4474 = vsel %vm2576, %v4426, %v1597
      %v4475 = vsel %vm2576, %v4427, %v1599
      %v4476 = vsel %vm2576, %v4428, %v3561
      %v4477 = vsel %vm2576, %v4429, %v1601
      %v4478 = vsel %vm2576, %v4430, %v1603
      %v4479 = vsel %vm2576, %v4431, %v3563
      %v4480 = vsel %vm2576, %v4432, %v1605
      %v4481 = vsel %vm2576, %v4433, %v1607
      %v4482 = vsel %vm2576, %v4434, %v3565
      %v4483 = vsel %vm2576, %v4435, %v3567
      %v4484 = vsel %vm2576, %v4436, %v3569
      %v4485 = vsel %vm2576, %v4437, %v3571
      %v4486 = vsel %vm2576, %v4438, %v3573
      %v4487 = vsel %vm2576, %v4439, %v3575
      %v4488 = vsel %vm2576, %v4440, %v3577
      %v4489 = vsel %vm2609, %v4441, %v1654
      %v4490 = vsel %vm2609, %v4442, %v1656
      %v4491 = vsel %vm2609, %v4443, %v3604
      %v4492 = vsel %vm2609, %v4444, %v1658
      %v4493 = vsel %vm2609, %v4445, %v1660
      %v4494 = vsel %vm2609, %v4446, %v3606
      %v4495 = vsel %vm2609, %v4447, %v1662
      %v4496 = vsel %vm2609, %v4448, %v1664
      %v4497 = vsel %vm2609, %v4449, %v3608
      %v4498 = vsel %vm2609, %v4450, %v1666
      %v4499 = vsel %vm2609, %v4451, %v1668
      %v4500 = vsel %vm2609, %v4452, %v3610
      %v4501 = vsel %vm2609, %v4453, %v1670
      %v4502 = vsel %vm2609, %v4454, %v1672
      %v4503 = vsel %vm2609, %v4455, %v3612
      %v4504 = vsel %vm2609, %v4456, %v1674
      %v4505 = vsel %vm2609, %v4457, %v1676
      %v4506 = vsel %vm2609, %v4458, %v3614
      %v4507 = vsel %vm2609, %v4459, %v1678
      %v4508 = vsel %vm2609, %v4460, %v1680
      %v4509 = vsel %vm2609, %v4461, %v3616
      %v4510 = vsel %vm2609, %v4462, %v1682
      %v4511 = vsel %vm2609, %v4463, %v1684
      %v4512 = vsel %vm2609, %v4464, %v3618
      %v4513 = vsel %vm2609, %v4465, %v1686
      %v4514 = vsel %vm2609, %v4466, %v1688
      %v4515 = vsel %vm2609, %v4467, %v3620
      %v4516 = vsel %vm2609, %v4468, %v1690
      %v4517 = vsel %vm2609, %v4469, %v1692
      %v4518 = vsel %vm2609, %v4470, %v3622
      %v4519 = vsel %vm2609, %v4471, %v1694
      %v4520 = vsel %vm2609, %v4472, %v1696
      %v4521 = vsel %vm2609, %v4473, %v3624
      %v4522 = vsel %vm2609, %v4474, %v1698
      %v4523 = vsel %vm2609, %v4475, %v1700
      %v4524 = vsel %vm2609, %v4476, %v3626
      %v4525 = vsel %vm2609, %v4477, %v1702
      %v4526 = vsel %vm2609, %v4478, %v1704
      %v4527 = vsel %vm2609, %v4479, %v3628
      %v4528 = vsel %vm2609, %v4480, %v1706
      %v4529 = vsel %vm2609, %v4481, %v1708
      %v4530 = vsel %vm2609, %v4482, %v3630
      %v4531 = vsel %vm2609, %v4483, %v3632
      %v4532 = vsel %vm2609, %v4484, %v3634
      %v4533 = vsel %vm2609, %v4485, %v3636
      %v4534 = vsel %vm2609, %v4486, %v3638
      %v4535 = vsel %vm2609, %v4487, %v3640
      %v4536 = vsel %vm2609, %v4488, %v3642
      %v4537 = vsel %vm2642, %v4489, %v1755
      %v4538 = vsel %vm2642, %v4490, %v1757
      %v4539 = vsel %vm2642, %v4491, %v3669
      %v4540 = vsel %vm2642, %v4492, %v1759
      %v4541 = vsel %vm2642, %v4493, %v1761
      %v4542 = vsel %vm2642, %v4494, %v3671
      %v4543 = vsel %vm2642, %v4495, %v1763
      %v4544 = vsel %vm2642, %v4496, %v1765
      %v4545 = vsel %vm2642, %v4497, %v3673
      %v4546 = vsel %vm2642, %v4498, %v1767
      %v4547 = vsel %vm2642, %v4499, %v1769
      %v4548 = vsel %vm2642, %v4500, %v3675
      %v4549 = vsel %vm2642, %v4501, %v1771
      %v4550 = vsel %vm2642, %v4502, %v1773
      %v4551 = vsel %vm2642, %v4503, %v3677
      %v4552 = vsel %vm2642, %v4504, %v1775
      %v4553 = vsel %vm2642, %v4505, %v1777
      %v4554 = vsel %vm2642, %v4506, %v3679
      %v4555 = vsel %vm2642, %v4507, %v1779
      %v4556 = vsel %vm2642, %v4508, %v1781
      %v4557 = vsel %vm2642, %v4509, %v3681
      %v4558 = vsel %vm2642, %v4510, %v1783
      %v4559 = vsel %vm2642, %v4511, %v1785
      %v4560 = vsel %vm2642, %v4512, %v3683
      %v4561 = vsel %vm2642, %v4513, %v1787
      %v4562 = vsel %vm2642, %v4514, %v1789
      %v4563 = vsel %vm2642, %v4515, %v3685
      %v4564 = vsel %vm2642, %v4516, %v1791
      %v4565 = vsel %vm2642, %v4517, %v1793
      %v4566 = vsel %vm2642, %v4518, %v3687
      %v4567 = vsel %vm2642, %v4519, %v1795
      %v4568 = vsel %vm2642, %v4520, %v1797
      %v4569 = vsel %vm2642, %v4521, %v3689
      %v4570 = vsel %vm2642, %v4522, %v1799
      %v4571 = vsel %vm2642, %v4523, %v1801
      %v4572 = vsel %vm2642, %v4524, %v3691
      %v4573 = vsel %vm2642, %v4525, %v1803
      %v4574 = vsel %vm2642, %v4526, %v1805
      %v4575 = vsel %vm2642, %v4527, %v3693
      %v4576 = vsel %vm2642, %v4528, %v1807
      %v4577 = vsel %vm2642, %v4529, %v1809
      %v4578 = vsel %vm2642, %v4530, %v3695
      %v4579 = vsel %vm2642, %v4531, %v3697
      %v4580 = vsel %vm2642, %v4532, %v3699
      %v4581 = vsel %vm2642, %v4533, %v3701
      %v4582 = vsel %vm2642, %v4534, %v3703
      %v4583 = vsel %vm2642, %v4535, %v3705
      %v4584 = vsel %vm2642, %v4536, %v3707
      %v4585 = vsel %vm2675, %v4537, %v1856
      %v4586 = vsel %vm2675, %v4538, %v1858
      %v4587 = vsel %vm2675, %v4539, %v3734
      %v4588 = vsel %vm2675, %v4540, %v1860
      %v4589 = vsel %vm2675, %v4541, %v1862
      %v4590 = vsel %vm2675, %v4542, %v3736
      %v4591 = vsel %vm2675, %v4543, %v1864
      %v4592 = vsel %vm2675, %v4544, %v1866
      %v4593 = vsel %vm2675, %v4545, %v3738
      %v4594 = vsel %vm2675, %v4546, %v1868
      %v4595 = vsel %vm2675, %v4547, %v1870
      %v4596 = vsel %vm2675, %v4548, %v3740
      %v4597 = vsel %vm2675, %v4549, %v1872
      %v4598 = vsel %vm2675, %v4550, %v1874
      %v4599 = vsel %vm2675, %v4551, %v3742
      %v4600 = vsel %vm2675, %v4552, %v1876
      %v4601 = vsel %vm2675, %v4553, %v1878
      %v4602 = vsel %vm2675, %v4554, %v3744
      %v4603 = vsel %vm2675, %v4555, %v1880
      %v4604 = vsel %vm2675, %v4556, %v1882
      %v4605 = vsel %vm2675, %v4557, %v3746
      %v4606 = vsel %vm2675, %v4558, %v1884
      %v4607 = vsel %vm2675, %v4559, %v1886
      %v4608 = vsel %vm2675, %v4560, %v3748
      %v4609 = vsel %vm2675, %v4561, %v1888
      %v4610 = vsel %vm2675, %v4562, %v1890
      %v4611 = vsel %vm2675, %v4563, %v3750
      %v4612 = vsel %vm2675, %v4564, %v1892
      %v4613 = vsel %vm2675, %v4565, %v1894
      %v4614 = vsel %vm2675, %v4566, %v3752
      %v4615 = vsel %vm2675, %v4567, %v1896
      %v4616 = vsel %vm2675, %v4568, %v1898
      %v4617 = vsel %vm2675, %v4569, %v3754
      %v4618 = vsel %vm2675, %v4570, %v1900
      %v4619 = vsel %vm2675, %v4571, %v1902
      %v4620 = vsel %vm2675, %v4572, %v3756
      %v4621 = vsel %vm2675, %v4573, %v1904
      %v4622 = vsel %vm2675, %v4574, %v1906
      %v4623 = vsel %vm2675, %v4575, %v3758
      %v4624 = vsel %vm2675, %v4576, %v1908
      %v4625 = vsel %vm2675, %v4577, %v1910
      %v4626 = vsel %vm2675, %v4578, %v3760
      %v4627 = vsel %vm2675, %v4579, %v3762
      %v4628 = vsel %vm2675, %v4580, %v3764
      %v4629 = vsel %vm2675, %v4581, %v3766
      %v4630 = vsel %vm2675, %v4582, %v3768
      %v4631 = vsel %vm2675, %v4583, %v3770
      %v4632 = vsel %vm2675, %v4584, %v3772
      %v4633 = vsel %vm2708, %v4585, %v3799
      %v4634 = vsel %vm2708, %v4586, %v3801
      %v4635 = vsel %vm2708, %v4587, %v3803
      %v4636 = vsel %vm2708, %v4588, %v3805
      %v4637 = vsel %vm2708, %v4589, %v3807
      %v4638 = vsel %vm2708, %v4590, %v3809
      %v4639 = vsel %vm2708, %v4591, %v3811
      %v4640 = vsel %vm2708, %v4592, %v3813
      %v4641 = vsel %vm2708, %v4593, %v3815
      %v4642 = vsel %vm2708, %v4594, %v3817
      %v4643 = vsel %vm2708, %v4595, %v3819
      %v4644 = vsel %vm2708, %v4596, %v3821
      %v4645 = vsel %vm2708, %v4597, %v3823
      %v4646 = vsel %vm2708, %v4598, %v3825
      %v4647 = vsel %vm2708, %v4599, %v3827
      %v4648 = vsel %vm2708, %v4600, %v3829
      %v4649 = vsel %vm2708, %v4601, %v3831
      %v4650 = vsel %vm2708, %v4602, %v3833
      %v4651 = vsel %vm2708, %v4603, %v3835
      %v4652 = vsel %vm2708, %v4604, %v3837
      %v4653 = vsel %vm2708, %v4605, %v3839
      %v4654 = vsel %vm2708, %v4606, %v3841
      %v4655 = vsel %vm2708, %v4607, %v3843
      %v4656 = vsel %vm2708, %v4608, %v3845
      %v4657 = vsel %vm2708, %v4609, %v3847
      %v4658 = vsel %vm2708, %v4610, %v3849
      %v4659 = vsel %vm2708, %v4611, %v3851
      %v4660 = vsel %vm2708, %v4612, %v3853
      %v4661 = vsel %vm2708, %v4613, %v3855
      %v4662 = vsel %vm2708, %v4614, %v3857
      %v4663 = vsel %vm2708, %v4615, %v3859
      %v4664 = vsel %vm2708, %v4616, %v3861
      %v4665 = vsel %vm2708, %v4617, %v3863
      %v4666 = vsel %vm2708, %v4618, %v3865
      %v4667 = vsel %vm2708, %v4619, %v3867
      %v4668 = vsel %vm2708, %v4620, %v3869
      %v4669 = vsel %vm2708, %v4621, %v3871
      %v4670 = vsel %vm2708, %v4622, %v3873
      %v4671 = vsel %vm2708, %v4623, %v3875
      %v4672 = vsel %vm2708, %v4624, %v3877
      %v4673 = vsel %vm2708, %v4625, %v3879
      %v4674 = vsel %vm2708, %v4626, %v3881
      %v4675 = vsel %vm2708, %v4627, %v3883
      %v4676 = vsel %vm2708, %v4628, %v3885
      %v4677 = vsel %vm2708, %v4629, %v3887
      %v4678 = vsel %vm2708, %v4630, %v3889
      %v4679 = vsel %vm2708, %v4631, %v3891
      %v4680 = vsel %vm2708, %v4632, %v3893
      %v4681 = vsel %vm2741, %v4633, %v3949
      %v4682 = vsel %vm2741, %v4634, %v3951
      %v4683 = vsel %vm2741, %v4635, %v3953
      %v4684 = vsel %vm2741, %v4636, %v3955
      %v4685 = vsel %vm2741, %v4637, %v3957
      %v4686 = vsel %vm2741, %v4638, %v3959
      %v4687 = vsel %vm2741, %v4639, %v3961
      %v4688 = vsel %vm2741, %v4640, %v3963
      %v4689 = vsel %vm2741, %v4641, %v3965
      %v4690 = vsel %vm2741, %v4642, %v3967
      %v4691 = vsel %vm2741, %v4643, %v3969
      %v4692 = vsel %vm2741, %v4644, %v3971
      %v4693 = vsel %vm2741, %v4645, %v3973
      %v4694 = vsel %vm2741, %v4646, %v3975
      %v4695 = vsel %vm2741, %v4647, %v3977
      %v4696 = vsel %vm2741, %v4648, %v3979
      %v4697 = vsel %vm2741, %v4649, %v3981
      %v4698 = vsel %vm2741, %v4650, %v3983
      %v4699 = vsel %vm2741, %v4651, %v3985
      %v4700 = vsel %vm2741, %v4652, %v3987
      %v4701 = vsel %vm2741, %v4653, %v3989
      %v4702 = vsel %vm2741, %v4654, %v3991
      %v4703 = vsel %vm2741, %v4655, %v3993
      %v4704 = vsel %vm2741, %v4656, %v3995
      %v4705 = vsel %vm2741, %v4657, %v3997
      %v4706 = vsel %vm2741, %v4658, %v3999
      %v4707 = vsel %vm2741, %v4659, %v4001
      %v4708 = vsel %vm2741, %v4660, %v4003
      %v4709 = vsel %vm2741, %v4661, %v4005
      %v4710 = vsel %vm2741, %v4662, %v4007
      %v4711 = vsel %vm2741, %v4663, %v4009
      %v4712 = vsel %vm2741, %v4664, %v4011
      %v4713 = vsel %vm2741, %v4665, %v4013
      %v4714 = vsel %vm2741, %v4666, %v4015
      %v4715 = vsel %vm2741, %v4667, %v4017
      %v4716 = vsel %vm2741, %v4668, %v4019
      %v4717 = vsel %vm2741, %v4669, %v4021
      %v4718 = vsel %vm2741, %v4670, %v4023
      %v4719 = vsel %vm2741, %v4671, %v4025
      %v4720 = vsel %vm2741, %v4672, %v4027
      %v4721 = vsel %vm2741, %v4673, %v4029
      %v4722 = vsel %vm2741, %v4674, %v4031
      %v4723 = vsel %vm2741, %v4675, %v4033
      %v4724 = vsel %vm2741, %v4676, %v4035
      %v4725 = vsel %vm2741, %v4677, %v4037
      %v4726 = vsel %vm2741, %v4678, %v4039
      %v4727 = vsel %vm2741, %v4679, %v4041
      %v4728 = vsel %vm2741, %v4680, %v4043
      %v4729 = vsel %vm2774, %v4681, %v2156
      %v4730 = vsel %vm2774, %v4682, %v2158
      %v4731 = vsel %vm2774, %v4683, %v4093
      %v4732 = vsel %vm2774, %v4684, %v2160
      %v4733 = vsel %vm2774, %v4685, %v2162
      %v4734 = vsel %vm2774, %v4686, %v4095
      %v4735 = vsel %vm2774, %v4687, %v2164
      %v4736 = vsel %vm2774, %v4688, %v2166
      %v4737 = vsel %vm2774, %v4689, %v4097
      %v4738 = vsel %vm2774, %v4690, %v2168
      %v4739 = vsel %vm2774, %v4691, %v2170
      %v4740 = vsel %vm2774, %v4692, %v4099
      %v4741 = vsel %vm2774, %v4693, %v2172
      %v4742 = vsel %vm2774, %v4694, %v2174
      %v4743 = vsel %vm2774, %v4695, %v4101
      %v4744 = vsel %vm2774, %v4696, %v2176
      %v4745 = vsel %vm2774, %v4697, %v2178
      %v4746 = vsel %vm2774, %v4698, %v4103
      %v4747 = vsel %vm2774, %v4699, %v2180
      %v4748 = vsel %vm2774, %v4700, %v2182
      %v4749 = vsel %vm2774, %v4701, %v4105
      %v4750 = vsel %vm2774, %v4702, %v2184
      %v4751 = vsel %vm2774, %v4703, %v2186
      %v4752 = vsel %vm2774, %v4704, %v4107
      %v4753 = vsel %vm2774, %v4705, %v2188
      %v4754 = vsel %vm2774, %v4706, %v2190
      %v4755 = vsel %vm2774, %v4707, %v4109
      %v4756 = vsel %vm2774, %v4708, %v2192
      %v4757 = vsel %vm2774, %v4709, %v2194
      %v4758 = vsel %vm2774, %v4710, %v4111
      %v4759 = vsel %vm2774, %v4711, %v2196
      %v4760 = vsel %vm2774, %v4712, %v2198
      %v4761 = vsel %vm2774, %v4713, %v4113
      %v4762 = vsel %vm2774, %v4714, %v2200
      %v4763 = vsel %vm2774, %v4715, %v2202
      %v4764 = vsel %vm2774, %v4716, %v4115
      %v4765 = vsel %vm2774, %v4717, %v2204
      %v4766 = vsel %vm2774, %v4718, %v2206
      %v4767 = vsel %vm2774, %v4719, %v4117
      %v4768 = vsel %vm2774, %v4720, %v2208
      %v4769 = vsel %vm2774, %v4721, %v2210
      %v4770 = vsel %vm2774, %v4722, %v4119
      %v4771 = vsel %vm2774, %v4723, %v4121
      %v4772 = vsel %vm2774, %v4724, %v4123
      %v4773 = vsel %vm2774, %v4725, %v4125
      %v4774 = vsel %vm2774, %v4726, %v4127
      %v4775 = vsel %vm2774, %v4727, %v4129
      %v4776 = vsel %vm2774, %v4728, %v4131
      %v4777 = vsel %vm2807, %v4729, %v2258
      %v4778 = vsel %vm2807, %v4730, %v2260
      %v4779 = vsel %vm2807, %v4731, %v4158
      %v4780 = vsel %vm2807, %v4732, %v2262
      %v4781 = vsel %vm2807, %v4733, %v2264
      %v4782 = vsel %vm2807, %v4734, %v4160
      %v4783 = vsel %vm2807, %v4735, %v2266
      %v4784 = vsel %vm2807, %v4736, %v2268
      %v4785 = vsel %vm2807, %v4737, %v4162
      %v4786 = vsel %vm2807, %v4738, %v2270
      %v4787 = vsel %vm2807, %v4739, %v2272
      %v4788 = vsel %vm2807, %v4740, %v4164
      %v4789 = vsel %vm2807, %v4741, %v2274
      %v4790 = vsel %vm2807, %v4742, %v2276
      %v4791 = vsel %vm2807, %v4743, %v4166
      %v4792 = vsel %vm2807, %v4744, %v2278
      %v4793 = vsel %vm2807, %v4745, %v2280
      %v4794 = vsel %vm2807, %v4746, %v4168
      %v4795 = vsel %vm2807, %v4747, %v2282
      %v4796 = vsel %vm2807, %v4748, %v2284
      %v4797 = vsel %vm2807, %v4749, %v4170
      %v4798 = vsel %vm2807, %v4750, %v2286
      %v4799 = vsel %vm2807, %v4751, %v2288
      %v4800 = vsel %vm2807, %v4752, %v4172
      %v4801 = vsel %vm2807, %v4753, %v2290
      %v4802 = vsel %vm2807, %v4754, %v2292
      %v4803 = vsel %vm2807, %v4755, %v4174
      %v4804 = vsel %vm2807, %v4756, %v2294
      %v4805 = vsel %vm2807, %v4757, %v2296
      %v4806 = vsel %vm2807, %v4758, %v4176
      %v4807 = vsel %vm2807, %v4759, %v2298
      %v4808 = vsel %vm2807, %v4760, %v2300
      %v4809 = vsel %vm2807, %v4761, %v4178
      %v4810 = vsel %vm2807, %v4762, %v2302
      %v4811 = vsel %vm2807, %v4763, %v2304
      %v4812 = vsel %vm2807, %v4764, %v4180
      %v4813 = vsel %vm2807, %v4765, %v2306
      %v4814 = vsel %vm2807, %v4766, %v2308
      %v4815 = vsel %vm2807, %v4767, %v4182
      %v4816 = vsel %vm2807, %v4768, %v2310
      %v4817 = vsel %vm2807, %v4769, %v2312
      %v4818 = vsel %vm2807, %v4770, %v4184
      %v4819 = vsel %vm2807, %v4771, %v4186
      %v4820 = vsel %vm2807, %v4772, %v4188
      %v4821 = vsel %vm2807, %v4773, %v4190
      %v4822 = vsel %vm2807, %v4774, %v4192
      %v4823 = vsel %vm2807, %v4775, %v4194
      %v4824 = vsel %vm2807, %v4776, %v4196
      %4825 = vrot.lane.b32.xlu0 %v3535, 4
      %v4826 = vpop.permute.xlu0 %4825
      %4827 = vrot.lane.b32.xlu0 %v3537, 4
      %v4828 = vpop.permute.xlu0 %4827
      %4829 = vrot.lane.b32.xlu0 %v3536, 4
      %v4830 = vpop.permute.xlu0 %4829
      %4831 = vrot.lane.b32.xlu0 %v4154, 4
      %v4832 = vpop.permute.xlu0 %4831
      %4833 = vrot.lane.b32.xlu0 %v4156, 4
      %v4834 = vpop.permute.xlu0 %4833
      %4835 = vrot.lane.b32.xlu0 %v4155, 4
      %v4836 = vpop.permute.xlu0 %4835
      %v4843 = vrot.slane %v295, 2
      %v4844 = vrot.slane %v296, 2
      %v4845 = vsel %vm555, %v4843, %v4844
      %v4846 = vrot.slane %v297, 2
      %v4847 = vsel %vm555, %v4844, %v4846
      %4848 = vrot.lane.b32.xlu0 %v3600, 8
      %v4849 = vpop.permute.xlu0 %4848
      %4850 = vrot.lane.b32.xlu0 %v3602, 8
      %v4851 = vpop.permute.xlu0 %4850
      %4852 = vrot.lane.b32.xlu0 %v3601, 8
      %v4853 = vpop.permute.xlu0 %4852
      %4854 = vrot.lane.b32.xlu0 %v4845, 8
      %v4855 = vpop.permute.xlu0 %4854
      %4856 = vrot.lane.b32.xlu0 %v4847, 8
      %v4857 = vpop.permute.xlu0 %4856
      %4858 = vrot.lane.b32.xlu0 %v4846, 8
      %v4859 = vpop.permute.xlu0 %4858
      %v4868 = vrot.slane %v295, 4
      %v4869 = vrot.slane %v296, 4
      %v4870 = vsel %vm909, %v4868, %v4869
      %v4871 = vrot.slane %v298, 4
      %v4872 = vrot.slane %v299, 4
      %v4873 = vsel %vm909, %v4871, %v4872
      %4874 = vrot.lane.b32.xlu0 %v935, 12
      %v4875 = vpop.permute.xlu0 %4874
      %4876 = vrot.lane.b32.xlu0 %v937, 12
      %v4877 = vpop.permute.xlu0 %4876
      %4878 = vrot.lane.b32.xlu0 %v936, 12
      %v4879 = vpop.permute.xlu0 %4878
      %4880 = vrot.lane.b32.xlu0 %v940, 12
      %v4881 = vpop.permute.xlu0 %4880
      %4882 = vrot.lane.b32.xlu0 %v942, 12
      %v4883 = vpop.permute.xlu0 %4882
      %4884 = vrot.lane.b32.xlu0 %v941, 12
      %v4885 = vpop.permute.xlu0 %4884
      %4886 = vrot.lane.b32.xlu0 %v945, 12
      %v4887 = vpop.permute.xlu0 %4886
      %4888 = vrot.lane.b32.xlu0 %v947, 12
      %v4889 = vpop.permute.xlu0 %4888
      %4890 = vrot.lane.b32.xlu0 %v946, 12
      %v4891 = vpop.permute.xlu0 %4890
      %4892 = vrot.lane.b32.xlu0 %v950, 12
      %v4893 = vpop.permute.xlu0 %4892
      %4894 = vrot.lane.b32.xlu0 %v952, 12
      %v4895 = vpop.permute.xlu0 %4894
      %4896 = vrot.lane.b32.xlu0 %v951, 12
      %v4897 = vpop.permute.xlu0 %4896
      %4898 = vrot.lane.b32.xlu0 %v955, 12
      %v4899 = vpop.permute.xlu0 %4898
      %4900 = vrot.lane.b32.xlu0 %v957, 12
      %v4901 = vpop.permute.xlu0 %4900
      %4902 = vrot.lane.b32.xlu0 %v956, 12
      %v4903 = vpop.permute.xlu0 %4902
      %4904 = vrot.lane.b32.xlu0 %v960, 12
      %v4905 = vpop.permute.xlu0 %4904
      %4906 = vrot.lane.b32.xlu0 %v962, 12
      %v4907 = vpop.permute.xlu0 %4906
      %4908 = vrot.lane.b32.xlu0 %v961, 12
      %v4909 = vpop.permute.xlu0 %4908
      %4910 = vrot.lane.b32.xlu0 %v965, 12
      %v4911 = vpop.permute.xlu0 %4910
      %4912 = vrot.lane.b32.xlu0 %v967, 12
      %v4913 = vpop.permute.xlu0 %4912
      %4914 = vrot.lane.b32.xlu0 %v966, 12
      %v4915 = vpop.permute.xlu0 %4914
      %4916 = vrot.lane.b32.xlu0 %v970, 12
      %v4917 = vpop.permute.xlu0 %4916
      %4918 = vrot.lane.b32.xlu0 %v972, 12
      %v4919 = vpop.permute.xlu0 %4918
      %4920 = vrot.lane.b32.xlu0 %v971, 12
      %v4921 = vpop.permute.xlu0 %4920
      %4922 = vrot.lane.b32.xlu0 %v975, 12
      %v4923 = vpop.permute.xlu0 %4922
      %4924 = vrot.lane.b32.xlu0 %v977, 12
      %v4925 = vpop.permute.xlu0 %4924
      %4926 = vrot.lane.b32.xlu0 %v976, 12
      %v4927 = vpop.permute.xlu0 %4926
      %4928 = vrot.lane.b32.xlu0 %v980, 12
      %v4929 = vpop.permute.xlu0 %4928
      %4930 = vrot.lane.b32.xlu0 %v982, 12
      %v4931 = vpop.permute.xlu0 %4930
      %4932 = vrot.lane.b32.xlu0 %v981, 12
      %v4933 = vpop.permute.xlu0 %4932
      %4934 = vrot.lane.b32.xlu0 %v985, 12
      %v4935 = vpop.permute.xlu0 %4934
      %4936 = vrot.lane.b32.xlu0 %v987, 12
      %v4937 = vpop.permute.xlu0 %4936
      %4938 = vrot.lane.b32.xlu0 %v986, 12
      %v4939 = vpop.permute.xlu0 %4938
      %4940 = vrot.lane.b32.xlu0 %v1842, 12
      %v4941 = vpop.permute.xlu0 %4940
      %4942 = vrot.lane.b32.xlu0 %v1844, 12
      %v4943 = vpop.permute.xlu0 %4942
      %4944 = vrot.lane.b32.xlu0 %v1843, 12
      %v4945 = vpop.permute.xlu0 %4944
      %4946 = vrot.lane.b32.xlu0 %v3030, 12
      %v4947 = vpop.permute.xlu0 %4946
      %4948 = vrot.lane.b32.xlu0 %v3032, 12
      %v4949 = vpop.permute.xlu0 %4948
      %4950 = vrot.lane.b32.xlu0 %v3031, 12
      %v4951 = vpop.permute.xlu0 %4950
      %4952 = vrot.lane.b32.xlu0 %v3728, 12
      %v4953 = vpop.permute.xlu0 %4952
      %4954 = vrot.lane.b32.xlu0 %v3730, 12
      %v4955 = vpop.permute.xlu0 %4954
      %4956 = vrot.lane.b32.xlu0 %v3729, 12
      %v4957 = vpop.permute.xlu0 %4956
      %4958 = vrot.lane.b32.xlu0 %v4868, 12
      %v4959 = vpop.permute.xlu0 %4958
      %4960 = vrot.lane.b32.xlu0 %v4870, 12
      %v4961 = vpop.permute.xlu0 %4960
      %4962 = vrot.lane.b32.xlu0 %v4869, 12
      %v4963 = vpop.permute.xlu0 %4962
      %4964 = vrot.lane.b32.xlu0 %v4871, 12
      %v4965 = vpop.permute.xlu0 %4964
      %4966 = vrot.lane.b32.xlu0 %v4873, 12
      %v4967 = vpop.permute.xlu0 %4966
      %4968 = vrot.lane.b32.xlu0 %v4872, 12
      %v4969 = vpop.permute.xlu0 %4968
      %v5019 = vrot.slane %v289, 5
      %v5020 = vrot.slane %v290, 5
      %v5021 = vsel %vm1086, %v5019, %v5020
      %v5022 = vrot.slane %v291, 5
      %v5023 = vsel %vm1086, %v5020, %v5022
      %v5024 = vrot.slane %v292, 5
      %v5025 = vrot.slane %v293, 5
      %v5026 = vsel %vm1086, %v5024, %v5025
      %v5027 = vrot.slane %v294, 5
      %v5028 = vsel %vm1086, %v5025, %v5027
      %v5029 = vrot.slane %v295, 5
      %v5030 = vrot.slane %v296, 5
      %v5031 = vsel %vm1086, %v5029, %v5030
      %v5032 = vrot.slane %v297, 5
      %v5033 = vsel %vm1086, %v5030, %v5032
      %v5034 = vrot.slane %v298, 5
      %v5035 = vrot.slane %v299, 5
      %v5036 = vsel %vm1086, %v5034, %v5035
      %v5037 = vrot.slane %v300, 5
      %v5038 = vsel %vm1086, %v5035, %v5037
      %5039 = vrot.lane.b32.xlu0 %v1112, 16
      %v5040 = vpop.permute.xlu0 %5039
      %5041 = vrot.lane.b32.xlu0 %v1114, 16
      %v5042 = vpop.permute.xlu0 %5041
      %5043 = vrot.lane.b32.xlu0 %v1116, 16
      %v5044 = vpop.permute.xlu0 %5043
      %5045 = vrot.lane.b32.xlu0 %v1117, 16
      %v5046 = vpop.permute.xlu0 %5045
      %5047 = vrot.lane.b32.xlu0 %v1119, 16
      %v5048 = vpop.permute.xlu0 %5047
      %5049 = vrot.lane.b32.xlu0 %v1121, 16
      %v5050 = vpop.permute.xlu0 %5049
      %5051 = vrot.lane.b32.xlu0 %v1122, 16
      %v5052 = vpop.permute.xlu0 %5051
      %5053 = vrot.lane.b32.xlu0 %v1124, 16
      %v5054 = vpop.permute.xlu0 %5053
      %5055 = vrot.lane.b32.xlu0 %v1126, 16
      %v5056 = vpop.permute.xlu0 %5055
      %5057 = vrot.lane.b32.xlu0 %v1127, 16
      %v5058 = vpop.permute.xlu0 %5057
      %5059 = vrot.lane.b32.xlu0 %v1129, 16
      %v5060 = vpop.permute.xlu0 %5059
      %5061 = vrot.lane.b32.xlu0 %v1131, 16
      %v5062 = vpop.permute.xlu0 %5061
      %5063 = vrot.lane.b32.xlu0 %v1132, 16
      %v5064 = vpop.permute.xlu0 %5063
      %5065 = vrot.lane.b32.xlu0 %v1134, 16
      %v5066 = vpop.permute.xlu0 %5065
      %5067 = vrot.lane.b32.xlu0 %v1136, 16
      %v5068 = vpop.permute.xlu0 %5067
      %5069 = vrot.lane.b32.xlu0 %v1137, 16
      %v5070 = vpop.permute.xlu0 %5069
      %5071 = vrot.lane.b32.xlu0 %v1139, 16
      %v5072 = vpop.permute.xlu0 %5071
      %5073 = vrot.lane.b32.xlu0 %v1141, 16
      %v5074 = vpop.permute.xlu0 %5073
      %5075 = vrot.lane.b32.xlu0 %v1142, 16
      %v5076 = vpop.permute.xlu0 %5075
      %5077 = vrot.lane.b32.xlu0 %v1144, 16
      %v5078 = vpop.permute.xlu0 %5077
      %5079 = vrot.lane.b32.xlu0 %v1146, 16
      %v5080 = vpop.permute.xlu0 %5079
      %5081 = vrot.lane.b32.xlu0 %v1147, 16
      %v5082 = vpop.permute.xlu0 %5081
      %5083 = vrot.lane.b32.xlu0 %v1149, 16
      %v5084 = vpop.permute.xlu0 %5083
      %5085 = vrot.lane.b32.xlu0 %v1151, 16
      %v5086 = vpop.permute.xlu0 %5085
      %5087 = vrot.lane.b32.xlu0 %v1152, 16
      %v5088 = vpop.permute.xlu0 %5087
      %5089 = vrot.lane.b32.xlu0 %v1154, 16
      %v5090 = vpop.permute.xlu0 %5089
      %5091 = vrot.lane.b32.xlu0 %v1156, 16
      %v5092 = vpop.permute.xlu0 %5091
      %5093 = vrot.lane.b32.xlu0 %v1157, 16
      %v5094 = vpop.permute.xlu0 %5093
      %5095 = vrot.lane.b32.xlu0 %v1159, 16
      %v5096 = vpop.permute.xlu0 %5095
      %5097 = vrot.lane.b32.xlu0 %v1161, 16
      %v5098 = vpop.permute.xlu0 %5097
      %5099 = vrot.lane.b32.xlu0 %v1162, 16
      %v5100 = vpop.permute.xlu0 %5099
      %5101 = vrot.lane.b32.xlu0 %v1164, 16
      %v5102 = vpop.permute.xlu0 %5101
      %5103 = vrot.lane.b32.xlu0 %v1166, 16
      %v5104 = vpop.permute.xlu0 %5103
      %5105 = vrot.lane.b32.xlu0 %v1943, 16
      %v5106 = vpop.permute.xlu0 %5105
      %5107 = vrot.lane.b32.xlu0 %v1945, 16
      %v5108 = vpop.permute.xlu0 %5107
      %5109 = vrot.lane.b32.xlu0 %v1947, 16
      %v5110 = vpop.permute.xlu0 %5109
      %5111 = vrot.lane.b32.xlu0 %v5019, 16
      %v5112 = vpop.permute.xlu0 %5111
      %5113 = vrot.lane.b32.xlu0 %v5021, 16
      %v5114 = vpop.permute.xlu0 %5113
      %5115 = vrot.lane.b32.xlu0 %v5023, 16
      %v5116 = vpop.permute.xlu0 %5115
      %5117 = vrot.lane.b32.xlu0 %v5024, 16
      %v5118 = vpop.permute.xlu0 %5117
      %5119 = vrot.lane.b32.xlu0 %v5026, 16
      %v5120 = vpop.permute.xlu0 %5119
      %5121 = vrot.lane.b32.xlu0 %v5028, 16
      %v5122 = vpop.permute.xlu0 %5121
      %5123 = vrot.lane.b32.xlu0 %v5029, 16
      %v5124 = vpop.permute.xlu0 %5123
      %5125 = vrot.lane.b32.xlu0 %v5031, 16
      %v5126 = vpop.permute.xlu0 %5125
      %5127 = vrot.lane.b32.xlu0 %v5033, 16
      %v5128 = vpop.permute.xlu0 %5127
      %5129 = vrot.lane.b32.xlu0 %v5034, 16
      %v5130 = vpop.permute.xlu0 %5129
      %5131 = vrot.lane.b32.xlu0 %v5036, 16
      %v5132 = vpop.permute.xlu0 %5131
      %5133 = vrot.lane.b32.xlu0 %v5038, 16
      %v5134 = vpop.permute.xlu0 %5133
      %v5183 = vrot.slane %v291, 6
      %v5184 = vsel %vm1263, %v3098, %v5183
      %v5185 = vrot.slane %v294, 6
      %v5186 = vsel %vm1263, %v3101, %v5185
      %v5187 = vrot.slane %v297, 6
      %v5188 = vsel %vm1263, %v3796, %v5187
      %v5189 = vrot.slane %v298, 6
      %v5190 = vrot.slane %v299, 6
      %v5191 = vsel %vm1263, %v5189, %v5190
      %v5192 = vrot.slane %v300, 6
      %v5193 = vsel %vm1263, %v5190, %v5192
      %5194 = vrot.lane.b32.xlu0 %v1293, 20
      %v5195 = vpop.permute.xlu0 %5194
      %5196 = vrot.lane.b32.xlu0 %v1298, 20
      %v5197 = vpop.permute.xlu0 %5196
      %5198 = vrot.lane.b32.xlu0 %v1303, 20
      %v5199 = vpop.permute.xlu0 %5198
      %5200 = vrot.lane.b32.xlu0 %v1308, 20
      %v5201 = vpop.permute.xlu0 %5200
      %5202 = vrot.lane.b32.xlu0 %v1313, 20
      %v5203 = vpop.permute.xlu0 %5202
      %5204 = vrot.lane.b32.xlu0 %v1318, 20
      %v5205 = vpop.permute.xlu0 %5204
      %5206 = vrot.lane.b32.xlu0 %v1323, 20
      %v5207 = vpop.permute.xlu0 %5206
      %5208 = vrot.lane.b32.xlu0 %v1328, 20
      %v5209 = vpop.permute.xlu0 %5208
      %5210 = vrot.lane.b32.xlu0 %v1333, 20
      %v5211 = vpop.permute.xlu0 %5210
      %5212 = vrot.lane.b32.xlu0 %v1338, 20
      %v5213 = vpop.permute.xlu0 %5212
      %5214 = vrot.lane.b32.xlu0 %v1343, 20
      %v5215 = vpop.permute.xlu0 %5214
      %5216 = vrot.lane.b32.xlu0 %v2048, 20
      %v5217 = vpop.permute.xlu0 %5216
      %5218 = vrot.lane.b32.xlu0 %v5184, 20
      %v5219 = vpop.permute.xlu0 %5218
      %5220 = vrot.lane.b32.xlu0 %v5186, 20
      %v5221 = vpop.permute.xlu0 %5220
      %5222 = vrot.lane.b32.xlu0 %v3795, 20
      %v5223 = vpop.permute.xlu0 %5222
      %5224 = vrot.lane.b32.xlu0 %v3797, 20
      %v5225 = vpop.permute.xlu0 %5224
      %5226 = vrot.lane.b32.xlu0 %v5188, 20
      %v5227 = vpop.permute.xlu0 %5226
      %5228 = vrot.lane.b32.xlu0 %v5189, 20
      %v5229 = vpop.permute.xlu0 %5228
      %5230 = vrot.lane.b32.xlu0 %v5191, 20
      %v5231 = vpop.permute.xlu0 %5230
      %5232 = vrot.lane.b32.xlu0 %v5193, 20
      %v5233 = vpop.permute.xlu0 %5232
      %v5254 = vrot.slane %v298, 7
      %v5255 = vrot.slane %v299, 7
      %v5256 = vsel %vm3248, %v5254, %v5255
      %v5257 = vrot.slane %v300, 7
      %v5258 = vsel %vm3248, %v5255, %v5257
      %5259 = vrot.lane.b32.xlu0 %v3943, 24
      %v5260 = vpop.permute.xlu0 %5259
      %5261 = vrot.lane.b32.xlu0 %v3945, 24
      %v5262 = vpop.permute.xlu0 %5261
      %5263 = vrot.lane.b32.xlu0 %v3947, 24
      %v5264 = vpop.permute.xlu0 %5263
      %5265 = vrot.lane.b32.xlu0 %v5254, 24
      %v5266 = vpop.permute.xlu0 %5265
      %5267 = vrot.lane.b32.xlu0 %v5256, 24
      %v5268 = vpop.permute.xlu0 %5267
      %5269 = vrot.lane.b32.xlu0 %v5258, 24
      %v5270 = vpop.permute.xlu0 %5269
      %5277 = vrot.lane.b32.xlu0 %v295, 28
      %v5278 = vpop.permute.xlu0 %5277
      %5279 = vrot.lane.b32.xlu0 %v296, 28
      %v5280 = vpop.permute.xlu0 %5279
      %5281 = vrot.lane.b32.xlu0 %v297, 28
      %v5282 = vpop.permute.xlu0 %5281
      %5283 = vrot.lane.b32.xlu0 %v298, 28
      %v5284 = vpop.permute.xlu0 %5283
      %5285 = vrot.lane.b32.xlu0 %v299, 28
      %v5286 = vpop.permute.xlu0 %5285
      %5287 = vrot.lane.b32.xlu0 %v300, 28
      %v5288 = vpop.permute.xlu0 %5287
      %v5295 = vrot.slane %v298, 1
      %v5296 = vrot.slane %v299, 1
      %v5297 = vsel %vm378, %v5295, %v5296
      %v5298 = vrot.slane %v300, 1
      %v5299 = vsel %vm378, %v5296, %v5298
      %5300 = vrot.lane.b32.xlu0 %v4154, 32
      %v5301 = vpop.permute.xlu0 %5300
      %5302 = vrot.lane.b32.xlu0 %v4156, 32
      %v5303 = vpop.permute.xlu0 %5302
      %5304 = vrot.lane.b32.xlu0 %v4155, 32
      %v5305 = vpop.permute.xlu0 %5304
      %5306 = vrot.lane.b32.xlu0 %v5297, 32
      %v5307 = vpop.permute.xlu0 %5306
      %5308 = vrot.lane.b32.xlu0 %v5299, 32
      %v5309 = vpop.permute.xlu0 %5308
      %5310 = vrot.lane.b32.xlu0 %v5298, 32
      %v5311 = vpop.permute.xlu0 %5310
      %v5318 = vrot.slane %v298, 2
      %v5319 = vrot.slane %v299, 2
      %v5320 = vsel %vm555, %v5318, %v5319
      %v5321 = vrot.slane %v300, 2
      %v5322 = vsel %vm555, %v5319, %v5321
      %5323 = vrot.lane.b32.xlu0 %v4845, 36
      %v5324 = vpop.permute.xlu0 %5323
      %5325 = vrot.lane.b32.xlu0 %v4847, 36
      %v5326 = vpop.permute.xlu0 %5325
      %5327 = vrot.lane.b32.xlu0 %v4846, 36
      %v5328 = vpop.permute.xlu0 %5327
      %5329 = vrot.lane.b32.xlu0 %v5320, 36
      %v5330 = vpop.permute.xlu0 %5329
      %5331 = vrot.lane.b32.xlu0 %v5322, 36
      %v5332 = vpop.permute.xlu0 %5331
      %5333 = vrot.lane.b32.xlu0 %v5321, 36
      %v5334 = vpop.permute.xlu0 %5333
      %v5343 = vrot.slane %v301, 4
      %v5344 = vrot.slane %v302, 4
      %v5345 = vsel %vm909, %v5343, %v5344
      %5346 = vrot.lane.b32.xlu0 %v940, 40
      %v5347 = vpop.permute.xlu0 %5346
      %5348 = vrot.lane.b32.xlu0 %v942, 40
      %v5349 = vpop.permute.xlu0 %5348
      %5350 = vrot.lane.b32.xlu0 %v941, 40
      %v5351 = vpop.permute.xlu0 %5350
      %5352 = vrot.lane.b32.xlu0 %v945, 40
      %v5353 = vpop.permute.xlu0 %5352
      %5354 = vrot.lane.b32.xlu0 %v947, 40
      %v5355 = vpop.permute.xlu0 %5354
      %5356 = vrot.lane.b32.xlu0 %v946, 40
      %v5357 = vpop.permute.xlu0 %5356
      %5358 = vrot.lane.b32.xlu0 %v950, 40
      %v5359 = vpop.permute.xlu0 %5358
      %5360 = vrot.lane.b32.xlu0 %v952, 40
      %v5361 = vpop.permute.xlu0 %5360
      %5362 = vrot.lane.b32.xlu0 %v951, 40
      %v5363 = vpop.permute.xlu0 %5362
      %5364 = vrot.lane.b32.xlu0 %v955, 40
      %v5365 = vpop.permute.xlu0 %5364
      %5366 = vrot.lane.b32.xlu0 %v957, 40
      %v5367 = vpop.permute.xlu0 %5366
      %5368 = vrot.lane.b32.xlu0 %v956, 40
      %v5369 = vpop.permute.xlu0 %5368
      %5370 = vrot.lane.b32.xlu0 %v960, 40
      %v5371 = vpop.permute.xlu0 %5370
      %5372 = vrot.lane.b32.xlu0 %v962, 40
      %v5373 = vpop.permute.xlu0 %5372
      %5374 = vrot.lane.b32.xlu0 %v961, 40
      %v5375 = vpop.permute.xlu0 %5374
      %5376 = vrot.lane.b32.xlu0 %v965, 40
      %v5377 = vpop.permute.xlu0 %5376
      %5378 = vrot.lane.b32.xlu0 %v967, 40
      %v5379 = vpop.permute.xlu0 %5378
      %5380 = vrot.lane.b32.xlu0 %v966, 40
      %v5381 = vpop.permute.xlu0 %5380
      %5382 = vrot.lane.b32.xlu0 %v970, 40
      %v5383 = vpop.permute.xlu0 %5382
      %5384 = vrot.lane.b32.xlu0 %v972, 40
      %v5385 = vpop.permute.xlu0 %5384
      %5386 = vrot.lane.b32.xlu0 %v971, 40
      %v5387 = vpop.permute.xlu0 %5386
      %5388 = vrot.lane.b32.xlu0 %v975, 40
      %v5389 = vpop.permute.xlu0 %5388
      %5390 = vrot.lane.b32.xlu0 %v977, 40
      %v5391 = vpop.permute.xlu0 %5390
      %5392 = vrot.lane.b32.xlu0 %v976, 40
      %v5393 = vpop.permute.xlu0 %5392
      %5394 = vrot.lane.b32.xlu0 %v980, 40
      %v5395 = vpop.permute.xlu0 %5394
      %5396 = vrot.lane.b32.xlu0 %v982, 40
      %v5397 = vpop.permute.xlu0 %5396
      %5398 = vrot.lane.b32.xlu0 %v981, 40
      %v5399 = vpop.permute.xlu0 %5398
      %5400 = vrot.lane.b32.xlu0 %v985, 40
      %v5401 = vpop.permute.xlu0 %5400
      %5402 = vrot.lane.b32.xlu0 %v987, 40
      %v5403 = vpop.permute.xlu0 %5402
      %5404 = vrot.lane.b32.xlu0 %v986, 40
      %v5405 = vpop.permute.xlu0 %5404
      %5406 = vrot.lane.b32.xlu0 %v1842, 40
      %v5407 = vpop.permute.xlu0 %5406
      %5408 = vrot.lane.b32.xlu0 %v1844, 40
      %v5409 = vpop.permute.xlu0 %5408
      %5410 = vrot.lane.b32.xlu0 %v1843, 40
      %v5411 = vpop.permute.xlu0 %5410
      %5412 = vrot.lane.b32.xlu0 %v3030, 40
      %v5413 = vpop.permute.xlu0 %5412
      %5414 = vrot.lane.b32.xlu0 %v3032, 40
      %v5415 = vpop.permute.xlu0 %5414
      %5416 = vrot.lane.b32.xlu0 %v3031, 40
      %v5417 = vpop.permute.xlu0 %5416
      %5418 = vrot.lane.b32.xlu0 %v3728, 40
      %v5419 = vpop.permute.xlu0 %5418
      %5420 = vrot.lane.b32.xlu0 %v3730, 40
      %v5421 = vpop.permute.xlu0 %5420
      %5422 = vrot.lane.b32.xlu0 %v3729, 40
      %v5423 = vpop.permute.xlu0 %5422
      %5424 = vrot.lane.b32.xlu0 %v4868, 40
      %v5425 = vpop.permute.xlu0 %5424
      %5426 = vrot.lane.b32.xlu0 %v4870, 40
      %v5427 = vpop.permute.xlu0 %5426
      %5428 = vrot.lane.b32.xlu0 %v4869, 40
      %v5429 = vpop.permute.xlu0 %5428
      %5430 = vrot.lane.b32.xlu0 %v4871, 40
      %v5431 = vpop.permute.xlu0 %5430
      %5432 = vrot.lane.b32.xlu0 %v4873, 40
      %v5433 = vpop.permute.xlu0 %5432
      %5434 = vrot.lane.b32.xlu0 %v4872, 40
      %v5435 = vpop.permute.xlu0 %5434
      %5436 = vrot.lane.b32.xlu0 %v5343, 40
      %v5437 = vpop.permute.xlu0 %5436
      %5438 = vrot.lane.b32.xlu0 %v5345, 40
      %v5439 = vpop.permute.xlu0 %5438
      %5440 = vrot.lane.b32.xlu0 %v5344, 40
      %v5441 = vpop.permute.xlu0 %5440
      %v5491 = vrot.slane %v301, 5
      %v5492 = vrot.slane %v302, 5
      %v5493 = vsel %vm1086, %v5491, %v5492
      %v5494 = vrot.slane %v303, 5
      %v5495 = vsel %vm1086, %v5492, %v5494
      %5496 = vrot.lane.b32.xlu0 %v1117, 44
      %v5497 = vpop.permute.xlu0 %5496
      %5498 = vrot.lane.b32.xlu0 %v1119, 44
      %v5499 = vpop.permute.xlu0 %5498
      %5500 = vrot.lane.b32.xlu0 %v1121, 44
      %v5501 = vpop.permute.xlu0 %5500
      %5502 = vrot.lane.b32.xlu0 %v1122, 44
      %v5503 = vpop.permute.xlu0 %5502
      %5504 = vrot.lane.b32.xlu0 %v1124, 44
      %v5505 = vpop.permute.xlu0 %5504
      %5506 = vrot.lane.b32.xlu0 %v1126, 44
      %v5507 = vpop.permute.xlu0 %5506
      %5508 = vrot.lane.b32.xlu0 %v1127, 44
      %v5509 = vpop.permute.xlu0 %5508
      %5510 = vrot.lane.b32.xlu0 %v1129, 44
      %v5511 = vpop.permute.xlu0 %5510
      %5512 = vrot.lane.b32.xlu0 %v1131, 44
      %v5513 = vpop.permute.xlu0 %5512
      %5514 = vrot.lane.b32.xlu0 %v1132, 44
      %v5515 = vpop.permute.xlu0 %5514
      %5516 = vrot.lane.b32.xlu0 %v1134, 44
      %v5517 = vpop.permute.xlu0 %5516
      %5518 = vrot.lane.b32.xlu0 %v1136, 44
      %v5519 = vpop.permute.xlu0 %5518
      %5520 = vrot.lane.b32.xlu0 %v1137, 44
      %v5521 = vpop.permute.xlu0 %5520
      %5522 = vrot.lane.b32.xlu0 %v1139, 44
      %v5523 = vpop.permute.xlu0 %5522
      %5524 = vrot.lane.b32.xlu0 %v1141, 44
      %v5525 = vpop.permute.xlu0 %5524
      %5526 = vrot.lane.b32.xlu0 %v1142, 44
      %v5527 = vpop.permute.xlu0 %5526
      %5528 = vrot.lane.b32.xlu0 %v1144, 44
      %v5529 = vpop.permute.xlu0 %5528
      %5530 = vrot.lane.b32.xlu0 %v1146, 44
      %v5531 = vpop.permute.xlu0 %5530
      %5532 = vrot.lane.b32.xlu0 %v1147, 44
      %v5533 = vpop.permute.xlu0 %5532
      %5534 = vrot.lane.b32.xlu0 %v1149, 44
      %v5535 = vpop.permute.xlu0 %5534
      %5536 = vrot.lane.b32.xlu0 %v1151, 44
      %v5537 = vpop.permute.xlu0 %5536
      %5538 = vrot.lane.b32.xlu0 %v1152, 44
      %v5539 = vpop.permute.xlu0 %5538
      %5540 = vrot.lane.b32.xlu0 %v1154, 44
      %v5541 = vpop.permute.xlu0 %5540
      %5542 = vrot.lane.b32.xlu0 %v1156, 44
      %v5543 = vpop.permute.xlu0 %5542
      %5544 = vrot.lane.b32.xlu0 %v1157, 44
      %v5545 = vpop.permute.xlu0 %5544
      %5546 = vrot.lane.b32.xlu0 %v1159, 44
      %v5547 = vpop.permute.xlu0 %5546
      %5548 = vrot.lane.b32.xlu0 %v1161, 44
      %v5549 = vpop.permute.xlu0 %5548
      %5550 = vrot.lane.b32.xlu0 %v1162, 44
      %v5551 = vpop.permute.xlu0 %5550
      %5552 = vrot.lane.b32.xlu0 %v1164, 44
      %v5553 = vpop.permute.xlu0 %5552
      %5554 = vrot.lane.b32.xlu0 %v1166, 44
      %v5555 = vpop.permute.xlu0 %5554
      %5556 = vrot.lane.b32.xlu0 %v1943, 44
      %v5557 = vpop.permute.xlu0 %5556
      %5558 = vrot.lane.b32.xlu0 %v1945, 44
      %v5559 = vpop.permute.xlu0 %5558
      %5560 = vrot.lane.b32.xlu0 %v1947, 44
      %v5561 = vpop.permute.xlu0 %5560
      %5562 = vrot.lane.b32.xlu0 %v5019, 44
      %v5563 = vpop.permute.xlu0 %5562
      %5564 = vrot.lane.b32.xlu0 %v5021, 44
      %v5565 = vpop.permute.xlu0 %5564
      %5566 = vrot.lane.b32.xlu0 %v5023, 44
      %v5567 = vpop.permute.xlu0 %5566
      %5568 = vrot.lane.b32.xlu0 %v5024, 44
      %v5569 = vpop.permute.xlu0 %5568
      %5570 = vrot.lane.b32.xlu0 %v5026, 44
      %v5571 = vpop.permute.xlu0 %5570
      %5572 = vrot.lane.b32.xlu0 %v5028, 44
      %v5573 = vpop.permute.xlu0 %5572
      %5574 = vrot.lane.b32.xlu0 %v5029, 44
      %v5575 = vpop.permute.xlu0 %5574
      %5576 = vrot.lane.b32.xlu0 %v5031, 44
      %v5577 = vpop.permute.xlu0 %5576
      %5578 = vrot.lane.b32.xlu0 %v5033, 44
      %v5579 = vpop.permute.xlu0 %5578
      %5580 = vrot.lane.b32.xlu0 %v5034, 44
      %v5581 = vpop.permute.xlu0 %5580
      %5582 = vrot.lane.b32.xlu0 %v5036, 44
      %v5583 = vpop.permute.xlu0 %5582
      %5584 = vrot.lane.b32.xlu0 %v5038, 44
      %v5585 = vpop.permute.xlu0 %5584
      %5586 = vrot.lane.b32.xlu0 %v5491, 44
      %v5587 = vpop.permute.xlu0 %5586
      %5588 = vrot.lane.b32.xlu0 %v5493, 44
      %v5589 = vpop.permute.xlu0 %5588
      %5590 = vrot.lane.b32.xlu0 %v5495, 44
      %v5591 = vpop.permute.xlu0 %5590
      %v5640 = vrot.slane %v301, 6
      %v5641 = vrot.slane %v302, 6
      %v5642 = vsel %vm1263, %v5640, %v5641
      %v5643 = vrot.slane %v303, 6
      %v5644 = vsel %vm1263, %v5641, %v5643
      %5645 = vrot.lane.b32.xlu0 %v1298, 48
      %v5646 = vpop.permute.xlu0 %5645
      %5647 = vrot.lane.b32.xlu0 %v1303, 48
      %v5648 = vpop.permute.xlu0 %5647
      %5649 = vrot.lane.b32.xlu0 %v1308, 48
      %v5650 = vpop.permute.xlu0 %5649
      %5651 = vrot.lane.b32.xlu0 %v1313, 48
      %v5652 = vpop.permute.xlu0 %5651
      %5653 = vrot.lane.b32.xlu0 %v1318, 48
      %v5654 = vpop.permute.xlu0 %5653
      %5655 = vrot.lane.b32.xlu0 %v1323, 48
      %v5656 = vpop.permute.xlu0 %5655
      %5657 = vrot.lane.b32.xlu0 %v1328, 48
      %v5658 = vpop.permute.xlu0 %5657
      %5659 = vrot.lane.b32.xlu0 %v1333, 48
      %v5660 = vpop.permute.xlu0 %5659
      %5661 = vrot.lane.b32.xlu0 %v1338, 48
      %v5662 = vpop.permute.xlu0 %5661
      %5663 = vrot.lane.b32.xlu0 %v1343, 48
      %v5664 = vpop.permute.xlu0 %5663
      %5665 = vrot.lane.b32.xlu0 %v2048, 48
      %v5666 = vpop.permute.xlu0 %5665
      %5667 = vrot.lane.b32.xlu0 %v5184, 48
      %v5668 = vpop.permute.xlu0 %5667
      %5669 = vrot.lane.b32.xlu0 %v5186, 48
      %v5670 = vpop.permute.xlu0 %5669
      %5671 = vrot.lane.b32.xlu0 %v5188, 48
      %v5672 = vpop.permute.xlu0 %5671
      %5673 = vrot.lane.b32.xlu0 %v5189, 48
      %v5674 = vpop.permute.xlu0 %5673
      %5675 = vrot.lane.b32.xlu0 %v5191, 48
      %v5676 = vpop.permute.xlu0 %5675
      %5677 = vrot.lane.b32.xlu0 %v5193, 48
      %v5678 = vpop.permute.xlu0 %5677
      %5679 = vrot.lane.b32.xlu0 %v5640, 48
      %v5680 = vpop.permute.xlu0 %5679
      %5681 = vrot.lane.b32.xlu0 %v5642, 48
      %v5682 = vpop.permute.xlu0 %5681
      %5683 = vrot.lane.b32.xlu0 %v5644, 48
      %v5684 = vpop.permute.xlu0 %5683
      %v5705 = vrot.slane %v301, 7
      %v5706 = vrot.slane %v302, 7
      %v5707 = vsel %vm3248, %v5705, %v5706
      %v5708 = vrot.slane %v303, 7
      %v5709 = vsel %vm3248, %v5706, %v5708
      %5710 = vrot.lane.b32.xlu0 %v5254, 52
      %v5711 = vpop.permute.xlu0 %5710
      %5712 = vrot.lane.b32.xlu0 %v5256, 52
      %v5713 = vpop.permute.xlu0 %5712
      %5714 = vrot.lane.b32.xlu0 %v5258, 52
      %v5715 = vpop.permute.xlu0 %5714
      %5716 = vrot.lane.b32.xlu0 %v5705, 52
      %v5717 = vpop.permute.xlu0 %5716
      %5718 = vrot.lane.b32.xlu0 %v5707, 52
      %v5719 = vpop.permute.xlu0 %5718
      %5720 = vrot.lane.b32.xlu0 %v5709, 52
      %v5721 = vpop.permute.xlu0 %5720
      %5728 = vrot.lane.b32.xlu0 %v298, 56
      %v5729 = vpop.permute.xlu0 %5728
      %5730 = vrot.lane.b32.xlu0 %v299, 56
      %v5731 = vpop.permute.xlu0 %5730
      %5732 = vrot.lane.b32.xlu0 %v300, 56
      %v5733 = vpop.permute.xlu0 %5732
      %5734 = vrot.lane.b32.xlu0 %v301, 56
      %v5735 = vpop.permute.xlu0 %5734
      %5736 = vrot.lane.b32.xlu0 %v302, 56
      %v5737 = vpop.permute.xlu0 %5736
      %5738 = vrot.lane.b32.xlu0 %v303, 56
      %v5739 = vpop.permute.xlu0 %5738
      %v5746 = vrot.slane %v301, 1
      %v5747 = vrot.slane %v302, 1
      %v5748 = vsel %vm378, %v5746, %v5747
      %v5749 = vrot.slane %v303, 1
      %v5750 = vsel %vm378, %v5747, %v5749
      %5751 = vrot.lane.b32.xlu0 %v5297, 60
      %v5752 = vpop.permute.xlu0 %5751
      %5753 = vrot.lane.b32.xlu0 %v5299, 60
      %v5754 = vpop.permute.xlu0 %5753
      %5755 = vrot.lane.b32.xlu0 %v5298, 60
      %v5756 = vpop.permute.xlu0 %5755
      %5757 = vrot.lane.b32.xlu0 %v5748, 60
      %v5758 = vpop.permute.xlu0 %5757
      %5759 = vrot.lane.b32.xlu0 %v5750, 60
      %v5760 = vpop.permute.xlu0 %5759
      %5761 = vrot.lane.b32.xlu0 %v5749, 60
      %v5762 = vpop.permute.xlu0 %5761
      %v5769 = vsel %vm2345, %v292, %v4826
      %v5770 = vsel %vm2345, %v293, %v4828
      %v5771 = vsel %vm2345, %v294, %v4830
      %v5772 = vsel %vm2345, %v295, %v4832
      %v5773 = vsel %vm2345, %v296, %v4834
      %v5774 = vsel %vm2345, %v297, %v4836
      %v5775 = vsel %vm2378, %v5769, %v4849
      %v5776 = vsel %vm2378, %v5770, %v4851
      %v5777 = vsel %vm2378, %v5771, %v4853
      %v5778 = vsel %vm2378, %v5772, %v4855
      %v5779 = vsel %vm2378, %v5773, %v4857
      %v5780 = vsel %vm2378, %v5774, %v4859
      %v5781 = vsel %vm2411, %v2387, %v4875
      %v5782 = vsel %vm2411, %v2388, %v4877
      %v5783 = vsel %vm2411, %v4239, %v4879
      %v5784 = vsel %vm2411, %v2389, %v4881
      %v5785 = vsel %vm2411, %v2390, %v4883
      %v5786 = vsel %vm2411, %v4240, %v4885
      %v5787 = vsel %vm2411, %v2391, %v4887
      %v5788 = vsel %vm2411, %v2392, %v4889
      %v5789 = vsel %vm2411, %v4241, %v4891
      %v5790 = vsel %vm2411, %v2393, %v4893
      %v5791 = vsel %vm2411, %v2394, %v4895
      %v5792 = vsel %vm2411, %v4242, %v4897
      %v5793 = vsel %vm2411, %v2395, %v4899
      %v5794 = vsel %vm2411, %v2396, %v4901
      %v5795 = vsel %vm2411, %v4243, %v4903
      %v5796 = vsel %vm2411, %v2397, %v4905
      %v5797 = vsel %vm2411, %v2398, %v4907
      %v5798 = vsel %vm2411, %v4244, %v4909
      %v5799 = vsel %vm2411, %v2399, %v4911
      %v5800 = vsel %vm2411, %v2400, %v4913
      %v5801 = vsel %vm2411, %v4245, %v4915
      %v5802 = vsel %vm2411, %v2401, %v4917
      %v5803 = vsel %vm2411, %v2402, %v4919
      %v5804 = vsel %vm2411, %v4246, %v4921
      %v5805 = vsel %vm2411, %v2403, %v4923
      %v5806 = vsel %vm2411, %v2404, %v4925
      %v5807 = vsel %vm2411, %v4247, %v4927
      %v5808 = vsel %vm2411, %v2405, %v4929
      %v5809 = vsel %vm2411, %v2406, %v4931
      %v5810 = vsel %vm2411, %v4248, %v4933
      %v5811 = vsel %vm2411, %v2407, %v4935
      %v5812 = vsel %vm2411, %v2408, %v4937
      %v5813 = vsel %vm2411, %v4249, %v4939
      %v5814 = vsel %vm2411, %v2409, %v4941
      %v5815 = vsel %vm2411, %v2410, %v4943
      %v5816 = vsel %vm2411, %v4250, %v4945
      %v5817 = vsel %vm2411, %v4251, %v4947
      %v5818 = vsel %vm2411, %v4252, %v4949
      %v5819 = vsel %vm2411, %v4253, %v4951
      %v5820 = vsel %vm2411, %v4254, %v4953
      %v5821 = vsel %vm2411, %v4255, %v4955
      %v5822 = vsel %vm2411, %v4256, %v4957
      %v5823 = vsel %vm2411, %v5775, %v4959
      %v5824 = vsel %vm2411, %v5776, %v4961
      %v5825 = vsel %vm2411, %v5777, %v4963
      %v5826 = vsel %vm2411, %v5778, %v4965
      %v5827 = vsel %vm2411, %v5779, %v4967
      %v5828 = vsel %vm2411, %v5780, %v4969
      %v5829 = vsel %vm2444, %v5781, %v5040
      %v5830 = vsel %vm2444, %v5782, %v5042
      %v5831 = vsel %vm2444, %v5783, %v5044
      %v5832 = vsel %vm2444, %v5784, %v5046
      %v5833 = vsel %vm2444, %v5785, %v5048
      %v5834 = vsel %vm2444, %v5786, %v5050
      %v5835 = vsel %vm2444, %v5787, %v5052
      %v5836 = vsel %vm2444, %v5788, %v5054
      %v5837 = vsel %vm2444, %v5789, %v5056
      %v5838 = vsel %vm2444, %v5790, %v5058
      %v5839 = vsel %vm2444, %v5791, %v5060
      %v5840 = vsel %vm2444, %v5792, %v5062
      %v5841 = vsel %vm2444, %v5793, %v5064
      %v5842 = vsel %vm2444, %v5794, %v5066
      %v5843 = vsel %vm2444, %v5795, %v5068
      %v5844 = vsel %vm2444, %v5796, %v5070
      %v5845 = vsel %vm2444, %v5797, %v5072
      %v5846 = vsel %vm2444, %v5798, %v5074
      %v5847 = vsel %vm2444, %v5799, %v5076
      %v5848 = vsel %vm2444, %v5800, %v5078
      %v5849 = vsel %vm2444, %v5801, %v5080
      %v5850 = vsel %vm2444, %v5802, %v5082
      %v5851 = vsel %vm2444, %v5803, %v5084
      %v5852 = vsel %vm2444, %v5804, %v5086
      %v5853 = vsel %vm2444, %v5805, %v5088
      %v5854 = vsel %vm2444, %v5806, %v5090
      %v5855 = vsel %vm2444, %v5807, %v5092
      %v5856 = vsel %vm2444, %v5808, %v5094
      %v5857 = vsel %vm2444, %v5809, %v5096
      %v5858 = vsel %vm2444, %v5810, %v5098
      %v5859 = vsel %vm2444, %v5811, %v5100
      %v5860 = vsel %vm2444, %v5812, %v5102
      %v5861 = vsel %vm2444, %v5813, %v5104
      %v5862 = vsel %vm2444, %v5814, %v5106
      %v5863 = vsel %vm2444, %v5815, %v5108
      %v5864 = vsel %vm2444, %v5816, %v5110
      %v5865 = vsel %vm2444, %v5817, %v5112
      %v5866 = vsel %vm2444, %v5818, %v5114
      %v5867 = vsel %vm2444, %v5819, %v5116
      %v5868 = vsel %vm2444, %v5820, %v5118
      %v5869 = vsel %vm2444, %v5821, %v5120
      %v5870 = vsel %vm2444, %v5822, %v5122
      %v5871 = vsel %vm2444, %v5823, %v5124
      %v5872 = vsel %vm2444, %v5824, %v5126
      %v5873 = vsel %vm2444, %v5825, %v5128
      %v5874 = vsel %vm2444, %v5826, %v5130
      %v5875 = vsel %vm2444, %v5827, %v5132
      %v5876 = vsel %vm2444, %v5828, %v5134
      %v5877 = vsel %vm2477, %v5829, %v3116
      %v5878 = vsel %vm2477, %v5830, %v3118
      %v5879 = vsel %vm2477, %v5831, %v5195
      %v5880 = vsel %vm2477, %v5832, %v3122
      %v5881 = vsel %vm2477, %v5833, %v3124
      %v5882 = vsel %vm2477, %v5834, %v5197
      %v5883 = vsel %vm2477, %v5835, %v3128
      %v5884 = vsel %vm2477, %v5836, %v3130
      %v5885 = vsel %vm2477, %v5837, %v5199
      %v5886 = vsel %vm2477, %v5838, %v3134
      %v5887 = vsel %vm2477, %v5839, %v3136
      %v5888 = vsel %vm2477, %v5840, %v5201
      %v5889 = vsel %vm2477, %v5841, %v3140
      %v5890 = vsel %vm2477, %v5842, %v3142
      %v5891 = vsel %vm2477, %v5843, %v5203
      %v5892 = vsel %vm2477, %v5844, %v3146
      %v5893 = vsel %vm2477, %v5845, %v3148
      %v5894 = vsel %vm2477, %v5846, %v5205
      %v5895 = vsel %vm2477, %v5847, %v3152
      %v5896 = vsel %vm2477, %v5848, %v3154
      %v5897 = vsel %vm2477, %v5849, %v5207
      %v5898 = vsel %vm2477, %v5850, %v3158
      %v5899 = vsel %vm2477, %v5851, %v3160
      %v5900 = vsel %vm2477, %v5852, %v5209
      %v5901 = vsel %vm2477, %v5853, %v3164
      %v5902 = vsel %vm2477, %v5854, %v3166
      %v5903 = vsel %vm2477, %v5855, %v5211
      %v5904 = vsel %vm2477, %v5856, %v3170
      %v5905 = vsel %vm2477, %v5857, %v3172
      %v5906 = vsel %vm2477, %v5858, %v5213
      %v5907 = vsel %vm2477, %v5859, %v3176
      %v5908 = vsel %vm2477, %v5860, %v3178
      %v5909 = vsel %vm2477, %v5861, %v5215
      %v5910 = vsel %vm2477, %v5862, %v3182
      %v5911 = vsel %vm2477, %v5863, %v3184
      %v5912 = vsel %vm2477, %v5864, %v5217
      %v5913 = vsel %vm2477, %v5865, %v3188
      %v5914 = vsel %vm2477, %v5866, %v3190
      %v5915 = vsel %vm2477, %v5867, %v5219
      %v5916 = vsel %vm2477, %v5868, %v3194
      %v5917 = vsel %vm2477, %v5869, %v3196
      %v5918 = vsel %vm2477, %v5870, %v5221
      %v5919 = vsel %vm2477, %v5871, %v5223
      %v5920 = vsel %vm2477, %v5872, %v5225
      %v5921 = vsel %vm2477, %v5873, %v5227
      %v5922 = vsel %vm2477, %v5874, %v5229
      %v5923 = vsel %vm2477, %v5875, %v5231
      %v5924 = vsel %vm2477, %v5876, %v5233
      %v5925 = vsel %vm2510, %v5877, %v3342
      %v5926 = vsel %vm2510, %v5878, %v3344
      %v5927 = vsel %vm2510, %v5879, %v3346
      %v5928 = vsel %vm2510, %v5880, %v3348
      %v5929 = vsel %vm2510, %v5881, %v3350
      %v5930 = vsel %vm2510, %v5882, %v3352
      %v5931 = vsel %vm2510, %v5883, %v3354
      %v5932 = vsel %vm2510, %v5884, %v3356
      %v5933 = vsel %vm2510, %v5885, %v3358
      %v5934 = vsel %vm2510, %v5886, %v3360
      %v5935 = vsel %vm2510, %v5887, %v3362
      %v5936 = vsel %vm2510, %v5888, %v3364
      %v5937 = vsel %vm2510, %v5889, %v3366
      %v5938 = vsel %vm2510, %v5890, %v3368
      %v5939 = vsel %vm2510, %v5891, %v3370
      %v5940 = vsel %vm2510, %v5892, %v3372
      %v5941 = vsel %vm2510, %v5893, %v3374
      %v5942 = vsel %vm2510, %v5894, %v3376
      %v5943 = vsel %vm2510, %v5895, %v3378
      %v5944 = vsel %vm2510, %v5896, %v3380
      %v5945 = vsel %vm2510, %v5897, %v3382
      %v5946 = vsel %vm2510, %v5898, %v3384
      %v5947 = vsel %vm2510, %v5899, %v3386
      %v5948 = vsel %vm2510, %v5900, %v3388
      %v5949 = vsel %vm2510, %v5901, %v3390
      %v5950 = vsel %vm2510, %v5902, %v3392
      %v5951 = vsel %vm2510, %v5903, %v3394
      %v5952 = vsel %vm2510, %v5904, %v3396
      %v5953 = vsel %vm2510, %v5905, %v3398
      %v5954 = vsel %vm2510, %v5906, %v3400
      %v5955 = vsel %vm2510, %v5907, %v3402
      %v5956 = vsel %vm2510, %v5908, %v3404
      %v5957 = vsel %vm2510, %v5909, %v3406
      %v5958 = vsel %vm2510, %v5910, %v3408
      %v5959 = vsel %vm2510, %v5911, %v3410
      %v5960 = vsel %vm2510, %v5912, %v3412
      %v5961 = vsel %vm2510, %v5913, %v3414
      %v5962 = vsel %vm2510, %v5914, %v3416
      %v5963 = vsel %vm2510, %v5915, %v3418
      %v5964 = vsel %vm2510, %v5916, %v3420
      %v5965 = vsel %vm2510, %v5917, %v3422
      %v5966 = vsel %vm2510, %v5918, %v3424
      %v5967 = vsel %vm2510, %v5919, %v5260
      %v5968 = vsel %vm2510, %v5920, %v5262
      %v5969 = vsel %vm2510, %v5921, %v5264
      %v5970 = vsel %vm2510, %v5922, %v5266
      %v5971 = vsel %vm2510, %v5923, %v5268
      %v5972 = vsel %vm2510, %v5924, %v5270
      %v5973 = vsel %vm2543, %v5925, %v1459
      %v5974 = vsel %vm2543, %v5926, %v1461
      %v5975 = vsel %vm2543, %v5927, %v3478
      %v5976 = vsel %vm2543, %v5928, %v1463
      %v5977 = vsel %vm2543, %v5929, %v1465
      %v5978 = vsel %vm2543, %v5930, %v3480
      %v5979 = vsel %vm2543, %v5931, %v1467
      %v5980 = vsel %vm2543, %v5932, %v1469
      %v5981 = vsel %vm2543, %v5933, %v3482
      %v5982 = vsel %vm2543, %v5934, %v1471
      %v5983 = vsel %vm2543, %v5935, %v1473
      %v5984 = vsel %vm2543, %v5936, %v3484
      %v5985 = vsel %vm2543, %v5937, %v1475
      %v5986 = vsel %vm2543, %v5938, %v1477
      %v5987 = vsel %vm2543, %v5939, %v3486
      %v5988 = vsel %vm2543, %v5940, %v1479
      %v5989 = vsel %vm2543, %v5941, %v1481
      %v5990 = vsel %vm2543, %v5942, %v3488
      %v5991 = vsel %vm2543, %v5943, %v1483
      %v5992 = vsel %vm2543, %v5944, %v1485
      %v5993 = vsel %vm2543, %v5945, %v3490
      %v5994 = vsel %vm2543, %v5946, %v1487
      %v5995 = vsel %vm2543, %v5947, %v1489
      %v5996 = vsel %vm2543, %v5948, %v3492
      %v5997 = vsel %vm2543, %v5949, %v1491
      %v5998 = vsel %vm2543, %v5950, %v1493
      %v5999 = vsel %vm2543, %v5951, %v3494
      %v6000 = vsel %vm2543, %v5952, %v1495
      %v6001 = vsel %vm2543, %v5953, %v1497
      %v6002 = vsel %vm2543, %v5954, %v3496
      %v6003 = vsel %vm2543, %v5955, %v1499
      %v6004 = vsel %vm2543, %v5956, %v1501
      %v6005 = vsel %vm2543, %v5957, %v3498
      %v6006 = vsel %vm2543, %v5958, %v1503
      %v6007 = vsel %vm2543, %v5959, %v1505
      %v6008 = vsel %vm2543, %v5960, %v3500
      %v6009 = vsel %vm2543, %v5961, %v3502
      %v6010 = vsel %vm2543, %v5962, %v3504
      %v6011 = vsel %vm2543, %v5963, %v3506
      %v6012 = vsel %vm2543, %v5964, %v3508
      %v6013 = vsel %vm2543, %v5965, %v3510
      %v6014 = vsel %vm2543, %v5966, %v3512
      %v6015 = vsel %vm2543, %v5967, %v5278
      %v6016 = vsel %vm2543, %v5968, %v5280
      %v6017 = vsel %vm2543, %v5969, %v5282
      %v6018 = vsel %vm2543, %v5970, %v5284
      %v6019 = vsel %vm2543, %v5971, %v5286
      %v6020 = vsel %vm2543, %v5972, %v5288
      %v6021 = vsel %vm2576, %v5973, %v1561
      %v6022 = vsel %vm2576, %v5974, %v1563
      %v6023 = vsel %vm2576, %v5975, %v3543
      %v6024 = vsel %vm2576, %v5976, %v1565
      %v6025 = vsel %vm2576, %v5977, %v1567
      %v6026 = vsel %vm2576, %v5978, %v3545
      %v6027 = vsel %vm2576, %v5979, %v1569
      %v6028 = vsel %vm2576, %v5980, %v1571
      %v6029 = vsel %vm2576, %v5981, %v3547
      %v6030 = vsel %vm2576, %v5982, %v1573
      %v6031 = vsel %vm2576, %v5983, %v1575
      %v6032 = vsel %vm2576, %v5984, %v3549
      %v6033 = vsel %vm2576, %v5985, %v1577
      %v6034 = vsel %vm2576, %v5986, %v1579
      %v6035 = vsel %vm2576, %v5987, %v3551
      %v6036 = vsel %vm2576, %v5988, %v1581
      %v6037 = vsel %vm2576, %v5989, %v1583
      %v6038 = vsel %vm2576, %v5990, %v3553
      %v6039 = vsel %vm2576, %v5991, %v1585
      %v6040 = vsel %vm2576, %v5992, %v1587
      %v6041 = vsel %vm2576, %v5993, %v3555
      %v6042 = vsel %vm2576, %v5994, %v1589
      %v6043 = vsel %vm2576, %v5995, %v1591
      %v6044 = vsel %vm2576, %v5996, %v3557
      %v6045 = vsel %vm2576, %v5997, %v1593
      %v6046 = vsel %vm2576, %v5998, %v1595
      %v6047 = vsel %vm2576, %v5999, %v3559
      %v6048 = vsel %vm2576, %v6000, %v1597
      %v6049 = vsel %vm2576, %v6001, %v1599
      %v6050 = vsel %vm2576, %v6002, %v3561
      %v6051 = vsel %vm2576, %v6003, %v1601
      %v6052 = vsel %vm2576, %v6004, %v1603
      %v6053 = vsel %vm2576, %v6005, %v3563
      %v6054 = vsel %vm2576, %v6006, %v1605
      %v6055 = vsel %vm2576, %v6007, %v1607
      %v6056 = vsel %vm2576, %v6008, %v3565
      %v6057 = vsel %vm2576, %v6009, %v3567
      %v6058 = vsel %vm2576, %v6010, %v3569
      %v6059 = vsel %vm2576, %v6011, %v3571
      %v6060 = vsel %vm2576, %v6012, %v3573
      %v6061 = vsel %vm2576, %v6013, %v3575
      %v6062 = vsel %vm2576, %v6014, %v3577
      %v6063 = vsel %vm2576, %v6015, %v5301
      %v6064 = vsel %vm2576, %v6016, %v5303
      %v6065 = vsel %vm2576, %v6017, %v5305
      %v6066 = vsel %vm2576, %v6018, %v5307
      %v6067 = vsel %vm2576, %v6019, %v5309
      %v6068 = vsel %vm2576, %v6020, %v5311
      %v6069 = vsel %vm2609, %v6021, %v1662
      %v6070 = vsel %vm2609, %v6022, %v1664
      %v6071 = vsel %vm2609, %v6023, %v3608
      %v6072 = vsel %vm2609, %v6024, %v1666
      %v6073 = vsel %vm2609, %v6025, %v1668
      %v6074 = vsel %vm2609, %v6026, %v3610
      %v6075 = vsel %vm2609, %v6027, %v1670
      %v6076 = vsel %vm2609, %v6028, %v1672
      %v6077 = vsel %vm2609, %v6029, %v3612
      %v6078 = vsel %vm2609, %v6030, %v1674
      %v6079 = vsel %vm2609, %v6031, %v1676
      %v6080 = vsel %vm2609, %v6032, %v3614
      %v6081 = vsel %vm2609, %v6033, %v1678
      %v6082 = vsel %vm2609, %v6034, %v1680
      %v6083 = vsel %vm2609, %v6035, %v3616
      %v6084 = vsel %vm2609, %v6036, %v1682
      %v6085 = vsel %vm2609, %v6037, %v1684
      %v6086 = vsel %vm2609, %v6038, %v3618
      %v6087 = vsel %vm2609, %v6039, %v1686
      %v6088 = vsel %vm2609, %v6040, %v1688
      %v6089 = vsel %vm2609, %v6041, %v3620
      %v6090 = vsel %vm2609, %v6042, %v1690
      %v6091 = vsel %vm2609, %v6043, %v1692
      %v6092 = vsel %vm2609, %v6044, %v3622
      %v6093 = vsel %vm2609, %v6045, %v1694
      %v6094 = vsel %vm2609, %v6046, %v1696
      %v6095 = vsel %vm2609, %v6047, %v3624
      %v6096 = vsel %vm2609, %v6048, %v1698
      %v6097 = vsel %vm2609, %v6049, %v1700
      %v6098 = vsel %vm2609, %v6050, %v3626
      %v6099 = vsel %vm2609, %v6051, %v1702
      %v6100 = vsel %vm2609, %v6052, %v1704
      %v6101 = vsel %vm2609, %v6053, %v3628
      %v6102 = vsel %vm2609, %v6054, %v1706
      %v6103 = vsel %vm2609, %v6055, %v1708
      %v6104 = vsel %vm2609, %v6056, %v3630
      %v6105 = vsel %vm2609, %v6057, %v3632
      %v6106 = vsel %vm2609, %v6058, %v3634
      %v6107 = vsel %vm2609, %v6059, %v3636
      %v6108 = vsel %vm2609, %v6060, %v3638
      %v6109 = vsel %vm2609, %v6061, %v3640
      %v6110 = vsel %vm2609, %v6062, %v3642
      %v6111 = vsel %vm2609, %v6063, %v5324
      %v6112 = vsel %vm2609, %v6064, %v5326
      %v6113 = vsel %vm2609, %v6065, %v5328
      %v6114 = vsel %vm2609, %v6066, %v5330
      %v6115 = vsel %vm2609, %v6067, %v5332
      %v6116 = vsel %vm2609, %v6068, %v5334
      %v6117 = vsel %vm2642, %v6069, %v5347
      %v6118 = vsel %vm2642, %v6070, %v5349
      %v6119 = vsel %vm2642, %v6071, %v5351
      %v6120 = vsel %vm2642, %v6072, %v5353
      %v6121 = vsel %vm2642, %v6073, %v5355
      %v6122 = vsel %vm2642, %v6074, %v5357
      %v6123 = vsel %vm2642, %v6075, %v5359
      %v6124 = vsel %vm2642, %v6076, %v5361
      %v6125 = vsel %vm2642, %v6077, %v5363
      %v6126 = vsel %vm2642, %v6078, %v5365
      %v6127 = vsel %vm2642, %v6079, %v5367
      %v6128 = vsel %vm2642, %v6080, %v5369
      %v6129 = vsel %vm2642, %v6081, %v5371
      %v6130 = vsel %vm2642, %v6082, %v5373
      %v6131 = vsel %vm2642, %v6083, %v5375
      %v6132 = vsel %vm2642, %v6084, %v5377
      %v6133 = vsel %vm2642, %v6085, %v5379
      %v6134 = vsel %vm2642, %v6086, %v5381
      %v6135 = vsel %vm2642, %v6087, %v5383
      %v6136 = vsel %vm2642, %v6088, %v5385
      %v6137 = vsel %vm2642, %v6089, %v5387
      %v6138 = vsel %vm2642, %v6090, %v5389
      %v6139 = vsel %vm2642, %v6091, %v5391
      %v6140 = vsel %vm2642, %v6092, %v5393
      %v6141 = vsel %vm2642, %v6093, %v5395
      %v6142 = vsel %vm2642, %v6094, %v5397
      %v6143 = vsel %vm2642, %v6095, %v5399
      %v6144 = vsel %vm2642, %v6096, %v5401
      %v6145 = vsel %vm2642, %v6097, %v5403
      %v6146 = vsel %vm2642, %v6098, %v5405
      %v6147 = vsel %vm2642, %v6099, %v5407
      %v6148 = vsel %vm2642, %v6100, %v5409
      %v6149 = vsel %vm2642, %v6101, %v5411
      %v6150 = vsel %vm2642, %v6102, %v5413
      %v6151 = vsel %vm2642, %v6103, %v5415
      %v6152 = vsel %vm2642, %v6104, %v5417
      %v6153 = vsel %vm2642, %v6105, %v5419
      %v6154 = vsel %vm2642, %v6106, %v5421
      %v6155 = vsel %vm2642, %v6107, %v5423
      %v6156 = vsel %vm2642, %v6108, %v5425
      %v6157 = vsel %vm2642, %v6109, %v5427
      %v6158 = vsel %vm2642, %v6110, %v5429
      %v6159 = vsel %vm2642, %v6111, %v5431
      %v6160 = vsel %vm2642, %v6112, %v5433
      %v6161 = vsel %vm2642, %v6113, %v5435
      %v6162 = vsel %vm2642, %v6114, %v5437
      %v6163 = vsel %vm2642, %v6115, %v5439
      %v6164 = vsel %vm2642, %v6116, %v5441
      %v6165 = vsel %vm2675, %v6117, %v5497
      %v6166 = vsel %vm2675, %v6118, %v5499
      %v6167 = vsel %vm2675, %v6119, %v5501
      %v6168 = vsel %vm2675, %v6120, %v5503
      %v6169 = vsel %vm2675, %v6121, %v5505
      %v6170 = vsel %vm2675, %v6122, %v5507
      %v6171 = vsel %vm2675, %v6123, %v5509
      %v6172 = vsel %vm2675, %v6124, %v5511
      %v6173 = vsel %vm2675, %v6125, %v5513
      %v6174 = vsel %vm2675, %v6126, %v5515
      %v6175 = vsel %vm2675, %v6127, %v5517
      %v6176 = vsel %vm2675, %v6128, %v5519
      %v6177 = vsel %vm2675, %v6129, %v5521
      %v6178 = vsel %vm2675, %v6130, %v5523
      %v6179 = vsel %vm2675, %v6131, %v5525
      %v6180 = vsel %vm2675, %v6132, %v5527
      %v6181 = vsel %vm2675, %v6133, %v5529
      %v6182 = vsel %vm2675, %v6134, %v5531
      %v6183 = vsel %vm2675, %v6135, %v5533
      %v6184 = vsel %vm2675, %v6136, %v5535
      %v6185 = vsel %vm2675, %v6137, %v5537
      %v6186 = vsel %vm2675, %v6138, %v5539
      %v6187 = vsel %vm2675, %v6139, %v5541
      %v6188 = vsel %vm2675, %v6140, %v5543
      %v6189 = vsel %vm2675, %v6141, %v5545
      %v6190 = vsel %vm2675, %v6142, %v5547
      %v6191 = vsel %vm2675, %v6143, %v5549
      %v6192 = vsel %vm2675, %v6144, %v5551
      %v6193 = vsel %vm2675, %v6145, %v5553
      %v6194 = vsel %vm2675, %v6146, %v5555
      %v6195 = vsel %vm2675, %v6147, %v5557
      %v6196 = vsel %vm2675, %v6148, %v5559
      %v6197 = vsel %vm2675, %v6149, %v5561
      %v6198 = vsel %vm2675, %v6150, %v5563
      %v6199 = vsel %vm2675, %v6151, %v5565
      %v6200 = vsel %vm2675, %v6152, %v5567
      %v6201 = vsel %vm2675, %v6153, %v5569
      %v6202 = vsel %vm2675, %v6154, %v5571
      %v6203 = vsel %vm2675, %v6155, %v5573
      %v6204 = vsel %vm2675, %v6156, %v5575
      %v6205 = vsel %vm2675, %v6157, %v5577
      %v6206 = vsel %vm2675, %v6158, %v5579
      %v6207 = vsel %vm2675, %v6159, %v5581
      %v6208 = vsel %vm2675, %v6160, %v5583
      %v6209 = vsel %vm2675, %v6161, %v5585
      %v6210 = vsel %vm2675, %v6162, %v5587
      %v6211 = vsel %vm2675, %v6163, %v5589
      %v6212 = vsel %vm2675, %v6164, %v5591
      %v6213 = vsel %vm2708, %v6165, %v3811
      %v6214 = vsel %vm2708, %v6166, %v3813
      %v6215 = vsel %vm2708, %v6167, %v5646
      %v6216 = vsel %vm2708, %v6168, %v3817
      %v6217 = vsel %vm2708, %v6169, %v3819
      %v6218 = vsel %vm2708, %v6170, %v5648
      %v6219 = vsel %vm2708, %v6171, %v3823
      %v6220 = vsel %vm2708, %v6172, %v3825
      %v6221 = vsel %vm2708, %v6173, %v5650
      %v6222 = vsel %vm2708, %v6174, %v3829
      %v6223 = vsel %vm2708, %v6175, %v3831
      %v6224 = vsel %vm2708, %v6176, %v5652
      %v6225 = vsel %vm2708, %v6177, %v3835
      %v6226 = vsel %vm2708, %v6178, %v3837
      %v6227 = vsel %vm2708, %v6179, %v5654
      %v6228 = vsel %vm2708, %v6180, %v3841
      %v6229 = vsel %vm2708, %v6181, %v3843
      %v6230 = vsel %vm2708, %v6182, %v5656
      %v6231 = vsel %vm2708, %v6183, %v3847
      %v6232 = vsel %vm2708, %v6184, %v3849
      %v6233 = vsel %vm2708, %v6185, %v5658
      %v6234 = vsel %vm2708, %v6186, %v3853
      %v6235 = vsel %vm2708, %v6187, %v3855
      %v6236 = vsel %vm2708, %v6188, %v5660
      %v6237 = vsel %vm2708, %v6189, %v3859
      %v6238 = vsel %vm2708, %v6190, %v3861
      %v6239 = vsel %vm2708, %v6191, %v5662
      %v6240 = vsel %vm2708, %v6192, %v3865
      %v6241 = vsel %vm2708, %v6193, %v3867
      %v6242 = vsel %vm2708, %v6194, %v5664
      %v6243 = vsel %vm2708, %v6195, %v3871
      %v6244 = vsel %vm2708, %v6196, %v3873
      %v6245 = vsel %vm2708, %v6197, %v5666
      %v6246 = vsel %vm2708, %v6198, %v3877
      %v6247 = vsel %vm2708, %v6199, %v3879
      %v6248 = vsel %vm2708, %v6200, %v5668
      %v6249 = vsel %vm2708, %v6201, %v3883
      %v6250 = vsel %vm2708, %v6202, %v3885
      %v6251 = vsel %vm2708, %v6203, %v5670
      %v6252 = vsel %vm2708, %v6204, %v3889
      %v6253 = vsel %vm2708, %v6205, %v3891
      %v6254 = vsel %vm2708, %v6206, %v5672
      %v6255 = vsel %vm2708, %v6207, %v5674
      %v6256 = vsel %vm2708, %v6208, %v5676
      %v6257 = vsel %vm2708, %v6209, %v5678
      %v6258 = vsel %vm2708, %v6210, %v5680
      %v6259 = vsel %vm2708, %v6211, %v5682
      %v6260 = vsel %vm2708, %v6212, %v5684
      %v6261 = vsel %vm2741, %v6213, %v3961
      %v6262 = vsel %vm2741, %v6214, %v3963
      %v6263 = vsel %vm2741, %v6215, %v3965
      %v6264 = vsel %vm2741, %v6216, %v3967
      %v6265 = vsel %vm2741, %v6217, %v3969
      %v6266 = vsel %vm2741, %v6218, %v3971
      %v6267 = vsel %vm2741, %v6219, %v3973
      %v6268 = vsel %vm2741, %v6220, %v3975
      %v6269 = vsel %vm2741, %v6221, %v3977
      %v6270 = vsel %vm2741, %v6222, %v3979
      %v6271 = vsel %vm2741, %v6223, %v3981
      %v6272 = vsel %vm2741, %v6224, %v3983
      %v6273 = vsel %vm2741, %v6225, %v3985
      %v6274 = vsel %vm2741, %v6226, %v3987
      %v6275 = vsel %vm2741, %v6227, %v3989
      %v6276 = vsel %vm2741, %v6228, %v3991
      %v6277 = vsel %vm2741, %v6229, %v3993
      %v6278 = vsel %vm2741, %v6230, %v3995
      %v6279 = vsel %vm2741, %v6231, %v3997
      %v6280 = vsel %vm2741, %v6232, %v3999
      %v6281 = vsel %vm2741, %v6233, %v4001
      %v6282 = vsel %vm2741, %v6234, %v4003
      %v6283 = vsel %vm2741, %v6235, %v4005
      %v6284 = vsel %vm2741, %v6236, %v4007
      %v6285 = vsel %vm2741, %v6237, %v4009
      %v6286 = vsel %vm2741, %v6238, %v4011
      %v6287 = vsel %vm2741, %v6239, %v4013
      %v6288 = vsel %vm2741, %v6240, %v4015
      %v6289 = vsel %vm2741, %v6241, %v4017
      %v6290 = vsel %vm2741, %v6242, %v4019
      %v6291 = vsel %vm2741, %v6243, %v4021
      %v6292 = vsel %vm2741, %v6244, %v4023
      %v6293 = vsel %vm2741, %v6245, %v4025
      %v6294 = vsel %vm2741, %v6246, %v4027
      %v6295 = vsel %vm2741, %v6247, %v4029
      %v6296 = vsel %vm2741, %v6248, %v4031
      %v6297 = vsel %vm2741, %v6249, %v4033
      %v6298 = vsel %vm2741, %v6250, %v4035
      %v6299 = vsel %vm2741, %v6251, %v4037
      %v6300 = vsel %vm2741, %v6252, %v4039
      %v6301 = vsel %vm2741, %v6253, %v4041
      %v6302 = vsel %vm2741, %v6254, %v4043
      %v6303 = vsel %vm2741, %v6255, %v5711
      %v6304 = vsel %vm2741, %v6256, %v5713
      %v6305 = vsel %vm2741, %v6257, %v5715
      %v6306 = vsel %vm2741, %v6258, %v5717
      %v6307 = vsel %vm2741, %v6259, %v5719
      %v6308 = vsel %vm2741, %v6260, %v5721
      %v6309 = vsel %vm2774, %v6261, %v2164
      %v6310 = vsel %vm2774, %v6262, %v2166
      %v6311 = vsel %vm2774, %v6263, %v4097
      %v6312 = vsel %vm2774, %v6264, %v2168
      %v6313 = vsel %vm2774, %v6265, %v2170
      %v6314 = vsel %vm2774, %v6266, %v4099
      %v6315 = vsel %vm2774, %v6267, %v2172
      %v6316 = vsel %vm2774, %v6268, %v2174
      %v6317 = vsel %vm2774, %v6269, %v4101
      %v6318 = vsel %vm2774, %v6270, %v2176
      %v6319 = vsel %vm2774, %v6271, %v2178
      %v6320 = vsel %vm2774, %v6272, %v4103
      %v6321 = vsel %vm2774, %v6273, %v2180
      %v6322 = vsel %vm2774, %v6274, %v2182
      %v6323 = vsel %vm2774, %v6275, %v4105
      %v6324 = vsel %vm2774, %v6276, %v2184
      %v6325 = vsel %vm2774, %v6277, %v2186
      %v6326 = vsel %vm2774, %v6278, %v4107
      %v6327 = vsel %vm2774, %v6279, %v2188
      %v6328 = vsel %vm2774, %v6280, %v2190
      %v6329 = vsel %vm2774, %v6281, %v4109
      %v6330 = vsel %vm2774, %v6282, %v2192
      %v6331 = vsel %vm2774, %v6283, %v2194
      %v6332 = vsel %vm2774, %v6284, %v4111
      %v6333 = vsel %vm2774, %v6285, %v2196
      %v6334 = vsel %vm2774, %v6286, %v2198
      %v6335 = vsel %vm2774, %v6287, %v4113
      %v6336 = vsel %vm2774, %v6288, %v2200
      %v6337 = vsel %vm2774, %v6289, %v2202
      %v6338 = vsel %vm2774, %v6290, %v4115
      %v6339 = vsel %vm2774, %v6291, %v2204
      %v6340 = vsel %vm2774, %v6292, %v2206
      %v6341 = vsel %vm2774, %v6293, %v4117
      %v6342 = vsel %vm2774, %v6294, %v2208
      %v6343 = vsel %vm2774, %v6295, %v2210
      %v6344 = vsel %vm2774, %v6296, %v4119
      %v6345 = vsel %vm2774, %v6297, %v4121
      %v6346 = vsel %vm2774, %v6298, %v4123
      %v6347 = vsel %vm2774, %v6299, %v4125
      %v6348 = vsel %vm2774, %v6300, %v4127
      %v6349 = vsel %vm2774, %v6301, %v4129
      %v6350 = vsel %vm2774, %v6302, %v4131
      %v6351 = vsel %vm2774, %v6303, %v5729
      %v6352 = vsel %vm2774, %v6304, %v5731
      %v6353 = vsel %vm2774, %v6305, %v5733
      %v6354 = vsel %vm2774, %v6306, %v5735
      %v6355 = vsel %vm2774, %v6307, %v5737
      %v6356 = vsel %vm2774, %v6308, %v5739
      %v6357 = vsel %vm2807, %v6309, %v2266
      %v6358 = vsel %vm2807, %v6310, %v2268
      %v6359 = vsel %vm2807, %v6311, %v4162
      %v6360 = vsel %vm2807, %v6312, %v2270
      %v6361 = vsel %vm2807, %v6313, %v2272
      %v6362 = vsel %vm2807, %v6314, %v4164
      %v6363 = vsel %vm2807, %v6315, %v2274
      %v6364 = vsel %vm2807, %v6316, %v2276
      %v6365 = vsel %vm2807, %v6317, %v4166
      %v6366 = vsel %vm2807, %v6318, %v2278
      %v6367 = vsel %vm2807, %v6319, %v2280
      %v6368 = vsel %vm2807, %v6320, %v4168
      %v6369 = vsel %vm2807, %v6321, %v2282
      %v6370 = vsel %vm2807, %v6322, %v2284
      %v6371 = vsel %vm2807, %v6323, %v4170
      %v6372 = vsel %vm2807, %v6324, %v2286
      %v6373 = vsel %vm2807, %v6325, %v2288
      %v6374 = vsel %vm2807, %v6326, %v4172
      %v6375 = vsel %vm2807, %v6327, %v2290
      %v6376 = vsel %vm2807, %v6328, %v2292
      %v6377 = vsel %vm2807, %v6329, %v4174
      %v6378 = vsel %vm2807, %v6330, %v2294
      %v6379 = vsel %vm2807, %v6331, %v2296
      %v6380 = vsel %vm2807, %v6332, %v4176
      %v6381 = vsel %vm2807, %v6333, %v2298
      %v6382 = vsel %vm2807, %v6334, %v2300
      %v6383 = vsel %vm2807, %v6335, %v4178
      %v6384 = vsel %vm2807, %v6336, %v2302
      %v6385 = vsel %vm2807, %v6337, %v2304
      %v6386 = vsel %vm2807, %v6338, %v4180
      %v6387 = vsel %vm2807, %v6339, %v2306
      %v6388 = vsel %vm2807, %v6340, %v2308
      %v6389 = vsel %vm2807, %v6341, %v4182
      %v6390 = vsel %vm2807, %v6342, %v2310
      %v6391 = vsel %vm2807, %v6343, %v2312
      %v6392 = vsel %vm2807, %v6344, %v4184
      %v6393 = vsel %vm2807, %v6345, %v4186
      %v6394 = vsel %vm2807, %v6346, %v4188
      %v6395 = vsel %vm2807, %v6347, %v4190
      %v6396 = vsel %vm2807, %v6348, %v4192
      %v6397 = vsel %vm2807, %v6349, %v4194
      %v6398 = vsel %vm2807, %v6350, %v4196
      %v6399 = vsel %vm2807, %v6351, %v5752
      %v6400 = vsel %vm2807, %v6352, %v5754
      %v6401 = vsel %vm2807, %v6353, %v5756
      %v6402 = vsel %vm2807, %v6354, %v5758
      %v6403 = vsel %vm2807, %v6355, %v5760
      %v6404 = vsel %vm2807, %v6356, %v5762
      %v6453 = vrot.slane %v4777, 2
      %v6454 = vrot.slane %v4778, 2
      %v6455 = vsel %vm555, %v6453, %v6454
      %v6456 = vrot.slane %v4779, 2
      %v6457 = vsel %vm555, %v6454, %v6456
      %v6458 = vrot.slane %v4780, 2
      %v6459 = vrot.slane %v4781, 2
      %v6460 = vsel %vm555, %v6458, %v6459
      %v6461 = vrot.slane %v4782, 2
      %v6462 = vsel %vm555, %v6459, %v6461
      %v6463 = vrot.slane %v4783, 2
      %v6464 = vrot.slane %v4784, 2
      %v6465 = vsel %vm555, %v6463, %v6464
      %v6466 = vrot.slane %v4785, 2
      %v6467 = vsel %vm555, %v6464, %v6466
      %v6468 = vrot.slane %v4786, 2
      %v6469 = vrot.slane %v4787, 2
      %v6470 = vsel %vm555, %v6468, %v6469
      %v6471 = vrot.slane %v4788, 2
      %v6472 = vsel %vm555, %v6469, %v6471
      %v6473 = vrot.slane %v4789, 2
      %v6474 = vrot.slane %v4790, 2
      %v6475 = vsel %vm555, %v6473, %v6474
      %v6476 = vrot.slane %v4791, 2
      %v6477 = vsel %vm555, %v6474, %v6476
      %v6478 = vrot.slane %v4792, 2
      %v6479 = vrot.slane %v4793, 2
      %v6480 = vsel %vm555, %v6478, %v6479
      %v6481 = vrot.slane %v4794, 2
      %v6482 = vsel %vm555, %v6479, %v6481
      %v6483 = vrot.slane %v4795, 2
      %v6484 = vrot.slane %v4796, 2
      %v6485 = vsel %vm555, %v6483, %v6484
      %v6486 = vrot.slane %v4797, 2
      %v6487 = vsel %vm555, %v6484, %v6486
      %v6488 = vrot.slane %v4798, 2
      %v6489 = vrot.slane %v4799, 2
      %v6490 = vsel %vm555, %v6488, %v6489
      %v6491 = vrot.slane %v4800, 2
      %v6492 = vsel %vm555, %v6489, %v6491
      %v6493 = vrot.slane %v4801, 2
      %v6494 = vrot.slane %v4802, 2
      %v6495 = vsel %vm555, %v6493, %v6494
      %v6496 = vrot.slane %v4803, 2
      %v6497 = vsel %vm555, %v6494, %v6496
      %v6498 = vrot.slane %v4804, 2
      %v6499 = vrot.slane %v4805, 2
      %v6500 = vsel %vm555, %v6498, %v6499
      %v6501 = vrot.slane %v4806, 2
      %v6502 = vsel %vm555, %v6499, %v6501
      %v6503 = vrot.slane %v4807, 2
      %v6504 = vrot.slane %v4808, 2
      %v6505 = vsel %vm555, %v6503, %v6504
      %v6506 = vrot.slane %v4809, 2
      %v6507 = vsel %vm555, %v6504, %v6506
      %v6508 = vrot.slane %v4810, 2
      %v6509 = vrot.slane %v4811, 2
      %v6510 = vsel %vm555, %v6508, %v6509
      %v6511 = vrot.slane %v4812, 2
      %v6512 = vsel %vm555, %v6509, %v6511
      %v6513 = vrot.slane %v4813, 2
      %v6514 = vrot.slane %v4814, 2
      %v6515 = vsel %vm555, %v6513, %v6514
      %v6516 = vrot.slane %v4815, 2
      %v6517 = vsel %vm555, %v6514, %v6516
      %v6518 = vrot.slane %v4816, 2
      %v6519 = vrot.slane %v4817, 2
      %v6520 = vsel %vm555, %v6518, %v6519
      %v6521 = vrot.slane %v4818, 2
      %v6522 = vsel %vm555, %v6519, %v6521
      %v6523 = vrot.slane %v4819, 2
      %v6524 = vrot.slane %v4820, 2
      %v6525 = vsel %vm555, %v6523, %v6524
      %v6526 = vrot.slane %v4821, 2
      %v6527 = vsel %vm555, %v6524, %v6526
      %v6528 = vrot.slane %v4822, 2
      %v6529 = vrot.slane %v4823, 2
      %v6530 = vsel %vm555, %v6528, %v6529
      %v6531 = vrot.slane %v4824, 2
      %v6532 = vsel %vm555, %v6529, %v6531
      %6533 = vrot.lane.b32.xlu0 %v6455, 64
      %v6534 = vpop.permute.xlu0 %6533
      %6535 = vrot.lane.b32.xlu0 %v6457, 64
      %v6536 = vpop.permute.xlu0 %6535
      %6537 = vrot.lane.b32.xlu0 %v6460, 64
      %v6538 = vpop.permute.xlu0 %6537
      %6539 = vrot.lane.b32.xlu0 %v6462, 64
      %v6540 = vpop.permute.xlu0 %6539
      %6541 = vrot.lane.b32.xlu0 %v6465, 64
      %v6542 = vpop.permute.xlu0 %6541
      %6543 = vrot.lane.b32.xlu0 %v6467, 64
      %v6544 = vpop.permute.xlu0 %6543
      %6545 = vrot.lane.b32.xlu0 %v6470, 64
      %v6546 = vpop.permute.xlu0 %6545
      %6547 = vrot.lane.b32.xlu0 %v6472, 64
      %v6548 = vpop.permute.xlu0 %6547
      %6549 = vrot.lane.b32.xlu0 %v6475, 64
      %v6550 = vpop.permute.xlu0 %6549
      %6551 = vrot.lane.b32.xlu0 %v6477, 64
      %v6552 = vpop.permute.xlu0 %6551
      %6553 = vrot.lane.b32.xlu0 %v6480, 64
      %v6554 = vpop.permute.xlu0 %6553
      %6555 = vrot.lane.b32.xlu0 %v6482, 64
      %v6556 = vpop.permute.xlu0 %6555
      %6557 = vrot.lane.b32.xlu0 %v6485, 64
      %v6558 = vpop.permute.xlu0 %6557
      %6559 = vrot.lane.b32.xlu0 %v6487, 64
      %v6560 = vpop.permute.xlu0 %6559
      %6561 = vrot.lane.b32.xlu0 %v6490, 64
      %v6562 = vpop.permute.xlu0 %6561
      %6563 = vrot.lane.b32.xlu0 %v6492, 64
      %v6564 = vpop.permute.xlu0 %6563
      %6565 = vrot.lane.b32.xlu0 %v6495, 64
      %v6566 = vpop.permute.xlu0 %6565
      %6567 = vrot.lane.b32.xlu0 %v6497, 64
      %v6568 = vpop.permute.xlu0 %6567
      %6569 = vrot.lane.b32.xlu0 %v6500, 64
      %v6570 = vpop.permute.xlu0 %6569
      %6571 = vrot.lane.b32.xlu0 %v6502, 64
      %v6572 = vpop.permute.xlu0 %6571
      %6573 = vrot.lane.b32.xlu0 %v6505, 64
      %v6574 = vpop.permute.xlu0 %6573
      %6575 = vrot.lane.b32.xlu0 %v6507, 64
      %v6576 = vpop.permute.xlu0 %6575
      %6577 = vrot.lane.b32.xlu0 %v6510, 64
      %v6578 = vpop.permute.xlu0 %6577
      %6579 = vrot.lane.b32.xlu0 %v6512, 64
      %v6580 = vpop.permute.xlu0 %6579
      %6581 = vrot.lane.b32.xlu0 %v6515, 64
      %v6582 = vpop.permute.xlu0 %6581
      %6583 = vrot.lane.b32.xlu0 %v6517, 64
      %v6584 = vpop.permute.xlu0 %6583
      %6585 = vrot.lane.b32.xlu0 %v6520, 64
      %v6586 = vpop.permute.xlu0 %6585
      %6587 = vrot.lane.b32.xlu0 %v6522, 64
      %v6588 = vpop.permute.xlu0 %6587
      %6589 = vrot.lane.b32.xlu0 %v6525, 64
      %v6590 = vpop.permute.xlu0 %6589
      %6591 = vrot.lane.b32.xlu0 %v6527, 64
      %v6592 = vpop.permute.xlu0 %6591
      %6593 = vrot.lane.b32.xlu0 %v6530, 64
      %v6594 = vpop.permute.xlu0 %6593
      %6595 = vrot.lane.b32.xlu0 %v6532, 64
      %v6596 = vpop.permute.xlu0 %6595
      %v6677 = vrot.slane %v6357, 4
      %v6678 = vrot.slane %v6358, 4
      %v6679 = vsel %vm909, %v6677, %v6678
      %v6680 = vrot.slane %v6359, 4
      %v6681 = vsel %vm909, %v6678, %v6680
      %v6682 = vrot.slane %v6360, 4
      %v6683 = vrot.slane %v6361, 4
      %v6684 = vsel %vm909, %v6682, %v6683
      %v6685 = vrot.slane %v6362, 4
      %v6686 = vsel %vm909, %v6683, %v6685
      %v6687 = vrot.slane %v6363, 4
      %v6688 = vrot.slane %v6364, 4
      %v6689 = vsel %vm909, %v6687, %v6688
      %v6690 = vrot.slane %v6365, 4
      %v6691 = vsel %vm909, %v6688, %v6690
      %v6692 = vrot.slane %v6366, 4
      %v6693 = vrot.slane %v6367, 4
      %v6694 = vsel %vm909, %v6692, %v6693
      %v6695 = vrot.slane %v6368, 4
      %v6696 = vsel %vm909, %v6693, %v6695
      %v6697 = vrot.slane %v6369, 4
      %v6698 = vrot.slane %v6370, 4
      %v6699 = vsel %vm909, %v6697, %v6698
      %v6700 = vrot.slane %v6371, 4
      %v6701 = vsel %vm909, %v6698, %v6700
      %v6702 = vrot.slane %v6372, 4
      %v6703 = vrot.slane %v6373, 4
      %v6704 = vsel %vm909, %v6702, %v6703
      %v6705 = vrot.slane %v6374, 4
      %v6706 = vsel %vm909, %v6703, %v6705
      %v6707 = vrot.slane %v6375, 4
      %v6708 = vrot.slane %v6376, 4
      %v6709 = vsel %vm909, %v6707, %v6708
      %v6710 = vrot.slane %v6377, 4
      %v6711 = vsel %vm909, %v6708, %v6710
      %v6712 = vrot.slane %v6378, 4
      %v6713 = vrot.slane %v6379, 4
      %v6714 = vsel %vm909, %v6712, %v6713
      %v6715 = vrot.slane %v6380, 4
      %v6716 = vsel %vm909, %v6713, %v6715
      %v6717 = vrot.slane %v6381, 4
      %v6718 = vrot.slane %v6382, 4
      %v6719 = vsel %vm909, %v6717, %v6718
      %v6720 = vrot.slane %v6383, 4
      %v6721 = vsel %vm909, %v6718, %v6720
      %v6722 = vrot.slane %v6384, 4
      %v6723 = vrot.slane %v6385, 4
      %v6724 = vsel %vm909, %v6722, %v6723
      %v6725 = vrot.slane %v6386, 4
      %v6726 = vsel %vm909, %v6723, %v6725
      %v6727 = vrot.slane %v6387, 4
      %v6728 = vrot.slane %v6388, 4
      %v6729 = vsel %vm909, %v6727, %v6728
      %v6730 = vrot.slane %v6389, 4
      %v6731 = vsel %vm909, %v6728, %v6730
      %v6732 = vrot.slane %v6390, 4
      %v6733 = vrot.slane %v6391, 4
      %v6734 = vsel %vm909, %v6732, %v6733
      %v6735 = vrot.slane %v6392, 4
      %v6736 = vsel %vm909, %v6733, %v6735
      %v6737 = vrot.slane %v6393, 4
      %v6738 = vrot.slane %v6394, 4
      %v6739 = vsel %vm909, %v6737, %v6738
      %v6740 = vrot.slane %v6395, 4
      %v6741 = vsel %vm909, %v6738, %v6740
      %v6742 = vrot.slane %v6396, 4
      %v6743 = vrot.slane %v6397, 4
      %v6744 = vsel %vm909, %v6742, %v6743
      %v6745 = vrot.slane %v6398, 4
      %v6746 = vsel %vm909, %v6743, %v6745
      %v6747 = vrot.slane %v6399, 4
      %v6748 = vrot.slane %v6400, 4
      %v6749 = vsel %vm909, %v6747, %v6748
      %v6750 = vrot.slane %v6401, 4
      %v6751 = vsel %vm909, %v6748, %v6750
      %v6752 = vrot.slane %v6402, 4
      %v6753 = vrot.slane %v6403, 4
      %v6754 = vsel %vm909, %v6752, %v6753
      %v6755 = vrot.slane %v6404, 4
      %v6756 = vsel %vm909, %v6753, %v6755
      %6789 = vrot.lane.b32.xlu0 %v1296, 64
      %v6790 = vpop.permute.xlu0 %6789
      %6791 = vrot.lane.b32.xlu0 %v1298, 64
      %v6792 = vpop.permute.xlu0 %6791
      %6793 = vrot.lane.b32.xlu0 %v1301, 64
      %v6794 = vpop.permute.xlu0 %6793
      %6795 = vrot.lane.b32.xlu0 %v1303, 64
      %v6796 = vpop.permute.xlu0 %6795
      %6797 = vrot.lane.b32.xlu0 %v1306, 64
      %v6798 = vpop.permute.xlu0 %6797
      %6799 = vrot.lane.b32.xlu0 %v1308, 64
      %v6800 = vpop.permute.xlu0 %6799
      %6801 = vrot.lane.b32.xlu0 %v1311, 64
      %v6802 = vpop.permute.xlu0 %6801
      %6803 = vrot.lane.b32.xlu0 %v1313, 64
      %v6804 = vpop.permute.xlu0 %6803
      %6805 = vrot.lane.b32.xlu0 %v1316, 64
      %v6806 = vpop.permute.xlu0 %6805
      %6807 = vrot.lane.b32.xlu0 %v1318, 64
      %v6808 = vpop.permute.xlu0 %6807
      %6809 = vrot.lane.b32.xlu0 %v1321, 64
      %v6810 = vpop.permute.xlu0 %6809
      %6811 = vrot.lane.b32.xlu0 %v1323, 64
      %v6812 = vpop.permute.xlu0 %6811
      %6813 = vrot.lane.b32.xlu0 %v1326, 64
      %v6814 = vpop.permute.xlu0 %6813
      %6815 = vrot.lane.b32.xlu0 %v1328, 64
      %v6816 = vpop.permute.xlu0 %6815
      %6817 = vrot.lane.b32.xlu0 %v1331, 64
      %v6818 = vpop.permute.xlu0 %6817
      %6819 = vrot.lane.b32.xlu0 %v1333, 64
      %v6820 = vpop.permute.xlu0 %6819
      %6821 = vrot.lane.b32.xlu0 %v1336, 64
      %v6822 = vpop.permute.xlu0 %6821
      %6823 = vrot.lane.b32.xlu0 %v1338, 64
      %v6824 = vpop.permute.xlu0 %6823
      %6825 = vrot.lane.b32.xlu0 %v1341, 64
      %v6826 = vpop.permute.xlu0 %6825
      %6827 = vrot.lane.b32.xlu0 %v1343, 64
      %v6828 = vpop.permute.xlu0 %6827
      %6829 = vrot.lane.b32.xlu0 %v2046, 64
      %v6830 = vpop.permute.xlu0 %6829
      %6831 = vrot.lane.b32.xlu0 %v2048, 64
      %v6832 = vpop.permute.xlu0 %6831
      %6833 = vrot.lane.b32.xlu0 %v3099, 64
      %v6834 = vpop.permute.xlu0 %6833
      %6835 = vrot.lane.b32.xlu0 %v5184, 64
      %v6836 = vpop.permute.xlu0 %6835
      %6837 = vrot.lane.b32.xlu0 %v3102, 64
      %v6838 = vpop.permute.xlu0 %6837
      %6839 = vrot.lane.b32.xlu0 %v5186, 64
      %v6840 = vpop.permute.xlu0 %6839
      %6841 = vrot.lane.b32.xlu0 %v3797, 64
      %v6842 = vpop.permute.xlu0 %6841
      %6843 = vrot.lane.b32.xlu0 %v5188, 64
      %v6844 = vpop.permute.xlu0 %6843
      %6845 = vrot.lane.b32.xlu0 %v5191, 64
      %v6846 = vpop.permute.xlu0 %6845
      %6847 = vrot.lane.b32.xlu0 %v5193, 64
      %v6848 = vpop.permute.xlu0 %6847
      %6849 = vrot.lane.b32.xlu0 %v5642, 64
      %v6850 = vpop.permute.xlu0 %6849
      %6851 = vrot.lane.b32.xlu0 %v5644, 64
      %v6852 = vpop.permute.xlu0 %6851
      %vm6885 = vcmask 523264
      %v6886 = vsel %vm6885, %v2808, %v6534
      %v6887 = vsel %vm6885, %v2809, %v6536
      %v6888 = vsel %vm6885, %v2810, %v6538
      %v6889 = vsel %vm6885, %v2811, %v6540
      %v6890 = vsel %vm6885, %v2812, %v6542
      %v6891 = vsel %vm6885, %v2813, %v6544
      %v6892 = vsel %vm6885, %v2814, %v6546
      %v6893 = vsel %vm6885, %v2815, %v6548
      %v6894 = vsel %vm6885, %v2816, %v6550
      %v6895 = vsel %vm6885, %v2817, %v6552
      %v6896 = vsel %vm6885, %v2818, %v6554
      %v6897 = vsel %vm6885, %v2819, %v6556
      %v6898 = vsel %vm6885, %v2820, %v6558
      %v6899 = vsel %vm6885, %v2821, %v6560
      %v6900 = vsel %vm6885, %v2822, %v6562
      %v6901 = vsel %vm6885, %v2823, %v6564
      %v6902 = vsel %vm6885, %v2824, %v6566
      %v6903 = vsel %vm6885, %v2825, %v6568
      %v6904 = vsel %vm6885, %v2826, %v6570
      %v6905 = vsel %vm6885, %v2827, %v6572
      %v6906 = vsel %vm6885, %v2828, %v6574
      %v6907 = vsel %vm6885, %v2829, %v6576
      %v6908 = vsel %vm6885, %v2830, %v6578
      %v6909 = vsel %vm6885, %v2831, %v6580
      %v6910 = vsel %vm6885, %v2832, %v6582
      %v6911 = vsel %vm6885, %v2833, %v6584
      %v6912 = vsel %vm6885, %v2834, %v6586
      %v6913 = vsel %vm6885, %v2835, %v6588
      %v6914 = vsel %vm6885, %v2836, %v6590
      %v6915 = vsel %vm6885, %v2837, %v6592
      %v6916 = vsel %vm6885, %v2838, %v6594
      %v6917 = vsel %vm6885, %v2839, %v6596
      %v6918 = vsel %vm6885, %v6679, %v6790
      %v6919 = vsel %vm6885, %v6681, %v6792
      %v6920 = vsel %vm6885, %v6684, %v6794
      %v6921 = vsel %vm6885, %v6686, %v6796
      %v6922 = vsel %vm6885, %v6689, %v6798
      %v6923 = vsel %vm6885, %v6691, %v6800
      %v6924 = vsel %vm6885, %v6694, %v6802
      %v6925 = vsel %vm6885, %v6696, %v6804
      %v6926 = vsel %vm6885, %v6699, %v6806
      %v6927 = vsel %vm6885, %v6701, %v6808
      %v6928 = vsel %vm6885, %v6704, %v6810
      %v6929 = vsel %vm6885, %v6706, %v6812
      %v6930 = vsel %vm6885, %v6709, %v6814
      %v6931 = vsel %vm6885, %v6711, %v6816
      %v6932 = vsel %vm6885, %v6714, %v6818
      %v6933 = vsel %vm6885, %v6716, %v6820
      %v6934 = vsel %vm6885, %v6719, %v6822
      %v6935 = vsel %vm6885, %v6721, %v6824
      %v6936 = vsel %vm6885, %v6724, %v6826
      %v6937 = vsel %vm6885, %v6726, %v6828
      %v6938 = vsel %vm6885, %v6729, %v6830
      %v6939 = vsel %vm6885, %v6731, %v6832
      %v6940 = vsel %vm6885, %v6734, %v6834
      %v6941 = vsel %vm6885, %v6736, %v6836
      %v6942 = vsel %vm6885, %v6739, %v6838
      %v6943 = vsel %vm6885, %v6741, %v6840
      %v6944 = vsel %vm6885, %v6744, %v6842
      %v6945 = vsel %vm6885, %v6746, %v6844
      %v6946 = vsel %vm6885, %v6749, %v6846
      %v6947 = vsel %vm6885, %v6751, %v6848
      %v6948 = vsel %vm6885, %v6754, %v6850
      %v6949 = vsel %vm6885, %v6756, %v6852
      %v6950 = vpack.c.bf16 %v6887, %v6886
      %v6951 = vpack.c.bf16 %v6919, %v6918
      %v6953 = vperm.slane %v329, 0
      %v6980 = vunpack.c.l.b16 %v304
      %v6981 = vunpack.c.l.b16 %v305
      %v6982 = vunpack.c.l.b16 %v306
      %v6983 = vunpack.c.l.b16 %v307
      %v6984 = vunpack.c.l.b16 %v308
      %v6985 = vunpack.c.l.b16 %v309
      %v6986 = vunpack.c.l.b16 %v310
      %v6987 = vunpack.c.l.b16 %v311
      %v6988 = vunpack.c.l.b16 %v312
      %v6989 = vunpack.c.l.b16 %v313
      %v6990 = vunpack.c.l.b16 %v314
      %v6991 = vunpack.c.l.b16 %v315
      %v6992 = vunpack.c.l.b16 %v316
      %v6993 = vunpack.c.l.b16 %v317
      %v6994 = vunpack.c.l.b16 %v318
      %v6995 = vunpack.c.l.b16 %v319
      %v6996 = vunpack.c.l.b16 %v320
      %v6997 = vunpack.c.l.b16 %v321
      %v6998 = vunpack.c.l.b16 %v322
      %v6999 = vunpack.c.l.b16 %v323
      %v7000 = vunpack.c.l.b16 %v324
      %v7001 = vunpack.c.l.b16 %v325
      %v7002 = vunpack.c.l.b16 %v326
      %v7003 = vunpack.c.l.b16 %v327
      %v7004 = vunpack.c.l.b16 %v328
      %v7005 = vpack.c.b16 %v6981, %v6980
      %v7006 = vpack.c.b16 %v6983, %v6982
      %v7007 = vpack.c.b16 %v6985, %v6984
      %v7008 = vpack.c.b16 %v6987, %v6986
      %v7009 = vpack.c.b16 %v6989, %v6988
      %v7010 = vpack.c.b16 %v6991, %v6990
      %v7011 = vpack.c.b16 %v6993, %v6992
      %v7012 = vpack.c.b16 %v6995, %v6994
      %v7013 = vpack.c.b16 %v6997, %v6996
      %v7014 = vpack.c.b16 %v6999, %v6998
      %v7015 = vpack.c.b16 %v7001, %v7000
      %v7016 = vpack.c.b16 %v7003, %v7002
      %v7017 = vpack.c.b16 %v7004, %v7004
      %vm7030 = vcmask 556032
      %v7032 = vsel %vm7030, %v6951, 0
      %v7035 = vsel %vm1263, %v7017, 0
      %7037 = vmatpush.bf16.msra.mxu0 %v7012
      %7038 = vmatpush.bf16.msra.mxu0 %v7011
      %7039 = vmatpush.bf16.msra.mxu0 %v7010
      %7040 = vmatpush.bf16.msra.mxu0 %v7009
      %7041 = vmatpush.bf16.msra.mxu0 %v7008
      %7042 = vmatpush.bf16.msra.mxu0 %v7007
      %7043 = vmatpush.bf16.msra.mxu0 %v7006
      %7044 = vmatpush.bf16.msra.mxu0 %v7005
      %7045 = vmatmul.bf16.gmra.mxu0 %v6950
      %v7046 = vpop.f32.mrf.mxu0
      %v7047 = vadd.f32 %v6953, %v7046
      %v7048 = vpop.f32.mrf.mxu0
      %v7049 = vadd.f32 %v6953, %v7048
      %7050 = vdwg.mxu0
      %7051 = vmatpush.bf16.msra.mxu0 0
      %7052 = vmatpush.bf16.msra.mxu0 0
      %7053 = vmatpush.bf16.msra.mxu0 0
      %7054 = vmatpush.bf16.msra.mxu0 %v7035
      %7055 = vmatpush.bf16.msra.mxu0 %v7016
      %7056 = vmatpush.bf16.msra.mxu0 %v7015
      %7057 = vmatpush.bf16.msra.mxu0 %v7014
      %7058 = vmatpush.bf16.msra.mxu0 %v7013
      %7059 = vmatmul.bf16.gmra.mxu0 %v7032
      %v7060 = vpop.f32.mrf.mxu0
      %v7061 = vadd.f32 %v7047, %v7060
      %v7062 = vpop.f32.mrf.mxu0
      %v7063 = vadd.f32 %v7049, %v7062
      %7064 = vdwg.mxu0
      %vm7065 = vcmp.ge.f32.partialorder %v7061, 0.0
      %vm7066 = vcmp.ge.f32.partialorder %v7063, 0.0
      %v7067 = vmul.f32 %v7061, 0.2
      %v7068 = vmul.f32 %v7063, 0.2
      %v7069 = vsel %vm7065, %v7061, %v7067
      %v7070 = vsel %vm7066, %v7063, %v7068
      %v7071 = vpack.c.bf16 %v6889, %v6888
      %v7072 = vpack.c.bf16 %v6921, %v6920
      %v7074 = vsel %vm7030, %v7072, 0
      %7076 = vmatpush.bf16.msra.mxu0 %v7012
      %7077 = vmatpush.bf16.msra.mxu0 %v7011
      %7078 = vmatpush.bf16.msra.mxu0 %v7010
      %7079 = vmatpush.bf16.msra.mxu0 %v7009
      %7080 = vmatpush.bf16.msra.mxu0 %v7008
      %7081 = vmatpush.bf16.msra.mxu0 %v7007
      %7082 = vmatpush.bf16.msra.mxu0 %v7006
      %7083 = vmatpush.bf16.msra.mxu0 %v7005
      %7084 = vmatmul.bf16.gmra.mxu0 %v7071
      %v7085 = vpop.f32.mrf.mxu0
      %v7086 = vadd.f32 %v6953, %v7085
      %v7087 = vpop.f32.mrf.mxu0
      %v7088 = vadd.f32 %v6953, %v7087
      %7089 = vdwg.mxu0
      %7090 = vmatpush.bf16.msra.mxu0 0
      %7091 = vmatpush.bf16.msra.mxu0 0
      %7092 = vmatpush.bf16.msra.mxu0 0
      %7093 = vmatpush.bf16.msra.mxu0 %v7035
      %7094 = vmatpush.bf16.msra.mxu0 %v7016
      %7095 = vmatpush.bf16.msra.mxu0 %v7015
      %7096 = vmatpush.bf16.msra.mxu0 %v7014
      %7097 = vmatpush.bf16.msra.mxu0 %v7013
      %7098 = vmatmul.bf16.gmra.mxu0 %v7074
      %v7099 = vpop.f32.mrf.mxu0
      %v7100 = vadd.f32 %v7086, %v7099
      %v7101 = vpop.f32.mrf.mxu0
      %v7102 = vadd.f32 %v7088, %v7101
      %7103 = vdwg.mxu0
      %vm7104 = vcmp.ge.f32.partialorder %v7100, 0.0
      %vm7105 = vcmp.ge.f32.partialorder %v7102, 0.0
      %v7106 = vmul.f32 %v7100, 0.2
      %v7107 = vmul.f32 %v7102, 0.2
      %v7108 = vsel %vm7104, %v7100, %v7106
      %v7109 = vsel %vm7105, %v7102, %v7107
      %v7110 = vpack.c.bf16 %v6891, %v6890
      %v7111 = vpack.c.bf16 %v6923, %v6922
      %v7113 = vsel %vm7030, %v7111, 0
      %7115 = vmatpush.bf16.msra.mxu0 %v7012
      %7116 = vmatpush.bf16.msra.mxu0 %v7011
      %7117 = vmatpush.bf16.msra.mxu0 %v7010
      %7118 = vmatpush.bf16.msra.mxu0 %v7009
      %7119 = vmatpush.bf16.msra.mxu0 %v7008
      %7120 = vmatpush.bf16.msra.mxu0 %v7007
      %7121 = vmatpush.bf16.msra.mxu0 %v7006
      %7122 = vmatpush.bf16.msra.mxu0 %v7005
      %7123 = vmatmul.bf16.gmra.mxu0 %v7110
      %v7124 = vpop.f32.mrf.mxu0
      %v7125 = vadd.f32 %v6953, %v7124
      %v7126 = vpop.f32.mrf.mxu0
      %v7127 = vadd.f32 %v6953, %v7126
      %7128 = vdwg.mxu0
      %7129 = vmatpush.bf16.msra.mxu0 0
      %7130 = vmatpush.bf16.msra.mxu0 0
      %7131 = vmatpush.bf16.msra.mxu0 0
      %7132 = vmatpush.bf16.msra.mxu0 %v7035
      %7133 = vmatpush.bf16.msra.mxu0 %v7016
      %7134 = vmatpush.bf16.msra.mxu0 %v7015
      %7135 = vmatpush.bf16.msra.mxu0 %v7014
      %7136 = vmatpush.bf16.msra.mxu0 %v7013
      %7137 = vmatmul.bf16.gmra.mxu0 %v7113
      %v7138 = vpop.f32.mrf.mxu0
      %v7139 = vadd.f32 %v7125, %v7138
      %v7140 = vpop.f32.mrf.mxu0
      %v7141 = vadd.f32 %v7127, %v7140
      %7142 = vdwg.mxu0
      %vm7143 = vcmp.ge.f32.partialorder %v7139, 0.0
      %vm7144 = vcmp.ge.f32.partialorder %v7141, 0.0
      %v7145 = vmul.f32 %v7139, 0.2
      %v7146 = vmul.f32 %v7141, 0.2
      %v7147 = vsel %vm7143, %v7139, %v7145
      %v7148 = vsel %vm7144, %v7141, %v7146
      %v7149 = vpack.c.bf16 %v6893, %v6892
      %v7150 = vpack.c.bf16 %v6925, %v6924
      %v7152 = vsel %vm7030, %v7150, 0
      %7154 = vmatpush.bf16.msra.mxu0 %v7012
      %7155 = vmatpush.bf16.msra.mxu0 %v7011
      %7156 = vmatpush.bf16.msra.mxu0 %v7010
      %7157 = vmatpush.bf16.msra.mxu0 %v7009
      %7158 = vmatpush.bf16.msra.mxu0 %v7008
      %7159 = vmatpush.bf16.msra.mxu0 %v7007
      %7160 = vmatpush.bf16.msra.mxu0 %v7006
      %7161 = vmatpush.bf16.msra.mxu0 %v7005
      %7162 = vmatmul.bf16.gmra.mxu0 %v7149
      %v7163 = vpop.f32.mrf.mxu0
      %v7164 = vadd.f32 %v6953, %v7163
      %v7165 = vpop.f32.mrf.mxu0
      %v7166 = vadd.f32 %v6953, %v7165
      %7167 = vdwg.mxu0
      %7168 = vmatpush.bf16.msra.mxu0 0
      %7169 = vmatpush.bf16.msra.mxu0 0
      %7170 = vmatpush.bf16.msra.mxu0 0
      %7171 = vmatpush.bf16.msra.mxu0 %v7035
      %7172 = vmatpush.bf16.msra.mxu0 %v7016
      %7173 = vmatpush.bf16.msra.mxu0 %v7015
      %7174 = vmatpush.bf16.msra.mxu0 %v7014
      %7175 = vmatpush.bf16.msra.mxu0 %v7013
      %7176 = vmatmul.bf16.gmra.mxu0 %v7152
      %v7177 = vpop.f32.mrf.mxu0
      %v7178 = vadd.f32 %v7164, %v7177
      %v7179 = vpop.f32.mrf.mxu0
      %v7180 = vadd.f32 %v7166, %v7179
      %7181 = vdwg.mxu0
      %vm7182 = vcmp.ge.f32.partialorder %v7178, 0.0
      %vm7183 = vcmp.ge.f32.partialorder %v7180, 0.0
      %v7184 = vmul.f32 %v7178, 0.2
      %v7185 = vmul.f32 %v7180, 0.2
      %v7186 = vsel %vm7182, %v7178, %v7184
      %v7187 = vsel %vm7183, %v7180, %v7185
      %v7188 = vpack.c.bf16 %v6895, %v6894
      %v7189 = vpack.c.bf16 %v6927, %v6926
      %v7191 = vsel %vm7030, %v7189, 0
      %7193 = vmatpush.bf16.msra.mxu0 %v7012
      %7194 = vmatpush.bf16.msra.mxu0 %v7011
      %7195 = vmatpush.bf16.msra.mxu0 %v7010
      %7196 = vmatpush.bf16.msra.mxu0 %v7009
      %7197 = vmatpush.bf16.msra.mxu0 %v7008
      %7198 = vmatpush.bf16.msra.mxu0 %v7007
      %7199 = vmatpush.bf16.msra.mxu0 %v7006
      %7200 = vmatpush.bf16.msra.mxu0 %v7005
      %7201 = vmatmul.bf16.gmra.mxu0 %v7188
      %v7202 = vpop.f32.mrf.mxu0
      %v7203 = vadd.f32 %v6953, %v7202
      %v7204 = vpop.f32.mrf.mxu0
      %v7205 = vadd.f32 %v6953, %v7204
      %7206 = vdwg.mxu0
      %7207 = vmatpush.bf16.msra.mxu0 0
      %7208 = vmatpush.bf16.msra.mxu0 0
      %7209 = vmatpush.bf16.msra.mxu0 0
      %7210 = vmatpush.bf16.msra.mxu0 %v7035
      %7211 = vmatpush.bf16.msra.mxu0 %v7016
      %7212 = vmatpush.bf16.msra.mxu0 %v7015
      %7213 = vmatpush.bf16.msra.mxu0 %v7014
      %7214 = vmatpush.bf16.msra.mxu0 %v7013
      %7215 = vmatmul.bf16.gmra.mxu0 %v7191
      %v7216 = vpop.f32.mrf.mxu0
      %v7217 = vadd.f32 %v7203, %v7216
      %v7218 = vpop.f32.mrf.mxu0
      %v7219 = vadd.f32 %v7205, %v7218
      %7220 = vdwg.mxu0
      %vm7221 = vcmp.ge.f32.partialorder %v7217, 0.0
      %vm7222 = vcmp.ge.f32.partialorder %v7219, 0.0
      %v7223 = vmul.f32 %v7217, 0.2
      %v7224 = vmul.f32 %v7219, 0.2
      %v7225 = vsel %vm7221, %v7217, %v7223
      %v7226 = vsel %vm7222, %v7219, %v7224
      %v7227 = vpack.c.bf16 %v6897, %v6896
      %v7228 = vpack.c.bf16 %v6929, %v6928
      %v7230 = vsel %vm7030, %v7228, 0
      %7232 = vmatpush.bf16.msra.mxu0 %v7012
      %7233 = vmatpush.bf16.msra.mxu0 %v7011
      %7234 = vmatpush.bf16.msra.mxu0 %v7010
      %7235 = vmatpush.bf16.msra.mxu0 %v7009
      %7236 = vmatpush.bf16.msra.mxu0 %v7008
      %7237 = vmatpush.bf16.msra.mxu0 %v7007
      %7238 = vmatpush.bf16.msra.mxu0 %v7006
      %7239 = vmatpush.bf16.msra.mxu0 %v7005
      %7240 = vmatmul.bf16.gmra.mxu0 %v7227
      %v7241 = vpop.f32.mrf.mxu0
      %v7242 = vadd.f32 %v6953, %v7241
      %v7243 = vpop.f32.mrf.mxu0
      %v7244 = vadd.f32 %v6953, %v7243
      %7245 = vdwg.mxu0
      %7246 = vmatpush.bf16.msra.mxu0 0
      %7247 = vmatpush.bf16.msra.mxu0 0
      %7248 = vmatpush.bf16.msra.mxu0 0
      %7249 = vmatpush.bf16.msra.mxu0 %v7035
      %7250 = vmatpush.bf16.msra.mxu0 %v7016
      %7251 = vmatpush.bf16.msra.mxu0 %v7015
      %7252 = vmatpush.bf16.msra.mxu0 %v7014
      %7253 = vmatpush.bf16.msra.mxu0 %v7013
      %7254 = vmatmul.bf16.gmra.mxu0 %v7230
      %v7255 = vpop.f32.mrf.mxu0
      %v7256 = vadd.f32 %v7242, %v7255
      %v7257 = vpop.f32.mrf.mxu0
      %v7258 = vadd.f32 %v7244, %v7257
      %7259 = vdwg.mxu0
      %vm7260 = vcmp.ge.f32.partialorder %v7256, 0.0
      %vm7261 = vcmp.ge.f32.partialorder %v7258, 0.0
      %v7262 = vmul.f32 %v7256, 0.2
      %v7263 = vmul.f32 %v7258, 0.2
      %v7264 = vsel %vm7260, %v7256, %v7262
      %v7265 = vsel %vm7261, %v7258, %v7263
      %v7266 = vpack.c.bf16 %v6899, %v6898
      %v7267 = vpack.c.bf16 %v6931, %v6930
      %v7269 = vsel %vm7030, %v7267, 0
      %7271 = vmatpush.bf16.msra.mxu0 %v7012
      %7272 = vmatpush.bf16.msra.mxu0 %v7011
      %7273 = vmatpush.bf16.msra.mxu0 %v7010
      %7274 = vmatpush.bf16.msra.mxu0 %v7009
      %7275 = vmatpush.bf16.msra.mxu0 %v7008
      %7276 = vmatpush.bf16.msra.mxu0 %v7007
      %7277 = vmatpush.bf16.msra.mxu0 %v7006
      %7278 = vmatpush.bf16.msra.mxu0 %v7005
      %7279 = vmatmul.bf16.gmra.mxu0 %v7266
      %v7280 = vpop.f32.mrf.mxu0
      %v7281 = vadd.f32 %v6953, %v7280
      %v7282 = vpop.f32.mrf.mxu0
      %v7283 = vadd.f32 %v6953, %v7282
      %7284 = vdwg.mxu0
      %7285 = vmatpush.bf16.msra.mxu0 0
      %7286 = vmatpush.bf16.msra.mxu0 0
      %7287 = vmatpush.bf16.msra.mxu0 0
      %7288 = vmatpush.bf16.msra.mxu0 %v7035
      %7289 = vmatpush.bf16.msra.mxu0 %v7016
      %7290 = vmatpush.bf16.msra.mxu0 %v7015
      %7291 = vmatpush.bf16.msra.mxu0 %v7014
      %7292 = vmatpush.bf16.msra.mxu0 %v7013
      %7293 = vmatmul.bf16.gmra.mxu0 %v7269
      %v7294 = vpop.f32.mrf.mxu0
      %v7295 = vadd.f32 %v7281, %v7294
      %v7296 = vpop.f32.mrf.mxu0
      %v7297 = vadd.f32 %v7283, %v7296
      %7298 = vdwg.mxu0
      %vm7299 = vcmp.ge.f32.partialorder %v7295, 0.0
      %vm7300 = vcmp.ge.f32.partialorder %v7297, 0.0
      %v7301 = vmul.f32 %v7295, 0.2
      %v7302 = vmul.f32 %v7297, 0.2
      %v7303 = vsel %vm7299, %v7295, %v7301
      %v7304 = vsel %vm7300, %v7297, %v7302
      %v7305 = vpack.c.bf16 %v6901, %v6900
      %v7306 = vpack.c.bf16 %v6933, %v6932
      %v7308 = vsel %vm7030, %v7306, 0
      %7310 = vmatpush.bf16.msra.mxu0 %v7012
      %7311 = vmatpush.bf16.msra.mxu0 %v7011
      %7312 = vmatpush.bf16.msra.mxu0 %v7010
      %7313 = vmatpush.bf16.msra.mxu0 %v7009
      %7314 = vmatpush.bf16.msra.mxu0 %v7008
      %7315 = vmatpush.bf16.msra.mxu0 %v7007
      %7316 = vmatpush.bf16.msra.mxu0 %v7006
      %7317 = vmatpush.bf16.msra.mxu0 %v7005
      %7318 = vmatmul.bf16.gmra.mxu0 %v7305
      %v7319 = vpop.f32.mrf.mxu0
      %v7320 = vadd.f32 %v6953, %v7319
      %v7321 = vpop.f32.mrf.mxu0
      %v7322 = vadd.f32 %v6953, %v7321
      %7323 = vdwg.mxu0
      %7324 = vmatpush.bf16.msra.mxu0 0
      %7325 = vmatpush.bf16.msra.mxu0 0
      %7326 = vmatpush.bf16.msra.mxu0 0
      %7327 = vmatpush.bf16.msra.mxu0 %v7035
      %7328 = vmatpush.bf16.msra.mxu0 %v7016
      %7329 = vmatpush.bf16.msra.mxu0 %v7015
      %7330 = vmatpush.bf16.msra.mxu0 %v7014
      %7331 = vmatpush.bf16.msra.mxu0 %v7013
      %7332 = vmatmul.bf16.gmra.mxu0 %v7308
      %v7333 = vpop.f32.mrf.mxu0
      %v7334 = vadd.f32 %v7320, %v7333
      %v7335 = vpop.f32.mrf.mxu0
      %v7336 = vadd.f32 %v7322, %v7335
      %7337 = vdwg.mxu0
      %vm7338 = vcmp.ge.f32.partialorder %v7334, 0.0
      %vm7339 = vcmp.ge.f32.partialorder %v7336, 0.0
      %v7340 = vmul.f32 %v7334, 0.2
      %v7341 = vmul.f32 %v7336, 0.2
      %v7342 = vsel %vm7338, %v7334, %v7340
      %v7343 = vsel %vm7339, %v7336, %v7341
      %v7344 = vpack.c.bf16 %v6903, %v6902
      %v7345 = vpack.c.bf16 %v6935, %v6934
      %v7347 = vsel %vm7030, %v7345, 0
      %7349 = vmatpush.bf16.msra.mxu0 %v7012
      %7350 = vmatpush.bf16.msra.mxu0 %v7011
      %7351 = vmatpush.bf16.msra.mxu0 %v7010
      %7352 = vmatpush.bf16.msra.mxu0 %v7009
      %7353 = vmatpush.bf16.msra.mxu0 %v7008
      %7354 = vmatpush.bf16.msra.mxu0 %v7007
      %7355 = vmatpush.bf16.msra.mxu0 %v7006
      %7356 = vmatpush.bf16.msra.mxu0 %v7005
      %7357 = vmatmul.bf16.gmra.mxu0 %v7344
      %v7358 = vpop.f32.mrf.mxu0
      %v7359 = vadd.f32 %v6953, %v7358
      %v7360 = vpop.f32.mrf.mxu0
      %v7361 = vadd.f32 %v6953, %v7360
      %7362 = vdwg.mxu0
      %7363 = vmatpush.bf16.msra.mxu0 0
      %7364 = vmatpush.bf16.msra.mxu0 0
      %7365 = vmatpush.bf16.msra.mxu0 0
      %7366 = vmatpush.bf16.msra.mxu0 %v7035
      %7367 = vmatpush.bf16.msra.mxu0 %v7016
      %7368 = vmatpush.bf16.msra.mxu0 %v7015
      %7369 = vmatpush.bf16.msra.mxu0 %v7014
      %7370 = vmatpush.bf16.msra.mxu0 %v7013
      %7371 = vmatmul.bf16.gmra.mxu0 %v7347
      %v7372 = vpop.f32.mrf.mxu0
      %v7373 = vadd.f32 %v7359, %v7372
      %v7374 = vpop.f32.mrf.mxu0
      %v7375 = vadd.f32 %v7361, %v7374
      %7376 = vdwg.mxu0
      %vm7377 = vcmp.ge.f32.partialorder %v7373, 0.0
      %vm7378 = vcmp.ge.f32.partialorder %v7375, 0.0
      %v7379 = vmul.f32 %v7373, 0.2
      %v7380 = vmul.f32 %v7375, 0.2
      %v7381 = vsel %vm7377, %v7373, %v7379
      %v7382 = vsel %vm7378, %v7375, %v7380
      %v7383 = vpack.c.bf16 %v6905, %v6904
      %v7384 = vpack.c.bf16 %v6937, %v6936
      %v7386 = vsel %vm7030, %v7384, 0
      %7388 = vmatpush.bf16.msra.mxu0 %v7012
      %7389 = vmatpush.bf16.msra.mxu0 %v7011
      %7390 = vmatpush.bf16.msra.mxu0 %v7010
      %7391 = vmatpush.bf16.msra.mxu0 %v7009
      %7392 = vmatpush.bf16.msra.mxu0 %v7008
      %7393 = vmatpush.bf16.msra.mxu0 %v7007
      %7394 = vmatpush.bf16.msra.mxu0 %v7006
      %7395 = vmatpush.bf16.msra.mxu0 %v7005
      %7396 = vmatmul.bf16.gmra.mxu0 %v7383
      %v7397 = vpop.f32.mrf.mxu0
      %v7398 = vadd.f32 %v6953, %v7397
      %v7399 = vpop.f32.mrf.mxu0
      %v7400 = vadd.f32 %v6953, %v7399
      %7401 = vdwg.mxu0
      %7402 = vmatpush.bf16.msra.mxu0 0
      %7403 = vmatpush.bf16.msra.mxu0 0
      %7404 = vmatpush.bf16.msra.mxu0 0
      %7405 = vmatpush.bf16.msra.mxu0 %v7035
      %7406 = vmatpush.bf16.msra.mxu0 %v7016
      %7407 = vmatpush.bf16.msra.mxu0 %v7015
      %7408 = vmatpush.bf16.msra.mxu0 %v7014
      %7409 = vmatpush.bf16.msra.mxu0 %v7013
      %7410 = vmatmul.bf16.gmra.mxu0 %v7386
      %v7411 = vpop.f32.mrf.mxu0
      %v7412 = vadd.f32 %v7398, %v7411
      %v7413 = vpop.f32.mrf.mxu0
      %v7414 = vadd.f32 %v7400, %v7413
      %7415 = vdwg.mxu0
      %vm7416 = vcmp.ge.f32.partialorder %v7412, 0.0
      %vm7417 = vcmp.ge.f32.partialorder %v7414, 0.0
      %v7418 = vmul.f32 %v7412, 0.2
      %v7419 = vmul.f32 %v7414, 0.2
      %v7420 = vsel %vm7416, %v7412, %v7418
      %v7421 = vsel %vm7417, %v7414, %v7419
      %v7422 = vpack.c.bf16 %v6907, %v6906
      %v7423 = vpack.c.bf16 %v6939, %v6938
      %v7425 = vsel %vm7030, %v7423, 0
      %7427 = vmatpush.bf16.msra.mxu0 %v7012
      %7428 = vmatpush.bf16.msra.mxu0 %v7011
      %7429 = vmatpush.bf16.msra.mxu0 %v7010
      %7430 = vmatpush.bf16.msra.mxu0 %v7009
      %7431 = vmatpush.bf16.msra.mxu0 %v7008
      %7432 = vmatpush.bf16.msra.mxu0 %v7007
      %7433 = vmatpush.bf16.msra.mxu0 %v7006
      %7434 = vmatpush.bf16.msra.mxu0 %v7005
      %7435 = vmatmul.bf16.gmra.mxu0 %v7422
      %v7436 = vpop.f32.mrf.mxu0
      %v7437 = vadd.f32 %v6953, %v7436
      %v7438 = vpop.f32.mrf.mxu0
      %v7439 = vadd.f32 %v6953, %v7438
      %7440 = vdwg.mxu0
      %7441 = vmatpush.bf16.msra.mxu0 0
      %7442 = vmatpush.bf16.msra.mxu0 0
      %7443 = vmatpush.bf16.msra.mxu0 0
      %7444 = vmatpush.bf16.msra.mxu0 %v7035
      %7445 = vmatpush.bf16.msra.mxu0 %v7016
      %7446 = vmatpush.bf16.msra.mxu0 %v7015
      %7447 = vmatpush.bf16.msra.mxu0 %v7014
      %7448 = vmatpush.bf16.msra.mxu0 %v7013
      %7449 = vmatmul.bf16.gmra.mxu0 %v7425
      %v7450 = vpop.f32.mrf.mxu0
      %v7451 = vadd.f32 %v7437, %v7450
      %v7452 = vpop.f32.mrf.mxu0
      %v7453 = vadd.f32 %v7439, %v7452
      %7454 = vdwg.mxu0
      %vm7455 = vcmp.ge.f32.partialorder %v7451, 0.0
      %vm7456 = vcmp.ge.f32.partialorder %v7453, 0.0
      %v7457 = vmul.f32 %v7451, 0.2
      %v7458 = vmul.f32 %v7453, 0.2
      %v7459 = vsel %vm7455, %v7451, %v7457
      %v7460 = vsel %vm7456, %v7453, %v7458
      %v7461 = vpack.c.bf16 %v6909, %v6908
      %v7462 = vpack.c.bf16 %v6941, %v6940
      %v7464 = vsel %vm7030, %v7462, 0
      %7466 = vmatpush.bf16.msra.mxu0 %v7012
      %7467 = vmatpush.bf16.msra.mxu0 %v7011
      %7468 = vmatpush.bf16.msra.mxu0 %v7010
      %7469 = vmatpush.bf16.msra.mxu0 %v7009
      %7470 = vmatpush.bf16.msra.mxu0 %v7008
      %7471 = vmatpush.bf16.msra.mxu0 %v7007
      %7472 = vmatpush.bf16.msra.mxu0 %v7006
      %7473 = vmatpush.bf16.msra.mxu0 %v7005
      %7474 = vmatmul.bf16.gmra.mxu0 %v7461
      %v7475 = vpop.f32.mrf.mxu0
      %v7476 = vadd.f32 %v6953, %v7475
      %v7477 = vpop.f32.mrf.mxu0
      %v7478 = vadd.f32 %v6953, %v7477
      %7479 = vdwg.mxu0
      %7480 = vmatpush.bf16.msra.mxu0 0
      %7481 = vmatpush.bf16.msra.mxu0 0
      %7482 = vmatpush.bf16.msra.mxu0 0
      %7483 = vmatpush.bf16.msra.mxu0 %v7035
      %7484 = vmatpush.bf16.msra.mxu0 %v7016
      %7485 = vmatpush.bf16.msra.mxu0 %v7015
      %7486 = vmatpush.bf16.msra.mxu0 %v7014
      %7487 = vmatpush.bf16.msra.mxu0 %v7013
      %7488 = vmatmul.bf16.gmra.mxu0 %v7464
      %v7489 = vpop.f32.mrf.mxu0
      %v7490 = vadd.f32 %v7476, %v7489
      %v7491 = vpop.f32.mrf.mxu0
      %v7492 = vadd.f32 %v7478, %v7491
      %7493 = vdwg.mxu0
      %vm7494 = vcmp.ge.f32.partialorder %v7490, 0.0
      %vm7495 = vcmp.ge.f32.partialorder %v7492, 0.0
      %v7496 = vmul.f32 %v7490, 0.2
      %v7497 = vmul.f32 %v7492, 0.2
      %v7498 = vsel %vm7494, %v7490, %v7496
      %v7499 = vsel %vm7495, %v7492, %v7497
      %v7500 = vpack.c.bf16 %v6911, %v6910
      %v7501 = vpack.c.bf16 %v6943, %v6942
      %v7503 = vsel %vm7030, %v7501, 0
      %7505 = vmatpush.bf16.msra.mxu0 %v7012
      %7506 = vmatpush.bf16.msra.mxu0 %v7011
      %7507 = vmatpush.bf16.msra.mxu0 %v7010
      %7508 = vmatpush.bf16.msra.mxu0 %v7009
      %7509 = vmatpush.bf16.msra.mxu0 %v7008
      %7510 = vmatpush.bf16.msra.mxu0 %v7007
      %7511 = vmatpush.bf16.msra.mxu0 %v7006
      %7512 = vmatpush.bf16.msra.mxu0 %v7005
      %7513 = vmatmul.bf16.gmra.mxu0 %v7500
      %v7514 = vpop.f32.mrf.mxu0
      %v7515 = vadd.f32 %v6953, %v7514
      %v7516 = vpop.f32.mrf.mxu0
      %v7517 = vadd.f32 %v6953, %v7516
      %7518 = vdwg.mxu0
      %7519 = vmatpush.bf16.msra.mxu0 0
      %7520 = vmatpush.bf16.msra.mxu0 0
      %7521 = vmatpush.bf16.msra.mxu0 0
      %7522 = vmatpush.bf16.msra.mxu0 %v7035
      %7523 = vmatpush.bf16.msra.mxu0 %v7016
      %7524 = vmatpush.bf16.msra.mxu0 %v7015
      %7525 = vmatpush.bf16.msra.mxu0 %v7014
      %7526 = vmatpush.bf16.msra.mxu0 %v7013
      %7527 = vmatmul.bf16.gmra.mxu0 %v7503
      %v7528 = vpop.f32.mrf.mxu0
      %v7529 = vadd.f32 %v7515, %v7528
      %v7530 = vpop.f32.mrf.mxu0
      %v7531 = vadd.f32 %v7517, %v7530
      %7532 = vdwg.mxu0
      %vm7533 = vcmp.ge.f32.partialorder %v7529, 0.0
      %vm7534 = vcmp.ge.f32.partialorder %v7531, 0.0
      %v7535 = vmul.f32 %v7529, 0.2
      %v7536 = vmul.f32 %v7531, 0.2
      %v7537 = vsel %vm7533, %v7529, %v7535
      %v7538 = vsel %vm7534, %v7531, %v7536
      %v7539 = vpack.c.bf16 %v6913, %v6912
      %v7540 = vpack.c.bf16 %v6945, %v6944
      %v7542 = vsel %vm7030, %v7540, 0
      %7544 = vmatpush.bf16.msra.mxu0 %v7012
      %7545 = vmatpush.bf16.msra.mxu0 %v7011
      %7546 = vmatpush.bf16.msra.mxu0 %v7010
      %7547 = vmatpush.bf16.msra.mxu0 %v7009
      %7548 = vmatpush.bf16.msra.mxu0 %v7008
      %7549 = vmatpush.bf16.msra.mxu0 %v7007
      %7550 = vmatpush.bf16.msra.mxu0 %v7006
      %7551 = vmatpush.bf16.msra.mxu0 %v7005
      %7552 = vmatmul.bf16.gmra.mxu0 %v7539
      %v7553 = vpop.f32.mrf.mxu0
      %v7554 = vadd.f32 %v6953, %v7553
      %v7555 = vpop.f32.mrf.mxu0
      %v7556 = vadd.f32 %v6953, %v7555
      %7557 = vdwg.mxu0
      %7558 = vmatpush.bf16.msra.mxu0 0
      %7559 = vmatpush.bf16.msra.mxu0 0
      %7560 = vmatpush.bf16.msra.mxu0 0
      %7561 = vmatpush.bf16.msra.mxu0 %v7035
      %7562 = vmatpush.bf16.msra.mxu0 %v7016
      %7563 = vmatpush.bf16.msra.mxu0 %v7015
      %7564 = vmatpush.bf16.msra.mxu0 %v7014
      %7565 = vmatpush.bf16.msra.mxu0 %v7013
      %7566 = vmatmul.bf16.gmra.mxu0 %v7542
      %v7567 = vpop.f32.mrf.mxu0
      %v7568 = vadd.f32 %v7554, %v7567
      %v7569 = vpop.f32.mrf.mxu0
      %v7570 = vadd.f32 %v7556, %v7569
      %7571 = vdwg.mxu0
      %vm7572 = vcmp.ge.f32.partialorder %v7568, 0.0
      %vm7573 = vcmp.ge.f32.partialorder %v7570, 0.0
      %v7574 = vmul.f32 %v7568, 0.2
      %v7575 = vmul.f32 %v7570, 0.2
      %v7576 = vsel %vm7572, %v7568, %v7574
      %v7577 = vsel %vm7573, %v7570, %v7575
      %v7578 = vpack.c.bf16 %v6915, %v6914
      %v7579 = vpack.c.bf16 %v6947, %v6946
      %v7581 = vsel %vm7030, %v7579, 0
      %7583 = vmatpush.bf16.msra.mxu0 %v7012
      %7584 = vmatpush.bf16.msra.mxu0 %v7011
      %7585 = vmatpush.bf16.msra.mxu0 %v7010
      %7586 = vmatpush.bf16.msra.mxu0 %v7009
      %7587 = vmatpush.bf16.msra.mxu0 %v7008
      %7588 = vmatpush.bf16.msra.mxu0 %v7007
      %7589 = vmatpush.bf16.msra.mxu0 %v7006
      %7590 = vmatpush.bf16.msra.mxu0 %v7005
      %7591 = vmatmul.bf16.gmra.mxu0 %v7578
      %v7592 = vpop.f32.mrf.mxu0
      %v7593 = vadd.f32 %v6953, %v7592
      %v7594 = vpop.f32.mrf.mxu0
      %v7595 = vadd.f32 %v6953, %v7594
      %7596 = vdwg.mxu0
      %7597 = vmatpush.bf16.msra.mxu0 0
      %7598 = vmatpush.bf16.msra.mxu0 0
      %7599 = vmatpush.bf16.msra.mxu0 0
      %7600 = vmatpush.bf16.msra.mxu0 %v7035
      %7601 = vmatpush.bf16.msra.mxu0 %v7016
      %7602 = vmatpush.bf16.msra.mxu0 %v7015
      %7603 = vmatpush.bf16.msra.mxu0 %v7014
      %7604 = vmatpush.bf16.msra.mxu0 %v7013
      %7605 = vmatmul.bf16.gmra.mxu0 %v7581
      %v7606 = vpop.f32.mrf.mxu0
      %v7607 = vadd.f32 %v7593, %v7606
      %v7608 = vpop.f32.mrf.mxu0
      %v7609 = vadd.f32 %v7595, %v7608
      %7610 = vdwg.mxu0
      %vm7611 = vcmp.ge.f32.partialorder %v7607, 0.0
      %vm7612 = vcmp.ge.f32.partialorder %v7609, 0.0
      %v7613 = vmul.f32 %v7607, 0.2
      %v7614 = vmul.f32 %v7609, 0.2
      %v7615 = vsel %vm7611, %v7607, %v7613
      %v7616 = vsel %vm7612, %v7609, %v7614
      %v7617 = vpack.c.bf16 %v6917, %v6916
      %v7618 = vpack.c.bf16 %v6949, %v6948
      %v7620 = vsel %vm7030, %v7618, 0
      %7622 = vmatpush.bf16.msra.mxu0 %v7012
      %7623 = vmatpush.bf16.msra.mxu0 %v7011
      %7624 = vmatpush.bf16.msra.mxu0 %v7010
      %7625 = vmatpush.bf16.msra.mxu0 %v7009
      %7626 = vmatpush.bf16.msra.mxu0 %v7008
      %7627 = vmatpush.bf16.msra.mxu0 %v7007
      %7628 = vmatpush.bf16.msra.mxu0 %v7006
      %7629 = vmatpush.bf16.msra.mxu0 %v7005
      %7630 = vmatmul.bf16.gmra.mxu0 %v7617
      %v7631 = vpop.f32.mrf.mxu0
      %v7632 = vadd.f32 %v6953, %v7631
      %v7633 = vpop.f32.mrf.mxu0
      %v7634 = vadd.f32 %v6953, %v7633
      %7635 = vdwg.mxu0
      %7636 = vmatpush.bf16.msra.mxu0 0
      %7637 = vmatpush.bf16.msra.mxu0 0
      %7638 = vmatpush.bf16.msra.mxu0 0
      %7639 = vmatpush.bf16.msra.mxu0 %v7035
      %7640 = vmatpush.bf16.msra.mxu0 %v7016
      %7641 = vmatpush.bf16.msra.mxu0 %v7015
      %7642 = vmatpush.bf16.msra.mxu0 %v7014
      %7643 = vmatpush.bf16.msra.mxu0 %v7013
      %7644 = vmatmul.bf16.gmra.mxu0 %v7620
      %v7645 = vpop.f32.mrf.mxu0
      %v7646 = vadd.f32 %v7632, %v7645
      %v7647 = vpop.f32.mrf.mxu0
      %v7648 = vadd.f32 %v7634, %v7647
      %7649 = vdwg.mxu0
      %vm7650 = vcmp.ge.f32.partialorder %v7646, 0.0
      %vm7651 = vcmp.ge.f32.partialorder %v7648, 0.0
      %v7652 = vmul.f32 %v7646, 0.2
      %v7653 = vmul.f32 %v7648, 0.2
      %v7654 = vsel %vm7650, %v7646, %v7652
      %v7655 = vsel %vm7651, %v7648, %v7653
      %v7656 = vpack.c.bf16 %v7069, %v7069
      %v7657 = vpack.c.bf16 %v7070, %v7070
      %v7658 = vpack.c.bf16 %v7108, %v7108
      %v7659 = vpack.c.bf16 %v7109, %v7109
      %v7660 = vpack.c.bf16 %v7147, %v7147
      %v7661 = vpack.c.bf16 %v7148, %v7148
      %v7662 = vpack.c.bf16 %v7186, %v7186
      %v7663 = vpack.c.bf16 %v7187, %v7187
      %v7664 = vpack.c.bf16 %v7225, %v7225
      %v7665 = vpack.c.bf16 %v7226, %v7226
      %v7666 = vpack.c.bf16 %v7264, %v7264
      %v7667 = vpack.c.bf16 %v7265, %v7265
      %v7668 = vpack.c.bf16 %v7303, %v7303
      %v7669 = vpack.c.bf16 %v7304, %v7304
      %v7670 = vpack.c.bf16 %v7342, %v7342
      %v7671 = vpack.c.bf16 %v7343, %v7343
      %v7672 = vpack.c.bf16 %v7381, %v7381
      %v7673 = vpack.c.bf16 %v7382, %v7382
      %v7674 = vpack.c.bf16 %v7420, %v7420
      %v7675 = vpack.c.bf16 %v7421, %v7421
      %v7676 = vpack.c.bf16 %v7459, %v7459
      %v7677 = vpack.c.bf16 %v7460, %v7460
      %v7678 = vpack.c.bf16 %v7498, %v7498
      %v7679 = vpack.c.bf16 %v7499, %v7499
      %v7680 = vpack.c.bf16 %v7537, %v7537
      %v7681 = vpack.c.bf16 %v7538, %v7538
      %v7682 = vpack.c.bf16 %v7576, %v7576
      %v7683 = vpack.c.bf16 %v7577, %v7577
      %v7684 = vpack.c.bf16 %v7615, %v7615
      %v7685 = vpack.c.bf16 %v7616, %v7616
      %v7686 = vpack.c.bf16 %v7654, %v7654
      %v7687 = vpack.c.bf16 %v7655, %v7655
      %vm7688 = vcmask 60416
      %7689 = vst.msk [vmem:[%s170] sm:$0xf] %vm7688, %v7656
      %7690 = vst.msk [vmem:[%s170 + $0x4] sm:$0xf] %vm7688, %v7657
      %7691 = vst.msk [vmem:[%s170 + $0x8] sm:$0xf] %vm7688, %v7658
      %7692 = vst.msk [vmem:[%s170 + $0xc] sm:$0xf] %vm7688, %v7659
      %7693 = vst.msk [vmem:[%s170 + $0x10] sm:$0xf] %vm7688, %v7660
      %7694 = vst.msk [vmem:[%s170 + $0x14] sm:$0xf] %vm7688, %v7661
      %7695 = vst.msk [vmem:[%s170 + $0x18] sm:$0xf] %vm7688, %v7662
      %7696 = vst.msk [vmem:[%s170 + $0x1c] sm:$0xf] %vm7688, %v7663
      %7697 = vst.msk [vmem:[%s170 + $0x20] sm:$0xf] %vm7688, %v7664
      %7698 = vst.msk [vmem:[%s170 + $0x24] sm:$0xf] %vm7688, %v7665
      %7699 = vst.msk [vmem:[%s170 + $0x28] sm:$0xf] %vm7688, %v7666
      %7700 = vst.msk [vmem:[%s170 + $0x2c] sm:$0xf] %vm7688, %v7667
      %7701 = vst.msk [vmem:[%s170 + $0x30] sm:$0xf] %vm7688, %v7668
      %7702 = vst.msk [vmem:[%s170 + $0x34] sm:$0xf] %vm7688, %v7669
      %7703 = vst.msk [vmem:[%s170 + $0x38] sm:$0xf] %vm7688, %v7670
      %7704 = vst.msk [vmem:[%s170 + $0x3c] sm:$0xf] %vm7688, %v7671
      %7705 = vst.msk [vmem:[%s170 + $0x40] sm:$0xf] %vm7688, %v7672
      %7706 = vst.msk [vmem:[%s170 + $0x44] sm:$0xf] %vm7688, %v7673
      %7707 = vst.msk [vmem:[%s170 + $0x48] sm:$0xf] %vm7688, %v7674
      %7708 = vst.msk [vmem:[%s170 + $0x4c] sm:$0xf] %vm7688, %v7675
      %7709 = vst.msk [vmem:[%s170 + $0x50] sm:$0xf] %vm7688, %v7676
      %7710 = vst.msk [vmem:[%s170 + $0x54] sm:$0xf] %vm7688, %v7677
      %7711 = vst.msk [vmem:[%s170 + $0x58] sm:$0xf] %vm7688, %v7678
      %7712 = vst.msk [vmem:[%s170 + $0x5c] sm:$0xf] %vm7688, %v7679
      %7713 = vst.msk [vmem:[%s170 + $0x60] sm:$0xf] %vm7688, %v7680
      %7714 = vst.msk [vmem:[%s170 + $0x64] sm:$0xf] %vm7688, %v7681
      %7715 = vst.msk [vmem:[%s170 + $0x68] sm:$0xf] %vm7688, %v7682
      %7716 = vst.msk [vmem:[%s170 + $0x6c] sm:$0xf] %vm7688, %v7683
      %7717 = vst.msk [vmem:[%s170 + $0x70] sm:$0xf] %vm7688, %v7684
      %7718 = vst.msk [vmem:[%s170 + $0x74] sm:$0xf] %vm7688, %v7685
      %7719 = vst.msk [vmem:[%s170 + $0x78] sm:$0xf] %vm7688, %v7686
      %7720 = vst.msk [vmem:[%s170 + $0x7c] sm:$0xf] %vm7688, %v7687
      %p7721 = scmp.lt.s32.totalorder %s14, 1
      %s7722 = scalar_select %p7721, %s14, 1
      %s7723 = smul.addr %s7722, 32
      %s7724 = smul.addr %s7723, 4
      %s7725 = scalar_lea.vmem %s3, %s7724
      // Predicated region
      $region33: #{patch_discriminator_forward.3} parent=31 // pred_check
        %p7726 = pneg %p100
      $region34: #{patch_discriminator_forward.3} parent=31 // pred_check_branch
        %7728 = sbr.rel (%p7726) target = $region36
      $region35: #{patch_discriminator_forward.3} parent=31 // pred_region
        _
      $region36: #{patch_discriminator_forward.3} parent=31 // pred_fallthru
        _
    $region32: #{patch_discriminator_forward.3} parent=5 // pred_fallthru
      _
    %p7729 = scmp.le.s32.totalorder 2, %s9
    // Predicated region
    $region37: #{patch_discriminator_forward.3} parent=5 // pred_check
      %p7730 = pneg %p7729
    $region38: #{patch_discriminator_forward.3} parent=5 // pred_check_branch
      %7732 = sbr.rel (%p7730) target = $region40
    $region39: #{patch_discriminator_forward.3} parent=5 // pred_region
      %s7733 = ssub.s32 %s9, 2
      // Predicated region
      $region41: #{patch_discriminator_forward.3} parent=39 // pred_check
        %p7734 = pneg %p106
      $region42: #{patch_discriminator_forward.3} parent=39 // pred_check_branch
        %7736 = sbr.rel (%p7734) target = $region44
      $region43: #{patch_discriminator_forward.3} parent=39 // pred_region
        %p7737 = scmp.lt.s32.totalorder %s15, 1
        %s7738 = scalar_select %p7737, %s15, 1
        %s7739 = smul.addr %s7738, 32
        %s7740 = smul.addr %s7739, 4
        %s7741 = scalar_lea.vmem %s3, %s7740
      $region44: #{patch_discriminator_forward.3} parent=39 // pred_fallthru
        _
    $region40: #{patch_discriminator_forward.3} parent=5 // pred_fallthru
      _
  $region6: #{patch_discriminator_forward.3} parent=0 // loop_footer
    %s13 = sadd.s32 1, %s9
  $region7: #{patch_discriminator_forward.3} parent=0 // loop_footer_branch
    %8 = sbr.rel target = $region3
  $region8: #{patch_discriminator_forward.3} parent=0 // loop_exit
    _

</llo_original>
